<compile_context>
chip_gen: v6e
topology: v6e:2x2x1
jax: 0.10.0
libtpu: 0.0.40
codegen_flags: <defaults>
</compile_context>

<pallas_src>
import functools

import numpy as np
import jax
import jax.numpy as jnp
from jax.experimental import pallas as pl
from jax.experimental.pallas import tpu as pltpu

LN_EPS = 1e-5                                # torch nn.LayerNorm default eps

H1, W1, C1 = 8, 100, 16                      # stage-1 spatial, conv1 out-channels
H2, W2, C2 = 4, 50, 32                       # stage-2 spatial, conv2 out-channels
WP1, SP1 = W1 + 2, (H1 + 2) * (W1 + 2)       # 102, 1020 : padded row length / slab size
WP2, SP2 = W2 + 2, (H2 + 2) * (W2 + 2)       # 52, 312
M1, M2 = WP1 + 1, WP2 + 1                    # conv-window margins (103 / 53)
XPAD_W = SP1 + 2 * M1                        # 1226
A1P_W = SP2 + 2 * M2                         # 418
PH1, PW1 = H1 // 2, W1 // 2                  # 4, 50   pool-1 output rows / cols
PH2, PW2 = H2 // 2, W2 // 2                  # 2, 25   pool-2 output rows / cols
CPAD = 128                                   # lane-aligned per-channel chunk for the FC
NF, NF_PAD, NCLS = C2 * PH2 * PW2, C2 * CPAD, 39     # 1600, 4096, 39
MAX_BBLK = 8                                 # samples fused per grid step


# ------------------------------- fused kernel --------------------------------
def _simple_cnn4_kernel(bblk, x_ref, w1_ref, b1_ref, ln1_ref, g1_ref,
                        w2_ref, b2_ref, ln2_ref, g2_ref, wfc_ref, bfc_ref,
                        out_ref,
                        xpad, yn1, seg1, pooled1, a1p, cols2, y2s, yn2, a2, flat):
    f32, bf16 = jnp.float32, jnp.bfloat16

    # one-time (per block) zero init: padding rings + FC-input pad lanes.
    # interiors are fully overwritten every sample, so no per-sample re-zeroing.
    xpad[...] = jnp.zeros_like(xpad)
    a1p[...] = jnp.zeros_like(a1p)
    flat[...] = jnp.zeros_like(flat)

    msk1, gam1, bet1 = ln1_ref[0:1, :], ln1_ref[1:2, :], ln1_ref[2:3, :]
    msk2, gam2, bet2 = ln2_ref[0:1, :], ln2_ref[1:2, :], ln2_ref[2:3, :]

    # ============ stage 1 (per sample): conv1 + ReLU + LN1 + pool-1 fold ============
    for b in range(bblk):
        # fill the zero-padded input slab for sample b (ring stays zero)
        for h in range(H1):
            xpad[:, pl.ds(M1 + (h + 1) * WP1 + 1, W1)] = x_ref[b, 0, h:h + 1, :]

        # conv1 (1->16, 3x3, pad=1): K=9 is kept off the MXU -> 9 rank-1 VPU FMAs
        y1 = jnp.zeros((C1, SP1), f32)
        for t in range(9):
            di, dj = t // 3 - 1, t % 3 - 1
            win = xpad[:, pl.ds(M1 + di * WP1 + dj, SP1)]         # [1, 1020]
            y1 = y1 + w1_ref[:, t:t + 1] * win
        y1 = jnp.maximum(y1 + b1_ref[...], 0.0)                   # bias + ReLU

        # LayerNorm([8,100]) over the 800 valid lanes (mask zeroes the padded ring)
        mean1 = jnp.sum(y1 * msk1, axis=1, keepdims=True) * (1.0 / (H1 * W1))
        cen1 = (y1 - mean1) * msk1
        var1 = jnp.sum(cen1 * cen1, axis=1, keepdims=True) * (1.0 / (H1 * W1))
        yn1[...] = cen1 * jax.lax.rsqrt(var1 + LN_EPS) * gam1 + bet1   # ring -> 0

        # 2x2/2 max-pool: fold each output row (max of 4 shifted reads) into the
        # bf16 segment buffer; the stride-2 column select is one small gather matmul.
        for p in range(PH1):
            r0, r1 = (2 * p + 1) * WP1, (2 * p + 2) * WP1
            seg = jnp.maximum(
                jnp.maximum(yn1[:, pl.ds(r0, WP1)], yn1[:, pl.ds(r0 + 1, WP1)]),
                jnp.maximum(yn1[:, pl.ds(r1, WP1)], yn1[:, pl.ds(r1 + 1, WP1)]))
            seg1[pl.ds((b * PH1 + p) * C1, C1), :] = seg.astype(bf16)

    # ONE batched 0/1 gather matmul for pool-1 over the whole block
    # [bblk*4*16, 102] x [102, 50]  (bf16 operands, f32 accumulate)
    pooled1[...] = jnp.dot(seg1[...], g1_ref[...],
                           preferred_element_type=f32).astype(bf16)

    # ============ stage 2 input assembly (per sample): scatter + im2col ============
    for b in range(bblk):
        for p in range(PH1):                                      # pooled rows -> padded slab
            a1p[:, pl.ds(M2 + (p + 1) * WP2 + 1, W2)] = \
                pooled1[pl.ds((b * PH1 + p) * C1, C1), :]
        for t in range(9):                                        # in-kernel im2col (bf16)
            di, dj = t // 3 - 1, t % 3 - 1
            cols2[pl.ds(t * C1, C1), pl.ds(b * SP2, SP2)] = \
                a1p[:, pl.ds(M2 + di * WP2 + dj, SP2)]

    # conv2 (16->32, 3x3, pad=1): ONE bf16 MXU matmul for the whole block
    y2s[...] = jnp.dot(w2_ref[...], cols2[...], preferred_element_type=f32)

    # ============ stage 2 post (per sample): ReLU + LN2 + pool-2 + flatten ============
    for b in range(bblk):
        y2 = jnp.maximum(y2s[:, pl.ds(b * SP2, SP2)] + b2_ref[...], 0.0)
        mean2 = jnp.sum(y2 * msk2, axis=1, keepdims=True) * (1.0 / (H2 * W2))
        cen2 = (y2 - mean2) * msk2
        var2 = jnp.sum(cen2 * cen2, axis=1, keepdims=True) * (1.0 / (H2 * W2))
        yn2[...] = cen2 * jax.lax.rsqrt(var2 + LN_EPS) * gam2 + bet2

        for p in range(PH2):                                      # pool-2: fold + tiny gather
            r0, r1 = (2 * p + 1) * WP2, (2 * p + 2) * WP2
            seg = jnp.maximum(
                jnp.maximum(yn2[:, pl.ds(r0, WP2)], yn2[:, pl.ds(r0 + 1, WP2)]),
                jnp.maximum(yn2[:, pl.ds(r1, WP2)], yn2[:, pl.ds(r1 + 1, WP2)]))
            a2[:, pl.ds(p * PW2, PW2)] = jnp.dot(
                seg.astype(bf16), g2_ref[...], preferred_element_type=f32)

        # dropout(p=0.5) = identity in eval; flatten (torch .view) into 128-lane-aligned
        # per-channel slots (wfc rows are permuted / zero-padded to match).
        # TODO(synk): training-mode dropout (random mask + 1/(1-p) scaling) not implemented.
        for c in range(C2):
            flat[pl.ds(b, 1), pl.ds(c * CPAD, PH2 * PW2)] = a2[pl.ds(c, 1), :]

    # ---------------- fc: [bblk, 4096] x [4096, 39] bf16 MXU matmul ----------------
    out_ref[...] = (jnp.dot(flat[...].astype(bf16), wfc_ref[...],
                            preferred_element_type=f32) + bfc_ref[...])


# ------------------------- constant prep (hoisted) ----------------------------
def _pool_row_gather(wp, wo):
    """0/1 matrix selecting the stride-2 (odd) lanes of a folded padded row:
    [wp] fold row -> [wo] pooled row (pooled col q lives at local lane 2q+1)."""
    g = np.zeros((wp, wo), np.float32)
    for q in range(wo):
        g[2 * q + 1, q] = 1.0
    return g


def prepare_params(params):
    """One-time parameter prep: reshapes, transposes, bf16 casts, padded LN params,
    the small pool-row gather matrices and the lane-aligned FC weight."""
    f32 = jnp.float32

    def pad_flat(a):                          # [h, w] -> [1, (h+2)*(w+2)]
        return jnp.pad(a.astype(f32), ((1, 1), (1, 1))).reshape(1, -1)

    ln1 = jnp.concatenate([pad_flat(jnp.ones((H1, W1), f32)),     # valid-lane mask
                           pad_flat(params["g1"]),                # gamma
                           pad_flat(params["be1"])], axis=0)      # beta   -> [3, 1020]
    ln2 = jnp.concatenate([pad_flat(jnp.ones((H2, W2), f32)),
                           pad_flat(params["g2"]),
                           pad_flat(params["be2"])], axis=0)      # [3, 312]

    # fc weight [39, 1600] -> per-channel 50-wide chunks padded to 128 lanes -> [4096, 39]
    wfc = params["wfc"].reshape(NCLS, C2, PH2 * PW2)
    wfc = jnp.pad(wfc, ((0, 0), (0, 0), (0, CPAD - PH2 * PW2)))
    wfc = jnp.transpose(wfc, (1, 2, 0)).reshape(NF_PAD, NCLS).astype(jnp.bfloat16)

    return {
        "w1": params["w1"].reshape(C1, 9).astype(f32),
        "b1": params["b1"].reshape(C1, 1).astype(f32),
        "ln1": ln1,
        "g1": jnp.asarray(_pool_row_gather(WP1, PW1), jnp.bfloat16),   # [102, 50]
        "w2": jnp.transpose(params["w2"], (0, 2, 3, 1)).reshape(
            C2, 9 * C1).astype(jnp.bfloat16),                          # [32, 144]
        "b2": params["b2"].reshape(C2, 1).astype(f32),
        "ln2": ln2,
        "g2": jnp.asarray(_pool_row_gather(WP2, PW2), jnp.bfloat16),   # [52, 25]
        "wfc": wfc,                                                    # [4096, 39] bf16
        "bfc": params["bfc"].reshape(1, NCLS).astype(f32),
    }


# --------------------------------- wrapper ------------------------------------
@jax.jit
def simple_cnn4_forward(prep, x):
    B = x.shape[0]
    bblk = min(B, MAX_BBLK)                          # samples fused per grid step
    bpad = pl.cdiv(B, bblk) * bblk
    if bpad != B:
        x = jnp.pad(x, ((0, bpad - B), (0, 0), (0, 0), (0, 0)))
    n_seg1 = bblk * PH1 * C1

    out = pl.pallas_call(
        functools.partial(_simple_cnn4_kernel, bblk),
        out_shape=jax.ShapeDtypeStruct((bpad, NCLS), jnp.float32),
        grid_spec=pltpu.PrefetchScalarGridSpec(
            num_scalar_prefetch=0,
            grid=(bpad // bblk,),
            in_specs=[
                pl.BlockSpec((bblk, 1, H1, W1), lambda nb: (nb, 0, 0, 0)),  # x block
                pl.BlockSpec((C1, 9), lambda nb: (0, 0)),                   # conv1 weight
                pl.BlockSpec((C1, 1), lambda nb: (0, 0)),                   # conv1 bias
                pl.BlockSpec((3, SP1), lambda nb: (0, 0)),                  # LN1 mask/g/b
                pl.BlockSpec((WP1, PW1), lambda nb: (0, 0)),                # pool-1 row gather
                pl.BlockSpec((C2, 9 * C1), lambda nb: (0, 0)),              # conv2 weight (bf16)
                pl.BlockSpec((C2, 1), lambda nb: (0, 0)),                   # conv2 bias
                pl.BlockSpec((3, SP2), lambda nb: (0, 0)),                  # LN2 mask/g/b
                pl.BlockSpec((WP2, PW2), lambda nb: (0, 0)),                # pool-2 row gather
                pl.BlockSpec((NF_PAD, NCLS), lambda nb: (0, 0)),            # fc weight (bf16)
                pl.BlockSpec((1, NCLS), lambda nb: (0, 0)),                 # fc bias
            ],
            out_specs=pl.BlockSpec((bblk, NCLS), lambda nb: (nb, 0)),
            scratch_shapes=[
                pltpu.VMEM((1, XPAD_W), jnp.float32),            # padded conv1 input slab
                pltpu.VMEM((C1, SP1), jnp.float32),              # post-LN1 (per sample)
                pltpu.VMEM((n_seg1, WP1), jnp.bfloat16),         # pool-1 fold row segments
                pltpu.VMEM((n_seg1, PW1), jnp.bfloat16),         # pooled stage-1 rows
                pltpu.VMEM((C1, A1P_W), jnp.bfloat16),           # padded stage-2 slab
                pltpu.VMEM((9 * C1, bblk * SP2), jnp.bfloat16),  # conv2 im2col (whole block)
                pltpu.VMEM((C2, bblk * SP2), jnp.float32),       # conv2 raw out (whole block)
                pltpu.VMEM((C2, SP2), jnp.float32),              # post-LN2 (per sample)
                pltpu.VMEM((C2, PH2 * PW2), jnp.float32),        # pooled stage-2 (per sample)
                pltpu.VMEM((bblk, NF_PAD), jnp.float32),         # lane-aligned fc input
            ],
        ),
        compiler_params=pltpu.CompilerParams(
            dimension_semantics=("parallel",)),
    )(x, prep["w1"], prep["b1"], prep["ln1"], prep["g1"],
      prep["w2"], prep["b2"], prep["ln2"], prep["g2"],
      prep["wfc"], prep["bfc"])
    return out[:B]


# ---------------------------- params / reference ------------------------------
def init_params(key):
    ks = jax.random.split(key, 10)
    f32 = jnp.float32
    return {
        "w1": jax.random.normal(ks[0], (C1, 1, 3, 3), f32) * 0.2,
        "b1": jax.random.normal(ks[1], (C1,), f32) * 0.1,
        "g1": 1.0 + 0.1 * jax.random.normal(ks[2], (H1, W1), f32),
        "be1": 0.1 * jax.random.normal(ks[3], (H1, W1), f32),
        "w2": jax.random.normal(ks[4], (C2, C1, 3, 3), f32) * 0.05,
        "b2": jax.random.normal(ks[5], (C2,), f32) * 0.1,
        "g2": 1.0 + 0.1 * jax.random.normal(ks[6], (H2, W2), f32),
        "be2": 0.1 * jax.random.normal(ks[7], (H2, W2), f32),
        "wfc": jax.random.normal(ks[8], (NCLS, NF), f32) * 0.02,
        "bfc": jax.random.normal(ks[9], (NCLS,), f32) * 0.1,
    }


def reference_forward(params, x):
    """Pure-JAX f32 equivalent of the torch module (numerical cross-check)."""
    def conv(v, w, b):
        y = jax.lax.conv_general_dilated(
            v, w, window_strides=(1, 1), padding="SAME",
            dimension_numbers=("NCHW", "OIHW", "NCHW"))
        return y + b[None, :, None, None]

    def ln(v, g, b):
        mu = jnp.mean(v, axis=(-2, -1), keepdims=True)
        var = jnp.mean(jnp.square(v - mu), axis=(-2, -1), keepdims=True)
        return (v - mu) * jax.lax.rsqrt(var + LN_EPS) * g + b

    def pool(v):
        bb, cc, hh, ww = v.shape
        return jnp.max(v.reshape(bb, cc, hh // 2, 2, ww // 2, 2), axis=(3, 5))

    y = pool(ln(jnp.maximum(conv(x, params["w1"], params["b1"]), 0.0),
                params["g1"], params["be1"]))
    y = pool(ln(jnp.maximum(conv(y, params["w2"], params["b2"]), 0.0),
                params["g2"], params["be2"]))
    flat = y.reshape(y.shape[0], -1)          # matches torch .view(-1, 1600)
    return flat @ params["wfc"].T + params["bfc"]


if __name__ == "__main__":
    key = jax.random.PRNGKey(0)
    pkey, xkey = jax.random.split(key)
    params = init_params(pkey)
    prep = prepare_params(params)             # constants built exactly once (hoisted)
    x = jax.random.normal(xkey, (2, 1, H1, W1), jnp.float32)   # NCHW, as in torch

    out = simple_cnn4_forward(prep, x)
    jax.block_until_ready(out)
    assert out.shape == (2, NCLS) and out.dtype == jnp.float32

    ref = reference_forward(params, x)
    err = float(jnp.max(jnp.abs(out - ref)))
    # conv2 / pool gathers / fc run with bf16 operands on the MXU -> loose tolerance.
    assert err < 1e-1, f"kernel/reference mismatch: max abs err = {err}"
    print("KERNEL_OK")
</pallas_src>

<mosaic_0001>
module attributes {stable_mosaic.version = 11 : i64} {
  func.func @_simple_cnn4_kernel(%arg0: i32, %arg1: memref<2x1x8x100xf32, #tpu.memory_space<vmem>>, %arg2: memref<16x9xf32, #tpu.memory_space<vmem>>, %arg3: memref<16x1xf32, #tpu.memory_space<vmem>>, %arg4: memref<3x1020xf32, #tpu.memory_space<vmem>>, %arg5: memref<102x50xbf16, #tpu.memory_space<vmem>>, %arg6: memref<32x144xbf16, #tpu.memory_space<vmem>>, %arg7: memref<32x1xf32, #tpu.memory_space<vmem>>, %arg8: memref<3x312xf32, #tpu.memory_space<vmem>>, %arg9: memref<52x25xbf16, #tpu.memory_space<vmem>>, %arg10: memref<4096x39xbf16, #tpu.memory_space<vmem>>, %arg11: memref<1x39xf32, #tpu.memory_space<vmem>>, %arg12: memref<2x39xf32, #tpu.memory_space<vmem>>, %arg13: memref<1x1226xf32, #tpu.memory_space<vmem>>, %arg14: memref<16x1020xf32, #tpu.memory_space<vmem>>, %arg15: memref<128x102xbf16, #tpu.memory_space<vmem>>, %arg16: memref<128x50xbf16, #tpu.memory_space<vmem>>, %arg17: memref<16x418xbf16, #tpu.memory_space<vmem>>, %arg18: memref<144x624xbf16, #tpu.memory_space<vmem>>, %arg19: memref<32x624xf32, #tpu.memory_space<vmem>>, %arg20: memref<32x312xf32, #tpu.memory_space<vmem>>, %arg21: memref<32x50xf32, #tpu.memory_space<vmem>>, %arg22: memref<2x4096xf32, #tpu.memory_space<vmem>>) attributes {dimension_semantics = [#tpu.dimension_semantics<parallel>], iteration_bounds = array<i64: 1>, scalar_prefetch = 0 : i64, scratch_operands = 10 : i64, tpu.core_type = #tpu.core_type<tc>, window_params = [{transform_indices = @transform_0, window_bounds = array<i64: 2, 1, 8, 100>}, {pipeline_mode = #tpu.pipeline_mode<synchronous>, transform_indices = @transform_1, window_bounds = array<i64: 16, 9>}, {pipeline_mode = #tpu.pipeline_mode<synchronous>, transform_indices = @transform_2, window_bounds = array<i64: 16, 1>}, {pipeline_mode = #tpu.pipeline_mode<synchronous>, transform_indices = @transform_3, window_bounds = array<i64: 3, 1020>}, {pipeline_mode = #tpu.pipeline_mode<synchronous>, transform_indices = @transform_4, window_bounds = array<i64: 102, 50>}, {pipeline_mode = #tpu.pipeline_mode<synchronous>, transform_indices = @transform_5, window_bounds = array<i64: 32, 144>}, {pipeline_mode = #tpu.pipeline_mode<synchronous>, transform_indices = @transform_6, window_bounds = array<i64: 32, 1>}, {pipeline_mode = #tpu.pipeline_mode<synchronous>, transform_indices = @transform_7, window_bounds = array<i64: 3, 312>}, {pipeline_mode = #tpu.pipeline_mode<synchronous>, transform_indices = @transform_8, window_bounds = array<i64: 52, 25>}, {pipeline_mode = #tpu.pipeline_mode<synchronous>, transform_indices = @transform_9, window_bounds = array<i64: 4096, 39>}, {pipeline_mode = #tpu.pipeline_mode<synchronous>, transform_indices = @transform_10, window_bounds = array<i64: 1, 39>}, {transform_indices = @transform_11, window_bounds = array<i64: 2, 39>}]} {
    %cst = arith.constant 0.000000e+00 : f32
    %0 = vector.broadcast %cst : f32 to vector<1x1226xf32>
    %c0 = arith.constant 0 : index
    %c0_0 = arith.constant 0 : index
    %1 = vector.load %arg13[%c0, %c0_0] : memref<1x1226xf32, #tpu.memory_space<vmem>>, vector<1x1226xf32>
    tpu.vector_store %arg13[%c0, %c0_0], %0 {strides = array<i32>} : memref<1x1226xf32, #tpu.memory_space<vmem>>, vector<1x1226xf32>,
    %cst_1 = arith.constant 0.000000e+00 : bf16
    %2 = vector.broadcast %cst_1 : bf16 to vector<16x418xbf16>
    %c0_2 = arith.constant 0 : index
    %c0_3 = arith.constant 0 : index
    %3 = vector.load %arg17[%c0_2, %c0_3] : memref<16x418xbf16, #tpu.memory_space<vmem>>, vector<16x418xbf16>
    tpu.vector_store %arg17[%c0_2, %c0_3], %2 {strides = array<i32>} : memref<16x418xbf16, #tpu.memory_space<vmem>>, vector<16x418xbf16>,
    %cst_4 = arith.constant 0.000000e+00 : f32
    %4 = vector.broadcast %cst_4 : f32 to vector<2x4096xf32>
    %c0_5 = arith.constant 0 : index
    %c0_6 = arith.constant 0 : index
    %5 = vector.load %arg22[%c0_5, %c0_6] : memref<2x4096xf32, #tpu.memory_space<vmem>>, vector<2x4096xf32>
    tpu.vector_store %arg22[%c0_5, %c0_6], %4 {strides = array<i32>} : memref<2x4096xf32, #tpu.memory_space<vmem>>, vector<2x4096xf32>,
    %c0_7 = arith.constant 0 : index
    %c0_8 = arith.constant 0 : index
    %6 = vector.load %arg4[%c0_7, %c0_8] : memref<3x1020xf32, #tpu.memory_space<vmem>>, vector<1x1020xf32>
    %c1 = arith.constant 1 : index
    %c0_9 = arith.constant 0 : index
    %7 = vector.load %arg4[%c1, %c0_9] : memref<3x1020xf32, #tpu.memory_space<vmem>>, vector<1x1020xf32>
    %c2 = arith.constant 2 : index
    %c0_10 = arith.constant 0 : index
    %8 = vector.load %arg4[%c2, %c0_10] : memref<3x1020xf32, #tpu.memory_space<vmem>>, vector<1x1020xf32>
    %c0_11 = arith.constant 0 : index
    %c0_12 = arith.constant 0 : index
    %9 = vector.load %arg8[%c0_11, %c0_12] : memref<3x312xf32, #tpu.memory_space<vmem>>, vector<1x312xf32>
    %c1_13 = arith.constant 1 : index
    %c0_14 = arith.constant 0 : index
    %10 = vector.load %arg8[%c1_13, %c0_14] : memref<3x312xf32, #tpu.memory_space<vmem>>, vector<1x312xf32>
    %c2_15 = arith.constant 2 : index
    %c0_16 = arith.constant 0 : index
    %11 = vector.load %arg8[%c2_15, %c0_16] : memref<3x312xf32, #tpu.memory_space<vmem>>, vector<1x312xf32>
    %c0_17 = arith.constant 0 : index
    %c0_18 = arith.constant 0 : index
    %c0_19 = arith.constant 0 : index
    %c0_20 = arith.constant 0 : index
    %12 = vector.load %arg1[%c0_17, %c0_18, %c0_19, %c0_20] : memref<2x1x8x100xf32, #tpu.memory_space<vmem>>, vector<1x1x1x100xf32>
    %13 = vector.shape_cast %12 : vector<1x1x1x100xf32> to vector<1x100xf32>
    %c0_21 = arith.constant 0 : index
    %c206 = arith.constant 206 : index
    %14 = vector.load %arg13[%c0_21, %c206] : memref<1x1226xf32, #tpu.memory_space<vmem>>, vector<1x100xf32>
    tpu.vector_store %arg13[%c0_21, %c206], %13 {strides = array<i32>} : memref<1x1226xf32, #tpu.memory_space<vmem>>, vector<1x100xf32>,
    %c0_22 = arith.constant 0 : index
    %c0_23 = arith.constant 0 : index
    %c1_24 = arith.constant 1 : index
    %c0_25 = arith.constant 0 : index
    %15 = vector.load %arg1[%c0_22, %c0_23, %c1_24, %c0_25] : memref<2x1x8x100xf32, #tpu.memory_space<vmem>>, vector<1x1x1x100xf32>
    %16 = vector.shape_cast %15 : vector<1x1x1x100xf32> to vector<1x100xf32>
    %c0_26 = arith.constant 0 : index
    %c308 = arith.constant 308 : index
    %17 = vector.load %arg13[%c0_26, %c308] : memref<1x1226xf32, #tpu.memory_space<vmem>>, vector<1x100xf32>
    tpu.vector_store %arg13[%c0_26, %c308], %16 {strides = array<i32>} : memref<1x1226xf32, #tpu.memory_space<vmem>>, vector<1x100xf32>,
    %c0_27 = arith.constant 0 : index
    %c0_28 = arith.constant 0 : index
    %c2_29 = arith.constant 2 : index
    %c0_30 = arith.constant 0 : index
    %18 = vector.load %arg1[%c0_27, %c0_28, %c2_29, %c0_30] : memref<2x1x8x100xf32, #tpu.memory_space<vmem>>, vector<1x1x1x100xf32>
    %19 = vector.shape_cast %18 : vector<1x1x1x100xf32> to vector<1x100xf32>
    %c0_31 = arith.constant 0 : index
    %c410 = arith.constant 410 : index
    %20 = vector.load %arg13[%c0_31, %c410] : memref<1x1226xf32, #tpu.memory_space<vmem>>, vector<1x100xf32>
    tpu.vector_store %arg13[%c0_31, %c410], %19 {strides = array<i32>} : memref<1x1226xf32, #tpu.memory_space<vmem>>, vector<1x100xf32>,
    %c0_32 = arith.constant 0 : index
    %c0_33 = arith.constant 0 : index
    %c3 = arith.constant 3 : index
    %c0_34 = arith.constant 0 : index
    %21 = vector.load %arg1[%c0_32, %c0_33, %c3, %c0_34] : memref<2x1x8x100xf32, #tpu.memory_space<vmem>>, vector<1x1x1x100xf32>
    %22 = vector.shape_cast %21 : vector<1x1x1x100xf32> to vector<1x100xf32>
    %c0_35 = arith.constant 0 : index
    %c512 = arith.constant 512 : index
    %23 = vector.load %arg13[%c0_35, %c512] : memref<1x1226xf32, #tpu.memory_space<vmem>>, vector<1x100xf32>
    tpu.vector_store %arg13[%c0_35, %c512], %22 {strides = array<i32>} : memref<1x1226xf32, #tpu.memory_space<vmem>>, vector<1x100xf32>,
    %c0_36 = arith.constant 0 : index
    %c0_37 = arith.constant 0 : index
    %c4 = arith.constant 4 : index
    %c0_38 = arith.constant 0 : index
    %24 = vector.load %arg1[%c0_36, %c0_37, %c4, %c0_38] : memref<2x1x8x100xf32, #tpu.memory_space<vmem>>, vector<1x1x1x100xf32>
    %25 = vector.shape_cast %24 : vector<1x1x1x100xf32> to vector<1x100xf32>
    %c0_39 = arith.constant 0 : index
    %c614 = arith.constant 614 : index
    %26 = vector.load %arg13[%c0_39, %c614] : memref<1x1226xf32, #tpu.memory_space<vmem>>, vector<1x100xf32>
    tpu.vector_store %arg13[%c0_39, %c614], %25 {strides = array<i32>} : memref<1x1226xf32, #tpu.memory_space<vmem>>, vector<1x100xf32>,
    %c0_40 = arith.constant 0 : index
    %c0_41 = arith.constant 0 : index
    %c5 = arith.constant 5 : index
    %c0_42 = arith.constant 0 : index
    %27 = vector.load %arg1[%c0_40, %c0_41, %c5, %c0_42] : memref<2x1x8x100xf32, #tpu.memory_space<vmem>>, vector<1x1x1x100xf32>
    %28 = vector.shape_cast %27 : vector<1x1x1x100xf32> to vector<1x100xf32>
    %c0_43 = arith.constant 0 : index
    %c716 = arith.constant 716 : index
    %29 = vector.load %arg13[%c0_43, %c716] : memref<1x1226xf32, #tpu.memory_space<vmem>>, vector<1x100xf32>
    tpu.vector_store %arg13[%c0_43, %c716], %28 {strides = array<i32>} : memref<1x1226xf32, #tpu.memory_space<vmem>>, vector<1x100xf32>,
    %c0_44 = arith.constant 0 : index
    %c0_45 = arith.constant 0 : index
    %c6 = arith.constant 6 : index
    %c0_46 = arith.constant 0 : index
    %30 = vector.load %arg1[%c0_44, %c0_45, %c6, %c0_46] : memref<2x1x8x100xf32, #tpu.memory_space<vmem>>, vector<1x1x1x100xf32>
    %31 = vector.shape_cast %30 : vector<1x1x1x100xf32> to vector<1x100xf32>
    %c0_47 = arith.constant 0 : index
    %c818 = arith.constant 818 : index
    %32 = vector.load %arg13[%c0_47, %c818] : memref<1x1226xf32, #tpu.memory_space<vmem>>, vector<1x100xf32>
    tpu.vector_store %arg13[%c0_47, %c818], %31 {strides = array<i32>} : memref<1x1226xf32, #tpu.memory_space<vmem>>, vector<1x100xf32>,
    %c0_48 = arith.constant 0 : index
    %c0_49 = arith.constant 0 : index
    %c7 = arith.constant 7 : index
    %c0_50 = arith.constant 0 : index
    %33 = vector.load %arg1[%c0_48, %c0_49, %c7, %c0_50] : memref<2x1x8x100xf32, #tpu.memory_space<vmem>>, vector<1x1x1x100xf32>
    %34 = vector.shape_cast %33 : vector<1x1x1x100xf32> to vector<1x100xf32>
    %c0_51 = arith.constant 0 : index
    %c920 = arith.constant 920 : index
    %35 = vector.load %arg13[%c0_51, %c920] : memref<1x1226xf32, #tpu.memory_space<vmem>>, vector<1x100xf32>
    tpu.vector_store %arg13[%c0_51, %c920], %34 {strides = array<i32>} : memref<1x1226xf32, #tpu.memory_space<vmem>>, vector<1x100xf32>,
    %cst_52 = arith.constant 0.000000e+00 : f32
    %36 = vector.broadcast %cst_52 : f32 to vector<16x1020xf32>
    %c0_53 = arith.constant 0 : index
    %c0_54 = arith.constant 0 : index
    %37 = vector.load %arg13[%c0_53, %c0_54] : memref<1x1226xf32, #tpu.memory_space<vmem>>, vector<1x1020xf32>
    %c0_55 = arith.constant 0 : index
    %c0_56 = arith.constant 0 : index
    %38 = vector.load %arg2[%c0_55, %c0_56] : memref<16x9xf32, #tpu.memory_space<vmem>>, vector<16x1xf32>
    %39 = vector.broadcast %38 : vector<16x1xf32> to vector<16x1020xf32>
    %40 = vector.broadcast %37 : vector<1x1020xf32> to vector<16x1020xf32>
    %41 = arith.mulf %39, %40 : vector<16x1020xf32>
    %42 = arith.addf %36, %41 : vector<16x1020xf32>
    %c0_57 = arith.constant 0 : index
    %c1_58 = arith.constant 1 : index
    %43 = vector.load %arg13[%c0_57, %c1_58] : memref<1x1226xf32, #tpu.memory_space<vmem>>, vector<1x1020xf32>
    %c0_59 = arith.constant 0 : index
    %c1_60 = arith.constant 1 : index
    %44 = vector.load %arg2[%c0_59, %c1_60] : memref<16x9xf32, #tpu.memory_space<vmem>>, vector<16x1xf32>
    %45 = vector.broadcast %44 : vector<16x1xf32> to vector<16x1020xf32>
    %46 = vector.broadcast %43 : vector<1x1020xf32> to vector<16x1020xf32>
    %47 = arith.mulf %45, %46 : vector<16x1020xf32>
    %48 = arith.addf %42, %47 : vector<16x1020xf32>
    %c0_61 = arith.constant 0 : index
    %c2_62 = arith.constant 2 : index
    %49 = vector.load %arg13[%c0_61, %c2_62] : memref<1x1226xf32, #tpu.memory_space<vmem>>, vector<1x1020xf32>
    %c0_63 = arith.constant 0 : index
    %c2_64 = arith.constant 2 : index
    %50 = vector.load %arg2[%c0_63, %c2_64] : memref<16x9xf32, #tpu.memory_space<vmem>>, vector<16x1xf32>
    %51 = vector.broadcast %50 : vector<16x1xf32> to vector<16x1020xf32>
    %52 = vector.broadcast %49 : vector<1x1020xf32> to vector<16x1020xf32>
    %53 = arith.mulf %51, %52 : vector<16x1020xf32>
    %54 = arith.addf %48, %53 : vector<16x1020xf32>
    %c0_65 = arith.constant 0 : index
    %c102 = arith.constant 102 : index
    %55 = vector.load %arg13[%c0_65, %c102] : memref<1x1226xf32, #tpu.memory_space<vmem>>, vector<1x1020xf32>
    %c0_66 = arith.constant 0 : index
    %c3_67 = arith.constant 3 : index
    %56 = vector.load %arg2[%c0_66, %c3_67] : memref<16x9xf32, #tpu.memory_space<vmem>>, vector<16x1xf32>
    %57 = vector.broadcast %56 : vector<16x1xf32> to vector<16x1020xf32>
    %58 = vector.broadcast %55 : vector<1x1020xf32> to vector<16x1020xf32>
    %59 = arith.mulf %57, %58 : vector<16x1020xf32>
    %60 = arith.addf %54, %59 : vector<16x1020xf32>
    %c0_68 = arith.constant 0 : index
    %c103 = arith.constant 103 : index
    %61 = vector.load %arg13[%c0_68, %c103] : memref<1x1226xf32, #tpu.memory_space<vmem>>, vector<1x1020xf32>
    %c0_69 = arith.constant 0 : index
    %c4_70 = arith.constant 4 : index
    %62 = vector.load %arg2[%c0_69, %c4_70] : memref<16x9xf32, #tpu.memory_space<vmem>>, vector<16x1xf32>
    %63 = vector.broadcast %62 : vector<16x1xf32> to vector<16x1020xf32>
    %64 = vector.broadcast %61 : vector<1x1020xf32> to vector<16x1020xf32>
    %65 = arith.mulf %63, %64 : vector<16x1020xf32>
    %66 = arith.addf %60, %65 : vector<16x1020xf32>
    %c0_71 = arith.constant 0 : index
    %c104 = arith.constant 104 : index
    %67 = vector.load %arg13[%c0_71, %c104] : memref<1x1226xf32, #tpu.memory_space<vmem>>, vector<1x1020xf32>
    %c0_72 = arith.constant 0 : index
    %c5_73 = arith.constant 5 : index
    %68 = vector.load %arg2[%c0_72, %c5_73] : memref<16x9xf32, #tpu.memory_space<vmem>>, vector<16x1xf32>
    %69 = vector.broadcast %68 : vector<16x1xf32> to vector<16x1020xf32>
    %70 = vector.broadcast %67 : vector<1x1020xf32> to vector<16x1020xf32>
    %71 = arith.mulf %69, %70 : vector<16x1020xf32>
    %72 = arith.addf %66, %71 : vector<16x1020xf32>
    %c0_74 = arith.constant 0 : index
    %c204 = arith.constant 204 : index
    %73 = vector.load %arg13[%c0_74, %c204] : memref<1x1226xf32, #tpu.memory_space<vmem>>, vector<1x1020xf32>
    %c0_75 = arith.constant 0 : index
    %c6_76 = arith.constant 6 : index
    %74 = vector.load %arg2[%c0_75, %c6_76] : memref<16x9xf32, #tpu.memory_space<vmem>>, vector<16x1xf32>
    %75 = vector.broadcast %74 : vector<16x1xf32> to vector<16x1020xf32>
    %76 = vector.broadcast %73 : vector<1x1020xf32> to vector<16x1020xf32>
    %77 = arith.mulf %75, %76 : vector<16x1020xf32>
    %78 = arith.addf %72, %77 : vector<16x1020xf32>
    %c0_77 = arith.constant 0 : index
    %c205 = arith.constant 205 : index
    %79 = vector.load %arg13[%c0_77, %c205] : memref<1x1226xf32, #tpu.memory_space<vmem>>, vector<1x1020xf32>
    %c0_78 = arith.constant 0 : index
    %c7_79 = arith.constant 7 : index
    %80 = vector.load %arg2[%c0_78, %c7_79] : memref<16x9xf32, #tpu.memory_space<vmem>>, vector<16x1xf32>
    %81 = vector.broadcast %80 : vector<16x1xf32> to vector<16x1020xf32>
    %82 = vector.broadcast %79 : vector<1x1020xf32> to vector<16x1020xf32>
    %83 = arith.mulf %81, %82 : vector<16x1020xf32>
    %84 = arith.addf %78, %83 : vector<16x1020xf32>
    %c0_80 = arith.constant 0 : index
    %c206_81 = arith.constant 206 : index
    %85 = vector.load %arg13[%c0_80, %c206_81] : memref<1x1226xf32, #tpu.memory_space<vmem>>, vector<1x1020xf32>
    %c0_82 = arith.constant 0 : index
    %c8 = arith.constant 8 : index
    %86 = vector.load %arg2[%c0_82, %c8] : memref<16x9xf32, #tpu.memory_space<vmem>>, vector<16x1xf32>
    %87 = vector.broadcast %86 : vector<16x1xf32> to vector<16x1020xf32>
    %88 = vector.broadcast %85 : vector<1x1020xf32> to vector<16x1020xf32>
    %89 = arith.mulf %87, %88 : vector<16x1020xf32>
    %90 = arith.addf %84, %89 : vector<16x1020xf32>
    %c0_83 = arith.constant 0 : index
    %c0_84 = arith.constant 0 : index
    %91 = vector.load %arg3[%c0_83, %c0_84] : memref<16x1xf32, #tpu.memory_space<vmem>>, vector<16x1xf32>
    %92 = vector.broadcast %91 : vector<16x1xf32> to vector<16x1020xf32>
    %93 = arith.addf %90, %92 : vector<16x1020xf32>
    %cst_85 = arith.constant 0.000000e+00 : f32
    %94 = vector.broadcast %cst_85 : f32 to vector<16x1020xf32>
    %95 = arith.maximumf %93, %94 : vector<16x1020xf32>
    %96 = vector.broadcast %6 : vector<1x1020xf32> to vector<16x1020xf32>
    %97 = arith.mulf %95, %96 : vector<16x1020xf32>
    %cst_86 = arith.constant dense<0.000000e+00> : vector<16xf32>
    %98 = vector.multi_reduction <add>, %97, %cst_86 [1] : vector<16x1020xf32> to vector<16xf32>
    %99 = vector.shape_cast %98 : vector<16xf32> to vector<16x1xf32>
    %cst_87 = arith.constant 1.250000e-03 : f32
    %100 = vector.broadcast %cst_87 : f32 to vector<16x1xf32>
    %101 = arith.mulf %99, %100 : vector<16x1xf32>
    %102 = vector.broadcast %101 : vector<16x1xf32> to vector<16x1020xf32>
    %103 = arith.subf %95, %102 : vector<16x1020xf32>
    %104 = vector.broadcast %6 : vector<1x1020xf32> to vector<16x1020xf32>
    %105 = arith.mulf %103, %104 : vector<16x1020xf32>
    %106 = arith.mulf %105, %105 : vector<16x1020xf32>
    %cst_88 = arith.constant dense<0.000000e+00> : vector<16xf32>
    %107 = vector.multi_reduction <add>, %106, %cst_88 [1] : vector<16x1020xf32> to vector<16xf32>
    %108 = vector.shape_cast %107 : vector<16xf32> to vector<16x1xf32>
    %cst_89 = arith.constant 1.250000e-03 : f32
    %109 = vector.broadcast %cst_89 : f32 to vector<16x1xf32>
    %110 = arith.mulf %108, %109 : vector<16x1xf32>
    %cst_90 = arith.constant 9.99999974E-6 : f32
    %111 = vector.broadcast %cst_90 : f32 to vector<16x1xf32>
    %112 = arith.addf %110, %111 : vector<16x1xf32>
    %113 = math.rsqrt %112 : vector<16x1xf32>
    %114 = vector.broadcast %113 : vector<16x1xf32> to vector<16x1020xf32>
    %115 = arith.mulf %105, %114 : vector<16x1020xf32>
    %116 = vector.broadcast %7 : vector<1x1020xf32> to vector<16x1020xf32>
    %117 = arith.mulf %115, %116 : vector<16x1020xf32>
    %118 = vector.broadcast %8 : vector<1x1020xf32> to vector<16x1020xf32>
    %119 = arith.addf %117, %118 : vector<16x1020xf32>
    %c0_91 = arith.constant 0 : index
    %c0_92 = arith.constant 0 : index
    %120 = vector.load %arg14[%c0_91, %c0_92] : memref<16x1020xf32, #tpu.memory_space<vmem>>, vector<16x1020xf32>
    tpu.vector_store %arg14[%c0_91, %c0_92], %119 {strides = array<i32>} : memref<16x1020xf32, #tpu.memory_space<vmem>>, vector<16x1020xf32>,
    %c0_93 = arith.constant 0 : index
    %c102_94 = arith.constant 102 : index
    %121 = vector.load %arg14[%c0_93, %c102_94] : memref<16x1020xf32, #tpu.memory_space<vmem>>, vector<16x102xf32>
    %c0_95 = arith.constant 0 : index
    %c103_96 = arith.constant 103 : index
    %122 = vector.load %arg14[%c0_95, %c103_96] : memref<16x1020xf32, #tpu.memory_space<vmem>>, vector<16x102xf32>
    %123 = arith.maximumf %121, %122 : vector<16x102xf32>
    %c0_97 = arith.constant 0 : index
    %c204_98 = arith.constant 204 : index
    %124 = vector.load %arg14[%c0_97, %c204_98] : memref<16x1020xf32, #tpu.memory_space<vmem>>, vector<16x102xf32>
    %c0_99 = arith.constant 0 : index
    %c205_100 = arith.constant 205 : index
    %125 = vector.load %arg14[%c0_99, %c205_100] : memref<16x1020xf32, #tpu.memory_space<vmem>>, vector<16x102xf32>
    %126 = arith.maximumf %124, %125 : vector<16x102xf32>
    %127 = arith.maximumf %123, %126 : vector<16x102xf32>
    %128 = arith.truncf %127 : vector<16x102xf32> to vector<16x102xbf16>
    %c0_101 = arith.constant 0 : index
    %c0_102 = arith.constant 0 : index
    %129 = vector.load %arg15[%c0_101, %c0_102] : memref<128x102xbf16, #tpu.memory_space<vmem>>, vector<16x102xbf16>
    tpu.vector_store %arg15[%c0_101, %c0_102], %128 {strides = array<i32>} : memref<128x102xbf16, #tpu.memory_space<vmem>>, vector<16x102xbf16>,
    %c0_103 = arith.constant 0 : index
    %c306 = arith.constant 306 : index
    %130 = vector.load %arg14[%c0_103, %c306] : memref<16x1020xf32, #tpu.memory_space<vmem>>, vector<16x102xf32>
    %c0_104 = arith.constant 0 : index
    %c307 = arith.constant 307 : index
    %131 = vector.load %arg14[%c0_104, %c307] : memref<16x1020xf32, #tpu.memory_space<vmem>>, vector<16x102xf32>
    %132 = arith.maximumf %130, %131 : vector<16x102xf32>
    %c0_105 = arith.constant 0 : index
    %c408 = arith.constant 408 : index
    %133 = vector.load %arg14[%c0_105, %c408] : memref<16x1020xf32, #tpu.memory_space<vmem>>, vector<16x102xf32>
    %c0_106 = arith.constant 0 : index
    %c409 = arith.constant 409 : index
    %134 = vector.load %arg14[%c0_106, %c409] : memref<16x1020xf32, #tpu.memory_space<vmem>>, vector<16x102xf32>
    %135 = arith.maximumf %133, %134 : vector<16x102xf32>
    %136 = arith.maximumf %132, %135 : vector<16x102xf32>
    %137 = arith.truncf %136 : vector<16x102xf32> to vector<16x102xbf16>
    %c16 = arith.constant 16 : index
    %c0_107 = arith.constant 0 : index
    %138 = vector.load %arg15[%c16, %c0_107] : memref<128x102xbf16, #tpu.memory_space<vmem>>, vector<16x102xbf16>
    tpu.vector_store %arg15[%c16, %c0_107], %137 {strides = array<i32>} : memref<128x102xbf16, #tpu.memory_space<vmem>>, vector<16x102xbf16>,
    %c0_108 = arith.constant 0 : index
    %c510 = arith.constant 510 : index
    %139 = vector.load %arg14[%c0_108, %c510] : memref<16x1020xf32, #tpu.memory_space<vmem>>, vector<16x102xf32>
    %c0_109 = arith.constant 0 : index
    %c511 = arith.constant 511 : index
    %140 = vector.load %arg14[%c0_109, %c511] : memref<16x1020xf32, #tpu.memory_space<vmem>>, vector<16x102xf32>
    %141 = arith.maximumf %139, %140 : vector<16x102xf32>
    %c0_110 = arith.constant 0 : index
    %c612 = arith.constant 612 : index
    %142 = vector.load %arg14[%c0_110, %c612] : memref<16x1020xf32, #tpu.memory_space<vmem>>, vector<16x102xf32>
    %c0_111 = arith.constant 0 : index
    %c613 = arith.constant 613 : index
    %143 = vector.load %arg14[%c0_111, %c613] : memref<16x1020xf32, #tpu.memory_space<vmem>>, vector<16x102xf32>
    %144 = arith.maximumf %142, %143 : vector<16x102xf32>
    %145 = arith.maximumf %141, %144 : vector<16x102xf32>
    %146 = arith.truncf %145 : vector<16x102xf32> to vector<16x102xbf16>
    %c32 = arith.constant 32 : index
    %c0_112 = arith.constant 0 : index
    %147 = vector.load %arg15[%c32, %c0_112] : memref<128x102xbf16, #tpu.memory_space<vmem>>, vector<16x102xbf16>
    tpu.vector_store %arg15[%c32, %c0_112], %146 {strides = array<i32>} : memref<128x102xbf16, #tpu.memory_space<vmem>>, vector<16x102xbf16>,
    %c0_113 = arith.constant 0 : index
    %c714 = arith.constant 714 : index
    %148 = vector.load %arg14[%c0_113, %c714] : memref<16x1020xf32, #tpu.memory_space<vmem>>, vector<16x102xf32>
    %c0_114 = arith.constant 0 : index
    %c715 = arith.constant 715 : index
    %149 = vector.load %arg14[%c0_114, %c715] : memref<16x1020xf32, #tpu.memory_space<vmem>>, vector<16x102xf32>
    %150 = arith.maximumf %148, %149 : vector<16x102xf32>
    %c0_115 = arith.constant 0 : index
    %c816 = arith.constant 816 : index
    %151 = vector.load %arg14[%c0_115, %c816] : memref<16x1020xf32, #tpu.memory_space<vmem>>, vector<16x102xf32>
    %c0_116 = arith.constant 0 : index
    %c817 = arith.constant 817 : index
    %152 = vector.load %arg14[%c0_116, %c817] : memref<16x1020xf32, #tpu.memory_space<vmem>>, vector<16x102xf32>
    %153 = arith.maximumf %151, %152 : vector<16x102xf32>
    %154 = arith.maximumf %150, %153 : vector<16x102xf32>
    %155 = arith.truncf %154 : vector<16x102xf32> to vector<16x102xbf16>
    %c48 = arith.constant 48 : index
    %c0_117 = arith.constant 0 : index
    %156 = vector.load %arg15[%c48, %c0_117] : memref<128x102xbf16, #tpu.memory_space<vmem>>, vector<16x102xbf16>
    tpu.vector_store %arg15[%c48, %c0_117], %155 {strides = array<i32>} : memref<128x102xbf16, #tpu.memory_space<vmem>>, vector<16x102xbf16>,
    %c1_118 = arith.constant 1 : index
    %c0_119 = arith.constant 0 : index
    %c0_120 = arith.constant 0 : index
    %c0_121 = arith.constant 0 : index
    %157 = vector.load %arg1[%c1_118, %c0_119, %c0_120, %c0_121] : memref<2x1x8x100xf32, #tpu.memory_space<vmem>>, vector<1x1x1x100xf32>
    %158 = vector.shape_cast %157 : vector<1x1x1x100xf32> to vector<1x100xf32>
    %c0_122 = arith.constant 0 : index
    %c206_123 = arith.constant 206 : index
    %159 = vector.load %arg13[%c0_122, %c206_123] : memref<1x1226xf32, #tpu.memory_space<vmem>>, vector<1x100xf32>
    tpu.vector_store %arg13[%c0_122, %c206_123], %158 {strides = array<i32>} : memref<1x1226xf32, #tpu.memory_space<vmem>>, vector<1x100xf32>,
    %c1_124 = arith.constant 1 : index
    %c0_125 = arith.constant 0 : index
    %c1_126 = arith.constant 1 : index
    %c0_127 = arith.constant 0 : index
    %160 = vector.load %arg1[%c1_124, %c0_125, %c1_126, %c0_127] : memref<2x1x8x100xf32, #tpu.memory_space<vmem>>, vector<1x1x1x100xf32>
    %161 = vector.shape_cast %160 : vector<1x1x1x100xf32> to vector<1x100xf32>
    %c0_128 = arith.constant 0 : index
    %c308_129 = arith.constant 308 : index
    %162 = vector.load %arg13[%c0_128, %c308_129] : memref<1x1226xf32, #tpu.memory_space<vmem>>, vector<1x100xf32>
    tpu.vector_store %arg13[%c0_128, %c308_129], %161 {strides = array<i32>} : memref<1x1226xf32, #tpu.memory_space<vmem>>, vector<1x100xf32>,
    %c1_130 = arith.constant 1 : index
    %c0_131 = arith.constant 0 : index
    %c2_132 = arith.constant 2 : index
    %c0_133 = arith.constant 0 : index
    %163 = vector.load %arg1[%c1_130, %c0_131, %c2_132, %c0_133] : memref<2x1x8x100xf32, #tpu.memory_space<vmem>>, vector<1x1x1x100xf32>
    %164 = vector.shape_cast %163 : vector<1x1x1x100xf32> to vector<1x100xf32>
    %c0_134 = arith.constant 0 : index
    %c410_135 = arith.constant 410 : index
    %165 = vector.load %arg13[%c0_134, %c410_135] : memref<1x1226xf32, #tpu.memory_space<vmem>>, vector<1x100xf32>
    tpu.vector_store %arg13[%c0_134, %c410_135], %164 {strides = array<i32>} : memref<1x1226xf32, #tpu.memory_space<vmem>>, vector<1x100xf32>,
    %c1_136 = arith.constant 1 : index
    %c0_137 = arith.constant 0 : index
    %c3_138 = arith.constant 3 : index
    %c0_139 = arith.constant 0 : index
    %166 = vector.load %arg1[%c1_136, %c0_137, %c3_138, %c0_139] : memref<2x1x8x100xf32, #tpu.memory_space<vmem>>, vector<1x1x1x100xf32>
    %167 = vector.shape_cast %166 : vector<1x1x1x100xf32> to vector<1x100xf32>
    %c0_140 = arith.constant 0 : index
    %c512_141 = arith.constant 512 : index
    %168 = vector.load %arg13[%c0_140, %c512_141] : memref<1x1226xf32, #tpu.memory_space<vmem>>, vector<1x100xf32>
    tpu.vector_store %arg13[%c0_140, %c512_141], %167 {strides = array<i32>} : memref<1x1226xf32, #tpu.memory_space<vmem>>, vector<1x100xf32>,
    %c1_142 = arith.constant 1 : index
    %c0_143 = arith.constant 0 : index
    %c4_144 = arith.constant 4 : index
    %c0_145 = arith.constant 0 : index
    %169 = vector.load %arg1[%c1_142, %c0_143, %c4_144, %c0_145] : memref<2x1x8x100xf32, #tpu.memory_space<vmem>>, vector<1x1x1x100xf32>
    %170 = vector.shape_cast %169 : vector<1x1x1x100xf32> to vector<1x100xf32>
    %c0_146 = arith.constant 0 : index
    %c614_147 = arith.constant 614 : index
    %171 = vector.load %arg13[%c0_146, %c614_147] : memref<1x1226xf32, #tpu.memory_space<vmem>>, vector<1x100xf32>
    tpu.vector_store %arg13[%c0_146, %c614_147], %170 {strides = array<i32>} : memref<1x1226xf32, #tpu.memory_space<vmem>>, vector<1x100xf32>,
    %c1_148 = arith.constant 1 : index
    %c0_149 = arith.constant 0 : index
    %c5_150 = arith.constant 5 : index
    %c0_151 = arith.constant 0 : index
    %172 = vector.load %arg1[%c1_148, %c0_149, %c5_150, %c0_151] : memref<2x1x8x100xf32, #tpu.memory_space<vmem>>, vector<1x1x1x100xf32>
    %173 = vector.shape_cast %172 : vector<1x1x1x100xf32> to vector<1x100xf32>
    %c0_152 = arith.constant 0 : index
    %c716_153 = arith.constant 716 : index
    %174 = vector.load %arg13[%c0_152, %c716_153] : memref<1x1226xf32, #tpu.memory_space<vmem>>, vector<1x100xf32>
    tpu.vector_store %arg13[%c0_152, %c716_153], %173 {strides = array<i32>} : memref<1x1226xf32, #tpu.memory_space<vmem>>, vector<1x100xf32>,
    %c1_154 = arith.constant 1 : index
    %c0_155 = arith.constant 0 : index
    %c6_156 = arith.constant 6 : index
    %c0_157 = arith.constant 0 : index
    %175 = vector.load %arg1[%c1_154, %c0_155, %c6_156, %c0_157] : memref<2x1x8x100xf32, #tpu.memory_space<vmem>>, vector<1x1x1x100xf32>
    %176 = vector.shape_cast %175 : vector<1x1x1x100xf32> to vector<1x100xf32>
    %c0_158 = arith.constant 0 : index
    %c818_159 = arith.constant 818 : index
    %177 = vector.load %arg13[%c0_158, %c818_159] : memref<1x1226xf32, #tpu.memory_space<vmem>>, vector<1x100xf32>
    tpu.vector_store %arg13[%c0_158, %c818_159], %176 {strides = array<i32>} : memref<1x1226xf32, #tpu.memory_space<vmem>>, vector<1x100xf32>,
    %c1_160 = arith.constant 1 : index
    %c0_161 = arith.constant 0 : index
    %c7_162 = arith.constant 7 : index
    %c0_163 = arith.constant 0 : index
    %178 = vector.load %arg1[%c1_160, %c0_161, %c7_162, %c0_163] : memref<2x1x8x100xf32, #tpu.memory_space<vmem>>, vector<1x1x1x100xf32>
    %179 = vector.shape_cast %178 : vector<1x1x1x100xf32> to vector<1x100xf32>
    %c0_164 = arith.constant 0 : index
    %c920_165 = arith.constant 920 : index
    %180 = vector.load %arg13[%c0_164, %c920_165] : memref<1x1226xf32, #tpu.memory_space<vmem>>, vector<1x100xf32>
    tpu.vector_store %arg13[%c0_164, %c920_165], %179 {strides = array<i32>} : memref<1x1226xf32, #tpu.memory_space<vmem>>, vector<1x100xf32>,
    %cst_166 = arith.constant 0.000000e+00 : f32
    %181 = vector.broadcast %cst_166 : f32 to vector<16x1020xf32>
    %c0_167 = arith.constant 0 : index
    %c0_168 = arith.constant 0 : index
    %182 = vector.load %arg13[%c0_167, %c0_168] : memref<1x1226xf32, #tpu.memory_space<vmem>>, vector<1x1020xf32>
    %c0_169 = arith.constant 0 : index
    %c0_170 = arith.constant 0 : index
    %183 = vector.load %arg2[%c0_169, %c0_170] : memref<16x9xf32, #tpu.memory_space<vmem>>, vector<16x1xf32>
    %184 = vector.broadcast %183 : vector<16x1xf32> to vector<16x1020xf32>
    %185 = vector.broadcast %182 : vector<1x1020xf32> to vector<16x1020xf32>
    %186 = arith.mulf %184, %185 : vector<16x1020xf32>
    %187 = arith.addf %181, %186 : vector<16x1020xf32>
    %c0_171 = arith.constant 0 : index
    %c1_172 = arith.constant 1 : index
    %188 = vector.load %arg13[%c0_171, %c1_172] : memref<1x1226xf32, #tpu.memory_space<vmem>>, vector<1x1020xf32>
    %c0_173 = arith.constant 0 : index
    %c1_174 = arith.constant 1 : index
    %189 = vector.load %arg2[%c0_173, %c1_174] : memref<16x9xf32, #tpu.memory_space<vmem>>, vector<16x1xf32>
    %190 = vector.broadcast %189 : vector<16x1xf32> to vector<16x1020xf32>
    %191 = vector.broadcast %188 : vector<1x1020xf32> to vector<16x1020xf32>
    %192 = arith.mulf %190, %191 : vector<16x1020xf32>
    %193 = arith.addf %187, %192 : vector<16x1020xf32>
    %c0_175 = arith.constant 0 : index
    %c2_176 = arith.constant 2 : index
    %194 = vector.load %arg13[%c0_175, %c2_176] : memref<1x1226xf32, #tpu.memory_space<vmem>>, vector<1x1020xf32>
    %c0_177 = arith.constant 0 : index
    %c2_178 = arith.constant 2 : index
    %195 = vector.load %arg2[%c0_177, %c2_178] : memref<16x9xf32, #tpu.memory_space<vmem>>, vector<16x1xf32>
    %196 = vector.broadcast %195 : vector<16x1xf32> to vector<16x1020xf32>
    %197 = vector.broadcast %194 : vector<1x1020xf32> to vector<16x1020xf32>
    %198 = arith.mulf %196, %197 : vector<16x1020xf32>
    %199 = arith.addf %193, %198 : vector<16x1020xf32>
    %c0_179 = arith.constant 0 : index
    %c102_180 = arith.constant 102 : index
    %200 = vector.load %arg13[%c0_179, %c102_180] : memref<1x1226xf32, #tpu.memory_space<vmem>>, vector<1x1020xf32>
    %c0_181 = arith.constant 0 : index
    %c3_182 = arith.constant 3 : index
    %201 = vector.load %arg2[%c0_181, %c3_182] : memref<16x9xf32, #tpu.memory_space<vmem>>, vector<16x1xf32>
    %202 = vector.broadcast %201 : vector<16x1xf32> to vector<16x1020xf32>
    %203 = vector.broadcast %200 : vector<1x1020xf32> to vector<16x1020xf32>
    %204 = arith.mulf %202, %203 : vector<16x1020xf32>
    %205 = arith.addf %199, %204 : vector<16x1020xf32>
    %c0_183 = arith.constant 0 : index
    %c103_184 = arith.constant 103 : index
    %206 = vector.load %arg13[%c0_183, %c103_184] : memref<1x1226xf32, #tpu.memory_space<vmem>>, vector<1x1020xf32>
    %c0_185 = arith.constant 0 : index
    %c4_186 = arith.constant 4 : index
    %207 = vector.load %arg2[%c0_185, %c4_186] : memref<16x9xf32, #tpu.memory_space<vmem>>, vector<16x1xf32>
    %208 = vector.broadcast %207 : vector<16x1xf32> to vector<16x1020xf32>
    %209 = vector.broadcast %206 : vector<1x1020xf32> to vector<16x1020xf32>
    %210 = arith.mulf %208, %209 : vector<16x1020xf32>
    %211 = arith.addf %205, %210 : vector<16x1020xf32>
    %c0_187 = arith.constant 0 : index
    %c104_188 = arith.constant 104 : index
    %212 = vector.load %arg13[%c0_187, %c104_188] : memref<1x1226xf32, #tpu.memory_space<vmem>>, vector<1x1020xf32>
    %c0_189 = arith.constant 0 : index
    %c5_190 = arith.constant 5 : index
    %213 = vector.load %arg2[%c0_189, %c5_190] : memref<16x9xf32, #tpu.memory_space<vmem>>, vector<16x1xf32>
    %214 = vector.broadcast %213 : vector<16x1xf32> to vector<16x1020xf32>
    %215 = vector.broadcast %212 : vector<1x1020xf32> to vector<16x1020xf32>
    %216 = arith.mulf %214, %215 : vector<16x1020xf32>
    %217 = arith.addf %211, %216 : vector<16x1020xf32>
    %c0_191 = arith.constant 0 : index
    %c204_192 = arith.constant 204 : index
    %218 = vector.load %arg13[%c0_191, %c204_192] : memref<1x1226xf32, #tpu.memory_space<vmem>>, vector<1x1020xf32>
    %c0_193 = arith.constant 0 : index
    %c6_194 = arith.constant 6 : index
    %219 = vector.load %arg2[%c0_193, %c6_194] : memref<16x9xf32, #tpu.memory_space<vmem>>, vector<16x1xf32>
    %220 = vector.broadcast %219 : vector<16x1xf32> to vector<16x1020xf32>
    %221 = vector.broadcast %218 : vector<1x1020xf32> to vector<16x1020xf32>
    %222 = arith.mulf %220, %221 : vector<16x1020xf32>
    %223 = arith.addf %217, %222 : vector<16x1020xf32>
    %c0_195 = arith.constant 0 : index
    %c205_196 = arith.constant 205 : index
    %224 = vector.load %arg13[%c0_195, %c205_196] : memref<1x1226xf32, #tpu.memory_space<vmem>>, vector<1x1020xf32>
    %c0_197 = arith.constant 0 : index
    %c7_198 = arith.constant 7 : index
    %225 = vector.load %arg2[%c0_197, %c7_198] : memref<16x9xf32, #tpu.memory_space<vmem>>, vector<16x1xf32>
    %226 = vector.broadcast %225 : vector<16x1xf32> to vector<16x1020xf32>
    %227 = vector.broadcast %224 : vector<1x1020xf32> to vector<16x1020xf32>
    %228 = arith.mulf %226, %227 : vector<16x1020xf32>
    %229 = arith.addf %223, %228 : vector<16x1020xf32>
    %c0_199 = arith.constant 0 : index
    %c206_200 = arith.constant 206 : index
    %230 = vector.load %arg13[%c0_199, %c206_200] : memref<1x1226xf32, #tpu.memory_space<vmem>>, vector<1x1020xf32>
    %c0_201 = arith.constant 0 : index
    %c8_202 = arith.constant 8 : index
    %231 = vector.load %arg2[%c0_201, %c8_202] : memref<16x9xf32, #tpu.memory_space<vmem>>, vector<16x1xf32>
    %232 = vector.broadcast %231 : vector<16x1xf32> to vector<16x1020xf32>
    %233 = vector.broadcast %230 : vector<1x1020xf32> to vector<16x1020xf32>
    %234 = arith.mulf %232, %233 : vector<16x1020xf32>
    %235 = arith.addf %229, %234 : vector<16x1020xf32>
    %c0_203 = arith.constant 0 : index
    %c0_204 = arith.constant 0 : index
    %236 = vector.load %arg3[%c0_203, %c0_204] : memref<16x1xf32, #tpu.memory_space<vmem>>, vector<16x1xf32>
    %237 = vector.broadcast %236 : vector<16x1xf32> to vector<16x1020xf32>
    %238 = arith.addf %235, %237 : vector<16x1020xf32>
    %cst_205 = arith.constant 0.000000e+00 : f32
    %239 = vector.broadcast %cst_205 : f32 to vector<16x1020xf32>
    %240 = arith.maximumf %238, %239 : vector<16x1020xf32>
    %241 = vector.broadcast %6 : vector<1x1020xf32> to vector<16x1020xf32>
    %242 = arith.mulf %240, %241 : vector<16x1020xf32>
    %cst_206 = arith.constant dense<0.000000e+00> : vector<16xf32>
    %243 = vector.multi_reduction <add>, %242, %cst_206 [1] : vector<16x1020xf32> to vector<16xf32>
    %244 = vector.shape_cast %243 : vector<16xf32> to vector<16x1xf32>
    %cst_207 = arith.constant 1.250000e-03 : f32
    %245 = vector.broadcast %cst_207 : f32 to vector<16x1xf32>
    %246 = arith.mulf %244, %245 : vector<16x1xf32>
    %247 = vector.broadcast %246 : vector<16x1xf32> to vector<16x1020xf32>
    %248 = arith.subf %240, %247 : vector<16x1020xf32>
    %249 = vector.broadcast %6 : vector<1x1020xf32> to vector<16x1020xf32>
    %250 = arith.mulf %248, %249 : vector<16x1020xf32>
    %251 = arith.mulf %250, %250 : vector<16x1020xf32>
    %cst_208 = arith.constant dense<0.000000e+00> : vector<16xf32>
    %252 = vector.multi_reduction <add>, %251, %cst_208 [1] : vector<16x1020xf32> to vector<16xf32>
    %253 = vector.shape_cast %252 : vector<16xf32> to vector<16x1xf32>
    %cst_209 = arith.constant 1.250000e-03 : f32
    %254 = vector.broadcast %cst_209 : f32 to vector<16x1xf32>
    %255 = arith.mulf %253, %254 : vector<16x1xf32>
    %cst_210 = arith.constant 9.99999974E-6 : f32
    %256 = vector.broadcast %cst_210 : f32 to vector<16x1xf32>
    %257 = arith.addf %255, %256 : vector<16x1xf32>
    %258 = math.rsqrt %257 : vector<16x1xf32>
    %259 = vector.broadcast %258 : vector<16x1xf32> to vector<16x1020xf32>
    %260 = arith.mulf %250, %259 : vector<16x1020xf32>
    %261 = vector.broadcast %7 : vector<1x1020xf32> to vector<16x1020xf32>
    %262 = arith.mulf %260, %261 : vector<16x1020xf32>
    %263 = vector.broadcast %8 : vector<1x1020xf32> to vector<16x1020xf32>
    %264 = arith.addf %262, %263 : vector<16x1020xf32>
    %c0_211 = arith.constant 0 : index
    %c0_212 = arith.constant 0 : index
    %265 = vector.load %arg14[%c0_211, %c0_212] : memref<16x1020xf32, #tpu.memory_space<vmem>>, vector<16x1020xf32>
    tpu.vector_store %arg14[%c0_211, %c0_212], %264 {strides = array<i32>} : memref<16x1020xf32, #tpu.memory_space<vmem>>, vector<16x1020xf32>,
    %c0_213 = arith.constant 0 : index
    %c102_214 = arith.constant 102 : index
    %266 = vector.load %arg14[%c0_213, %c102_214] : memref<16x1020xf32, #tpu.memory_space<vmem>>, vector<16x102xf32>
    %c0_215 = arith.constant 0 : index
    %c103_216 = arith.constant 103 : index
    %267 = vector.load %arg14[%c0_215, %c103_216] : memref<16x1020xf32, #tpu.memory_space<vmem>>, vector<16x102xf32>
    %268 = arith.maximumf %266, %267 : vector<16x102xf32>
    %c0_217 = arith.constant 0 : index
    %c204_218 = arith.constant 204 : index
    %269 = vector.load %arg14[%c0_217, %c204_218] : memref<16x1020xf32, #tpu.memory_space<vmem>>, vector<16x102xf32>
    %c0_219 = arith.constant 0 : index
    %c205_220 = arith.constant 205 : index
    %270 = vector.load %arg14[%c0_219, %c205_220] : memref<16x1020xf32, #tpu.memory_space<vmem>>, vector<16x102xf32>
    %271 = arith.maximumf %269, %270 : vector<16x102xf32>
    %272 = arith.maximumf %268, %271 : vector<16x102xf32>
    %273 = arith.truncf %272 : vector<16x102xf32> to vector<16x102xbf16>
    %c64 = arith.constant 64 : index
    %c0_221 = arith.constant 0 : index
    %274 = vector.load %arg15[%c64, %c0_221] : memref<128x102xbf16, #tpu.memory_space<vmem>>, vector<16x102xbf16>
    tpu.vector_store %arg15[%c64, %c0_221], %273 {strides = array<i32>} : memref<128x102xbf16, #tpu.memory_space<vmem>>, vector<16x102xbf16>,
    %c0_222 = arith.constant 0 : index
    %c306_223 = arith.constant 306 : index
    %275 = vector.load %arg14[%c0_222, %c306_223] : memref<16x1020xf32, #tpu.memory_space<vmem>>, vector<16x102xf32>
    %c0_224 = arith.constant 0 : index
    %c307_225 = arith.constant 307 : index
    %276 = vector.load %arg14[%c0_224, %c307_225] : memref<16x1020xf32, #tpu.memory_space<vmem>>, vector<16x102xf32>
    %277 = arith.maximumf %275, %276 : vector<16x102xf32>
    %c0_226 = arith.constant 0 : index
    %c408_227 = arith.constant 408 : index
    %278 = vector.load %arg14[%c0_226, %c408_227] : memref<16x1020xf32, #tpu.memory_space<vmem>>, vector<16x102xf32>
    %c0_228 = arith.constant 0 : index
    %c409_229 = arith.constant 409 : index
    %279 = vector.load %arg14[%c0_228, %c409_229] : memref<16x1020xf32, #tpu.memory_space<vmem>>, vector<16x102xf32>
    %280 = arith.maximumf %278, %279 : vector<16x102xf32>
    %281 = arith.maximumf %277, %280 : vector<16x102xf32>
    %282 = arith.truncf %281 : vector<16x102xf32> to vector<16x102xbf16>
    %c80 = arith.constant 80 : index
    %c0_230 = arith.constant 0 : index
    %283 = vector.load %arg15[%c80, %c0_230] : memref<128x102xbf16, #tpu.memory_space<vmem>>, vector<16x102xbf16>
    tpu.vector_store %arg15[%c80, %c0_230], %282 {strides = array<i32>} : memref<128x102xbf16, #tpu.memory_space<vmem>>, vector<16x102xbf16>,
    %c0_231 = arith.constant 0 : index
    %c510_232 = arith.constant 510 : index
    %284 = vector.load %arg14[%c0_231, %c510_232] : memref<16x1020xf32, #tpu.memory_space<vmem>>, vector<16x102xf32>
    %c0_233 = arith.constant 0 : index
    %c511_234 = arith.constant 511 : index
    %285 = vector.load %arg14[%c0_233, %c511_234] : memref<16x1020xf32, #tpu.memory_space<vmem>>, vector<16x102xf32>
    %286 = arith.maximumf %284, %285 : vector<16x102xf32>
    %c0_235 = arith.constant 0 : index
    %c612_236 = arith.constant 612 : index
    %287 = vector.load %arg14[%c0_235, %c612_236] : memref<16x1020xf32, #tpu.memory_space<vmem>>, vector<16x102xf32>
    %c0_237 = arith.constant 0 : index
    %c613_238 = arith.constant 613 : index
    %288 = vector.load %arg14[%c0_237, %c613_238] : memref<16x1020xf32, #tpu.memory_space<vmem>>, vector<16x102xf32>
    %289 = arith.maximumf %287, %288 : vector<16x102xf32>
    %290 = arith.maximumf %286, %289 : vector<16x102xf32>
    %291 = arith.truncf %290 : vector<16x102xf32> to vector<16x102xbf16>
    %c96 = arith.constant 96 : index
    %c0_239 = arith.constant 0 : index
    %292 = vector.load %arg15[%c96, %c0_239] : memref<128x102xbf16, #tpu.memory_space<vmem>>, vector<16x102xbf16>
    tpu.vector_store %arg15[%c96, %c0_239], %291 {strides = array<i32>} : memref<128x102xbf16, #tpu.memory_space<vmem>>, vector<16x102xbf16>,
    %c0_240 = arith.constant 0 : index
    %c714_241 = arith.constant 714 : index
    %293 = vector.load %arg14[%c0_240, %c714_241] : memref<16x1020xf32, #tpu.memory_space<vmem>>, vector<16x102xf32>
    %c0_242 = arith.constant 0 : index
    %c715_243 = arith.constant 715 : index
    %294 = vector.load %arg14[%c0_242, %c715_243] : memref<16x1020xf32, #tpu.memory_space<vmem>>, vector<16x102xf32>
    %295 = arith.maximumf %293, %294 : vector<16x102xf32>
    %c0_244 = arith.constant 0 : index
    %c816_245 = arith.constant 816 : index
    %296 = vector.load %arg14[%c0_244, %c816_245] : memref<16x1020xf32, #tpu.memory_space<vmem>>, vector<16x102xf32>
    %c0_246 = arith.constant 0 : index
    %c817_247 = arith.constant 817 : index
    %297 = vector.load %arg14[%c0_246, %c817_247] : memref<16x1020xf32, #tpu.memory_space<vmem>>, vector<16x102xf32>
    %298 = arith.maximumf %296, %297 : vector<16x102xf32>
    %299 = arith.maximumf %295, %298 : vector<16x102xf32>
    %300 = arith.truncf %299 : vector<16x102xf32> to vector<16x102xbf16>
    %c112 = arith.constant 112 : index
    %c0_248 = arith.constant 0 : index
    %301 = vector.load %arg15[%c112, %c0_248] : memref<128x102xbf16, #tpu.memory_space<vmem>>, vector<16x102xbf16>
    tpu.vector_store %arg15[%c112, %c0_248], %300 {strides = array<i32>} : memref<128x102xbf16, #tpu.memory_space<vmem>>, vector<16x102xbf16>,
    %c0_249 = arith.constant 0 : index
    %c0_250 = arith.constant 0 : index
    %302 = vector.load %arg15[%c0_249, %c0_250] : memref<128x102xbf16, #tpu.memory_space<vmem>>, vector<128x102xbf16>
    %c0_251 = arith.constant 0 : index
    %c0_252 = arith.constant 0 : index
    %303 = vector.load %arg5[%c0_251, %c0_252] : memref<102x50xbf16, #tpu.memory_space<vmem>>, vector<102x50xbf16>
    %cst_253 = arith.constant dense<0.000000e+00> : vector<128x50xf32>
    %304 = tpu.matmul %302, %303, %cst_253 {dimension_numbers = #tpu.dot_dimension_numbers<[1], [0], [0], [1], [0, 0, 1, 1], [], []>} : vector<128x102xbf16>, vector<102x50xbf16>, vector<128x50xf32> -> vector<128x50xf32>
    %305 = arith.truncf %304 : vector<128x50xf32> to vector<128x50xbf16>
    %c0_254 = arith.constant 0 : index
    %c0_255 = arith.constant 0 : index
    %306 = vector.load %arg16[%c0_254, %c0_255] : memref<128x50xbf16, #tpu.memory_space<vmem>>, vector<128x50xbf16>
    tpu.vector_store %arg16[%c0_254, %c0_255], %305 {strides = array<i32>} : memref<128x50xbf16, #tpu.memory_space<vmem>>, vector<128x50xbf16>,
    %c0_256 = arith.constant 0 : index
    %c0_257 = arith.constant 0 : index
    %307 = vector.load %arg16[%c0_256, %c0_257] : memref<128x50xbf16, #tpu.memory_space<vmem>>, vector<16x50xbf16>
    %c0_258 = arith.constant 0 : index
    %c106 = arith.constant 106 : index
    %308 = vector.load %arg17[%c0_258, %c106] : memref<16x418xbf16, #tpu.memory_space<vmem>>, vector<16x50xbf16>
    tpu.vector_store %arg17[%c0_258, %c106], %307 {strides = array<i32>} : memref<16x418xbf16, #tpu.memory_space<vmem>>, vector<16x50xbf16>,
    %c16_259 = arith.constant 16 : index
    %c0_260 = arith.constant 0 : index
    %309 = vector.load %arg16[%c16_259, %c0_260] : memref<128x50xbf16, #tpu.memory_space<vmem>>, vector<16x50xbf16>
    %c0_261 = arith.constant 0 : index
    %c158 = arith.constant 158 : index
    %310 = vector.load %arg17[%c0_261, %c158] : memref<16x418xbf16, #tpu.memory_space<vmem>>, vector<16x50xbf16>
    tpu.vector_store %arg17[%c0_261, %c158], %309 {strides = array<i32>} : memref<16x418xbf16, #tpu.memory_space<vmem>>, vector<16x50xbf16>,
    %c32_262 = arith.constant 32 : index
    %c0_263 = arith.constant 0 : index
    %311 = vector.load %arg16[%c32_262, %c0_263] : memref<128x50xbf16, #tpu.memory_space<vmem>>, vector<16x50xbf16>
    %c0_264 = arith.constant 0 : index
    %c210 = arith.constant 210 : index
    %312 = vector.load %arg17[%c0_264, %c210] : memref<16x418xbf16, #tpu.memory_space<vmem>>, vector<16x50xbf16>
    tpu.vector_store %arg17[%c0_264, %c210], %311 {strides = array<i32>} : memref<16x418xbf16, #tpu.memory_space<vmem>>, vector<16x50xbf16>,
    %c48_265 = arith.constant 48 : index
    %c0_266 = arith.constant 0 : index
    %313 = vector.load %arg16[%c48_265, %c0_266] : memref<128x50xbf16, #tpu.memory_space<vmem>>, vector<16x50xbf16>
    %c0_267 = arith.constant 0 : index
    %c262 = arith.constant 262 : index
    %314 = vector.load %arg17[%c0_267, %c262] : memref<16x418xbf16, #tpu.memory_space<vmem>>, vector<16x50xbf16>
    tpu.vector_store %arg17[%c0_267, %c262], %313 {strides = array<i32>} : memref<16x418xbf16, #tpu.memory_space<vmem>>, vector<16x50xbf16>,
    %c0_268 = arith.constant 0 : index
    %c0_269 = arith.constant 0 : index
    %315 = vector.load %arg17[%c0_268, %c0_269] : memref<16x418xbf16, #tpu.memory_space<vmem>>, vector<16x312xbf16>
    %c0_270 = arith.constant 0 : index
    %c0_271 = arith.constant 0 : index
    %316 = vector.load %arg18[%c0_270, %c0_271] : memref<144x624xbf16, #tpu.memory_space<vmem>>, vector<16x312xbf16>
    tpu.vector_store %arg18[%c0_270, %c0_271], %315 {strides = array<i32>} : memref<144x624xbf16, #tpu.memory_space<vmem>>, vector<16x312xbf16>,
    %c0_272 = arith.constant 0 : index
    %c1_273 = arith.constant 1 : index
    %317 = vector.load %arg17[%c0_272, %c1_273] : memref<16x418xbf16, #tpu.memory_space<vmem>>, vector<16x312xbf16>
    %c16_274 = arith.constant 16 : index
    %c0_275 = arith.constant 0 : index
    %318 = vector.load %arg18[%c16_274, %c0_275] : memref<144x624xbf16, #tpu.memory_space<vmem>>, vector<16x312xbf16>
    tpu.vector_store %arg18[%c16_274, %c0_275], %317 {strides = array<i32>} : memref<144x624xbf16, #tpu.memory_space<vmem>>, vector<16x312xbf16>,
    %c0_276 = arith.constant 0 : index
    %c2_277 = arith.constant 2 : index
    %319 = vector.load %arg17[%c0_276, %c2_277] : memref<16x418xbf16, #tpu.memory_space<vmem>>, vector<16x312xbf16>
    %c32_278 = arith.constant 32 : index
    %c0_279 = arith.constant 0 : index
    %320 = vector.load %arg18[%c32_278, %c0_279] : memref<144x624xbf16, #tpu.memory_space<vmem>>, vector<16x312xbf16>
    tpu.vector_store %arg18[%c32_278, %c0_279], %319 {strides = array<i32>} : memref<144x624xbf16, #tpu.memory_space<vmem>>, vector<16x312xbf16>,
    %c0_280 = arith.constant 0 : index
    %c52 = arith.constant 52 : index
    %321 = vector.load %arg17[%c0_280, %c52] : memref<16x418xbf16, #tpu.memory_space<vmem>>, vector<16x312xbf16>
    %c48_281 = arith.constant 48 : index
    %c0_282 = arith.constant 0 : index
    %322 = vector.load %arg18[%c48_281, %c0_282] : memref<144x624xbf16, #tpu.memory_space<vmem>>, vector<16x312xbf16>
    tpu.vector_store %arg18[%c48_281, %c0_282], %321 {strides = array<i32>} : memref<144x624xbf16, #tpu.memory_space<vmem>>, vector<16x312xbf16>,
    %c0_283 = arith.constant 0 : index
    %c53 = arith.constant 53 : index
    %323 = vector.load %arg17[%c0_283, %c53] : memref<16x418xbf16, #tpu.memory_space<vmem>>, vector<16x312xbf16>
    %c64_284 = arith.constant 64 : index
    %c0_285 = arith.constant 0 : index
    %324 = vector.load %arg18[%c64_284, %c0_285] : memref<144x624xbf16, #tpu.memory_space<vmem>>, vector<16x312xbf16>
    tpu.vector_store %arg18[%c64_284, %c0_285], %323 {strides = array<i32>} : memref<144x624xbf16, #tpu.memory_space<vmem>>, vector<16x312xbf16>,
    %c0_286 = arith.constant 0 : index
    %c54 = arith.constant 54 : index
    %325 = vector.load %arg17[%c0_286, %c54] : memref<16x418xbf16, #tpu.memory_space<vmem>>, vector<16x312xbf16>
    %c80_287 = arith.constant 80 : index
    %c0_288 = arith.constant 0 : index
    %326 = vector.load %arg18[%c80_287, %c0_288] : memref<144x624xbf16, #tpu.memory_space<vmem>>, vector<16x312xbf16>
    tpu.vector_store %arg18[%c80_287, %c0_288], %325 {strides = array<i32>} : memref<144x624xbf16, #tpu.memory_space<vmem>>, vector<16x312xbf16>,
    %c0_289 = arith.constant 0 : index
    %c104_290 = arith.constant 104 : index
    %327 = vector.load %arg17[%c0_289, %c104_290] : memref<16x418xbf16, #tpu.memory_space<vmem>>, vector<16x312xbf16>
    %c96_291 = arith.constant 96 : index
    %c0_292 = arith.constant 0 : index
    %328 = vector.load %arg18[%c96_291, %c0_292] : memref<144x624xbf16, #tpu.memory_space<vmem>>, vector<16x312xbf16>
    tpu.vector_store %arg18[%c96_291, %c0_292], %327 {strides = array<i32>} : memref<144x624xbf16, #tpu.memory_space<vmem>>, vector<16x312xbf16>,
    %c0_293 = arith.constant 0 : index
    %c105 = arith.constant 105 : index
    %329 = vector.load %arg17[%c0_293, %c105] : memref<16x418xbf16, #tpu.memory_space<vmem>>, vector<16x312xbf16>
    %c112_294 = arith.constant 112 : index
    %c0_295 = arith.constant 0 : index
    %330 = vector.load %arg18[%c112_294, %c0_295] : memref<144x624xbf16, #tpu.memory_space<vmem>>, vector<16x312xbf16>
    tpu.vector_store %arg18[%c112_294, %c0_295], %329 {strides = array<i32>} : memref<144x624xbf16, #tpu.memory_space<vmem>>, vector<16x312xbf16>,
    %c0_296 = arith.constant 0 : index
    %c106_297 = arith.constant 106 : index
    %331 = vector.load %arg17[%c0_296, %c106_297] : memref<16x418xbf16, #tpu.memory_space<vmem>>, vector<16x312xbf16>
    %c128 = arith.constant 128 : index
    %c0_298 = arith.constant 0 : index
    %332 = vector.load %arg18[%c128, %c0_298] : memref<144x624xbf16, #tpu.memory_space<vmem>>, vector<16x312xbf16>
    tpu.vector_store %arg18[%c128, %c0_298], %331 {strides = array<i32>} : memref<144x624xbf16, #tpu.memory_space<vmem>>, vector<16x312xbf16>,
    %c64_299 = arith.constant 64 : index
    %c0_300 = arith.constant 0 : index
    %333 = vector.load %arg16[%c64_299, %c0_300] : memref<128x50xbf16, #tpu.memory_space<vmem>>, vector<16x50xbf16>
    %c0_301 = arith.constant 0 : index
    %c106_302 = arith.constant 106 : index
    %334 = vector.load %arg17[%c0_301, %c106_302] : memref<16x418xbf16, #tpu.memory_space<vmem>>, vector<16x50xbf16>
    tpu.vector_store %arg17[%c0_301, %c106_302], %333 {strides = array<i32>} : memref<16x418xbf16, #tpu.memory_space<vmem>>, vector<16x50xbf16>,
    %c80_303 = arith.constant 80 : index
    %c0_304 = arith.constant 0 : index
    %335 = vector.load %arg16[%c80_303, %c0_304] : memref<128x50xbf16, #tpu.memory_space<vmem>>, vector<16x50xbf16>
    %c0_305 = arith.constant 0 : index
    %c158_306 = arith.constant 158 : index
    %336 = vector.load %arg17[%c0_305, %c158_306] : memref<16x418xbf16, #tpu.memory_space<vmem>>, vector<16x50xbf16>
    tpu.vector_store %arg17[%c0_305, %c158_306], %335 {strides = array<i32>} : memref<16x418xbf16, #tpu.memory_space<vmem>>, vector<16x50xbf16>,
    %c96_307 = arith.constant 96 : index
    %c0_308 = arith.constant 0 : index
    %337 = vector.load %arg16[%c96_307, %c0_308] : memref<128x50xbf16, #tpu.memory_space<vmem>>, vector<16x50xbf16>
    %c0_309 = arith.constant 0 : index
    %c210_310 = arith.constant 210 : index
    %338 = vector.load %arg17[%c0_309, %c210_310] : memref<16x418xbf16, #tpu.memory_space<vmem>>, vector<16x50xbf16>
    tpu.vector_store %arg17[%c0_309, %c210_310], %337 {strides = array<i32>} : memref<16x418xbf16, #tpu.memory_space<vmem>>, vector<16x50xbf16>,
    %c112_311 = arith.constant 112 : index
    %c0_312 = arith.constant 0 : index
    %339 = vector.load %arg16[%c112_311, %c0_312] : memref<128x50xbf16, #tpu.memory_space<vmem>>, vector<16x50xbf16>
    %c0_313 = arith.constant 0 : index
    %c262_314 = arith.constant 262 : index
    %340 = vector.load %arg17[%c0_313, %c262_314] : memref<16x418xbf16, #tpu.memory_space<vmem>>, vector<16x50xbf16>
    tpu.vector_store %arg17[%c0_313, %c262_314], %339 {strides = array<i32>} : memref<16x418xbf16, #tpu.memory_space<vmem>>, vector<16x50xbf16>,
    %c0_315 = arith.constant 0 : index
    %c0_316 = arith.constant 0 : index
    %341 = vector.load %arg17[%c0_315, %c0_316] : memref<16x418xbf16, #tpu.memory_space<vmem>>, vector<16x312xbf16>
    %c0_317 = arith.constant 0 : index
    %c312 = arith.constant 312 : index
    %342 = vector.load %arg18[%c0_317, %c312] : memref<144x624xbf16, #tpu.memory_space<vmem>>, vector<16x312xbf16>
    tpu.vector_store %arg18[%c0_317, %c312], %341 {strides = array<i32>} : memref<144x624xbf16, #tpu.memory_space<vmem>>, vector<16x312xbf16>,
    %c0_318 = arith.constant 0 : index
    %c1_319 = arith.constant 1 : index
    %343 = vector.load %arg17[%c0_318, %c1_319] : memref<16x418xbf16, #tpu.memory_space<vmem>>, vector<16x312xbf16>
    %c16_320 = arith.constant 16 : index
    %c312_321 = arith.constant 312 : index
    %344 = vector.load %arg18[%c16_320, %c312_321] : memref<144x624xbf16, #tpu.memory_space<vmem>>, vector<16x312xbf16>
    tpu.vector_store %arg18[%c16_320, %c312_321], %343 {strides = array<i32>} : memref<144x624xbf16, #tpu.memory_space<vmem>>, vector<16x312xbf16>,
    %c0_322 = arith.constant 0 : index
    %c2_323 = arith.constant 2 : index
    %345 = vector.load %arg17[%c0_322, %c2_323] : memref<16x418xbf16, #tpu.memory_space<vmem>>, vector<16x312xbf16>
    %c32_324 = arith.constant 32 : index
    %c312_325 = arith.constant 312 : index
    %346 = vector.load %arg18[%c32_324, %c312_325] : memref<144x624xbf16, #tpu.memory_space<vmem>>, vector<16x312xbf16>
    tpu.vector_store %arg18[%c32_324, %c312_325], %345 {strides = array<i32>} : memref<144x624xbf16, #tpu.memory_space<vmem>>, vector<16x312xbf16>,
    %c0_326 = arith.constant 0 : index
    %c52_327 = arith.constant 52 : index
    %347 = vector.load %arg17[%c0_326, %c52_327] : memref<16x418xbf16, #tpu.memory_space<vmem>>, vector<16x312xbf16>
    %c48_328 = arith.constant 48 : index
    %c312_329 = arith.constant 312 : index
    %348 = vector.load %arg18[%c48_328, %c312_329] : memref<144x624xbf16, #tpu.memory_space<vmem>>, vector<16x312xbf16>
    tpu.vector_store %arg18[%c48_328, %c312_329], %347 {strides = array<i32>} : memref<144x624xbf16, #tpu.memory_space<vmem>>, vector<16x312xbf16>,
    %c0_330 = arith.constant 0 : index
    %c53_331 = arith.constant 53 : index
    %349 = vector.load %arg17[%c0_330, %c53_331] : memref<16x418xbf16, #tpu.memory_space<vmem>>, vector<16x312xbf16>
    %c64_332 = arith.constant 64 : index
    %c312_333 = arith.constant 312 : index
    %350 = vector.load %arg18[%c64_332, %c312_333] : memref<144x624xbf16, #tpu.memory_space<vmem>>, vector<16x312xbf16>
    tpu.vector_store %arg18[%c64_332, %c312_333], %349 {strides = array<i32>} : memref<144x624xbf16, #tpu.memory_space<vmem>>, vector<16x312xbf16>,
    %c0_334 = arith.constant 0 : index
    %c54_335 = arith.constant 54 : index
    %351 = vector.load %arg17[%c0_334, %c54_335] : memref<16x418xbf16, #tpu.memory_space<vmem>>, vector<16x312xbf16>
    %c80_336 = arith.constant 80 : index
    %c312_337 = arith.constant 312 : index
    %352 = vector.load %arg18[%c80_336, %c312_337] : memref<144x624xbf16, #tpu.memory_space<vmem>>, vector<16x312xbf16>
    tpu.vector_store %arg18[%c80_336, %c312_337], %351 {strides = array<i32>} : memref<144x624xbf16, #tpu.memory_space<vmem>>, vector<16x312xbf16>,
    %c0_338 = arith.constant 0 : index
    %c104_339 = arith.constant 104 : index
    %353 = vector.load %arg17[%c0_338, %c104_339] : memref<16x418xbf16, #tpu.memory_space<vmem>>, vector<16x312xbf16>
    %c96_340 = arith.constant 96 : index
    %c312_341 = arith.constant 312 : index
    %354 = vector.load %arg18[%c96_340, %c312_341] : memref<144x624xbf16, #tpu.memory_space<vmem>>, vector<16x312xbf16>
    tpu.vector_store %arg18[%c96_340, %c312_341], %353 {strides = array<i32>} : memref<144x624xbf16, #tpu.memory_space<vmem>>, vector<16x312xbf16>,
    %c0_342 = arith.constant 0 : index
    %c105_343 = arith.constant 105 : index
    %355 = vector.load %arg17[%c0_342, %c105_343] : memref<16x418xbf16, #tpu.memory_space<vmem>>, vector<16x312xbf16>
    %c112_344 = arith.constant 112 : index
    %c312_345 = arith.constant 312 : index
    %356 = vector.load %arg18[%c112_344, %c312_345] : memref<144x624xbf16, #tpu.memory_space<vmem>>, vector<16x312xbf16>
    tpu.vector_store %arg18[%c112_344, %c312_345], %355 {strides = array<i32>} : memref<144x624xbf16, #tpu.memory_space<vmem>>, vector<16x312xbf16>,
    %c0_346 = arith.constant 0 : index
    %c106_347 = arith.constant 106 : index
    %357 = vector.load %arg17[%c0_346, %c106_347] : memref<16x418xbf16, #tpu.memory_space<vmem>>, vector<16x312xbf16>
    %c128_348 = arith.constant 128 : index
    %c312_349 = arith.constant 312 : index
    %358 = vector.load %arg18[%c128_348, %c312_349] : memref<144x624xbf16, #tpu.memory_space<vmem>>, vector<16x312xbf16>
    tpu.vector_store %arg18[%c128_348, %c312_349], %357 {strides = array<i32>} : memref<144x624xbf16, #tpu.memory_space<vmem>>, vector<16x312xbf16>,
    %c0_350 = arith.constant 0 : index
    %c0_351 = arith.constant 0 : index
    %359 = vector.load %arg6[%c0_350, %c0_351] : memref<32x144xbf16, #tpu.memory_space<vmem>>, vector<32x144xbf16>
    %c0_352 = arith.constant 0 : index
    %c0_353 = arith.constant 0 : index
    %360 = vector.load %arg18[%c0_352, %c0_353] : memref<144x624xbf16, #tpu.memory_space<vmem>>, vector<144x624xbf16>
    %cst_354 = arith.constant dense<0.000000e+00> : vector<32x624xf32>
    %361 = tpu.matmul %359, %360, %cst_354 {dimension_numbers = #tpu.dot_dimension_numbers<[1], [0], [0], [1], [0, 0, 1, 1], [], []>} : vector<32x144xbf16>, vector<144x624xbf16>, vector<32x624xf32> -> vector<32x624xf32>
    %c0_355 = arith.constant 0 : index
    %c0_356 = arith.constant 0 : index
    %362 = vector.load %arg19[%c0_355, %c0_356] : memref<32x624xf32, #tpu.memory_space<vmem>>, vector<32x624xf32>
    tpu.vector_store %arg19[%c0_355, %c0_356], %361 {strides = array<i32>} : memref<32x624xf32, #tpu.memory_space<vmem>>, vector<32x624xf32>,
    %c0_357 = arith.constant 0 : index
    %c0_358 = arith.constant 0 : index
    %363 = vector.load %arg19[%c0_357, %c0_358] : memref<32x624xf32, #tpu.memory_space<vmem>>, vector<32x312xf32>
    %c0_359 = arith.constant 0 : index
    %c0_360 = arith.constant 0 : index
    %364 = vector.load %arg7[%c0_359, %c0_360] : memref<32x1xf32, #tpu.memory_space<vmem>>, vector<32x1xf32>
    %365 = vector.broadcast %364 : vector<32x1xf32> to vector<32x312xf32>
    %366 = arith.addf %363, %365 : vector<32x312xf32>
    %cst_361 = arith.constant 0.000000e+00 : f32
    %367 = vector.broadcast %cst_361 : f32 to vector<32x312xf32>
    %368 = arith.maximumf %366, %367 : vector<32x312xf32>
    %369 = vector.broadcast %9 : vector<1x312xf32> to vector<32x312xf32>
    %370 = arith.mulf %368, %369 : vector<32x312xf32>
    %cst_362 = arith.constant dense<0.000000e+00> : vector<32xf32>
    %371 = vector.multi_reduction <add>, %370, %cst_362 [1] : vector<32x312xf32> to vector<32xf32>
    %372 = vector.shape_cast %371 : vector<32xf32> to vector<32x1xf32>
    %cst_363 = arith.constant 5.000000e-03 : f32
    %373 = vector.broadcast %cst_363 : f32 to vector<32x1xf32>
    %374 = arith.mulf %372, %373 : vector<32x1xf32>
    %375 = vector.broadcast %374 : vector<32x1xf32> to vector<32x312xf32>
    %376 = arith.subf %368, %375 : vector<32x312xf32>
    %377 = vector.broadcast %9 : vector<1x312xf32> to vector<32x312xf32>
    %378 = arith.mulf %376, %377 : vector<32x312xf32>
    %379 = arith.mulf %378, %378 : vector<32x312xf32>
    %cst_364 = arith.constant dense<0.000000e+00> : vector<32xf32>
    %380 = vector.multi_reduction <add>, %379, %cst_364 [1] : vector<32x312xf32> to vector<32xf32>
    %381 = vector.shape_cast %380 : vector<32xf32> to vector<32x1xf32>
    %cst_365 = arith.constant 5.000000e-03 : f32
    %382 = vector.broadcast %cst_365 : f32 to vector<32x1xf32>
    %383 = arith.mulf %381, %382 : vector<32x1xf32>
    %cst_366 = arith.constant 9.99999974E-6 : f32
    %384 = vector.broadcast %cst_366 : f32 to vector<32x1xf32>
    %385 = arith.addf %383, %384 : vector<32x1xf32>
    %386 = math.rsqrt %385 : vector<32x1xf32>
    %387 = vector.broadcast %386 : vector<32x1xf32> to vector<32x312xf32>
    %388 = arith.mulf %378, %387 : vector<32x312xf32>
    %389 = vector.broadcast %10 : vector<1x312xf32> to vector<32x312xf32>
    %390 = arith.mulf %388, %389 : vector<32x312xf32>
    %391 = vector.broadcast %11 : vector<1x312xf32> to vector<32x312xf32>
    %392 = arith.addf %390, %391 : vector<32x312xf32>
    %c0_367 = arith.constant 0 : index
    %c0_368 = arith.constant 0 : index
    %393 = vector.load %arg20[%c0_367, %c0_368] : memref<32x312xf32, #tpu.memory_space<vmem>>, vector<32x312xf32>
    tpu.vector_store %arg20[%c0_367, %c0_368], %392 {strides = array<i32>} : memref<32x312xf32, #tpu.memory_space<vmem>>, vector<32x312xf32>,
    %c0_369 = arith.constant 0 : index
    %c52_370 = arith.constant 52 : index
    %394 = vector.load %arg20[%c0_369, %c52_370] : memref<32x312xf32, #tpu.memory_space<vmem>>, vector<32x52xf32>
    %c0_371 = arith.constant 0 : index
    %c53_372 = arith.constant 53 : index
    %395 = vector.load %arg20[%c0_371, %c53_372] : memref<32x312xf32, #tpu.memory_space<vmem>>, vector<32x52xf32>
    %396 = arith.maximumf %394, %395 : vector<32x52xf32>
    %c0_373 = arith.constant 0 : index
    %c104_374 = arith.constant 104 : index
    %397 = vector.load %arg20[%c0_373, %c104_374] : memref<32x312xf32, #tpu.memory_space<vmem>>, vector<32x52xf32>
    %c0_375 = arith.constant 0 : index
    %c105_376 = arith.constant 105 : index
    %398 = vector.load %arg20[%c0_375, %c105_376] : memref<32x312xf32, #tpu.memory_space<vmem>>, vector<32x52xf32>
    %399 = arith.maximumf %397, %398 : vector<32x52xf32>
    %400 = arith.maximumf %396, %399 : vector<32x52xf32>
    %401 = arith.truncf %400 : vector<32x52xf32> to vector<32x52xbf16>
    %c0_377 = arith.constant 0 : index
    %c0_378 = arith.constant 0 : index
    %402 = vector.load %arg9[%c0_377, %c0_378] : memref<52x25xbf16, #tpu.memory_space<vmem>>, vector<52x25xbf16>
    %cst_379 = arith.constant dense<0.000000e+00> : vector<32x25xf32>
    %403 = tpu.matmul %401, %402, %cst_379 {dimension_numbers = #tpu.dot_dimension_numbers<[1], [0], [0], [1], [0, 0, 1, 1], [], []>} : vector<32x52xbf16>, vector<52x25xbf16>, vector<32x25xf32> -> vector<32x25xf32>
    %c0_380 = arith.constant 0 : index
    %c0_381 = arith.constant 0 : index
    %404 = vector.load %arg21[%c0_380, %c0_381] : memref<32x50xf32, #tpu.memory_space<vmem>>, vector<32x25xf32>
    tpu.vector_store %arg21[%c0_380, %c0_381], %403 {strides = array<i32>} : memref<32x50xf32, #tpu.memory_space<vmem>>, vector<32x25xf32>,
    %c0_382 = arith.constant 0 : index
    %c156 = arith.constant 156 : index
    %405 = vector.load %arg20[%c0_382, %c156] : memref<32x312xf32, #tpu.memory_space<vmem>>, vector<32x52xf32>
    %c0_383 = arith.constant 0 : index
    %c157 = arith.constant 157 : index
    %406 = vector.load %arg20[%c0_383, %c157] : memref<32x312xf32, #tpu.memory_space<vmem>>, vector<32x52xf32>
    %407 = arith.maximumf %405, %406 : vector<32x52xf32>
    %c0_384 = arith.constant 0 : index
    %c208 = arith.constant 208 : index
    %408 = vector.load %arg20[%c0_384, %c208] : memref<32x312xf32, #tpu.memory_space<vmem>>, vector<32x52xf32>
    %c0_385 = arith.constant 0 : index
    %c209 = arith.constant 209 : index
    %409 = vector.load %arg20[%c0_385, %c209] : memref<32x312xf32, #tpu.memory_space<vmem>>, vector<32x52xf32>
    %410 = arith.maximumf %408, %409 : vector<32x52xf32>
    %411 = arith.maximumf %407, %410 : vector<32x52xf32>
    %412 = arith.truncf %411 : vector<32x52xf32> to vector<32x52xbf16>
    %c0_386 = arith.constant 0 : index
    %c0_387 = arith.constant 0 : index
    %413 = vector.load %arg9[%c0_386, %c0_387] : memref<52x25xbf16, #tpu.memory_space<vmem>>, vector<52x25xbf16>
    %cst_388 = arith.constant dense<0.000000e+00> : vector<32x25xf32>
    %414 = tpu.matmul %412, %413, %cst_388 {dimension_numbers = #tpu.dot_dimension_numbers<[1], [0], [0], [1], [0, 0, 1, 1], [], []>} : vector<32x52xbf16>, vector<52x25xbf16>, vector<32x25xf32> -> vector<32x25xf32>
    %c0_389 = arith.constant 0 : index
    %c25 = arith.constant 25 : index
    %415 = vector.load %arg21[%c0_389, %c25] : memref<32x50xf32, #tpu.memory_space<vmem>>, vector<32x25xf32>
    tpu.vector_store %arg21[%c0_389, %c25], %414 {strides = array<i32>} : memref<32x50xf32, #tpu.memory_space<vmem>>, vector<32x25xf32>,
    %c0_390 = arith.constant 0 : index
    %c0_391 = arith.constant 0 : index
    %416 = vector.load %arg21[%c0_390, %c0_391] : memref<32x50xf32, #tpu.memory_space<vmem>>, vector<1x50xf32>
    %c0_392 = arith.constant 0 : index
    %c0_393 = arith.constant 0 : index
    %417 = vector.load %arg22[%c0_392, %c0_393] : memref<2x4096xf32, #tpu.memory_space<vmem>>, vector<1x50xf32>
    tpu.vector_store %arg22[%c0_392, %c0_393], %416 {strides = array<i32>} : memref<2x4096xf32, #tpu.memory_space<vmem>>, vector<1x50xf32>,
    %c1_394 = arith.constant 1 : index
    %c0_395 = arith.constant 0 : index
    %418 = vector.load %arg21[%c1_394, %c0_395] : memref<32x50xf32, #tpu.memory_space<vmem>>, vector<1x50xf32>
    %c0_396 = arith.constant 0 : index
    %c128_397 = arith.constant 128 : index
    %419 = vector.load %arg22[%c0_396, %c128_397] : memref<2x4096xf32, #tpu.memory_space<vmem>>, vector<1x50xf32>
    tpu.vector_store %arg22[%c0_396, %c128_397], %418 {strides = array<i32>} : memref<2x4096xf32, #tpu.memory_space<vmem>>, vector<1x50xf32>,
    %c2_398 = arith.constant 2 : index
    %c0_399 = arith.constant 0 : index
    %420 = vector.load %arg21[%c2_398, %c0_399] : memref<32x50xf32, #tpu.memory_space<vmem>>, vector<1x50xf32>
    %c0_400 = arith.constant 0 : index
    %c256 = arith.constant 256 : index
    %421 = vector.load %arg22[%c0_400, %c256] : memref<2x4096xf32, #tpu.memory_space<vmem>>, vector<1x50xf32>
    tpu.vector_store %arg22[%c0_400, %c256], %420 {strides = array<i32>} : memref<2x4096xf32, #tpu.memory_space<vmem>>, vector<1x50xf32>,
    %c3_401 = arith.constant 3 : index
    %c0_402 = arith.constant 0 : index
    %422 = vector.load %arg21[%c3_401, %c0_402] : memref<32x50xf32, #tpu.memory_space<vmem>>, vector<1x50xf32>
    %c0_403 = arith.constant 0 : index
    %c384 = arith.constant 384 : index
    %423 = vector.load %arg22[%c0_403, %c384] : memref<2x4096xf32, #tpu.memory_space<vmem>>, vector<1x50xf32>
    tpu.vector_store %arg22[%c0_403, %c384], %422 {strides = array<i32>} : memref<2x4096xf32, #tpu.memory_space<vmem>>, vector<1x50xf32>,
    %c4_404 = arith.constant 4 : index
    %c0_405 = arith.constant 0 : index
    %424 = vector.load %arg21[%c4_404, %c0_405] : memref<32x50xf32, #tpu.memory_space<vmem>>, vector<1x50xf32>
    %c0_406 = arith.constant 0 : index
    %c512_407 = arith.constant 512 : index
    %425 = vector.load %arg22[%c0_406, %c512_407] : memref<2x4096xf32, #tpu.memory_space<vmem>>, vector<1x50xf32>
    tpu.vector_store %arg22[%c0_406, %c512_407], %424 {strides = array<i32>} : memref<2x4096xf32, #tpu.memory_space<vmem>>, vector<1x50xf32>,
    %c5_408 = arith.constant 5 : index
    %c0_409 = arith.constant 0 : index
    %426 = vector.load %arg21[%c5_408, %c0_409] : memref<32x50xf32, #tpu.memory_space<vmem>>, vector<1x50xf32>
    %c0_410 = arith.constant 0 : index
    %c640 = arith.constant 640 : index
    %427 = vector.load %arg22[%c0_410, %c640] : memref<2x4096xf32, #tpu.memory_space<vmem>>, vector<1x50xf32>
    tpu.vector_store %arg22[%c0_410, %c640], %426 {strides = array<i32>} : memref<2x4096xf32, #tpu.memory_space<vmem>>, vector<1x50xf32>,
    %c6_411 = arith.constant 6 : index
    %c0_412 = arith.constant 0 : index
    %428 = vector.load %arg21[%c6_411, %c0_412] : memref<32x50xf32, #tpu.memory_space<vmem>>, vector<1x50xf32>
    %c0_413 = arith.constant 0 : index
    %c768 = arith.constant 768 : index
    %429 = vector.load %arg22[%c0_413, %c768] : memref<2x4096xf32, #tpu.memory_space<vmem>>, vector<1x50xf32>
    tpu.vector_store %arg22[%c0_413, %c768], %428 {strides = array<i32>} : memref<2x4096xf32, #tpu.memory_space<vmem>>, vector<1x50xf32>,
    %c7_414 = arith.constant 7 : index
    %c0_415 = arith.constant 0 : index
    %430 = vector.load %arg21[%c7_414, %c0_415] : memref<32x50xf32, #tpu.memory_space<vmem>>, vector<1x50xf32>
    %c0_416 = arith.constant 0 : index
    %c896 = arith.constant 896 : index
    %431 = vector.load %arg22[%c0_416, %c896] : memref<2x4096xf32, #tpu.memory_space<vmem>>, vector<1x50xf32>
    tpu.vector_store %arg22[%c0_416, %c896], %430 {strides = array<i32>} : memref<2x4096xf32, #tpu.memory_space<vmem>>, vector<1x50xf32>,
    %c8_417 = arith.constant 8 : index
    %c0_418 = arith.constant 0 : index
    %432 = vector.load %arg21[%c8_417, %c0_418] : memref<32x50xf32, #tpu.memory_space<vmem>>, vector<1x50xf32>
    %c0_419 = arith.constant 0 : index
    %c1024 = arith.constant 1024 : index
    %433 = vector.load %arg22[%c0_419, %c1024] : memref<2x4096xf32, #tpu.memory_space<vmem>>, vector<1x50xf32>
    tpu.vector_store %arg22[%c0_419, %c1024], %432 {strides = array<i32>} : memref<2x4096xf32, #tpu.memory_space<vmem>>, vector<1x50xf32>,
    %c9 = arith.constant 9 : index
    %c0_420 = arith.constant 0 : index
    %434 = vector.load %arg21[%c9, %c0_420] : memref<32x50xf32, #tpu.memory_space<vmem>>, vector<1x50xf32>
    %c0_421 = arith.constant 0 : index
    %c1152 = arith.constant 1152 : index
    %435 = vector.load %arg22[%c0_421, %c1152] : memref<2x4096xf32, #tpu.memory_space<vmem>>, vector<1x50xf32>
    tpu.vector_store %arg22[%c0_421, %c1152], %434 {strides = array<i32>} : memref<2x4096xf32, #tpu.memory_space<vmem>>, vector<1x50xf32>,
    %c10 = arith.constant 10 : index
    %c0_422 = arith.constant 0 : index
    %436 = vector.load %arg21[%c10, %c0_422] : memref<32x50xf32, #tpu.memory_space<vmem>>, vector<1x50xf32>
    %c0_423 = arith.constant 0 : index
    %c1280 = arith.constant 1280 : index
    %437 = vector.load %arg22[%c0_423, %c1280] : memref<2x4096xf32, #tpu.memory_space<vmem>>, vector<1x50xf32>
    tpu.vector_store %arg22[%c0_423, %c1280], %436 {strides = array<i32>} : memref<2x4096xf32, #tpu.memory_space<vmem>>, vector<1x50xf32>,
    %c11 = arith.constant 11 : index
    %c0_424 = arith.constant 0 : index
    %438 = vector.load %arg21[%c11, %c0_424] : memref<32x50xf32, #tpu.memory_space<vmem>>, vector<1x50xf32>
    %c0_425 = arith.constant 0 : index
    %c1408 = arith.constant 1408 : index
    %439 = vector.load %arg22[%c0_425, %c1408] : memref<2x4096xf32, #tpu.memory_space<vmem>>, vector<1x50xf32>
    tpu.vector_store %arg22[%c0_425, %c1408], %438 {strides = array<i32>} : memref<2x4096xf32, #tpu.memory_space<vmem>>, vector<1x50xf32>,
    %c12 = arith.constant 12 : index
    %c0_426 = arith.constant 0 : index
    %440 = vector.load %arg21[%c12, %c0_426] : memref<32x50xf32, #tpu.memory_space<vmem>>, vector<1x50xf32>
    %c0_427 = arith.constant 0 : index
    %c1536 = arith.constant 1536 : index
    %441 = vector.load %arg22[%c0_427, %c1536] : memref<2x4096xf32, #tpu.memory_space<vmem>>, vector<1x50xf32>
    tpu.vector_store %arg22[%c0_427, %c1536], %440 {strides = array<i32>} : memref<2x4096xf32, #tpu.memory_space<vmem>>, vector<1x50xf32>,
    %c13 = arith.constant 13 : index
    %c0_428 = arith.constant 0 : index
    %442 = vector.load %arg21[%c13, %c0_428] : memref<32x50xf32, #tpu.memory_space<vmem>>, vector<1x50xf32>
    %c0_429 = arith.constant 0 : index
    %c1664 = arith.constant 1664 : index
    %443 = vector.load %arg22[%c0_429, %c1664] : memref<2x4096xf32, #tpu.memory_space<vmem>>, vector<1x50xf32>
    tpu.vector_store %arg22[%c0_429, %c1664], %442 {strides = array<i32>} : memref<2x4096xf32, #tpu.memory_space<vmem>>, vector<1x50xf32>,
    %c14 = arith.constant 14 : index
    %c0_430 = arith.constant 0 : index
    %444 = vector.load %arg21[%c14, %c0_430] : memref<32x50xf32, #tpu.memory_space<vmem>>, vector<1x50xf32>
    %c0_431 = arith.constant 0 : index
    %c1792 = arith.constant 1792 : index
    %445 = vector.load %arg22[%c0_431, %c1792] : memref<2x4096xf32, #tpu.memory_space<vmem>>, vector<1x50xf32>
    tpu.vector_store %arg22[%c0_431, %c1792], %444 {strides = array<i32>} : memref<2x4096xf32, #tpu.memory_space<vmem>>, vector<1x50xf32>,
    %c15 = arith.constant 15 : index
    %c0_432 = arith.constant 0 : index
    %446 = vector.load %arg21[%c15, %c0_432] : memref<32x50xf32, #tpu.memory_space<vmem>>, vector<1x50xf32>
    %c0_433 = arith.constant 0 : index
    %c1920 = arith.constant 1920 : index
    %447 = vector.load %arg22[%c0_433, %c1920] : memref<2x4096xf32, #tpu.memory_space<vmem>>, vector<1x50xf32>
    tpu.vector_store %arg22[%c0_433, %c1920], %446 {strides = array<i32>} : memref<2x4096xf32, #tpu.memory_space<vmem>>, vector<1x50xf32>,
    %c16_434 = arith.constant 16 : index
    %c0_435 = arith.constant 0 : index
    %448 = vector.load %arg21[%c16_434, %c0_435] : memref<32x50xf32, #tpu.memory_space<vmem>>, vector<1x50xf32>
    %c0_436 = arith.constant 0 : index
    %c2048 = arith.constant 2048 : index
    %449 = vector.load %arg22[%c0_436, %c2048] : memref<2x4096xf32, #tpu.memory_space<vmem>>, vector<1x50xf32>
    tpu.vector_store %arg22[%c0_436, %c2048], %448 {strides = array<i32>} : memref<2x4096xf32, #tpu.memory_space<vmem>>, vector<1x50xf32>,
    %c17 = arith.constant 17 : index
    %c0_437 = arith.constant 0 : index
    %450 = vector.load %arg21[%c17, %c0_437] : memref<32x50xf32, #tpu.memory_space<vmem>>, vector<1x50xf32>
    %c0_438 = arith.constant 0 : index
    %c2176 = arith.constant 2176 : index
    %451 = vector.load %arg22[%c0_438, %c2176] : memref<2x4096xf32, #tpu.memory_space<vmem>>, vector<1x50xf32>
    tpu.vector_store %arg22[%c0_438, %c2176], %450 {strides = array<i32>} : memref<2x4096xf32, #tpu.memory_space<vmem>>, vector<1x50xf32>,
    %c18 = arith.constant 18 : index
    %c0_439 = arith.constant 0 : index
    %452 = vector.load %arg21[%c18, %c0_439] : memref<32x50xf32, #tpu.memory_space<vmem>>, vector<1x50xf32>
    %c0_440 = arith.constant 0 : index
    %c2304 = arith.constant 2304 : index
    %453 = vector.load %arg22[%c0_440, %c2304] : memref<2x4096xf32, #tpu.memory_space<vmem>>, vector<1x50xf32>
    tpu.vector_store %arg22[%c0_440, %c2304], %452 {strides = array<i32>} : memref<2x4096xf32, #tpu.memory_space<vmem>>, vector<1x50xf32>,
    %c19 = arith.constant 19 : index
    %c0_441 = arith.constant 0 : index
    %454 = vector.load %arg21[%c19, %c0_441] : memref<32x50xf32, #tpu.memory_space<vmem>>, vector<1x50xf32>
    %c0_442 = arith.constant 0 : index
    %c2432 = arith.constant 2432 : index
    %455 = vector.load %arg22[%c0_442, %c2432] : memref<2x4096xf32, #tpu.memory_space<vmem>>, vector<1x50xf32>
    tpu.vector_store %arg22[%c0_442, %c2432], %454 {strides = array<i32>} : memref<2x4096xf32, #tpu.memory_space<vmem>>, vector<1x50xf32>,
    %c20 = arith.constant 20 : index
    %c0_443 = arith.constant 0 : index
    %456 = vector.load %arg21[%c20, %c0_443] : memref<32x50xf32, #tpu.memory_space<vmem>>, vector<1x50xf32>
    %c0_444 = arith.constant 0 : index
    %c2560 = arith.constant 2560 : index
    %457 = vector.load %arg22[%c0_444, %c2560] : memref<2x4096xf32, #tpu.memory_space<vmem>>, vector<1x50xf32>
    tpu.vector_store %arg22[%c0_444, %c2560], %456 {strides = array<i32>} : memref<2x4096xf32, #tpu.memory_space<vmem>>, vector<1x50xf32>,
    %c21 = arith.constant 21 : index
    %c0_445 = arith.constant 0 : index
    %458 = vector.load %arg21[%c21, %c0_445] : memref<32x50xf32, #tpu.memory_space<vmem>>, vector<1x50xf32>
    %c0_446 = arith.constant 0 : index
    %c2688 = arith.constant 2688 : index
    %459 = vector.load %arg22[%c0_446, %c2688] : memref<2x4096xf32, #tpu.memory_space<vmem>>, vector<1x50xf32>
    tpu.vector_store %arg22[%c0_446, %c2688], %458 {strides = array<i32>} : memref<2x4096xf32, #tpu.memory_space<vmem>>, vector<1x50xf32>,
    %c22 = arith.constant 22 : index
    %c0_447 = arith.constant 0 : index
    %460 = vector.load %arg21[%c22, %c0_447] : memref<32x50xf32, #tpu.memory_space<vmem>>, vector<1x50xf32>
    %c0_448 = arith.constant 0 : index
    %c2816 = arith.constant 2816 : index
    %461 = vector.load %arg22[%c0_448, %c2816] : memref<2x4096xf32, #tpu.memory_space<vmem>>, vector<1x50xf32>
    tpu.vector_store %arg22[%c0_448, %c2816], %460 {strides = array<i32>} : memref<2x4096xf32, #tpu.memory_space<vmem>>, vector<1x50xf32>,
    %c23 = arith.constant 23 : index
    %c0_449 = arith.constant 0 : index
    %462 = vector.load %arg21[%c23, %c0_449] : memref<32x50xf32, #tpu.memory_space<vmem>>, vector<1x50xf32>
    %c0_450 = arith.constant 0 : index
    %c2944 = arith.constant 2944 : index
    %463 = vector.load %arg22[%c0_450, %c2944] : memref<2x4096xf32, #tpu.memory_space<vmem>>, vector<1x50xf32>
    tpu.vector_store %arg22[%c0_450, %c2944], %462 {strides = array<i32>} : memref<2x4096xf32, #tpu.memory_space<vmem>>, vector<1x50xf32>,
    %c24 = arith.constant 24 : index
    %c0_451 = arith.constant 0 : index
    %464 = vector.load %arg21[%c24, %c0_451] : memref<32x50xf32, #tpu.memory_space<vmem>>, vector<1x50xf32>
    %c0_452 = arith.constant 0 : index
    %c3072 = arith.constant 3072 : index
    %465 = vector.load %arg22[%c0_452, %c3072] : memref<2x4096xf32, #tpu.memory_space<vmem>>, vector<1x50xf32>
    tpu.vector_store %arg22[%c0_452, %c3072], %464 {strides = array<i32>} : memref<2x4096xf32, #tpu.memory_space<vmem>>, vector<1x50xf32>,
    %c25_453 = arith.constant 25 : index
    %c0_454 = arith.constant 0 : index
    %466 = vector.load %arg21[%c25_453, %c0_454] : memref<32x50xf32, #tpu.memory_space<vmem>>, vector<1x50xf32>
    %c0_455 = arith.constant 0 : index
    %c3200 = arith.constant 3200 : index
    %467 = vector.load %arg22[%c0_455, %c3200] : memref<2x4096xf32, #tpu.memory_space<vmem>>, vector<1x50xf32>
    tpu.vector_store %arg22[%c0_455, %c3200], %466 {strides = array<i32>} : memref<2x4096xf32, #tpu.memory_space<vmem>>, vector<1x50xf32>,
    %c26 = arith.constant 26 : index
    %c0_456 = arith.constant 0 : index
    %468 = vector.load %arg21[%c26, %c0_456] : memref<32x50xf32, #tpu.memory_space<vmem>>, vector<1x50xf32>
    %c0_457 = arith.constant 0 : index
    %c3328 = arith.constant 3328 : index
    %469 = vector.load %arg22[%c0_457, %c3328] : memref<2x4096xf32, #tpu.memory_space<vmem>>, vector<1x50xf32>
    tpu.vector_store %arg22[%c0_457, %c3328], %468 {strides = array<i32>} : memref<2x4096xf32, #tpu.memory_space<vmem>>, vector<1x50xf32>,
    %c27 = arith.constant 27 : index
    %c0_458 = arith.constant 0 : index
    %470 = vector.load %arg21[%c27, %c0_458] : memref<32x50xf32, #tpu.memory_space<vmem>>, vector<1x50xf32>
    %c0_459 = arith.constant 0 : index
    %c3456 = arith.constant 3456 : index
    %471 = vector.load %arg22[%c0_459, %c3456] : memref<2x4096xf32, #tpu.memory_space<vmem>>, vector<1x50xf32>
    tpu.vector_store %arg22[%c0_459, %c3456], %470 {strides = array<i32>} : memref<2x4096xf32, #tpu.memory_space<vmem>>, vector<1x50xf32>,
    %c28 = arith.constant 28 : index
    %c0_460 = arith.constant 0 : index
    %472 = vector.load %arg21[%c28, %c0_460] : memref<32x50xf32, #tpu.memory_space<vmem>>, vector<1x50xf32>
    %c0_461 = arith.constant 0 : index
    %c3584 = arith.constant 3584 : index
    %473 = vector.load %arg22[%c0_461, %c3584] : memref<2x4096xf32, #tpu.memory_space<vmem>>, vector<1x50xf32>
    tpu.vector_store %arg22[%c0_461, %c3584], %472 {strides = array<i32>} : memref<2x4096xf32, #tpu.memory_space<vmem>>, vector<1x50xf32>,
    %c29 = arith.constant 29 : index
    %c0_462 = arith.constant 0 : index
    %474 = vector.load %arg21[%c29, %c0_462] : memref<32x50xf32, #tpu.memory_space<vmem>>, vector<1x50xf32>
    %c0_463 = arith.constant 0 : index
    %c3712 = arith.constant 3712 : index
    %475 = vector.load %arg22[%c0_463, %c3712] : memref<2x4096xf32, #tpu.memory_space<vmem>>, vector<1x50xf32>
    tpu.vector_store %arg22[%c0_463, %c3712], %474 {strides = array<i32>} : memref<2x4096xf32, #tpu.memory_space<vmem>>, vector<1x50xf32>,
    %c30 = arith.constant 30 : index
    %c0_464 = arith.constant 0 : index
    %476 = vector.load %arg21[%c30, %c0_464] : memref<32x50xf32, #tpu.memory_space<vmem>>, vector<1x50xf32>
    %c0_465 = arith.constant 0 : index
    %c3840 = arith.constant 3840 : index
    %477 = vector.load %arg22[%c0_465, %c3840] : memref<2x4096xf32, #tpu.memory_space<vmem>>, vector<1x50xf32>
    tpu.vector_store %arg22[%c0_465, %c3840], %476 {strides = array<i32>} : memref<2x4096xf32, #tpu.memory_space<vmem>>, vector<1x50xf32>,
    %c31 = arith.constant 31 : index
    %c0_466 = arith.constant 0 : index
    %478 = vector.load %arg21[%c31, %c0_466] : memref<32x50xf32, #tpu.memory_space<vmem>>, vector<1x50xf32>
    %c0_467 = arith.constant 0 : index
    %c3968 = arith.constant 3968 : index
    %479 = vector.load %arg22[%c0_467, %c3968] : memref<2x4096xf32, #tpu.memory_space<vmem>>, vector<1x50xf32>
    tpu.vector_store %arg22[%c0_467, %c3968], %478 {strides = array<i32>} : memref<2x4096xf32, #tpu.memory_space<vmem>>, vector<1x50xf32>,
    %c0_468 = arith.constant 0 : index
    %c312_469 = arith.constant 312 : index
    %480 = vector.load %arg19[%c0_468, %c312_469] : memref<32x624xf32, #tpu.memory_space<vmem>>, vector<32x312xf32>
    %c0_470 = arith.constant 0 : index
    %c0_471 = arith.constant 0 : index
    %481 = vector.load %arg7[%c0_470, %c0_471] : memref<32x1xf32, #tpu.memory_space<vmem>>, vector<32x1xf32>
    %482 = vector.broadcast %481 : vector<32x1xf32> to vector<32x312xf32>
    %483 = arith.addf %480, %482 : vector<32x312xf32>
    %cst_472 = arith.constant 0.000000e+00 : f32
    %484 = vector.broadcast %cst_472 : f32 to vector<32x312xf32>
    %485 = arith.maximumf %483, %484 : vector<32x312xf32>
    %486 = vector.broadcast %9 : vector<1x312xf32> to vector<32x312xf32>
    %487 = arith.mulf %485, %486 : vector<32x312xf32>
    %cst_473 = arith.constant dense<0.000000e+00> : vector<32xf32>
    %488 = vector.multi_reduction <add>, %487, %cst_473 [1] : vector<32x312xf32> to vector<32xf32>
    %489 = vector.shape_cast %488 : vector<32xf32> to vector<32x1xf32>
    %cst_474 = arith.constant 5.000000e-03 : f32
    %490 = vector.broadcast %cst_474 : f32 to vector<32x1xf32>
    %491 = arith.mulf %489, %490 : vector<32x1xf32>
    %492 = vector.broadcast %491 : vector<32x1xf32> to vector<32x312xf32>
    %493 = arith.subf %485, %492 : vector<32x312xf32>
    %494 = vector.broadcast %9 : vector<1x312xf32> to vector<32x312xf32>
    %495 = arith.mulf %493, %494 : vector<32x312xf32>
    %496 = arith.mulf %495, %495 : vector<32x312xf32>
    %cst_475 = arith.constant dense<0.000000e+00> : vector<32xf32>
    %497 = vector.multi_reduction <add>, %496, %cst_475 [1] : vector<32x312xf32> to vector<32xf32>
    %498 = vector.shape_cast %497 : vector<32xf32> to vector<32x1xf32>
    %cst_476 = arith.constant 5.000000e-03 : f32
    %499 = vector.broadcast %cst_476 : f32 to vector<32x1xf32>
    %500 = arith.mulf %498, %499 : vector<32x1xf32>
    %cst_477 = arith.constant 9.99999974E-6 : f32
    %501 = vector.broadcast %cst_477 : f32 to vector<32x1xf32>
    %502 = arith.addf %500, %501 : vector<32x1xf32>
    %503 = math.rsqrt %502 : vector<32x1xf32>
    %504 = vector.broadcast %503 : vector<32x1xf32> to vector<32x312xf32>
    %505 = arith.mulf %495, %504 : vector<32x312xf32>
    %506 = vector.broadcast %10 : vector<1x312xf32> to vector<32x312xf32>
    %507 = arith.mulf %505, %506 : vector<32x312xf32>
    %508 = vector.broadcast %11 : vector<1x312xf32> to vector<32x312xf32>
    %509 = arith.addf %507, %508 : vector<32x312xf32>
    %c0_478 = arith.constant 0 : index
    %c0_479 = arith.constant 0 : index
    %510 = vector.load %arg20[%c0_478, %c0_479] : memref<32x312xf32, #tpu.memory_space<vmem>>, vector<32x312xf32>
    tpu.vector_store %arg20[%c0_478, %c0_479], %509 {strides = array<i32>} : memref<32x312xf32, #tpu.memory_space<vmem>>, vector<32x312xf32>,
    %c0_480 = arith.constant 0 : index
    %c52_481 = arith.constant 52 : index
    %511 = vector.load %arg20[%c0_480, %c52_481] : memref<32x312xf32, #tpu.memory_space<vmem>>, vector<32x52xf32>
    %c0_482 = arith.constant 0 : index
    %c53_483 = arith.constant 53 : index
    %512 = vector.load %arg20[%c0_482, %c53_483] : memref<32x312xf32, #tpu.memory_space<vmem>>, vector<32x52xf32>
    %513 = arith.maximumf %511, %512 : vector<32x52xf32>
    %c0_484 = arith.constant 0 : index
    %c104_485 = arith.constant 104 : index
    %514 = vector.load %arg20[%c0_484, %c104_485] : memref<32x312xf32, #tpu.memory_space<vmem>>, vector<32x52xf32>
    %c0_486 = arith.constant 0 : index
    %c105_487 = arith.constant 105 : index
    %515 = vector.load %arg20[%c0_486, %c105_487] : memref<32x312xf32, #tpu.memory_space<vmem>>, vector<32x52xf32>
    %516 = arith.maximumf %514, %515 : vector<32x52xf32>
    %517 = arith.maximumf %513, %516 : vector<32x52xf32>
    %518 = arith.truncf %517 : vector<32x52xf32> to vector<32x52xbf16>
    %c0_488 = arith.constant 0 : index
    %c0_489 = arith.constant 0 : index
    %519 = vector.load %arg9[%c0_488, %c0_489] : memref<52x25xbf16, #tpu.memory_space<vmem>>, vector<52x25xbf16>
    %cst_490 = arith.constant dense<0.000000e+00> : vector<32x25xf32>
    %520 = tpu.matmul %518, %519, %cst_490 {dimension_numbers = #tpu.dot_dimension_numbers<[1], [0], [0], [1], [0, 0, 1, 1], [], []>} : vector<32x52xbf16>, vector<52x25xbf16>, vector<32x25xf32> -> vector<32x25xf32>
    %c0_491 = arith.constant 0 : index
    %c0_492 = arith.constant 0 : index
    %521 = vector.load %arg21[%c0_491, %c0_492] : memref<32x50xf32, #tpu.memory_space<vmem>>, vector<32x25xf32>
    tpu.vector_store %arg21[%c0_491, %c0_492], %520 {strides = array<i32>} : memref<32x50xf32, #tpu.memory_space<vmem>>, vector<32x25xf32>,
    %c0_493 = arith.constant 0 : index
    %c156_494 = arith.constant 156 : index
    %522 = vector.load %arg20[%c0_493, %c156_494] : memref<32x312xf32, #tpu.memory_space<vmem>>, vector<32x52xf32>
    %c0_495 = arith.constant 0 : index
    %c157_496 = arith.constant 157 : index
    %523 = vector.load %arg20[%c0_495, %c157_496] : memref<32x312xf32, #tpu.memory_space<vmem>>, vector<32x52xf32>
    %524 = arith.maximumf %522, %523 : vector<32x52xf32>
    %c0_497 = arith.constant 0 : index
    %c208_498 = arith.constant 208 : index
    %525 = vector.load %arg20[%c0_497, %c208_498] : memref<32x312xf32, #tpu.memory_space<vmem>>, vector<32x52xf32>
    %c0_499 = arith.constant 0 : index
    %c209_500 = arith.constant 209 : index
    %526 = vector.load %arg20[%c0_499, %c209_500] : memref<32x312xf32, #tpu.memory_space<vmem>>, vector<32x52xf32>
    %527 = arith.maximumf %525, %526 : vector<32x52xf32>
    %528 = arith.maximumf %524, %527 : vector<32x52xf32>
    %529 = arith.truncf %528 : vector<32x52xf32> to vector<32x52xbf16>
    %c0_501 = arith.constant 0 : index
    %c0_502 = arith.constant 0 : index
    %530 = vector.load %arg9[%c0_501, %c0_502] : memref<52x25xbf16, #tpu.memory_space<vmem>>, vector<52x25xbf16>
    %cst_503 = arith.constant dense<0.000000e+00> : vector<32x25xf32>
    %531 = tpu.matmul %529, %530, %cst_503 {dimension_numbers = #tpu.dot_dimension_numbers<[1], [0], [0], [1], [0, 0, 1, 1], [], []>} : vector<32x52xbf16>, vector<52x25xbf16>, vector<32x25xf32> -> vector<32x25xf32>
    %c0_504 = arith.constant 0 : index
    %c25_505 = arith.constant 25 : index
    %532 = vector.load %arg21[%c0_504, %c25_505] : memref<32x50xf32, #tpu.memory_space<vmem>>, vector<32x25xf32>
    tpu.vector_store %arg21[%c0_504, %c25_505], %531 {strides = array<i32>} : memref<32x50xf32, #tpu.memory_space<vmem>>, vector<32x25xf32>,
    %c0_506 = arith.constant 0 : index
    %c0_507 = arith.constant 0 : index
    %533 = vector.load %arg21[%c0_506, %c0_507] : memref<32x50xf32, #tpu.memory_space<vmem>>, vector<1x50xf32>
    %c1_508 = arith.constant 1 : index
    %c0_509 = arith.constant 0 : index
    %534 = vector.load %arg22[%c1_508, %c0_509] : memref<2x4096xf32, #tpu.memory_space<vmem>>, vector<1x50xf32>
    tpu.vector_store %arg22[%c1_508, %c0_509], %533 {strides = array<i32>} : memref<2x4096xf32, #tpu.memory_space<vmem>>, vector<1x50xf32>,
    %c1_510 = arith.constant 1 : index
    %c0_511 = arith.constant 0 : index
    %535 = vector.load %arg21[%c1_510, %c0_511] : memref<32x50xf32, #tpu.memory_space<vmem>>, vector<1x50xf32>
    %c1_512 = arith.constant 1 : index
    %c128_513 = arith.constant 128 : index
    %536 = vector.load %arg22[%c1_512, %c128_513] : memref<2x4096xf32, #tpu.memory_space<vmem>>, vector<1x50xf32>
    tpu.vector_store %arg22[%c1_512, %c128_513], %535 {strides = array<i32>} : memref<2x4096xf32, #tpu.memory_space<vmem>>, vector<1x50xf32>,
    %c2_514 = arith.constant 2 : index
    %c0_515 = arith.constant 0 : index
    %537 = vector.load %arg21[%c2_514, %c0_515] : memref<32x50xf32, #tpu.memory_space<vmem>>, vector<1x50xf32>
    %c1_516 = arith.constant 1 : index
    %c256_517 = arith.constant 256 : index
    %538 = vector.load %arg22[%c1_516, %c256_517] : memref<2x4096xf32, #tpu.memory_space<vmem>>, vector<1x50xf32>
    tpu.vector_store %arg22[%c1_516, %c256_517], %537 {strides = array<i32>} : memref<2x4096xf32, #tpu.memory_space<vmem>>, vector<1x50xf32>,
    %c3_518 = arith.constant 3 : index
    %c0_519 = arith.constant 0 : index
    %539 = vector.load %arg21[%c3_518, %c0_519] : memref<32x50xf32, #tpu.memory_space<vmem>>, vector<1x50xf32>
    %c1_520 = arith.constant 1 : index
    %c384_521 = arith.constant 384 : index
    %540 = vector.load %arg22[%c1_520, %c384_521] : memref<2x4096xf32, #tpu.memory_space<vmem>>, vector<1x50xf32>
    tpu.vector_store %arg22[%c1_520, %c384_521], %539 {strides = array<i32>} : memref<2x4096xf32, #tpu.memory_space<vmem>>, vector<1x50xf32>,
    %c4_522 = arith.constant 4 : index
    %c0_523 = arith.constant 0 : index
    %541 = vector.load %arg21[%c4_522, %c0_523] : memref<32x50xf32, #tpu.memory_space<vmem>>, vector<1x50xf32>
    %c1_524 = arith.constant 1 : index
    %c512_525 = arith.constant 512 : index
    %542 = vector.load %arg22[%c1_524, %c512_525] : memref<2x4096xf32, #tpu.memory_space<vmem>>, vector<1x50xf32>
    tpu.vector_store %arg22[%c1_524, %c512_525], %541 {strides = array<i32>} : memref<2x4096xf32, #tpu.memory_space<vmem>>, vector<1x50xf32>,
    %c5_526 = arith.constant 5 : index
    %c0_527 = arith.constant 0 : index
    %543 = vector.load %arg21[%c5_526, %c0_527] : memref<32x50xf32, #tpu.memory_space<vmem>>, vector<1x50xf32>
    %c1_528 = arith.constant 1 : index
    %c640_529 = arith.constant 640 : index
    %544 = vector.load %arg22[%c1_528, %c640_529] : memref<2x4096xf32, #tpu.memory_space<vmem>>, vector<1x50xf32>
    tpu.vector_store %arg22[%c1_528, %c640_529], %543 {strides = array<i32>} : memref<2x4096xf32, #tpu.memory_space<vmem>>, vector<1x50xf32>,
    %c6_530 = arith.constant 6 : index
    %c0_531 = arith.constant 0 : index
    %545 = vector.load %arg21[%c6_530, %c0_531] : memref<32x50xf32, #tpu.memory_space<vmem>>, vector<1x50xf32>
    %c1_532 = arith.constant 1 : index
    %c768_533 = arith.constant 768 : index
    %546 = vector.load %arg22[%c1_532, %c768_533] : memref<2x4096xf32, #tpu.memory_space<vmem>>, vector<1x50xf32>
    tpu.vector_store %arg22[%c1_532, %c768_533], %545 {strides = array<i32>} : memref<2x4096xf32, #tpu.memory_space<vmem>>, vector<1x50xf32>,
    %c7_534 = arith.constant 7 : index
    %c0_535 = arith.constant 0 : index
    %547 = vector.load %arg21[%c7_534, %c0_535] : memref<32x50xf32, #tpu.memory_space<vmem>>, vector<1x50xf32>
    %c1_536 = arith.constant 1 : index
    %c896_537 = arith.constant 896 : index
    %548 = vector.load %arg22[%c1_536, %c896_537] : memref<2x4096xf32, #tpu.memory_space<vmem>>, vector<1x50xf32>
    tpu.vector_store %arg22[%c1_536, %c896_537], %547 {strides = array<i32>} : memref<2x4096xf32, #tpu.memory_space<vmem>>, vector<1x50xf32>,
    %c8_538 = arith.constant 8 : index
    %c0_539 = arith.constant 0 : index
    %549 = vector.load %arg21[%c8_538, %c0_539] : memref<32x50xf32, #tpu.memory_space<vmem>>, vector<1x50xf32>
    %c1_540 = arith.constant 1 : index
    %c1024_541 = arith.constant 1024 : index
    %550 = vector.load %arg22[%c1_540, %c1024_541] : memref<2x4096xf32, #tpu.memory_space<vmem>>, vector<1x50xf32>
    tpu.vector_store %arg22[%c1_540, %c1024_541], %549 {strides = array<i32>} : memref<2x4096xf32, #tpu.memory_space<vmem>>, vector<1x50xf32>,
    %c9_542 = arith.constant 9 : index
    %c0_543 = arith.constant 0 : index
    %551 = vector.load %arg21[%c9_542, %c0_543] : memref<32x50xf32, #tpu.memory_space<vmem>>, vector<1x50xf32>
    %c1_544 = arith.constant 1 : index
    %c1152_545 = arith.constant 1152 : index
    %552 = vector.load %arg22[%c1_544, %c1152_545] : memref<2x4096xf32, #tpu.memory_space<vmem>>, vector<1x50xf32>
    tpu.vector_store %arg22[%c1_544, %c1152_545], %551 {strides = array<i32>} : memref<2x4096xf32, #tpu.memory_space<vmem>>, vector<1x50xf32>,
    %c10_546 = arith.constant 10 : index
    %c0_547 = arith.constant 0 : index
    %553 = vector.load %arg21[%c10_546, %c0_547] : memref<32x50xf32, #tpu.memory_space<vmem>>, vector<1x50xf32>
    %c1_548 = arith.constant 1 : index
    %c1280_549 = arith.constant 1280 : index
    %554 = vector.load %arg22[%c1_548, %c1280_549] : memref<2x4096xf32, #tpu.memory_space<vmem>>, vector<1x50xf32>
    tpu.vector_store %arg22[%c1_548, %c1280_549], %553 {strides = array<i32>} : memref<2x4096xf32, #tpu.memory_space<vmem>>, vector<1x50xf32>,
    %c11_550 = arith.constant 11 : index
    %c0_551 = arith.constant 0 : index
    %555 = vector.load %arg21[%c11_550, %c0_551] : memref<32x50xf32, #tpu.memory_space<vmem>>, vector<1x50xf32>
    %c1_552 = arith.constant 1 : index
    %c1408_553 = arith.constant 1408 : index
    %556 = vector.load %arg22[%c1_552, %c1408_553] : memref<2x4096xf32, #tpu.memory_space<vmem>>, vector<1x50xf32>
    tpu.vector_store %arg22[%c1_552, %c1408_553], %555 {strides = array<i32>} : memref<2x4096xf32, #tpu.memory_space<vmem>>, vector<1x50xf32>,
    %c12_554 = arith.constant 12 : index
    %c0_555 = arith.constant 0 : index
    %557 = vector.load %arg21[%c12_554, %c0_555] : memref<32x50xf32, #tpu.memory_space<vmem>>, vector<1x50xf32>
    %c1_556 = arith.constant 1 : index
    %c1536_557 = arith.constant 1536 : index
    %558 = vector.load %arg22[%c1_556, %c1536_557] : memref<2x4096xf32, #tpu.memory_space<vmem>>, vector<1x50xf32>
    tpu.vector_store %arg22[%c1_556, %c1536_557], %557 {strides = array<i32>} : memref<2x4096xf32, #tpu.memory_space<vmem>>, vector<1x50xf32>,
    %c13_558 = arith.constant 13 : index
    %c0_559 = arith.constant 0 : index
    %559 = vector.load %arg21[%c13_558, %c0_559] : memref<32x50xf32, #tpu.memory_space<vmem>>, vector<1x50xf32>
    %c1_560 = arith.constant 1 : index
    %c1664_561 = arith.constant 1664 : index
    %560 = vector.load %arg22[%c1_560, %c1664_561] : memref<2x4096xf32, #tpu.memory_space<vmem>>, vector<1x50xf32>
    tpu.vector_store %arg22[%c1_560, %c1664_561], %559 {strides = array<i32>} : memref<2x4096xf32, #tpu.memory_space<vmem>>, vector<1x50xf32>,
    %c14_562 = arith.constant 14 : index
    %c0_563 = arith.constant 0 : index
    %561 = vector.load %arg21[%c14_562, %c0_563] : memref<32x50xf32, #tpu.memory_space<vmem>>, vector<1x50xf32>
    %c1_564 = arith.constant 1 : index
    %c1792_565 = arith.constant 1792 : index
    %562 = vector.load %arg22[%c1_564, %c1792_565] : memref<2x4096xf32, #tpu.memory_space<vmem>>, vector<1x50xf32>
    tpu.vector_store %arg22[%c1_564, %c1792_565], %561 {strides = array<i32>} : memref<2x4096xf32, #tpu.memory_space<vmem>>, vector<1x50xf32>,
    %c15_566 = arith.constant 15 : index
    %c0_567 = arith.constant 0 : index
    %563 = vector.load %arg21[%c15_566, %c0_567] : memref<32x50xf32, #tpu.memory_space<vmem>>, vector<1x50xf32>
    %c1_568 = arith.constant 1 : index
    %c1920_569 = arith.constant 1920 : index
    %564 = vector.load %arg22[%c1_568, %c1920_569] : memref<2x4096xf32, #tpu.memory_space<vmem>>, vector<1x50xf32>
    tpu.vector_store %arg22[%c1_568, %c1920_569], %563 {strides = array<i32>} : memref<2x4096xf32, #tpu.memory_space<vmem>>, vector<1x50xf32>,
    %c16_570 = arith.constant 16 : index
    %c0_571 = arith.constant 0 : index
    %565 = vector.load %arg21[%c16_570, %c0_571] : memref<32x50xf32, #tpu.memory_space<vmem>>, vector<1x50xf32>
    %c1_572 = arith.constant 1 : index
    %c2048_573 = arith.constant 2048 : index
    %566 = vector.load %arg22[%c1_572, %c2048_573] : memref<2x4096xf32, #tpu.memory_space<vmem>>, vector<1x50xf32>
    tpu.vector_store %arg22[%c1_572, %c2048_573], %565 {strides = array<i32>} : memref<2x4096xf32, #tpu.memory_space<vmem>>, vector<1x50xf32>,
    %c17_574 = arith.constant 17 : index
    %c0_575 = arith.constant 0 : index
    %567 = vector.load %arg21[%c17_574, %c0_575] : memref<32x50xf32, #tpu.memory_space<vmem>>, vector<1x50xf32>
    %c1_576 = arith.constant 1 : index
    %c2176_577 = arith.constant 2176 : index
    %568 = vector.load %arg22[%c1_576, %c2176_577] : memref<2x4096xf32, #tpu.memory_space<vmem>>, vector<1x50xf32>
    tpu.vector_store %arg22[%c1_576, %c2176_577], %567 {strides = array<i32>} : memref<2x4096xf32, #tpu.memory_space<vmem>>, vector<1x50xf32>,
    %c18_578 = arith.constant 18 : index
    %c0_579 = arith.constant 0 : index
    %569 = vector.load %arg21[%c18_578, %c0_579] : memref<32x50xf32, #tpu.memory_space<vmem>>, vector<1x50xf32>
    %c1_580 = arith.constant 1 : index
    %c2304_581 = arith.constant 2304 : index
    %570 = vector.load %arg22[%c1_580, %c2304_581] : memref<2x4096xf32, #tpu.memory_space<vmem>>, vector<1x50xf32>
    tpu.vector_store %arg22[%c1_580, %c2304_581], %569 {strides = array<i32>} : memref<2x4096xf32, #tpu.memory_space<vmem>>, vector<1x50xf32>,
    %c19_582 = arith.constant 19 : index
    %c0_583 = arith.constant 0 : index
    %571 = vector.load %arg21[%c19_582, %c0_583] : memref<32x50xf32, #tpu.memory_space<vmem>>, vector<1x50xf32>
    %c1_584 = arith.constant 1 : index
    %c2432_585 = arith.constant 2432 : index
    %572 = vector.load %arg22[%c1_584, %c2432_585] : memref<2x4096xf32, #tpu.memory_space<vmem>>, vector<1x50xf32>
    tpu.vector_store %arg22[%c1_584, %c2432_585], %571 {strides = array<i32>} : memref<2x4096xf32, #tpu.memory_space<vmem>>, vector<1x50xf32>,
    %c20_586 = arith.constant 20 : index
    %c0_587 = arith.constant 0 : index
    %573 = vector.load %arg21[%c20_586, %c0_587] : memref<32x50xf32, #tpu.memory_space<vmem>>, vector<1x50xf32>
    %c1_588 = arith.constant 1 : index
    %c2560_589 = arith.constant 2560 : index
    %574 = vector.load %arg22[%c1_588, %c2560_589] : memref<2x4096xf32, #tpu.memory_space<vmem>>, vector<1x50xf32>
    tpu.vector_store %arg22[%c1_588, %c2560_589], %573 {strides = array<i32>} : memref<2x4096xf32, #tpu.memory_space<vmem>>, vector<1x50xf32>,
    %c21_590 = arith.constant 21 : index
    %c0_591 = arith.constant 0 : index
    %575 = vector.load %arg21[%c21_590, %c0_591] : memref<32x50xf32, #tpu.memory_space<vmem>>, vector<1x50xf32>
    %c1_592 = arith.constant 1 : index
    %c2688_593 = arith.constant 2688 : index
    %576 = vector.load %arg22[%c1_592, %c2688_593] : memref<2x4096xf32, #tpu.memory_space<vmem>>, vector<1x50xf32>
    tpu.vector_store %arg22[%c1_592, %c2688_593], %575 {strides = array<i32>} : memref<2x4096xf32, #tpu.memory_space<vmem>>, vector<1x50xf32>,
    %c22_594 = arith.constant 22 : index
    %c0_595 = arith.constant 0 : index
    %577 = vector.load %arg21[%c22_594, %c0_595] : memref<32x50xf32, #tpu.memory_space<vmem>>, vector<1x50xf32>
    %c1_596 = arith.constant 1 : index
    %c2816_597 = arith.constant 2816 : index
    %578 = vector.load %arg22[%c1_596, %c2816_597] : memref<2x4096xf32, #tpu.memory_space<vmem>>, vector<1x50xf32>
    tpu.vector_store %arg22[%c1_596, %c2816_597], %577 {strides = array<i32>} : memref<2x4096xf32, #tpu.memory_space<vmem>>, vector<1x50xf32>,
    %c23_598 = arith.constant 23 : index
    %c0_599 = arith.constant 0 : index
    %579 = vector.load %arg21[%c23_598, %c0_599] : memref<32x50xf32, #tpu.memory_space<vmem>>, vector<1x50xf32>
    %c1_600 = arith.constant 1 : index
    %c2944_601 = arith.constant 2944 : index
    %580 = vector.load %arg22[%c1_600, %c2944_601] : memref<2x4096xf32, #tpu.memory_space<vmem>>, vector<1x50xf32>
    tpu.vector_store %arg22[%c1_600, %c2944_601], %579 {strides = array<i32>} : memref<2x4096xf32, #tpu.memory_space<vmem>>, vector<1x50xf32>,
    %c24_602 = arith.constant 24 : index
    %c0_603 = arith.constant 0 : index
    %581 = vector.load %arg21[%c24_602, %c0_603] : memref<32x50xf32, #tpu.memory_space<vmem>>, vector<1x50xf32>
    %c1_604 = arith.constant 1 : index
    %c3072_605 = arith.constant 3072 : index
    %582 = vector.load %arg22[%c1_604, %c3072_605] : memref<2x4096xf32, #tpu.memory_space<vmem>>, vector<1x50xf32>
    tpu.vector_store %arg22[%c1_604, %c3072_605], %581 {strides = array<i32>} : memref<2x4096xf32, #tpu.memory_space<vmem>>, vector<1x50xf32>,
    %c25_606 = arith.constant 25 : index
    %c0_607 = arith.constant 0 : index
    %583 = vector.load %arg21[%c25_606, %c0_607] : memref<32x50xf32, #tpu.memory_space<vmem>>, vector<1x50xf32>
    %c1_608 = arith.constant 1 : index
    %c3200_609 = arith.constant 3200 : index
    %584 = vector.load %arg22[%c1_608, %c3200_609] : memref<2x4096xf32, #tpu.memory_space<vmem>>, vector<1x50xf32>
    tpu.vector_store %arg22[%c1_608, %c3200_609], %583 {strides = array<i32>} : memref<2x4096xf32, #tpu.memory_space<vmem>>, vector<1x50xf32>,
    %c26_610 = arith.constant 26 : index
    %c0_611 = arith.constant 0 : index
    %585 = vector.load %arg21[%c26_610, %c0_611] : memref<32x50xf32, #tpu.memory_space<vmem>>, vector<1x50xf32>
    %c1_612 = arith.constant 1 : index
    %c3328_613 = arith.constant 3328 : index
    %586 = vector.load %arg22[%c1_612, %c3328_613] : memref<2x4096xf32, #tpu.memory_space<vmem>>, vector<1x50xf32>
    tpu.vector_store %arg22[%c1_612, %c3328_613], %585 {strides = array<i32>} : memref<2x4096xf32, #tpu.memory_space<vmem>>, vector<1x50xf32>,
    %c27_614 = arith.constant 27 : index
    %c0_615 = arith.constant 0 : index
    %587 = vector.load %arg21[%c27_614, %c0_615] : memref<32x50xf32, #tpu.memory_space<vmem>>, vector<1x50xf32>
    %c1_616 = arith.constant 1 : index
    %c3456_617 = arith.constant 3456 : index
    %588 = vector.load %arg22[%c1_616, %c3456_617] : memref<2x4096xf32, #tpu.memory_space<vmem>>, vector<1x50xf32>
    tpu.vector_store %arg22[%c1_616, %c3456_617], %587 {strides = array<i32>} : memref<2x4096xf32, #tpu.memory_space<vmem>>, vector<1x50xf32>,
    %c28_618 = arith.constant 28 : index
    %c0_619 = arith.constant 0 : index
    %589 = vector.load %arg21[%c28_618, %c0_619] : memref<32x50xf32, #tpu.memory_space<vmem>>, vector<1x50xf32>
    %c1_620 = arith.constant 1 : index
    %c3584_621 = arith.constant 3584 : index
    %590 = vector.load %arg22[%c1_620, %c3584_621] : memref<2x4096xf32, #tpu.memory_space<vmem>>, vector<1x50xf32>
    tpu.vector_store %arg22[%c1_620, %c3584_621], %589 {strides = array<i32>} : memref<2x4096xf32, #tpu.memory_space<vmem>>, vector<1x50xf32>,
    %c29_622 = arith.constant 29 : index
    %c0_623 = arith.constant 0 : index
    %591 = vector.load %arg21[%c29_622, %c0_623] : memref<32x50xf32, #tpu.memory_space<vmem>>, vector<1x50xf32>
    %c1_624 = arith.constant 1 : index
    %c3712_625 = arith.constant 3712 : index
    %592 = vector.load %arg22[%c1_624, %c3712_625] : memref<2x4096xf32, #tpu.memory_space<vmem>>, vector<1x50xf32>
    tpu.vector_store %arg22[%c1_624, %c3712_625], %591 {strides = array<i32>} : memref<2x4096xf32, #tpu.memory_space<vmem>>, vector<1x50xf32>,
    %c30_626 = arith.constant 30 : index
    %c0_627 = arith.constant 0 : index
    %593 = vector.load %arg21[%c30_626, %c0_627] : memref<32x50xf32, #tpu.memory_space<vmem>>, vector<1x50xf32>
    %c1_628 = arith.constant 1 : index
    %c3840_629 = arith.constant 3840 : index
    %594 = vector.load %arg22[%c1_628, %c3840_629] : memref<2x4096xf32, #tpu.memory_space<vmem>>, vector<1x50xf32>
    tpu.vector_store %arg22[%c1_628, %c3840_629], %593 {strides = array<i32>} : memref<2x4096xf32, #tpu.memory_space<vmem>>, vector<1x50xf32>,
    %c31_630 = arith.constant 31 : index
    %c0_631 = arith.constant 0 : index
    %595 = vector.load %arg21[%c31_630, %c0_631] : memref<32x50xf32, #tpu.memory_space<vmem>>, vector<1x50xf32>
    %c1_632 = arith.constant 1 : index
    %c3968_633 = arith.constant 3968 : index
    %596 = vector.load %arg22[%c1_632, %c3968_633] : memref<2x4096xf32, #tpu.memory_space<vmem>>, vector<1x50xf32>
    tpu.vector_store %arg22[%c1_632, %c3968_633], %595 {strides = array<i32>} : memref<2x4096xf32, #tpu.memory_space<vmem>>, vector<1x50xf32>,
    %c0_634 = arith.constant 0 : index
    %c0_635 = arith.constant 0 : index
    %597 = vector.load %arg22[%c0_634, %c0_635] : memref<2x4096xf32, #tpu.memory_space<vmem>>, vector<2x4096xf32>
    %598 = arith.truncf %597 : vector<2x4096xf32> to vector<2x4096xbf16>
    %c0_636 = arith.constant 0 : index
    %c0_637 = arith.constant 0 : index
    %599 = vector.load %arg10[%c0_636, %c0_637] : memref<4096x39xbf16, #tpu.memory_space<vmem>>, vector<4096x39xbf16>
    %cst_638 = arith.constant dense<0.000000e+00> : vector<2x39xf32>
    %600 = tpu.matmul %598, %599, %cst_638 {dimension_numbers = #tpu.dot_dimension_numbers<[1], [0], [0], [1], [0, 0, 1, 1], [], []>} : vector<2x4096xbf16>, vector<4096x39xbf16>, vector<2x39xf32> -> vector<2x39xf32>
    %c0_639 = arith.constant 0 : index
    %c0_640 = arith.constant 0 : index
    %601 = vector.load %arg11[%c0_639, %c0_640] : memref<1x39xf32, #tpu.memory_space<vmem>>, vector<1x39xf32>
    %602 = vector.broadcast %601 : vector<1x39xf32> to vector<2x39xf32>
    %603 = arith.addf %600, %602 : vector<2x39xf32>
    %c0_641 = arith.constant 0 : index
    %c0_642 = arith.constant 0 : index
    %604 = vector.load %arg12[%c0_641, %c0_642] : memref<2x39xf32, #tpu.memory_space<vmem>>, vector<2x39xf32>
    tpu.vector_store %arg12[%c0_641, %c0_642], %603 {strides = array<i32>} : memref<2x39xf32, #tpu.memory_space<vmem>>, vector<2x39xf32>,
    return
  }
  func.func @transform_0(%arg0: i32) -> (i32, i32, i32, i32) {
    %c0_i32 = arith.constant 0 : i32
    %c0_i32_0 = arith.constant 0 : i32
    %c0_i32_1 = arith.constant 0 : i32
    %c0_i32_2 = arith.constant 0 : i32
    return %arg0, %c0_i32, %c0_i32_0, %c0_i32_1 : i32, i32, i32, i32
  }
  func.func @transform_1(%arg0: i32) -> (i32, i32) {
    %c0_i32 = arith.constant 0 : i32
    %c0_i32_0 = arith.constant 0 : i32
    %c0_i32_1 = arith.constant 0 : i32
    return %c0_i32, %c0_i32_0 : i32, i32
  }
  func.func @transform_2(%arg0: i32) -> (i32, i32) {
    %c0_i32 = arith.constant 0 : i32
    %c0_i32_0 = arith.constant 0 : i32
    %c0_i32_1 = arith.constant 0 : i32
    return %c0_i32, %c0_i32_0 : i32, i32
  }
  func.func @transform_3(%arg0: i32) -> (i32, i32) {
    %c0_i32 = arith.constant 0 : i32
    %c0_i32_0 = arith.constant 0 : i32
    %c0_i32_1 = arith.constant 0 : i32
    return %c0_i32, %c0_i32_0 : i32, i32
  }
  func.func @transform_4(%arg0: i32) -> (i32, i32) {
    %c0_i32 = arith.constant 0 : i32
    %c0_i32_0 = arith.constant 0 : i32
    %c0_i32_1 = arith.constant 0 : i32
    return %c0_i32, %c0_i32_0 : i32, i32
  }
  func.func @transform_5(%arg0: i32) -> (i32, i32) {
    %c0_i32 = arith.constant 0 : i32
    %c0_i32_0 = arith.constant 0 : i32
    %c0_i32_1 = arith.constant 0 : i32
    return %c0_i32, %c0_i32_0 : i32, i32
  }
  func.func @transform_6(%arg0: i32) -> (i32, i32) {
    %c0_i32 = arith.constant 0 : i32
    %c0_i32_0 = arith.constant 0 : i32
    %c0_i32_1 = arith.constant 0 : i32
    return %c0_i32, %c0_i32_0 : i32, i32
  }
  func.func @transform_7(%arg0: i32) -> (i32, i32) {
    %c0_i32 = arith.constant 0 : i32
    %c0_i32_0 = arith.constant 0 : i32
    %c0_i32_1 = arith.constant 0 : i32
    return %c0_i32, %c0_i32_0 : i32, i32
  }
  func.func @transform_8(%arg0: i32) -> (i32, i32) {
    %c0_i32 = arith.constant 0 : i32
    %c0_i32_0 = arith.constant 0 : i32
    %c0_i32_1 = arith.constant 0 : i32
    return %c0_i32, %c0_i32_0 : i32, i32
  }
  func.func @transform_9(%arg0: i32) -> (i32, i32) {
    %c0_i32 = arith.constant 0 : i32
    %c0_i32_0 = arith.constant 0 : i32
    %c0_i32_1 = arith.constant 0 : i32
    return %c0_i32, %c0_i32_0 : i32, i32
  }
  func.func @transform_10(%arg0: i32) -> (i32, i32) {
    %c0_i32 = arith.constant 0 : i32
    %c0_i32_0 = arith.constant 0 : i32
    %c0_i32_1 = arith.constant 0 : i32
    return %c0_i32, %c0_i32_0 : i32, i32
  }
  func.func @transform_11(%arg0: i32) -> (i32, i32) {
    %c0_i32 = arith.constant 0 : i32
    %c0_i32_0 = arith.constant 0 : i32
    return %arg0, %c0_i32 : i32, i32
  }
}

</mosaic_0001>

<llo_original>
// kernel: simple_cnn4_forward.1
$region0: #{simple_cnn4_forward.1}
  #allocation0 [shape = 'u32[]', space=smem, size = 0x4, offset = 0x4, fixed_abs, tag = 'smem constant byte address 0x4 - core index']
  #allocation1 [shape = 'u32[144,128]{1,0:T(1,128)}', space=vmem, size = 0x12000, scoped, tag = 'internal scratch']
  #allocation2 [shape = 'f32[1,1226]{1,0:T(1,128)}', space=vmem, size = 0x1400, scoped, tag = 'scratch operand']
  #allocation3 [shape = 'f32[16,1020]{1,0:T(8,128)}', space=vmem, size = 0x10000, scoped, tag = 'scratch operand']
  #allocation4 [shape = 'bf16[128,102]{1,0:T(8,128)(2,1)}', space=vmem, size = 0x8000, scoped, tag = 'scratch operand']
  #allocation5 [shape = 'bf16[128,50]{1,0:T(8,128)(2,1)}', space=vmem, size = 0x8000, scoped, tag = 'scratch operand']
  #allocation6 [shape = 'bf16[16,418]{1,0:T(8,128)(2,1)}', space=vmem, size = 0x4000, scoped, tag = 'scratch operand']
  #allocation7 [shape = 'bf16[144,624]{1,0:T(8,128)(2,1)}', space=vmem, size = 0x2d000, scoped, tag = 'scratch operand']
  #allocation8 [shape = 'f32[32,624]{1,0:T(8,128)}', space=vmem, size = 0x14000, scoped, tag = 'scratch operand']
  #allocation9 [shape = 'f32[32,312]{1,0:T(8,128)}', space=vmem, size = 0xc000, scoped, tag = 'scratch operand']
  #allocation10 [shape = 'f32[32,50]{1,0:T(8,128)}', space=vmem, size = 0x4000, scoped, tag = 'scratch operand']
  #allocation11 [shape = 'f32[2,4096]{1,0:T(2,128)}', space=vmem, size = 0x8000, scoped, tag = 'scratch operand']
  %s0 = inlined_call_operand.vmem [shape: f32[2,1,8,100], index: 0, kind: input, shape index: {}]
  %s1 = inlined_call_operand.vmem [shape: f32[16,9], index: 1, kind: input, shape index: {}]
  %s2 = inlined_call_operand.vmem [shape: f32[16,1], index: 2, kind: input, shape index: {}]
  %s3 = inlined_call_operand.vmem [shape: f32[3,1020], index: 3, kind: input, shape index: {}]
  %s4 = inlined_call_operand.vmem [shape: bf16[102,50], index: 4, kind: input, shape index: {}]
  %s5 = inlined_call_operand.vmem [shape: bf16[32,144], index: 5, kind: input, shape index: {}]
  %s6 = inlined_call_operand.vmem [shape: f32[32,1], index: 6, kind: input, shape index: {}]
  %s7 = inlined_call_operand.vmem [shape: f32[3,312], index: 7, kind: input, shape index: {}]
  %s8 = inlined_call_operand.vmem [shape: bf16[52,25], index: 8, kind: input, shape index: {}]
  %s9 = inlined_call_operand.vmem [shape: bf16[4096,39], index: 9, kind: input, shape index: {}]
  %s10 = inlined_call_operand.vmem [shape: f32[1,39], index: 10, kind: input, shape index: {}]
  %s11 = inlined_call_operand.hbm [shape: f32[2,39], index: 11, kind: output, shape index: {}]
  %s12 = sld [smem:[#allocation0]]
  $region54: #{simple_cnn4_forward.1} parent=0
    _
  %s14 = ssub.s32 1, %s12
  %s15 = scalar_select 0, %s14, %s12
  $region1: #{simple_cnn4_forward.1} parent=0
    #allocation12 [shape = 'u8[1024]{0}', space=vmem, size = 0x400, scoped, tag = 'output window, operand 0, single buffered']
    #allocation13 [shape = 's32[1]{0}', space=sflag, size = 0x4, scoped, tag = 'scoped memory for simple_cnn4_forward.1']
    %16 = vsyncpa [#allocation13], 0
    // Predicated region
    $region2: #{simple_cnn4_forward.1} parent=1 // pred_check
      _
    $region3: #{simple_cnn4_forward.1} parent=1 // pred_check_branch
      %18 = sbr.rel (0) target = $region5
    $region4: #{simple_cnn4_forward.1} parent=1 // pred_region
      _
    $region5: #{simple_cnn4_forward.1} parent=1 // pred_fallthru
      _
    // Predicated region
    $region6: #{simple_cnn4_forward.1} parent=1 // pred_check
      _
    $region7: #{simple_cnn4_forward.1} parent=1 // pred_check_branch
      %20 = sbr.rel (0) target = $region9
    $region8: #{simple_cnn4_forward.1} parent=1 // pred_region
      _
    $region9: #{simple_cnn4_forward.1} parent=1 // pred_fallthru
      _
    // Predicated region
    $region10: #{simple_cnn4_forward.1} parent=1 // pred_check
      _
    $region11: #{simple_cnn4_forward.1} parent=1 // pred_check_branch
      %22 = sbr.rel (0) target = $region13
    $region12: #{simple_cnn4_forward.1} parent=1 // pred_region
      _
    $region13: #{simple_cnn4_forward.1} parent=1 // pred_fallthru
      _
    // Predicated region
    $region14: #{simple_cnn4_forward.1} parent=1 // pred_check
      _
    $region15: #{simple_cnn4_forward.1} parent=1 // pred_check_branch
      %24 = sbr.rel (0) target = $region17
    $region16: #{simple_cnn4_forward.1} parent=1 // pred_region
      _
    $region17: #{simple_cnn4_forward.1} parent=1 // pred_fallthru
      _
    // Predicated region
    $region18: #{simple_cnn4_forward.1} parent=1 // pred_check
      _
    $region19: #{simple_cnn4_forward.1} parent=1 // pred_check_branch
      %26 = sbr.rel (0) target = $region21
    $region20: #{simple_cnn4_forward.1} parent=1 // pred_region
      _
    $region21: #{simple_cnn4_forward.1} parent=1 // pred_fallthru
      _
    // Predicated region
    $region22: #{simple_cnn4_forward.1} parent=1 // pred_check
      _
    $region23: #{simple_cnn4_forward.1} parent=1 // pred_check_branch
      %28 = sbr.rel (0) target = $region25
    $region24: #{simple_cnn4_forward.1} parent=1 // pred_region
      _
    $region25: #{simple_cnn4_forward.1} parent=1 // pred_fallthru
      _
    // Predicated region
    $region26: #{simple_cnn4_forward.1} parent=1 // pred_check
      _
    $region27: #{simple_cnn4_forward.1} parent=1 // pred_check_branch
      %30 = sbr.rel (0) target = $region29
    $region28: #{simple_cnn4_forward.1} parent=1 // pred_region
      _
    $region29: #{simple_cnn4_forward.1} parent=1 // pred_fallthru
      _
    // Predicated region
    $region30: #{simple_cnn4_forward.1} parent=1 // pred_check
      _
    $region31: #{simple_cnn4_forward.1} parent=1 // pred_check_branch
      %32 = sbr.rel (0) target = $region33
    $region32: #{simple_cnn4_forward.1} parent=1 // pred_region
      _
    $region33: #{simple_cnn4_forward.1} parent=1 // pred_fallthru
      _
    // Predicated region
    $region34: #{simple_cnn4_forward.1} parent=1 // pred_check
      _
    $region35: #{simple_cnn4_forward.1} parent=1 // pred_check_branch
      %34 = sbr.rel (0) target = $region37
    $region36: #{simple_cnn4_forward.1} parent=1 // pred_region
      _
    $region37: #{simple_cnn4_forward.1} parent=1 // pred_fallthru
      _
    // Predicated region
    $region38: #{simple_cnn4_forward.1} parent=1 // pred_check
      _
    $region39: #{simple_cnn4_forward.1} parent=1 // pred_check_branch
      %36 = sbr.rel (0) target = $region41
    $region40: #{simple_cnn4_forward.1} parent=1 // pred_region
      _
    $region41: #{simple_cnn4_forward.1} parent=1 // pred_fallthru
      _
    // Predicated region
    $region42: #{simple_cnn4_forward.1} parent=1 // pred_check
      _
    $region43: #{simple_cnn4_forward.1} parent=1 // pred_check_branch
      %38 = sbr.rel (0) target = $region45
    $region44: #{simple_cnn4_forward.1} parent=1 // pred_region
      _
    $region45: #{simple_cnn4_forward.1} parent=1 // pred_fallthru
      _
    %40 = vst [vmem:[#allocation2] sm:$0xff] 0.0
    %v41 = vlaneseq
    %vm42 = vcmp.ge.s32.totalorder %v41, 0
    %vm43 = vcmp.lt.s32.totalorder %v41, 202
    %vm44 = vmand %vm42, %vm43
    %45 = vst.msk [vmem:[#allocation2 + $0x8] sm:$0x3] %vm44, 0.0
    %46 = vst [vmem:[#allocation6] sm:$0xff] 0
    %vm47 = vcmask 1043456
    %vm48 = vcmask 277508
    %vm49 = vmor %vm48, %vm47
    %50 = vst.msk [vmem:[#allocation6 + $0x8] sm:$0xff] %vm49, 0
    %51 = vst [vmem:[#allocation6 + $0x10] sm:$0xff] 0
    %52 = vst.msk [vmem:[#allocation6 + $0x18] sm:$0xff] %vm49, 0
    %53 = vst [vmem:[#allocation11] sm:$0xff] 0.0
    %54 = vst [vmem:[#allocation11 + $0x8] sm:$0xff] 0.0
    %55 = vst [vmem:[#allocation11 + $0x10] sm:$0xff] 0.0
    %56 = vst [vmem:[#allocation11 + $0x18] sm:$0xff] 0.0
    %57 = vst [vmem:[#allocation11 + $0x20] sm:$0xff] 0.0
    %58 = vst [vmem:[#allocation11 + $0x28] sm:$0xff] 0.0
    %59 = vst [vmem:[#allocation11 + $0x30] sm:$0xff] 0.0
    %60 = vst [vmem:[#allocation11 + $0x38] sm:$0xff] 0.0
    %v61 = vld [vmem:[%s3] ss:$4 sm:$0xff]
    %s62 = scalar_lea.vmem %s3, 1
    %v63 = vld [vmem:[%s62] ss:$4 sm:$0xff]
    %s64 = scalar_lea.vmem %s3, 2
    %v65 = vld [vmem:[%s64] ss:$4 sm:$0xff]
    %v66 = vld [vmem:[%s7] ss:$4 sm:$0x7]
    %s67 = scalar_lea.vmem %s7, 1
    %v68 = vld [vmem:[%s67] ss:$4 sm:$0x7]
    %s69 = scalar_lea.vmem %s7, 2
    %v70 = vld [vmem:[%s69] ss:$4 sm:$0x7]
    %v71 = vld [vmem:[%s0] sm:$0x1]
    %v74 = vunpack.c.l.s4 1966171168
    %v75 = vunpack.c.0.s8 %v74
    %v76 = vlaneseq
    %v77 = vshrl.u32 %v76, 7
    %v78 = vsub.s32 %v75, %v77
    %v79 = vrot.slane %v71, %v78
    %v81 = vunpack.c.l.s4 1966171168
    %v82 = vunpack.c.0.s8 %v81
    %v83 = vlaneseq
    %v84 = vshrl.u32 %v83, 7
    %v85 = vsub.s32 %v82, %v84
    %v86 = vrot.slane %v79, %v85
    %87 = vrot.lane.b32.xlu0 %v86, 78
    %v88 = vpop.permute.xlu0 %87
    %v89 = vrot.slane %v88, 7
    %vm90 = vcmask 637952
    %v91 = vsel %vm90, %v89, %v88
    %vm93 = vcmp.ge.s32.totalorder %v41, 78
    %vm94 = vcmp.lt.s32.totalorder %v41, 178
    %vm95 = vmand %vm93, %vm94
    %96 = vst.msk [vmem:[#allocation2 + $0x1] sm:$0x3] %vm95, %v91
    %v97 = vld [vmem:[%s0 + $0x1] sm:$0x1]
    %v100 = vunpack.c.l.s4 1966171168
    %v101 = vunpack.c.0.s8 %v100
    %v102 = vlaneseq
    %v103 = vshrl.u32 %v102, 7
    %v104 = vsub.s32 %v101, %v103
    %v105 = vrot.slane %v97, %v104
    %v107 = vunpack.c.l.s4 1966171168
    %v108 = vunpack.c.0.s8 %v107
    %v109 = vlaneseq
    %v110 = vshrl.u32 %v109, 7
    %v111 = vsub.s32 %v108, %v110
    %v112 = vrot.slane %v105, %v111
    %113 = vrot.lane.b32.xlu0 %v112, 52
    %v114 = vpop.permute.xlu0 %113
    %v115 = vrot.slane %v114, 7
    %vm116 = vcmask 424960
    %v117 = vsel %vm116, %v115, %v114
    %vm119 = vcmp.ge.s32.totalorder %v41, 52
    %vm120 = vcmp.lt.s32.totalorder %v41, 152
    %vm121 = vmand %vm119, %vm120
    %122 = vst.msk [vmem:[#allocation2 + $0x2] sm:$0x3] %vm121, %v117
    %v123 = vld [vmem:[%s0 + $0x2] sm:$0x1]
    %v126 = vunpack.c.l.s4 1966171168
    %v127 = vunpack.c.0.s8 %v126
    %v128 = vlaneseq
    %v129 = vshrl.u32 %v128, 7
    %v130 = vsub.s32 %v127, %v129
    %v131 = vrot.slane %v123, %v130
    %v133 = vunpack.c.l.s4 1966171168
    %v134 = vunpack.c.0.s8 %v133
    %v135 = vlaneseq
    %v136 = vshrl.u32 %v135, 7
    %v137 = vsub.s32 %v134, %v136
    %v138 = vrot.slane %v131, %v137
    %139 = vrot.lane.b32.xlu0 %v138, 26
    %v140 = vpop.permute.xlu0 %139
    %vm142 = vcmp.ge.s32.totalorder %v41, 26
    %vm143 = vcmp.lt.s32.totalorder %v41, 126
    %vm144 = vmand %vm142, %vm143
    %145 = vst.msk [vmem:[#allocation2 + $0x3] sm:$0x1] %vm144, %v140
    %v146 = vld [vmem:[%s0 + $0x3] sm:$0x1]
    %vm147 = vcmp.lt.s32.totalorder %v41, 100
    %vm148 = vmand %vm42, %vm147
    %149 = vst.msk [vmem:[#allocation2 + $0x4] sm:$0x1] %vm148, %v146
    %v150 = vld [vmem:[%s0 + $0x4] sm:$0x1]
    %v153 = vunpack.c.l.s4 1966171168
    %v154 = vunpack.c.0.s8 %v153
    %v155 = vlaneseq
    %v156 = vshrl.u32 %v155, 7
    %v157 = vsub.s32 %v154, %v156
    %v158 = vrot.slane %v150, %v157
    %v160 = vunpack.c.l.s4 1966171168
    %v161 = vunpack.c.0.s8 %v160
    %v162 = vlaneseq
    %v163 = vshrl.u32 %v162, 7
    %v164 = vsub.s32 %v161, %v163
    %v165 = vrot.slane %v158, %v164
    %166 = vrot.lane.b32.xlu0 %v165, 102
    %v167 = vpop.permute.xlu0 %166
    %v168 = vrot.slane %v167, 7
    %vm169 = vcmask 834560
    %v170 = vsel %vm169, %v168, %v167
    %vm172 = vcmp.ge.s32.totalorder %v41, 102
    %vm173 = vmand %vm172, %vm43
    %174 = vst.msk [vmem:[#allocation2 + $0x4] sm:$0x3] %vm173, %v170
    %v175 = vld [vmem:[%s0 + $0x5] sm:$0x1]
    %v178 = vunpack.c.l.s4 1966171168
    %v179 = vunpack.c.0.s8 %v178
    %v180 = vlaneseq
    %v181 = vshrl.u32 %v180, 7
    %v182 = vsub.s32 %v179, %v181
    %v183 = vrot.slane %v175, %v182
    %v185 = vunpack.c.l.s4 1966171168
    %v186 = vunpack.c.0.s8 %v185
    %v187 = vlaneseq
    %v188 = vshrl.u32 %v187, 7
    %v189 = vsub.s32 %v186, %v188
    %v190 = vrot.slane %v183, %v189
    %191 = vrot.lane.b32.xlu0 %v190, 76
    %v192 = vpop.permute.xlu0 %191
    %v193 = vrot.slane %v192, 7
    %vm194 = vcmask 621568
    %v195 = vsel %vm194, %v193, %v192
    %vm197 = vcmp.ge.s32.totalorder %v41, 76
    %vm198 = vcmp.lt.s32.totalorder %v41, 176
    %vm199 = vmand %vm197, %vm198
    %200 = vst.msk [vmem:[#allocation2 + $0x5] sm:$0x3] %vm199, %v195
    %v201 = vld [vmem:[%s0 + $0x6] sm:$0x1]
    %v204 = vunpack.c.l.s4 1966171168
    %v205 = vunpack.c.0.s8 %v204
    %v206 = vlaneseq
    %v207 = vshrl.u32 %v206, 7
    %v208 = vsub.s32 %v205, %v207
    %v209 = vrot.slane %v201, %v208
    %v211 = vunpack.c.l.s4 1966171168
    %v212 = vunpack.c.0.s8 %v211
    %v213 = vlaneseq
    %v214 = vshrl.u32 %v213, 7
    %v215 = vsub.s32 %v212, %v214
    %v216 = vrot.slane %v209, %v215
    %217 = vrot.lane.b32.xlu0 %v216, 50
    %v218 = vpop.permute.xlu0 %217
    %v219 = vrot.slane %v218, 7
    %vm220 = vcmask 408576
    %v221 = vsel %vm220, %v219, %v218
    %vm223 = vcmp.ge.s32.totalorder %v41, 50
    %vm224 = vcmp.lt.s32.totalorder %v41, 150
    %vm225 = vmand %vm223, %vm224
    %226 = vst.msk [vmem:[#allocation2 + $0x6] sm:$0x3] %vm225, %v221
    %v227 = vld [vmem:[%s0 + $0x7] sm:$0x1]
    %v230 = vunpack.c.l.s4 1966171168
    %v231 = vunpack.c.0.s8 %v230
    %v232 = vlaneseq
    %v233 = vshrl.u32 %v232, 7
    %v234 = vsub.s32 %v231, %v233
    %v235 = vrot.slane %v227, %v234
    %v237 = vunpack.c.l.s4 1966171168
    %v238 = vunpack.c.0.s8 %v237
    %v239 = vlaneseq
    %v240 = vshrl.u32 %v239, 7
    %v241 = vsub.s32 %v238, %v240
    %v242 = vrot.slane %v235, %v241
    %243 = vrot.lane.b32.xlu0 %v242, 24
    %v244 = vpop.permute.xlu0 %243
    %vm246 = vcmp.ge.s32.totalorder %v41, 24
    %vm247 = vcmp.lt.s32.totalorder %v41, 124
    %vm248 = vmand %vm246, %vm247
    %249 = vst.msk [vmem:[#allocation2 + $0x7] sm:$0x1] %vm248, %v244
    %v250 = vld [vmem:[#allocation2] sm:$0xff]
    %v251 = vld [vmem:[%s1] sm:$0xff]
    %v252 = vld [vmem:[%s1 + $0x8] sm:$0xff]
    %254 = vset.pattern.permute.xlu0 0
    %255 = vperm.xlu0 %254, %v251
    %v256 = vpop.permute.xlu0 %255
    %259 = vset.pattern.permute.xlu0 0
    %260 = vperm.xlu0 %259, %v252
    %v261 = vpop.permute.xlu0 %260
    %v264 = vlaneseq
    %v265 = vshrl.u32 %v264, 7
    %v266 = vsub.s32 0, %v265
    %v267 = vrot.slane %v250, %v266
    %v268 = vlaneseq
    %v269 = vshrl.u32 %v268, 7
    %v270 = vsub.s32 1, %v269
    %v271 = vrot.slane %v250, %v270
    %v272 = vlaneseq
    %v273 = vshrl.u32 %v272, 7
    %v274 = vsub.s32 2, %v273
    %v275 = vrot.slane %v250, %v274
    %v276 = vlaneseq
    %v277 = vshrl.u32 %v276, 7
    %v278 = vsub.s32 3, %v277
    %v279 = vrot.slane %v250, %v278
    %v280 = vlaneseq
    %v281 = vshrl.u32 %v280, 7
    %v282 = vsub.s32 4, %v281
    %v283 = vrot.slane %v250, %v282
    %v284 = vlaneseq
    %v285 = vshrl.u32 %v284, 7
    %v286 = vsub.s32 5, %v285
    %v287 = vrot.slane %v250, %v286
    %v288 = vlaneseq
    %v289 = vshrl.u32 %v288, 7
    %v290 = vsub.s32 6, %v289
    %v291 = vrot.slane %v250, %v290
    %v292 = vlaneseq
    %v293 = vshrl.u32 %v292, 7
    %v294 = vsub.s32 7, %v293
    %v295 = vrot.slane %v250, %v294
    %v304 = vmul.f32 %v256, %v267
    %v305 = vmul.f32 %v256, %v271
    %v306 = vmul.f32 %v256, %v275
    %v307 = vmul.f32 %v256, %v279
    %v308 = vmul.f32 %v256, %v283
    %v309 = vmul.f32 %v256, %v287
    %v310 = vmul.f32 %v256, %v291
    %v311 = vmul.f32 %v256, %v295
    %v312 = vmul.f32 %v261, %v267
    %v313 = vmul.f32 %v261, %v271
    %v314 = vmul.f32 %v261, %v275
    %v315 = vmul.f32 %v261, %v279
    %v316 = vmul.f32 %v261, %v283
    %v317 = vmul.f32 %v261, %v287
    %v318 = vmul.f32 %v261, %v291
    %v319 = vmul.f32 %v261, %v295
    %v320 = vadd.f32 %v304, 0.0
    %v321 = vadd.f32 %v305, 0.0
    %v322 = vadd.f32 %v306, 0.0
    %v323 = vadd.f32 %v307, 0.0
    %v324 = vadd.f32 %v308, 0.0
    %v325 = vadd.f32 %v309, 0.0
    %v326 = vadd.f32 %v310, 0.0
    %v327 = vadd.f32 %v311, 0.0
    %v328 = vadd.f32 %v312, 0.0
    %v329 = vadd.f32 %v313, 0.0
    %v330 = vadd.f32 %v314, 0.0
    %v331 = vadd.f32 %v315, 0.0
    %v332 = vadd.f32 %v316, 0.0
    %v333 = vadd.f32 %v317, 0.0
    %v334 = vadd.f32 %v318, 0.0
    %v335 = vadd.f32 %v319, 0.0
    %336 = vset.pattern.permute.xlu0 1
    %337 = vperm.xlu0 %336, %v251
    %v338 = vpop.permute.xlu0 %337
    %340 = vset.pattern.permute.xlu0 1
    %341 = vperm.xlu0 %340, %v252
    %v342 = vpop.permute.xlu0 %341
    %v344 = vmul.f32 %v338, %v267
    %v345 = vmul.f32 %v338, %v271
    %v346 = vmul.f32 %v338, %v275
    %v347 = vmul.f32 %v338, %v279
    %v348 = vmul.f32 %v338, %v283
    %v349 = vmul.f32 %v338, %v287
    %v350 = vmul.f32 %v338, %v291
    %v351 = vmul.f32 %v338, %v295
    %v352 = vmul.f32 %v342, %v267
    %v353 = vmul.f32 %v342, %v271
    %v354 = vmul.f32 %v342, %v275
    %v355 = vmul.f32 %v342, %v279
    %v356 = vmul.f32 %v342, %v283
    %v357 = vmul.f32 %v342, %v287
    %v358 = vmul.f32 %v342, %v291
    %v359 = vmul.f32 %v342, %v295
    %376 = vrot.lane.b32.xlu0 %v344, 127
    %v377 = vpop.permute.xlu0 %376
    %378 = vrot.lane.b32.xlu0 %v345, 127
    %v379 = vpop.permute.xlu0 %378
    %380 = vrot.lane.b32.xlu0 %v346, 127
    %v381 = vpop.permute.xlu0 %380
    %382 = vrot.lane.b32.xlu0 %v347, 127
    %v383 = vpop.permute.xlu0 %382
    %384 = vrot.lane.b32.xlu0 %v348, 127
    %v385 = vpop.permute.xlu0 %384
    %386 = vrot.lane.b32.xlu0 %v349, 127
    %v387 = vpop.permute.xlu0 %386
    %388 = vrot.lane.b32.xlu0 %v350, 127
    %v389 = vpop.permute.xlu0 %388
    %390 = vrot.lane.b32.xlu0 %v351, 127
    %v391 = vpop.permute.xlu0 %390
    %392 = vrot.lane.b32.xlu0 %v352, 127
    %v393 = vpop.permute.xlu0 %392
    %394 = vrot.lane.b32.xlu0 %v353, 127
    %v395 = vpop.permute.xlu0 %394
    %396 = vrot.lane.b32.xlu0 %v354, 127
    %v397 = vpop.permute.xlu0 %396
    %398 = vrot.lane.b32.xlu0 %v355, 127
    %v399 = vpop.permute.xlu0 %398
    %400 = vrot.lane.b32.xlu0 %v356, 127
    %v401 = vpop.permute.xlu0 %400
    %402 = vrot.lane.b32.xlu0 %v357, 127
    %v403 = vpop.permute.xlu0 %402
    %404 = vrot.lane.b32.xlu0 %v358, 127
    %v405 = vpop.permute.xlu0 %404
    %406 = vrot.lane.b32.xlu0 %v359, 127
    %v407 = vpop.permute.xlu0 %406
    %vm408 = vcmask 1039360
    %v409 = vsel %vm408, %v377, %v379
    %v410 = vsel %vm408, %v379, %v381
    %v411 = vsel %vm408, %v381, %v383
    %v412 = vsel %vm408, %v383, %v385
    %v413 = vsel %vm408, %v385, %v387
    %v414 = vsel %vm408, %v387, %v389
    %v415 = vsel %vm408, %v389, %v391
    %v416 = vsel %vm408, %v393, %v395
    %v417 = vsel %vm408, %v395, %v397
    %v418 = vsel %vm408, %v397, %v399
    %v419 = vsel %vm408, %v399, %v401
    %v420 = vsel %vm408, %v401, %v403
    %v421 = vsel %vm408, %v403, %v405
    %v422 = vsel %vm408, %v405, %v407
    %v439 = vadd.f32 %v320, %v409
    %v440 = vadd.f32 %v321, %v410
    %v441 = vadd.f32 %v322, %v411
    %v442 = vadd.f32 %v323, %v412
    %v443 = vadd.f32 %v324, %v413
    %v444 = vadd.f32 %v325, %v414
    %v445 = vadd.f32 %v326, %v415
    %v446 = vadd.f32 %v327, %v391
    %v447 = vadd.f32 %v328, %v416
    %v448 = vadd.f32 %v329, %v417
    %v449 = vadd.f32 %v330, %v418
    %v450 = vadd.f32 %v331, %v419
    %v451 = vadd.f32 %v332, %v420
    %v452 = vadd.f32 %v333, %v421
    %v453 = vadd.f32 %v334, %v422
    %v454 = vadd.f32 %v335, %v407
    %455 = vset.pattern.permute.xlu0 2
    %456 = vperm.xlu0 %455, %v251
    %v457 = vpop.permute.xlu0 %456
    %459 = vset.pattern.permute.xlu0 2
    %460 = vperm.xlu0 %459, %v252
    %v461 = vpop.permute.xlu0 %460
    %v463 = vmul.f32 %v457, %v267
    %v464 = vmul.f32 %v457, %v271
    %v465 = vmul.f32 %v457, %v275
    %v466 = vmul.f32 %v457, %v279
    %v467 = vmul.f32 %v457, %v283
    %v468 = vmul.f32 %v457, %v287
    %v469 = vmul.f32 %v457, %v291
    %v470 = vmul.f32 %v457, %v295
    %v471 = vmul.f32 %v461, %v267
    %v472 = vmul.f32 %v461, %v271
    %v473 = vmul.f32 %v461, %v275
    %v474 = vmul.f32 %v461, %v279
    %v475 = vmul.f32 %v461, %v283
    %v476 = vmul.f32 %v461, %v287
    %v477 = vmul.f32 %v461, %v291
    %v478 = vmul.f32 %v461, %v295
    %495 = vrot.lane.b32.xlu0 %v463, 126
    %v496 = vpop.permute.xlu0 %495
    %497 = vrot.lane.b32.xlu0 %v464, 126
    %v498 = vpop.permute.xlu0 %497
    %499 = vrot.lane.b32.xlu0 %v465, 126
    %v500 = vpop.permute.xlu0 %499
    %501 = vrot.lane.b32.xlu0 %v466, 126
    %v502 = vpop.permute.xlu0 %501
    %503 = vrot.lane.b32.xlu0 %v467, 126
    %v504 = vpop.permute.xlu0 %503
    %505 = vrot.lane.b32.xlu0 %v468, 126
    %v506 = vpop.permute.xlu0 %505
    %507 = vrot.lane.b32.xlu0 %v469, 126
    %v508 = vpop.permute.xlu0 %507
    %509 = vrot.lane.b32.xlu0 %v470, 126
    %v510 = vpop.permute.xlu0 %509
    %511 = vrot.lane.b32.xlu0 %v471, 126
    %v512 = vpop.permute.xlu0 %511
    %513 = vrot.lane.b32.xlu0 %v472, 126
    %v514 = vpop.permute.xlu0 %513
    %515 = vrot.lane.b32.xlu0 %v473, 126
    %v516 = vpop.permute.xlu0 %515
    %517 = vrot.lane.b32.xlu0 %v474, 126
    %v518 = vpop.permute.xlu0 %517
    %519 = vrot.lane.b32.xlu0 %v475, 126
    %v520 = vpop.permute.xlu0 %519
    %521 = vrot.lane.b32.xlu0 %v476, 126
    %v522 = vpop.permute.xlu0 %521
    %523 = vrot.lane.b32.xlu0 %v477, 126
    %v524 = vpop.permute.xlu0 %523
    %525 = vrot.lane.b32.xlu0 %v478, 126
    %v526 = vpop.permute.xlu0 %525
    %vm527 = vcmask 1031168
    %v528 = vsel %vm527, %v496, %v498
    %v529 = vsel %vm527, %v498, %v500
    %v530 = vsel %vm527, %v500, %v502
    %v531 = vsel %vm527, %v502, %v504
    %v532 = vsel %vm527, %v504, %v506
    %v533 = vsel %vm527, %v506, %v508
    %v534 = vsel %vm527, %v508, %v510
    %v535 = vsel %vm527, %v512, %v514
    %v536 = vsel %vm527, %v514, %v516
    %v537 = vsel %vm527, %v516, %v518
    %v538 = vsel %vm527, %v518, %v520
    %v539 = vsel %vm527, %v520, %v522
    %v540 = vsel %vm527, %v522, %v524
    %v541 = vsel %vm527, %v524, %v526
    %v558 = vadd.f32 %v439, %v528
    %v559 = vadd.f32 %v440, %v529
    %v560 = vadd.f32 %v441, %v530
    %v561 = vadd.f32 %v442, %v531
    %v562 = vadd.f32 %v443, %v532
    %v563 = vadd.f32 %v444, %v533
    %v564 = vadd.f32 %v445, %v534
    %v565 = vadd.f32 %v446, %v510
    %v566 = vadd.f32 %v447, %v535
    %v567 = vadd.f32 %v448, %v536
    %v568 = vadd.f32 %v449, %v537
    %v569 = vadd.f32 %v450, %v538
    %v570 = vadd.f32 %v451, %v539
    %v571 = vadd.f32 %v452, %v540
    %v572 = vadd.f32 %v453, %v541
    %v573 = vadd.f32 %v454, %v526
    %v574 = vld [vmem:[#allocation2] sm:$0xff]
    %v575 = vld [vmem:[#allocation2 + $0x8] sm:$0x1]
    %576 = vset.pattern.permute.xlu0 3
    %577 = vperm.xlu0 %576, %v251
    %v578 = vpop.permute.xlu0 %577
    %580 = vset.pattern.permute.xlu0 3
    %581 = vperm.xlu0 %580, %v252
    %v582 = vpop.permute.xlu0 %581
    %v586 = vlaneseq
    %v587 = vshrl.u32 %v586, 7
    %v588 = vsub.s32 0, %v587
    %v589 = vrot.slane %v574, %v588
    %v590 = vlaneseq
    %v591 = vshrl.u32 %v590, 7
    %v592 = vsub.s32 1, %v591
    %v593 = vrot.slane %v574, %v592
    %v594 = vlaneseq
    %v595 = vshrl.u32 %v594, 7
    %v596 = vsub.s32 2, %v595
    %v597 = vrot.slane %v574, %v596
    %v598 = vlaneseq
    %v599 = vshrl.u32 %v598, 7
    %v600 = vsub.s32 3, %v599
    %v601 = vrot.slane %v574, %v600
    %v602 = vlaneseq
    %v603 = vshrl.u32 %v602, 7
    %v604 = vsub.s32 4, %v603
    %v605 = vrot.slane %v574, %v604
    %v606 = vlaneseq
    %v607 = vshrl.u32 %v606, 7
    %v608 = vsub.s32 5, %v607
    %v609 = vrot.slane %v574, %v608
    %v610 = vlaneseq
    %v611 = vshrl.u32 %v610, 7
    %v612 = vsub.s32 6, %v611
    %v613 = vrot.slane %v574, %v612
    %v614 = vlaneseq
    %v615 = vshrl.u32 %v614, 7
    %v616 = vsub.s32 7, %v615
    %v617 = vrot.slane %v574, %v616
    %v618 = vlaneseq
    %v619 = vshrl.u32 %v618, 7
    %v620 = vsub.s32 0, %v619
    %v621 = vrot.slane %v575, %v620
    %v631 = vmul.f32 %v578, %v589
    %v632 = vmul.f32 %v578, %v593
    %v633 = vmul.f32 %v578, %v597
    %v634 = vmul.f32 %v578, %v601
    %v635 = vmul.f32 %v578, %v605
    %v636 = vmul.f32 %v578, %v609
    %v637 = vmul.f32 %v578, %v613
    %v638 = vmul.f32 %v578, %v617
    %v639 = vmul.f32 %v578, %v621
    %v640 = vmul.f32 %v582, %v589
    %v641 = vmul.f32 %v582, %v593
    %v642 = vmul.f32 %v582, %v597
    %v643 = vmul.f32 %v582, %v601
    %v644 = vmul.f32 %v582, %v605
    %v645 = vmul.f32 %v582, %v609
    %v646 = vmul.f32 %v582, %v613
    %v647 = vmul.f32 %v582, %v617
    %v648 = vmul.f32 %v582, %v621
    %667 = vrot.lane.b32.xlu0 %v631, 26
    %v668 = vpop.permute.xlu0 %667
    %669 = vrot.lane.b32.xlu0 %v632, 26
    %v670 = vpop.permute.xlu0 %669
    %671 = vrot.lane.b32.xlu0 %v633, 26
    %v672 = vpop.permute.xlu0 %671
    %673 = vrot.lane.b32.xlu0 %v634, 26
    %v674 = vpop.permute.xlu0 %673
    %675 = vrot.lane.b32.xlu0 %v635, 26
    %v676 = vpop.permute.xlu0 %675
    %677 = vrot.lane.b32.xlu0 %v636, 26
    %v678 = vpop.permute.xlu0 %677
    %679 = vrot.lane.b32.xlu0 %v637, 26
    %v680 = vpop.permute.xlu0 %679
    %681 = vrot.lane.b32.xlu0 %v638, 26
    %v682 = vpop.permute.xlu0 %681
    %683 = vrot.lane.b32.xlu0 %v639, 26
    %v684 = vpop.permute.xlu0 %683
    %685 = vrot.lane.b32.xlu0 %v640, 26
    %v686 = vpop.permute.xlu0 %685
    %687 = vrot.lane.b32.xlu0 %v641, 26
    %v688 = vpop.permute.xlu0 %687
    %689 = vrot.lane.b32.xlu0 %v642, 26
    %v690 = vpop.permute.xlu0 %689
    %691 = vrot.lane.b32.xlu0 %v643, 26
    %v692 = vpop.permute.xlu0 %691
    %693 = vrot.lane.b32.xlu0 %v644, 26
    %v694 = vpop.permute.xlu0 %693
    %695 = vrot.lane.b32.xlu0 %v645, 26
    %v696 = vpop.permute.xlu0 %695
    %697 = vrot.lane.b32.xlu0 %v646, 26
    %v698 = vpop.permute.xlu0 %697
    %699 = vrot.lane.b32.xlu0 %v647, 26
    %v700 = vpop.permute.xlu0 %699
    %701 = vrot.lane.b32.xlu0 %v648, 26
    %v702 = vpop.permute.xlu0 %701
    %vm703 = vcmask 211968
    %v704 = vsel %vm703, %v668, %v670
    %v705 = vsel %vm703, %v670, %v672
    %v706 = vsel %vm703, %v672, %v674
    %v707 = vsel %vm703, %v674, %v676
    %v708 = vsel %vm703, %v676, %v678
    %v709 = vsel %vm703, %v678, %v680
    %v710 = vsel %vm703, %v680, %v682
    %v711 = vsel %vm703, %v682, %v684
    %v712 = vsel %vm703, %v686, %v688
    %v713 = vsel %vm703, %v688, %v690
    %v714 = vsel %vm703, %v690, %v692
    %v715 = vsel %vm703, %v692, %v694
    %v716 = vsel %vm703, %v694, %v696
    %v717 = vsel %vm703, %v696, %v698
    %v718 = vsel %vm703, %v698, %v700
    %v719 = vsel %vm703, %v700, %v702
    %v736 = vadd.f32 %v558, %v704
    %v737 = vadd.f32 %v559, %v705
    %v738 = vadd.f32 %v560, %v706
    %v739 = vadd.f32 %v561, %v707
    %v740 = vadd.f32 %v562, %v708
    %v741 = vadd.f32 %v563, %v709
    %v742 = vadd.f32 %v564, %v710
    %v743 = vadd.f32 %v565, %v711
    %v744 = vadd.f32 %v566, %v712
    %v745 = vadd.f32 %v567, %v713
    %v746 = vadd.f32 %v568, %v714
    %v747 = vadd.f32 %v569, %v715
    %v748 = vadd.f32 %v570, %v716
    %v749 = vadd.f32 %v571, %v717
    %v750 = vadd.f32 %v572, %v718
    %v751 = vadd.f32 %v573, %v719
    %752 = vset.pattern.permute.xlu0 4
    %753 = vperm.xlu0 %752, %v251
    %v754 = vpop.permute.xlu0 %753
    %756 = vset.pattern.permute.xlu0 4
    %757 = vperm.xlu0 %756, %v252
    %v758 = vpop.permute.xlu0 %757
    %v760 = vmul.f32 %v754, %v589
    %v761 = vmul.f32 %v754, %v593
    %v762 = vmul.f32 %v754, %v597
    %v763 = vmul.f32 %v754, %v601
    %v764 = vmul.f32 %v754, %v605
    %v765 = vmul.f32 %v754, %v609
    %v766 = vmul.f32 %v754, %v613
    %v767 = vmul.f32 %v754, %v617
    %v768 = vmul.f32 %v754, %v621
    %v769 = vmul.f32 %v758, %v589
    %v770 = vmul.f32 %v758, %v593
    %v771 = vmul.f32 %v758, %v597
    %v772 = vmul.f32 %v758, %v601
    %v773 = vmul.f32 %v758, %v605
    %v774 = vmul.f32 %v758, %v609
    %v775 = vmul.f32 %v758, %v613
    %v776 = vmul.f32 %v758, %v617
    %v777 = vmul.f32 %v758, %v621
    %796 = vrot.lane.b32.xlu0 %v760, 25
    %v797 = vpop.permute.xlu0 %796
    %798 = vrot.lane.b32.xlu0 %v761, 25
    %v799 = vpop.permute.xlu0 %798
    %800 = vrot.lane.b32.xlu0 %v762, 25
    %v801 = vpop.permute.xlu0 %800
    %802 = vrot.lane.b32.xlu0 %v763, 25
    %v803 = vpop.permute.xlu0 %802
    %804 = vrot.lane.b32.xlu0 %v764, 25
    %v805 = vpop.permute.xlu0 %804
    %806 = vrot.lane.b32.xlu0 %v765, 25
    %v807 = vpop.permute.xlu0 %806
    %808 = vrot.lane.b32.xlu0 %v766, 25
    %v809 = vpop.permute.xlu0 %808
    %810 = vrot.lane.b32.xlu0 %v767, 25
    %v811 = vpop.permute.xlu0 %810
    %812 = vrot.lane.b32.xlu0 %v768, 25
    %v813 = vpop.permute.xlu0 %812
    %814 = vrot.lane.b32.xlu0 %v769, 25
    %v815 = vpop.permute.xlu0 %814
    %816 = vrot.lane.b32.xlu0 %v770, 25
    %v817 = vpop.permute.xlu0 %816
    %818 = vrot.lane.b32.xlu0 %v771, 25
    %v819 = vpop.permute.xlu0 %818
    %820 = vrot.lane.b32.xlu0 %v772, 25
    %v821 = vpop.permute.xlu0 %820
    %822 = vrot.lane.b32.xlu0 %v773, 25
    %v823 = vpop.permute.xlu0 %822
    %824 = vrot.lane.b32.xlu0 %v774, 25
    %v825 = vpop.permute.xlu0 %824
    %826 = vrot.lane.b32.xlu0 %v775, 25
    %v827 = vpop.permute.xlu0 %826
    %828 = vrot.lane.b32.xlu0 %v776, 25
    %v829 = vpop.permute.xlu0 %828
    %830 = vrot.lane.b32.xlu0 %v777, 25
    %v831 = vpop.permute.xlu0 %830
    %vm832 = vcmask 203776
    %v833 = vsel %vm832, %v797, %v799
    %v834 = vsel %vm832, %v799, %v801
    %v835 = vsel %vm832, %v801, %v803
    %v836 = vsel %vm832, %v803, %v805
    %v837 = vsel %vm832, %v805, %v807
    %v838 = vsel %vm832, %v807, %v809
    %v839 = vsel %vm832, %v809, %v811
    %v840 = vsel %vm832, %v811, %v813
    %v841 = vsel %vm832, %v815, %v817
    %v842 = vsel %vm832, %v817, %v819
    %v843 = vsel %vm832, %v819, %v821
    %v844 = vsel %vm832, %v821, %v823
    %v845 = vsel %vm832, %v823, %v825
    %v846 = vsel %vm832, %v825, %v827
    %v847 = vsel %vm832, %v827, %v829
    %v848 = vsel %vm832, %v829, %v831
    %v865 = vadd.f32 %v736, %v833
    %v866 = vadd.f32 %v737, %v834
    %v867 = vadd.f32 %v738, %v835
    %v868 = vadd.f32 %v739, %v836
    %v869 = vadd.f32 %v740, %v837
    %v870 = vadd.f32 %v741, %v838
    %v871 = vadd.f32 %v742, %v839
    %v872 = vadd.f32 %v743, %v840
    %v873 = vadd.f32 %v744, %v841
    %v874 = vadd.f32 %v745, %v842
    %v875 = vadd.f32 %v746, %v843
    %v876 = vadd.f32 %v747, %v844
    %v877 = vadd.f32 %v748, %v845
    %v878 = vadd.f32 %v749, %v846
    %v879 = vadd.f32 %v750, %v847
    %v880 = vadd.f32 %v751, %v848
    %881 = vset.pattern.permute.xlu0 5
    %882 = vperm.xlu0 %881, %v251
    %v883 = vpop.permute.xlu0 %882
    %885 = vset.pattern.permute.xlu0 5
    %886 = vperm.xlu0 %885, %v252
    %v887 = vpop.permute.xlu0 %886
    %v889 = vmul.f32 %v883, %v589
    %v890 = vmul.f32 %v883, %v593
    %v891 = vmul.f32 %v883, %v597
    %v892 = vmul.f32 %v883, %v601
    %v893 = vmul.f32 %v883, %v605
    %v894 = vmul.f32 %v883, %v609
    %v895 = vmul.f32 %v883, %v613
    %v896 = vmul.f32 %v883, %v617
    %v897 = vmul.f32 %v883, %v621
    %v898 = vmul.f32 %v887, %v589
    %v899 = vmul.f32 %v887, %v593
    %v900 = vmul.f32 %v887, %v597
    %v901 = vmul.f32 %v887, %v601
    %v902 = vmul.f32 %v887, %v605
    %v903 = vmul.f32 %v887, %v609
    %v904 = vmul.f32 %v887, %v613
    %v905 = vmul.f32 %v887, %v617
    %v906 = vmul.f32 %v887, %v621
    %925 = vrot.lane.b32.xlu0 %v889, 24
    %v926 = vpop.permute.xlu0 %925
    %927 = vrot.lane.b32.xlu0 %v890, 24
    %v928 = vpop.permute.xlu0 %927
    %929 = vrot.lane.b32.xlu0 %v891, 24
    %v930 = vpop.permute.xlu0 %929
    %931 = vrot.lane.b32.xlu0 %v892, 24
    %v932 = vpop.permute.xlu0 %931
    %933 = vrot.lane.b32.xlu0 %v893, 24
    %v934 = vpop.permute.xlu0 %933
    %935 = vrot.lane.b32.xlu0 %v894, 24
    %v936 = vpop.permute.xlu0 %935
    %937 = vrot.lane.b32.xlu0 %v895, 24
    %v938 = vpop.permute.xlu0 %937
    %939 = vrot.lane.b32.xlu0 %v896, 24
    %v940 = vpop.permute.xlu0 %939
    %941 = vrot.lane.b32.xlu0 %v897, 24
    %v942 = vpop.permute.xlu0 %941
    %943 = vrot.lane.b32.xlu0 %v898, 24
    %v944 = vpop.permute.xlu0 %943
    %945 = vrot.lane.b32.xlu0 %v899, 24
    %v946 = vpop.permute.xlu0 %945
    %947 = vrot.lane.b32.xlu0 %v900, 24
    %v948 = vpop.permute.xlu0 %947
    %949 = vrot.lane.b32.xlu0 %v901, 24
    %v950 = vpop.permute.xlu0 %949
    %951 = vrot.lane.b32.xlu0 %v902, 24
    %v952 = vpop.permute.xlu0 %951
    %953 = vrot.lane.b32.xlu0 %v903, 24
    %v954 = vpop.permute.xlu0 %953
    %955 = vrot.lane.b32.xlu0 %v904, 24
    %v956 = vpop.permute.xlu0 %955
    %957 = vrot.lane.b32.xlu0 %v905, 24
    %v958 = vpop.permute.xlu0 %957
    %959 = vrot.lane.b32.xlu0 %v906, 24
    %v960 = vpop.permute.xlu0 %959
    %vm961 = vcmask 195584
    %v962 = vsel %vm961, %v926, %v928
    %v963 = vsel %vm961, %v928, %v930
    %v964 = vsel %vm961, %v930, %v932
    %v965 = vsel %vm961, %v932, %v934
    %v966 = vsel %vm961, %v934, %v936
    %v967 = vsel %vm961, %v936, %v938
    %v968 = vsel %vm961, %v938, %v940
    %v969 = vsel %vm961, %v940, %v942
    %v970 = vsel %vm961, %v944, %v946
    %v971 = vsel %vm961, %v946, %v948
    %v972 = vsel %vm961, %v948, %v950
    %v973 = vsel %vm961, %v950, %v952
    %v974 = vsel %vm961, %v952, %v954
    %v975 = vsel %vm961, %v954, %v956
    %v976 = vsel %vm961, %v956, %v958
    %v977 = vsel %vm961, %v958, %v960
    %v994 = vadd.f32 %v865, %v962
    %v995 = vadd.f32 %v866, %v963
    %v996 = vadd.f32 %v867, %v964
    %v997 = vadd.f32 %v868, %v965
    %v998 = vadd.f32 %v869, %v966
    %v999 = vadd.f32 %v870, %v967
    %v1000 = vadd.f32 %v871, %v968
    %v1001 = vadd.f32 %v872, %v969
    %v1002 = vadd.f32 %v873, %v970
    %v1003 = vadd.f32 %v874, %v971
    %v1004 = vadd.f32 %v875, %v972
    %v1005 = vadd.f32 %v876, %v973
    %v1006 = vadd.f32 %v877, %v974
    %v1007 = vadd.f32 %v878, %v975
    %v1008 = vadd.f32 %v879, %v976
    %v1009 = vadd.f32 %v880, %v977
    %v1010 = vld [vmem:[#allocation2 + $0x1] sm:$0xff]
    %v1011 = vld [vmem:[#allocation2 + $0x9] sm:$0x1]
    %1012 = vset.pattern.permute.xlu0 6
    %1013 = vperm.xlu0 %1012, %v251
    %v1014 = vpop.permute.xlu0 %1013
    %1016 = vset.pattern.permute.xlu0 6
    %1017 = vperm.xlu0 %1016, %v252
    %v1018 = vpop.permute.xlu0 %1017
    %v1022 = vlaneseq
    %v1023 = vshrl.u32 %v1022, 7
    %v1024 = vsub.s32 0, %v1023
    %v1025 = vrot.slane %v1010, %v1024
    %v1026 = vlaneseq
    %v1027 = vshrl.u32 %v1026, 7
    %v1028 = vsub.s32 1, %v1027
    %v1029 = vrot.slane %v1010, %v1028
    %v1030 = vlaneseq
    %v1031 = vshrl.u32 %v1030, 7
    %v1032 = vsub.s32 2, %v1031
    %v1033 = vrot.slane %v1010, %v1032
    %v1034 = vlaneseq
    %v1035 = vshrl.u32 %v1034, 7
    %v1036 = vsub.s32 3, %v1035
    %v1037 = vrot.slane %v1010, %v1036
    %v1038 = vlaneseq
    %v1039 = vshrl.u32 %v1038, 7
    %v1040 = vsub.s32 4, %v1039
    %v1041 = vrot.slane %v1010, %v1040
    %v1042 = vlaneseq
    %v1043 = vshrl.u32 %v1042, 7
    %v1044 = vsub.s32 5, %v1043
    %v1045 = vrot.slane %v1010, %v1044
    %v1046 = vlaneseq
    %v1047 = vshrl.u32 %v1046, 7
    %v1048 = vsub.s32 6, %v1047
    %v1049 = vrot.slane %v1010, %v1048
    %v1050 = vlaneseq
    %v1051 = vshrl.u32 %v1050, 7
    %v1052 = vsub.s32 7, %v1051
    %v1053 = vrot.slane %v1010, %v1052
    %v1054 = vlaneseq
    %v1055 = vshrl.u32 %v1054, 7
    %v1056 = vsub.s32 0, %v1055
    %v1057 = vrot.slane %v1011, %v1056
    %v1067 = vmul.f32 %v1014, %v1025
    %v1068 = vmul.f32 %v1014, %v1029
    %v1069 = vmul.f32 %v1014, %v1033
    %v1070 = vmul.f32 %v1014, %v1037
    %v1071 = vmul.f32 %v1014, %v1041
    %v1072 = vmul.f32 %v1014, %v1045
    %v1073 = vmul.f32 %v1014, %v1049
    %v1074 = vmul.f32 %v1014, %v1053
    %v1075 = vmul.f32 %v1014, %v1057
    %v1076 = vmul.f32 %v1018, %v1025
    %v1077 = vmul.f32 %v1018, %v1029
    %v1078 = vmul.f32 %v1018, %v1033
    %v1079 = vmul.f32 %v1018, %v1037
    %v1080 = vmul.f32 %v1018, %v1041
    %v1081 = vmul.f32 %v1018, %v1045
    %v1082 = vmul.f32 %v1018, %v1049
    %v1083 = vmul.f32 %v1018, %v1053
    %v1084 = vmul.f32 %v1018, %v1057
    %1103 = vrot.lane.b32.xlu0 %v1067, 52
    %v1104 = vpop.permute.xlu0 %1103
    %1105 = vrot.lane.b32.xlu0 %v1068, 52
    %v1106 = vpop.permute.xlu0 %1105
    %1107 = vrot.lane.b32.xlu0 %v1069, 52
    %v1108 = vpop.permute.xlu0 %1107
    %1109 = vrot.lane.b32.xlu0 %v1070, 52
    %v1110 = vpop.permute.xlu0 %1109
    %1111 = vrot.lane.b32.xlu0 %v1071, 52
    %v1112 = vpop.permute.xlu0 %1111
    %1113 = vrot.lane.b32.xlu0 %v1072, 52
    %v1114 = vpop.permute.xlu0 %1113
    %1115 = vrot.lane.b32.xlu0 %v1073, 52
    %v1116 = vpop.permute.xlu0 %1115
    %1117 = vrot.lane.b32.xlu0 %v1074, 52
    %v1118 = vpop.permute.xlu0 %1117
    %1119 = vrot.lane.b32.xlu0 %v1075, 52
    %v1120 = vpop.permute.xlu0 %1119
    %1121 = vrot.lane.b32.xlu0 %v1076, 52
    %v1122 = vpop.permute.xlu0 %1121
    %1123 = vrot.lane.b32.xlu0 %v1077, 52
    %v1124 = vpop.permute.xlu0 %1123
    %1125 = vrot.lane.b32.xlu0 %v1078, 52
    %v1126 = vpop.permute.xlu0 %1125
    %1127 = vrot.lane.b32.xlu0 %v1079, 52
    %v1128 = vpop.permute.xlu0 %1127
    %1129 = vrot.lane.b32.xlu0 %v1080, 52
    %v1130 = vpop.permute.xlu0 %1129
    %1131 = vrot.lane.b32.xlu0 %v1081, 52
    %v1132 = vpop.permute.xlu0 %1131
    %1133 = vrot.lane.b32.xlu0 %v1082, 52
    %v1134 = vpop.permute.xlu0 %1133
    %1135 = vrot.lane.b32.xlu0 %v1083, 52
    %v1136 = vpop.permute.xlu0 %1135
    %1137 = vrot.lane.b32.xlu0 %v1084, 52
    %v1138 = vpop.permute.xlu0 %1137
    %v1139 = vsel %vm116, %v1104, %v1106
    %v1140 = vsel %vm116, %v1106, %v1108
    %v1141 = vsel %vm116, %v1108, %v1110
    %v1142 = vsel %vm116, %v1110, %v1112
    %v1143 = vsel %vm116, %v1112, %v1114
    %v1144 = vsel %vm116, %v1114, %v1116
    %v1145 = vsel %vm116, %v1116, %v1118
    %v1146 = vsel %vm116, %v1118, %v1120
    %v1147 = vsel %vm116, %v1122, %v1124
    %v1148 = vsel %vm116, %v1124, %v1126
    %v1149 = vsel %vm116, %v1126, %v1128
    %v1150 = vsel %vm116, %v1128, %v1130
    %v1151 = vsel %vm116, %v1130, %v1132
    %v1152 = vsel %vm116, %v1132, %v1134
    %v1153 = vsel %vm116, %v1134, %v1136
    %v1154 = vsel %vm116, %v1136, %v1138
    %v1171 = vadd.f32 %v994, %v1139
    %v1172 = vadd.f32 %v995, %v1140
    %v1173 = vadd.f32 %v996, %v1141
    %v1174 = vadd.f32 %v997, %v1142
    %v1175 = vadd.f32 %v998, %v1143
    %v1176 = vadd.f32 %v999, %v1144
    %v1177 = vadd.f32 %v1000, %v1145
    %v1178 = vadd.f32 %v1001, %v1146
    %v1179 = vadd.f32 %v1002, %v1147
    %v1180 = vadd.f32 %v1003, %v1148
    %v1181 = vadd.f32 %v1004, %v1149
    %v1182 = vadd.f32 %v1005, %v1150
    %v1183 = vadd.f32 %v1006, %v1151
    %v1184 = vadd.f32 %v1007, %v1152
    %v1185 = vadd.f32 %v1008, %v1153
    %v1186 = vadd.f32 %v1009, %v1154
    %1187 = vset.pattern.permute.xlu0 7
    %1188 = vperm.xlu0 %1187, %v251
    %v1189 = vpop.permute.xlu0 %1188
    %1191 = vset.pattern.permute.xlu0 7
    %1192 = vperm.xlu0 %1191, %v252
    %v1193 = vpop.permute.xlu0 %1192
    %v1195 = vmul.f32 %v1189, %v1025
    %v1196 = vmul.f32 %v1189, %v1029
    %v1197 = vmul.f32 %v1189, %v1033
    %v1198 = vmul.f32 %v1189, %v1037
    %v1199 = vmul.f32 %v1189, %v1041
    %v1200 = vmul.f32 %v1189, %v1045
    %v1201 = vmul.f32 %v1189, %v1049
    %v1202 = vmul.f32 %v1189, %v1053
    %v1203 = vmul.f32 %v1189, %v1057
    %v1204 = vmul.f32 %v1193, %v1025
    %v1205 = vmul.f32 %v1193, %v1029
    %v1206 = vmul.f32 %v1193, %v1033
    %v1207 = vmul.f32 %v1193, %v1037
    %v1208 = vmul.f32 %v1193, %v1041
    %v1209 = vmul.f32 %v1193, %v1045
    %v1210 = vmul.f32 %v1193, %v1049
    %v1211 = vmul.f32 %v1193, %v1053
    %v1212 = vmul.f32 %v1193, %v1057
    %1231 = vrot.lane.b32.xlu0 %v1195, 51
    %v1232 = vpop.permute.xlu0 %1231
    %1233 = vrot.lane.b32.xlu0 %v1196, 51
    %v1234 = vpop.permute.xlu0 %1233
    %1235 = vrot.lane.b32.xlu0 %v1197, 51
    %v1236 = vpop.permute.xlu0 %1235
    %1237 = vrot.lane.b32.xlu0 %v1198, 51
    %v1238 = vpop.permute.xlu0 %1237
    %1239 = vrot.lane.b32.xlu0 %v1199, 51
    %v1240 = vpop.permute.xlu0 %1239
    %1241 = vrot.lane.b32.xlu0 %v1200, 51
    %v1242 = vpop.permute.xlu0 %1241
    %1243 = vrot.lane.b32.xlu0 %v1201, 51
    %v1244 = vpop.permute.xlu0 %1243
    %1245 = vrot.lane.b32.xlu0 %v1202, 51
    %v1246 = vpop.permute.xlu0 %1245
    %1247 = vrot.lane.b32.xlu0 %v1203, 51
    %v1248 = vpop.permute.xlu0 %1247
    %1249 = vrot.lane.b32.xlu0 %v1204, 51
    %v1250 = vpop.permute.xlu0 %1249
    %1251 = vrot.lane.b32.xlu0 %v1205, 51
    %v1252 = vpop.permute.xlu0 %1251
    %1253 = vrot.lane.b32.xlu0 %v1206, 51
    %v1254 = vpop.permute.xlu0 %1253
    %1255 = vrot.lane.b32.xlu0 %v1207, 51
    %v1256 = vpop.permute.xlu0 %1255
    %1257 = vrot.lane.b32.xlu0 %v1208, 51
    %v1258 = vpop.permute.xlu0 %1257
    %1259 = vrot.lane.b32.xlu0 %v1209, 51
    %v1260 = vpop.permute.xlu0 %1259
    %1261 = vrot.lane.b32.xlu0 %v1210, 51
    %v1262 = vpop.permute.xlu0 %1261
    %1263 = vrot.lane.b32.xlu0 %v1211, 51
    %v1264 = vpop.permute.xlu0 %1263
    %1265 = vrot.lane.b32.xlu0 %v1212, 51
    %v1266 = vpop.permute.xlu0 %1265
    %vm1267 = vcmask 416768
    %v1268 = vsel %vm1267, %v1232, %v1234
    %v1269 = vsel %vm1267, %v1234, %v1236
    %v1270 = vsel %vm1267, %v1236, %v1238
    %v1271 = vsel %vm1267, %v1238, %v1240
    %v1272 = vsel %vm1267, %v1240, %v1242
    %v1273 = vsel %vm1267, %v1242, %v1244
    %v1274 = vsel %vm1267, %v1244, %v1246
    %v1275 = vsel %vm1267, %v1246, %v1248
    %v1276 = vsel %vm1267, %v1250, %v1252
    %v1277 = vsel %vm1267, %v1252, %v1254
    %v1278 = vsel %vm1267, %v1254, %v1256
    %v1279 = vsel %vm1267, %v1256, %v1258
    %v1280 = vsel %vm1267, %v1258, %v1260
    %v1281 = vsel %vm1267, %v1260, %v1262
    %v1282 = vsel %vm1267, %v1262, %v1264
    %v1283 = vsel %vm1267, %v1264, %v1266
    %v1300 = vadd.f32 %v1171, %v1268
    %v1301 = vadd.f32 %v1172, %v1269
    %v1302 = vadd.f32 %v1173, %v1270
    %v1303 = vadd.f32 %v1174, %v1271
    %v1304 = vadd.f32 %v1175, %v1272
    %v1305 = vadd.f32 %v1176, %v1273
    %v1306 = vadd.f32 %v1177, %v1274
    %v1307 = vadd.f32 %v1178, %v1275
    %v1308 = vadd.f32 %v1179, %v1276
    %v1309 = vadd.f32 %v1180, %v1277
    %v1310 = vadd.f32 %v1181, %v1278
    %v1311 = vadd.f32 %v1182, %v1279
    %v1312 = vadd.f32 %v1183, %v1280
    %v1313 = vadd.f32 %v1184, %v1281
    %v1314 = vadd.f32 %v1185, %v1282
    %v1315 = vadd.f32 %v1186, %v1283
    %1316 = vset.pattern.permute.xlu0 8
    %1317 = vperm.xlu0 %1316, %v251
    %v1318 = vpop.permute.xlu0 %1317
    %1320 = vset.pattern.permute.xlu0 8
    %1321 = vperm.xlu0 %1320, %v252
    %v1322 = vpop.permute.xlu0 %1321
    %v1324 = vmul.f32 %v1318, %v1025
    %v1325 = vmul.f32 %v1318, %v1029
    %v1326 = vmul.f32 %v1318, %v1033
    %v1327 = vmul.f32 %v1318, %v1037
    %v1328 = vmul.f32 %v1318, %v1041
    %v1329 = vmul.f32 %v1318, %v1045
    %v1330 = vmul.f32 %v1318, %v1049
    %v1331 = vmul.f32 %v1318, %v1053
    %v1332 = vmul.f32 %v1318, %v1057
    %v1333 = vmul.f32 %v1322, %v1025
    %v1334 = vmul.f32 %v1322, %v1029
    %v1335 = vmul.f32 %v1322, %v1033
    %v1336 = vmul.f32 %v1322, %v1037
    %v1337 = vmul.f32 %v1322, %v1041
    %v1338 = vmul.f32 %v1322, %v1045
    %v1339 = vmul.f32 %v1322, %v1049
    %v1340 = vmul.f32 %v1322, %v1053
    %v1341 = vmul.f32 %v1322, %v1057
    %1360 = vrot.lane.b32.xlu0 %v1324, 50
    %v1361 = vpop.permute.xlu0 %1360
    %1362 = vrot.lane.b32.xlu0 %v1325, 50
    %v1363 = vpop.permute.xlu0 %1362
    %1364 = vrot.lane.b32.xlu0 %v1326, 50
    %v1365 = vpop.permute.xlu0 %1364
    %1366 = vrot.lane.b32.xlu0 %v1327, 50
    %v1367 = vpop.permute.xlu0 %1366
    %1368 = vrot.lane.b32.xlu0 %v1328, 50
    %v1369 = vpop.permute.xlu0 %1368
    %1370 = vrot.lane.b32.xlu0 %v1329, 50
    %v1371 = vpop.permute.xlu0 %1370
    %1372 = vrot.lane.b32.xlu0 %v1330, 50
    %v1373 = vpop.permute.xlu0 %1372
    %1374 = vrot.lane.b32.xlu0 %v1331, 50
    %v1375 = vpop.permute.xlu0 %1374
    %1376 = vrot.lane.b32.xlu0 %v1332, 50
    %v1377 = vpop.permute.xlu0 %1376
    %1378 = vrot.lane.b32.xlu0 %v1333, 50
    %v1379 = vpop.permute.xlu0 %1378
    %1380 = vrot.lane.b32.xlu0 %v1334, 50
    %v1381 = vpop.permute.xlu0 %1380
    %1382 = vrot.lane.b32.xlu0 %v1335, 50
    %v1383 = vpop.permute.xlu0 %1382
    %1384 = vrot.lane.b32.xlu0 %v1336, 50
    %v1385 = vpop.permute.xlu0 %1384
    %1386 = vrot.lane.b32.xlu0 %v1337, 50
    %v1387 = vpop.permute.xlu0 %1386
    %1388 = vrot.lane.b32.xlu0 %v1338, 50
    %v1389 = vpop.permute.xlu0 %1388
    %1390 = vrot.lane.b32.xlu0 %v1339, 50
    %v1391 = vpop.permute.xlu0 %1390
    %1392 = vrot.lane.b32.xlu0 %v1340, 50
    %v1393 = vpop.permute.xlu0 %1392
    %1394 = vrot.lane.b32.xlu0 %v1341, 50
    %v1395 = vpop.permute.xlu0 %1394
    %v1396 = vsel %vm220, %v1361, %v1363
    %v1397 = vsel %vm220, %v1363, %v1365
    %v1398 = vsel %vm220, %v1365, %v1367
    %v1399 = vsel %vm220, %v1367, %v1369
    %v1400 = vsel %vm220, %v1369, %v1371
    %v1401 = vsel %vm220, %v1371, %v1373
    %v1402 = vsel %vm220, %v1373, %v1375
    %v1403 = vsel %vm220, %v1375, %v1377
    %v1404 = vsel %vm220, %v1379, %v1381
    %v1405 = vsel %vm220, %v1381, %v1383
    %v1406 = vsel %vm220, %v1383, %v1385
    %v1407 = vsel %vm220, %v1385, %v1387
    %v1408 = vsel %vm220, %v1387, %v1389
    %v1409 = vsel %vm220, %v1389, %v1391
    %v1410 = vsel %vm220, %v1391, %v1393
    %v1411 = vsel %vm220, %v1393, %v1395
    %v1428 = vadd.f32 %v1300, %v1396
    %v1429 = vadd.f32 %v1301, %v1397
    %v1430 = vadd.f32 %v1302, %v1398
    %v1431 = vadd.f32 %v1303, %v1399
    %v1432 = vadd.f32 %v1304, %v1400
    %v1433 = vadd.f32 %v1305, %v1401
    %v1434 = vadd.f32 %v1306, %v1402
    %v1435 = vadd.f32 %v1307, %v1403
    %v1436 = vadd.f32 %v1308, %v1404
    %v1437 = vadd.f32 %v1309, %v1405
    %v1438 = vadd.f32 %v1310, %v1406
    %v1439 = vadd.f32 %v1311, %v1407
    %v1440 = vadd.f32 %v1312, %v1408
    %v1441 = vadd.f32 %v1313, %v1409
    %v1442 = vadd.f32 %v1314, %v1410
    %v1443 = vadd.f32 %v1315, %v1411
    %v1444 = vld [vmem:[%s2] sm:$0xff]
    %v1445 = vld [vmem:[%s2 + $0x8] sm:$0xff]
    %1447 = vset.pattern.permute.xlu0 0
    %1448 = vperm.xlu0 %1447, %v1444
    %v1449 = vpop.permute.xlu0 %1448
    %1452 = vset.pattern.permute.xlu0 0
    %1453 = vperm.xlu0 %1452, %v1445
    %v1454 = vpop.permute.xlu0 %1453
    %v1456 = vadd.f32 %v1428, %v1449
    %v1457 = vadd.f32 %v1429, %v1449
    %v1458 = vadd.f32 %v1430, %v1449
    %v1459 = vadd.f32 %v1431, %v1449
    %v1460 = vadd.f32 %v1432, %v1449
    %v1461 = vadd.f32 %v1433, %v1449
    %v1462 = vadd.f32 %v1434, %v1449
    %v1463 = vadd.f32 %v1435, %v1449
    %v1464 = vadd.f32 %v1436, %v1454
    %v1465 = vadd.f32 %v1437, %v1454
    %v1466 = vadd.f32 %v1438, %v1454
    %v1467 = vadd.f32 %v1439, %v1454
    %v1468 = vadd.f32 %v1440, %v1454
    %v1469 = vadd.f32 %v1441, %v1454
    %v1470 = vadd.f32 %v1442, %v1454
    %v1471 = vadd.f32 %v1443, %v1454
    %v1472 = vmax.f32 %v1456, 0.0
    %v1473 = vmax.f32 %v1457, 0.0
    %v1474 = vmax.f32 %v1458, 0.0
    %v1475 = vmax.f32 %v1459, 0.0
    %v1476 = vmax.f32 %v1460, 0.0
    %v1477 = vmax.f32 %v1461, 0.0
    %v1478 = vmax.f32 %v1462, 0.0
    %v1479 = vmax.f32 %v1463, 0.0
    %v1480 = vmax.f32 %v1464, 0.0
    %v1481 = vmax.f32 %v1465, 0.0
    %v1482 = vmax.f32 %v1466, 0.0
    %v1483 = vmax.f32 %v1467, 0.0
    %v1484 = vmax.f32 %v1468, 0.0
    %v1485 = vmax.f32 %v1469, 0.0
    %v1486 = vmax.f32 %v1470, 0.0
    %v1487 = vmax.f32 %v1471, 0.0
    %v1489 = vlaneseq
    %v1490 = vshrl.u32 %v1489, 7
    %v1491 = vsub.s32 0, %v1490
    %v1492 = vrot.slane %v61, %v1491
    %v1493 = vlaneseq
    %v1494 = vshrl.u32 %v1493, 7
    %v1495 = vsub.s32 1, %v1494
    %v1496 = vrot.slane %v61, %v1495
    %v1497 = vlaneseq
    %v1498 = vshrl.u32 %v1497, 7
    %v1499 = vsub.s32 2, %v1498
    %v1500 = vrot.slane %v61, %v1499
    %v1501 = vlaneseq
    %v1502 = vshrl.u32 %v1501, 7
    %v1503 = vsub.s32 3, %v1502
    %v1504 = vrot.slane %v61, %v1503
    %v1505 = vlaneseq
    %v1506 = vshrl.u32 %v1505, 7
    %v1507 = vsub.s32 4, %v1506
    %v1508 = vrot.slane %v61, %v1507
    %v1509 = vlaneseq
    %v1510 = vshrl.u32 %v1509, 7
    %v1511 = vsub.s32 5, %v1510
    %v1512 = vrot.slane %v61, %v1511
    %v1513 = vlaneseq
    %v1514 = vshrl.u32 %v1513, 7
    %v1515 = vsub.s32 6, %v1514
    %v1516 = vrot.slane %v61, %v1515
    %v1517 = vlaneseq
    %v1518 = vshrl.u32 %v1517, 7
    %v1519 = vsub.s32 7, %v1518
    %v1520 = vrot.slane %v61, %v1519
    %v1529 = vmul.f32 %v1472, %v1492
    %v1530 = vmul.f32 %v1473, %v1496
    %v1531 = vmul.f32 %v1474, %v1500
    %v1532 = vmul.f32 %v1475, %v1504
    %v1533 = vmul.f32 %v1476, %v1508
    %v1534 = vmul.f32 %v1477, %v1512
    %v1535 = vmul.f32 %v1478, %v1516
    %v1536 = vmul.f32 %v1479, %v1520
    %v1537 = vmul.f32 %v1480, %v1492
    %v1538 = vmul.f32 %v1481, %v1496
    %v1539 = vmul.f32 %v1482, %v1500
    %v1540 = vmul.f32 %v1483, %v1504
    %v1541 = vmul.f32 %v1484, %v1508
    %v1542 = vmul.f32 %v1485, %v1512
    %v1543 = vmul.f32 %v1486, %v1516
    %v1544 = vmul.f32 %v1487, %v1520
    %v1545 = vadd.f32 %v1529, %v1530
    %v1546 = vadd.f32 %v1545, %v1531
    %v1547 = vadd.f32 %v1546, %v1532
    %v1548 = vadd.f32 %v1547, %v1533
    %v1549 = vadd.f32 %v1548, %v1534
    %v1550 = vadd.f32 %v1549, %v1535
    %vm1551 = vcmask 1014784
    %v1552 = vsel %vm1551, %v1536, 0.0
    %v1553 = vadd.f32 %v1550, %v1552
    %1554 = vadd.xlane.f32.xlu0 %v1553
    %v1555 = vpop.xlane.xlu0 %1554
    %v1556 = vadd.f32 %v1537, %v1538
    %v1557 = vadd.f32 %v1556, %v1539
    %v1558 = vadd.f32 %v1557, %v1540
    %v1559 = vadd.f32 %v1558, %v1541
    %v1560 = vadd.f32 %v1559, %v1542
    %v1561 = vadd.f32 %v1560, %v1543
    %v1562 = vsel %vm1551, %v1544, 0.0
    %v1563 = vadd.f32 %v1561, %v1562
    %1564 = vadd.xlane.f32.xlu0 %v1563
    %v1565 = vpop.xlane.xlu0 %1564
    %v1566 = vmul.f32 %v1555, 0.00125
    %v1567 = vmul.f32 %v1565, 0.00125
    %v1568 = vsub.f32 %v1472, %v1566
    %v1569 = vsub.f32 %v1473, %v1566
    %v1570 = vsub.f32 %v1474, %v1566
    %v1571 = vsub.f32 %v1475, %v1566
    %v1572 = vsub.f32 %v1476, %v1566
    %v1573 = vsub.f32 %v1477, %v1566
    %v1574 = vsub.f32 %v1478, %v1566
    %v1575 = vsub.f32 %v1479, %v1566
    %v1576 = vsub.f32 %v1480, %v1567
    %v1577 = vsub.f32 %v1481, %v1567
    %v1578 = vsub.f32 %v1482, %v1567
    %v1579 = vsub.f32 %v1483, %v1567
    %v1580 = vsub.f32 %v1484, %v1567
    %v1581 = vsub.f32 %v1485, %v1567
    %v1582 = vsub.f32 %v1486, %v1567
    %v1583 = vsub.f32 %v1487, %v1567
    %v1584 = vmul.f32 %v1568, %v1492
    %v1585 = vmul.f32 %v1569, %v1496
    %v1586 = vmul.f32 %v1570, %v1500
    %v1587 = vmul.f32 %v1571, %v1504
    %v1588 = vmul.f32 %v1572, %v1508
    %v1589 = vmul.f32 %v1573, %v1512
    %v1590 = vmul.f32 %v1574, %v1516
    %v1591 = vmul.f32 %v1575, %v1520
    %v1592 = vmul.f32 %v1576, %v1492
    %v1593 = vmul.f32 %v1577, %v1496
    %v1594 = vmul.f32 %v1578, %v1500
    %v1595 = vmul.f32 %v1579, %v1504
    %v1596 = vmul.f32 %v1580, %v1508
    %v1597 = vmul.f32 %v1581, %v1512
    %v1598 = vmul.f32 %v1582, %v1516
    %v1599 = vmul.f32 %v1583, %v1520
    %v1600 = vmul.f32 %v1584, %v1584
    %v1601 = vmul.f32 %v1585, %v1585
    %v1602 = vmul.f32 %v1586, %v1586
    %v1603 = vmul.f32 %v1587, %v1587
    %v1604 = vmul.f32 %v1588, %v1588
    %v1605 = vmul.f32 %v1589, %v1589
    %v1606 = vmul.f32 %v1590, %v1590
    %v1607 = vmul.f32 %v1591, %v1591
    %v1608 = vmul.f32 %v1592, %v1592
    %v1609 = vmul.f32 %v1593, %v1593
    %v1610 = vmul.f32 %v1594, %v1594
    %v1611 = vmul.f32 %v1595, %v1595
    %v1612 = vmul.f32 %v1596, %v1596
    %v1613 = vmul.f32 %v1597, %v1597
    %v1614 = vmul.f32 %v1598, %v1598
    %v1615 = vmul.f32 %v1599, %v1599
    %v1616 = vadd.f32 %v1600, %v1601
    %v1617 = vadd.f32 %v1616, %v1602
    %v1618 = vadd.f32 %v1617, %v1603
    %v1619 = vadd.f32 %v1618, %v1604
    %v1620 = vadd.f32 %v1619, %v1605
    %v1621 = vadd.f32 %v1620, %v1606
    %v1622 = vsel %vm1551, %v1607, 0.0
    %v1623 = vadd.f32 %v1621, %v1622
    %1624 = vadd.xlane.f32.xlu0 %v1623
    %v1625 = vpop.xlane.xlu0 %1624
    %v1626 = vadd.f32 %v1608, %v1609
    %v1627 = vadd.f32 %v1626, %v1610
    %v1628 = vadd.f32 %v1627, %v1611
    %v1629 = vadd.f32 %v1628, %v1612
    %v1630 = vadd.f32 %v1629, %v1613
    %v1631 = vadd.f32 %v1630, %v1614
    %v1632 = vsel %vm1551, %v1615, 0.0
    %v1633 = vadd.f32 %v1631, %v1632
    %1634 = vadd.xlane.f32.xlu0 %v1633
    %v1635 = vpop.xlane.xlu0 %1634
    %v1636 = vmul.f32 %v1625, 0.00125
    %v1637 = vmul.f32 %v1635, 0.00125
    %v1638 = vadd.f32 %v1636, 1e-05
    %v1639 = vadd.f32 %v1637, 1e-05
    %v1640 = vrsqrt.pop %v1638
    %v1641 = vrsqrt.pop %v1639
    %v1642 = vmul.f32 %v1584, %v1640
    %v1643 = vmul.f32 %v1585, %v1640
    %v1644 = vmul.f32 %v1586, %v1640
    %v1645 = vmul.f32 %v1587, %v1640
    %v1646 = vmul.f32 %v1588, %v1640
    %v1647 = vmul.f32 %v1589, %v1640
    %v1648 = vmul.f32 %v1590, %v1640
    %v1649 = vmul.f32 %v1591, %v1640
    %v1650 = vmul.f32 %v1592, %v1641
    %v1651 = vmul.f32 %v1593, %v1641
    %v1652 = vmul.f32 %v1594, %v1641
    %v1653 = vmul.f32 %v1595, %v1641
    %v1654 = vmul.f32 %v1596, %v1641
    %v1655 = vmul.f32 %v1597, %v1641
    %v1656 = vmul.f32 %v1598, %v1641
    %v1657 = vmul.f32 %v1599, %v1641
    %v1659 = vlaneseq
    %v1660 = vshrl.u32 %v1659, 7
    %v1661 = vsub.s32 0, %v1660
    %v1662 = vrot.slane %v63, %v1661
    %v1663 = vlaneseq
    %v1664 = vshrl.u32 %v1663, 7
    %v1665 = vsub.s32 1, %v1664
    %v1666 = vrot.slane %v63, %v1665
    %v1667 = vlaneseq
    %v1668 = vshrl.u32 %v1667, 7
    %v1669 = vsub.s32 2, %v1668
    %v1670 = vrot.slane %v63, %v1669
    %v1671 = vlaneseq
    %v1672 = vshrl.u32 %v1671, 7
    %v1673 = vsub.s32 3, %v1672
    %v1674 = vrot.slane %v63, %v1673
    %v1675 = vlaneseq
    %v1676 = vshrl.u32 %v1675, 7
    %v1677 = vsub.s32 4, %v1676
    %v1678 = vrot.slane %v63, %v1677
    %v1679 = vlaneseq
    %v1680 = vshrl.u32 %v1679, 7
    %v1681 = vsub.s32 5, %v1680
    %v1682 = vrot.slane %v63, %v1681
    %v1683 = vlaneseq
    %v1684 = vshrl.u32 %v1683, 7
    %v1685 = vsub.s32 6, %v1684
    %v1686 = vrot.slane %v63, %v1685
    %v1687 = vlaneseq
    %v1688 = vshrl.u32 %v1687, 7
    %v1689 = vsub.s32 7, %v1688
    %v1690 = vrot.slane %v63, %v1689
    %v1699 = vmul.f32 %v1642, %v1662
    %v1700 = vmul.f32 %v1643, %v1666
    %v1701 = vmul.f32 %v1644, %v1670
    %v1702 = vmul.f32 %v1645, %v1674
    %v1703 = vmul.f32 %v1646, %v1678
    %v1704 = vmul.f32 %v1647, %v1682
    %v1705 = vmul.f32 %v1648, %v1686
    %v1706 = vmul.f32 %v1649, %v1690
    %v1707 = vmul.f32 %v1650, %v1662
    %v1708 = vmul.f32 %v1651, %v1666
    %v1709 = vmul.f32 %v1652, %v1670
    %v1710 = vmul.f32 %v1653, %v1674
    %v1711 = vmul.f32 %v1654, %v1678
    %v1712 = vmul.f32 %v1655, %v1682
    %v1713 = vmul.f32 %v1656, %v1686
    %v1714 = vmul.f32 %v1657, %v1690
    %v1716 = vlaneseq
    %v1717 = vshrl.u32 %v1716, 7
    %v1718 = vsub.s32 0, %v1717
    %v1719 = vrot.slane %v65, %v1718
    %v1720 = vlaneseq
    %v1721 = vshrl.u32 %v1720, 7
    %v1722 = vsub.s32 1, %v1721
    %v1723 = vrot.slane %v65, %v1722
    %v1724 = vlaneseq
    %v1725 = vshrl.u32 %v1724, 7
    %v1726 = vsub.s32 2, %v1725
    %v1727 = vrot.slane %v65, %v1726
    %v1728 = vlaneseq
    %v1729 = vshrl.u32 %v1728, 7
    %v1730 = vsub.s32 3, %v1729
    %v1731 = vrot.slane %v65, %v1730
    %v1732 = vlaneseq
    %v1733 = vshrl.u32 %v1732, 7
    %v1734 = vsub.s32 4, %v1733
    %v1735 = vrot.slane %v65, %v1734
    %v1736 = vlaneseq
    %v1737 = vshrl.u32 %v1736, 7
    %v1738 = vsub.s32 5, %v1737
    %v1739 = vrot.slane %v65, %v1738
    %v1740 = vlaneseq
    %v1741 = vshrl.u32 %v1740, 7
    %v1742 = vsub.s32 6, %v1741
    %v1743 = vrot.slane %v65, %v1742
    %v1744 = vlaneseq
    %v1745 = vshrl.u32 %v1744, 7
    %v1746 = vsub.s32 7, %v1745
    %v1747 = vrot.slane %v65, %v1746
    %v1756 = vadd.f32 %v1699, %v1719
    %v1757 = vadd.f32 %v1700, %v1723
    %v1758 = vadd.f32 %v1701, %v1727
    %v1759 = vadd.f32 %v1702, %v1731
    %v1760 = vadd.f32 %v1703, %v1735
    %v1761 = vadd.f32 %v1704, %v1739
    %v1762 = vadd.f32 %v1705, %v1743
    %v1763 = vadd.f32 %v1706, %v1747
    %v1764 = vadd.f32 %v1707, %v1719
    %v1765 = vadd.f32 %v1708, %v1723
    %v1766 = vadd.f32 %v1709, %v1727
    %v1767 = vadd.f32 %v1710, %v1731
    %v1768 = vadd.f32 %v1711, %v1735
    %v1769 = vadd.f32 %v1712, %v1739
    %v1770 = vadd.f32 %v1713, %v1743
    %v1771 = vadd.f32 %v1714, %v1747
    %1772 = vst [vmem:[#allocation3] sm:$0xff] %v1756
    %1773 = vst [vmem:[#allocation3 + $0x8] sm:$0xff] %v1757
    %1774 = vst [vmem:[#allocation3 + $0x10] sm:$0xff] %v1758
    %1775 = vst [vmem:[#allocation3 + $0x18] sm:$0xff] %v1759
    %1776 = vst [vmem:[#allocation3 + $0x20] sm:$0xff] %v1760
    %1777 = vst [vmem:[#allocation3 + $0x28] sm:$0xff] %v1761
    %1778 = vst [vmem:[#allocation3 + $0x30] sm:$0xff] %v1762
    %1779 = vst.msk [vmem:[#allocation3 + $0x38] sm:$0xff] %vm1551, %v1763
    %1780 = vst [vmem:[#allocation3 + $0x40] sm:$0xff] %v1764
    %1781 = vst [vmem:[#allocation3 + $0x48] sm:$0xff] %v1765
    %1782 = vst [vmem:[#allocation3 + $0x50] sm:$0xff] %v1766
    %1783 = vst [vmem:[#allocation3 + $0x58] sm:$0xff] %v1767
    %1784 = vst [vmem:[#allocation3 + $0x60] sm:$0xff] %v1768
    %1785 = vst [vmem:[#allocation3 + $0x68] sm:$0xff] %v1769
    %1786 = vst [vmem:[#allocation3 + $0x70] sm:$0xff] %v1770
    %1787 = vst.msk [vmem:[#allocation3 + $0x78] sm:$0xff] %vm1551, %v1771
    %v1788 = vld [vmem:[#allocation3] sm:$0xff]
    %v1789 = vld [vmem:[#allocation3 + $0x8] sm:$0xff]
    %v1790 = vld [vmem:[#allocation3 + $0x40] sm:$0xff]
    %v1791 = vld [vmem:[#allocation3 + $0x48] sm:$0xff]
    %1796 = vrot.lane.b32.xlu0 %v1788, 127
    %v1797 = vpop.permute.xlu0 %1796
    %1798 = vrot.lane.b32.xlu0 %v1789, 127
    %v1799 = vpop.permute.xlu0 %1798
    %1800 = vrot.lane.b32.xlu0 %v1790, 127
    %v1801 = vpop.permute.xlu0 %1800
    %1802 = vrot.lane.b32.xlu0 %v1791, 127
    %v1803 = vpop.permute.xlu0 %1802
    %v1804 = vsel %vm408, %v1797, %v1799
    %v1805 = vsel %vm408, %v1801, %v1803
    %v1810 = vmax.f32 %v1788, %v1804
    %v1811 = vmax.f32 %v1789, %v1799
    %v1812 = vmax.f32 %v1790, %v1805
    %v1813 = vmax.f32 %v1791, %v1803
    %v1814 = vld [vmem:[#allocation3 + $0x10] sm:$0xff]
    %v1815 = vld [vmem:[#allocation3 + $0x50] sm:$0xff]
    %1818 = vrot.lane.b32.xlu0 %v1814, 127
    %v1819 = vpop.permute.xlu0 %1818
    %1820 = vrot.lane.b32.xlu0 %v1815, 127
    %v1821 = vpop.permute.xlu0 %1820
    %v1822 = vsel %vm408, %v1799, %v1819
    %v1823 = vsel %vm408, %v1803, %v1821
    %v1828 = vmax.f32 %v1789, %v1822
    %v1829 = vmax.f32 %v1814, %v1819
    %v1830 = vmax.f32 %v1791, %v1823
    %v1831 = vmax.f32 %v1815, %v1821
    %1836 = vrot.lane.b32.xlu0 %v1828, 26
    %v1837 = vpop.permute.xlu0 %1836
    %1838 = vrot.lane.b32.xlu0 %v1829, 26
    %v1839 = vpop.permute.xlu0 %1838
    %1840 = vrot.lane.b32.xlu0 %v1830, 26
    %v1841 = vpop.permute.xlu0 %1840
    %1842 = vrot.lane.b32.xlu0 %v1831, 26
    %v1843 = vpop.permute.xlu0 %1842
    %v1844 = vsel %vm703, %v1837, %v1839
    %v1845 = vsel %vm703, %v1841, %v1843
    %v1850 = vmax.f32 %v1810, %v1837
    %v1851 = vmax.f32 %v1811, %v1844
    %v1852 = vmax.f32 %v1812, %v1841
    %v1853 = vmax.f32 %v1813, %v1845
    %v1854 = vpack.c.bf16 %v1852, %v1850
    %v1855 = vpack.c.bf16 %v1853, %v1851
    %v1858 = vunpack.c.l.b16 %v1854
    %v1859 = vunpack.c.l.b16 %v1855
    %v1860 = vunpack.c.h.b16 %v1854
    %v1861 = vunpack.c.h.b16 %v1855
    %v1862 = vpack.c.b16 %v1859, %v1858
    %v1863 = vpack.c.b16 %v1861, %v1860
    %1864 = vrot.lane.b32.xlu0 %v1862, 26
    %v1865 = vpop.permute.xlu0 %1864
    %1866 = vrot.lane.b32.xlu0 %v1863, 26
    %v1867 = vpop.permute.xlu0 %1866
    %v1868 = vrot.slane %v1865, 4
    %v1869 = vrot.slane %v1867, 4
    %vm1870 = vcmask 211968
    %v1871 = vsel %vm1870, %v1865, %v1868
    %v1872 = vsel %vm1870, %v1867, %v1869
    %vm1875 = vcmask 830464
    %1876 = vst.msk [vmem:[#allocation4] sm:$0xf] %vm1875, %v1871
    %1877 = vst.msk [vmem:[#allocation4 + $0x4] sm:$0xf] %vm1875, %v1872
    %v1878 = vld [vmem:[#allocation3 + $0x10] sm:$0xff]
    %v1879 = vld [vmem:[#allocation3 + $0x18] sm:$0xff]
    %v1880 = vld [vmem:[#allocation3 + $0x50] sm:$0xff]
    %v1881 = vld [vmem:[#allocation3 + $0x58] sm:$0xff]
    %1886 = vrot.lane.b32.xlu0 %v1878, 127
    %v1887 = vpop.permute.xlu0 %1886
    %1888 = vrot.lane.b32.xlu0 %v1879, 127
    %v1889 = vpop.permute.xlu0 %1888
    %1890 = vrot.lane.b32.xlu0 %v1880, 127
    %v1891 = vpop.permute.xlu0 %1890
    %1892 = vrot.lane.b32.xlu0 %v1881, 127
    %v1893 = vpop.permute.xlu0 %1892
    %v1894 = vsel %vm408, %v1887, %v1889
    %v1895 = vsel %vm408, %v1891, %v1893
    %v1900 = vmax.f32 %v1878, %v1894
    %v1901 = vmax.f32 %v1879, %v1889
    %v1902 = vmax.f32 %v1880, %v1895
    %v1903 = vmax.f32 %v1881, %v1893
    %1906 = vrot.lane.b32.xlu0 %v1901, 26
    %v1907 = vpop.permute.xlu0 %1906
    %1908 = vrot.lane.b32.xlu0 %v1903, 26
    %v1909 = vpop.permute.xlu0 %1908
    %v1912 = vmax.f32 %v1900, %v1907
    %v1913 = vmax.f32 %v1901, %v1907
    %v1914 = vmax.f32 %v1902, %v1909
    %v1915 = vmax.f32 %v1903, %v1909
    %v1916 = vpack.c.bf16 %v1914, %v1912
    %v1917 = vpack.c.bf16 %v1915, %v1913
    %v1920 = vunpack.c.l.b16 %v1916
    %v1921 = vunpack.c.l.b16 %v1917
    %v1922 = vunpack.c.h.b16 %v1916
    %v1923 = vunpack.c.h.b16 %v1917
    %v1924 = vpack.c.b16 %v1921, %v1920
    %v1925 = vpack.c.b16 %v1923, %v1922
    %1926 = vrot.lane.b32.xlu0 %v1924, 78
    %v1927 = vpop.permute.xlu0 %1926
    %1928 = vrot.lane.b32.xlu0 %v1925, 78
    %v1929 = vpop.permute.xlu0 %1928
    %v1930 = vrot.slane %v1927, 4
    %v1931 = vrot.slane %v1929, 4
    %vm1932 = vcmask 637952
    %v1933 = vsel %vm1932, %v1927, %v1930
    %v1934 = vsel %vm1932, %v1929, %v1931
    %1937 = vst.msk [vmem:[#allocation4 + $0x8] sm:$0xf] %vm1875, %v1933
    %1938 = vst.msk [vmem:[#allocation4 + $0xc] sm:$0xf] %vm1875, %v1934
    %v1939 = vld [vmem:[#allocation3 + $0x18] sm:$0xff]
    %v1940 = vld [vmem:[#allocation3 + $0x20] sm:$0xff]
    %v1941 = vld [vmem:[#allocation3 + $0x58] sm:$0xff]
    %v1942 = vld [vmem:[#allocation3 + $0x60] sm:$0xff]
    %1947 = vrot.lane.b32.xlu0 %v1939, 127
    %v1948 = vpop.permute.xlu0 %1947
    %1949 = vrot.lane.b32.xlu0 %v1940, 127
    %v1950 = vpop.permute.xlu0 %1949
    %1951 = vrot.lane.b32.xlu0 %v1941, 127
    %v1952 = vpop.permute.xlu0 %1951
    %1953 = vrot.lane.b32.xlu0 %v1942, 127
    %v1954 = vpop.permute.xlu0 %1953
    %v1955 = vsel %vm408, %v1948, %v1950
    %v1956 = vsel %vm408, %v1952, %v1954
    %v1961 = vmax.f32 %v1939, %v1955
    %v1962 = vmax.f32 %v1940, %v1950
    %v1963 = vmax.f32 %v1941, %v1956
    %v1964 = vmax.f32 %v1942, %v1954
    %v1965 = vld [vmem:[#allocation3 + $0x28] sm:$0xff]
    %v1966 = vld [vmem:[#allocation3 + $0x68] sm:$0xff]
    %1969 = vrot.lane.b32.xlu0 %v1965, 127
    %v1970 = vpop.permute.xlu0 %1969
    %1971 = vrot.lane.b32.xlu0 %v1966, 127
    %v1972 = vpop.permute.xlu0 %1971
    %v1973 = vsel %vm408, %v1950, %v1970
    %v1974 = vsel %vm408, %v1954, %v1972
    %v1979 = vmax.f32 %v1940, %v1973
    %v1980 = vmax.f32 %v1965, %v1970
    %v1981 = vmax.f32 %v1942, %v1974
    %v1982 = vmax.f32 %v1966, %v1972
    %1987 = vrot.lane.b32.xlu0 %v1979, 26
    %v1988 = vpop.permute.xlu0 %1987
    %1989 = vrot.lane.b32.xlu0 %v1980, 26
    %v1990 = vpop.permute.xlu0 %1989
    %1991 = vrot.lane.b32.xlu0 %v1981, 26
    %v1992 = vpop.permute.xlu0 %1991
    %1993 = vrot.lane.b32.xlu0 %v1982, 26
    %v1994 = vpop.permute.xlu0 %1993
    %v1995 = vsel %vm703, %v1988, %v1990
    %v1996 = vsel %vm703, %v1992, %v1994
    %v2001 = vmax.f32 %v1961, %v1988
    %v2002 = vmax.f32 %v1962, %v1995
    %v2003 = vmax.f32 %v1963, %v1992
    %v2004 = vmax.f32 %v1964, %v1996
    %v2005 = vpack.c.bf16 %v2003, %v2001
    %v2006 = vpack.c.bf16 %v2004, %v2002
    %v2009 = vunpack.c.l.b16 %v2005
    %v2010 = vunpack.c.l.b16 %v2006
    %v2011 = vunpack.c.h.b16 %v2005
    %v2012 = vunpack.c.h.b16 %v2006
    %v2013 = vpack.c.b16 %v2010, %v2009
    %v2014 = vpack.c.b16 %v2012, %v2011
    %2015 = vrot.lane.b32.xlu0 %v2013, 2
    %v2016 = vpop.permute.xlu0 %2015
    %2017 = vrot.lane.b32.xlu0 %v2014, 2
    %v2018 = vpop.permute.xlu0 %2017
    %v2019 = vrot.slane %v2016, 4
    %v2020 = vrot.slane %v2018, 4
    %vm2021 = vcmask 15360
    %v2022 = vsel %vm2021, %v2016, %v2019
    %v2023 = vsel %vm2021, %v2018, %v2020
    %2026 = vst.msk [vmem:[#allocation4 + $0x10] sm:$0xf] %vm1875, %v2022
    %2027 = vst.msk [vmem:[#allocation4 + $0x14] sm:$0xf] %vm1875, %v2023
    %v2028 = vld [vmem:[#allocation3 + $0x28] sm:$0xff]
    %v2029 = vld [vmem:[#allocation3 + $0x30] sm:$0xff]
    %v2030 = vld [vmem:[#allocation3 + $0x68] sm:$0xff]
    %v2031 = vld [vmem:[#allocation3 + $0x70] sm:$0xff]
    %2036 = vrot.lane.b32.xlu0 %v2028, 127
    %v2037 = vpop.permute.xlu0 %2036
    %2038 = vrot.lane.b32.xlu0 %v2029, 127
    %v2039 = vpop.permute.xlu0 %2038
    %2040 = vrot.lane.b32.xlu0 %v2030, 127
    %v2041 = vpop.permute.xlu0 %2040
    %2042 = vrot.lane.b32.xlu0 %v2031, 127
    %v2043 = vpop.permute.xlu0 %2042
    %v2044 = vsel %vm408, %v2037, %v2039
    %v2045 = vsel %vm408, %v2041, %v2043
    %v2050 = vmax.f32 %v2028, %v2044
    %v2051 = vmax.f32 %v2029, %v2039
    %v2052 = vmax.f32 %v2030, %v2045
    %v2053 = vmax.f32 %v2031, %v2043
    %v2054 = vld [vmem:[#allocation3 + $0x38] sm:$0xff]
    %v2055 = vld [vmem:[#allocation3 + $0x78] sm:$0xff]
    %2058 = vrot.lane.b32.xlu0 %v2054, 127
    %v2059 = vpop.permute.xlu0 %2058
    %2060 = vrot.lane.b32.xlu0 %v2055, 127
    %v2061 = vpop.permute.xlu0 %2060
    %v2062 = vsel %vm408, %v2039, %v2059
    %v2063 = vsel %vm408, %v2043, %v2061
    %v2068 = vmax.f32 %v2029, %v2062
    %v2069 = vmax.f32 %v2054, %v2059
    %v2070 = vmax.f32 %v2031, %v2063
    %v2071 = vmax.f32 %v2055, %v2061
    %2076 = vrot.lane.b32.xlu0 %v2068, 26
    %v2077 = vpop.permute.xlu0 %2076
    %2078 = vrot.lane.b32.xlu0 %v2069, 26
    %v2079 = vpop.permute.xlu0 %2078
    %2080 = vrot.lane.b32.xlu0 %v2070, 26
    %v2081 = vpop.permute.xlu0 %2080
    %2082 = vrot.lane.b32.xlu0 %v2071, 26
    %v2083 = vpop.permute.xlu0 %2082
    %v2084 = vsel %vm703, %v2077, %v2079
    %v2085 = vsel %vm703, %v2081, %v2083
    %v2090 = vmax.f32 %v2050, %v2077
    %v2091 = vmax.f32 %v2051, %v2084
    %v2092 = vmax.f32 %v2052, %v2081
    %v2093 = vmax.f32 %v2053, %v2085
    %v2094 = vpack.c.bf16 %v2092, %v2090
    %v2095 = vpack.c.bf16 %v2093, %v2091
    %v2098 = vunpack.c.l.b16 %v2094
    %v2099 = vunpack.c.l.b16 %v2095
    %v2100 = vunpack.c.h.b16 %v2094
    %v2101 = vunpack.c.h.b16 %v2095
    %v2102 = vpack.c.b16 %v2099, %v2098
    %v2103 = vpack.c.b16 %v2101, %v2100
    %2104 = vrot.lane.b32.xlu0 %v2102, 54
    %v2105 = vpop.permute.xlu0 %2104
    %2106 = vrot.lane.b32.xlu0 %v2103, 54
    %v2107 = vpop.permute.xlu0 %2106
    %v2108 = vrot.slane %v2105, 4
    %v2109 = vrot.slane %v2107, 4
    %vm2110 = vcmask 441344
    %v2111 = vsel %vm2110, %v2105, %v2108
    %v2112 = vsel %vm2110, %v2107, %v2109
    %2115 = vst.msk [vmem:[#allocation4 + $0x18] sm:$0xf] %vm1875, %v2111
    %2116 = vst.msk [vmem:[#allocation4 + $0x1c] sm:$0xf] %vm1875, %v2112
    %s2117 = scalar_lea.vmem %s0, 8
    %v2118 = vld [vmem:[%s2117] sm:$0x1]
    %v2121 = vunpack.c.l.s4 1966171168
    %v2122 = vunpack.c.0.s8 %v2121
    %v2123 = vlaneseq
    %v2124 = vshrl.u32 %v2123, 7
    %v2125 = vsub.s32 %v2122, %v2124
    %v2126 = vrot.slane %v2118, %v2125
    %v2128 = vunpack.c.l.s4 1966171168
    %v2129 = vunpack.c.0.s8 %v2128
    %v2130 = vlaneseq
    %v2131 = vshrl.u32 %v2130, 7
    %v2132 = vsub.s32 %v2129, %v2131
    %v2133 = vrot.slane %v2126, %v2132
    %2134 = vrot.lane.b32.xlu0 %v2133, 78
    %v2135 = vpop.permute.xlu0 %2134
    %v2136 = vrot.slane %v2135, 7
    %v2137 = vsel %vm90, %v2136, %v2135
    %2139 = vst.msk [vmem:[#allocation2 + $0x1] sm:$0x3] %vm95, %v2137
    %v2140 = vld [vmem:[%s2117 + $0x1] sm:$0x1]
    %v2143 = vunpack.c.l.s4 1966171168
    %v2144 = vunpack.c.0.s8 %v2143
    %v2145 = vlaneseq
    %v2146 = vshrl.u32 %v2145, 7
    %v2147 = vsub.s32 %v2144, %v2146
    %v2148 = vrot.slane %v2140, %v2147
    %v2150 = vunpack.c.l.s4 1966171168
    %v2151 = vunpack.c.0.s8 %v2150
    %v2152 = vlaneseq
    %v2153 = vshrl.u32 %v2152, 7
    %v2154 = vsub.s32 %v2151, %v2153
    %v2155 = vrot.slane %v2148, %v2154
    %2156 = vrot.lane.b32.xlu0 %v2155, 52
    %v2157 = vpop.permute.xlu0 %2156
    %v2158 = vrot.slane %v2157, 7
    %v2159 = vsel %vm116, %v2158, %v2157
    %2161 = vst.msk [vmem:[#allocation2 + $0x2] sm:$0x3] %vm121, %v2159
    %v2162 = vld [vmem:[%s2117 + $0x2] sm:$0x1]
    %v2165 = vunpack.c.l.s4 1966171168
    %v2166 = vunpack.c.0.s8 %v2165
    %v2167 = vlaneseq
    %v2168 = vshrl.u32 %v2167, 7
    %v2169 = vsub.s32 %v2166, %v2168
    %v2170 = vrot.slane %v2162, %v2169
    %v2172 = vunpack.c.l.s4 1966171168
    %v2173 = vunpack.c.0.s8 %v2172
    %v2174 = vlaneseq
    %v2175 = vshrl.u32 %v2174, 7
    %v2176 = vsub.s32 %v2173, %v2175
    %v2177 = vrot.slane %v2170, %v2176
    %2178 = vrot.lane.b32.xlu0 %v2177, 26
    %v2179 = vpop.permute.xlu0 %2178
    %2181 = vst.msk [vmem:[#allocation2 + $0x3] sm:$0x1] %vm144, %v2179
    %v2182 = vld [vmem:[%s2117 + $0x3] sm:$0x1]
    %2183 = vst.msk [vmem:[#allocation2 + $0x4] sm:$0x1] %vm148, %v2182
    %v2184 = vld [vmem:[%s2117 + $0x4] sm:$0x1]
    %v2187 = vunpack.c.l.s4 1966171168
    %v2188 = vunpack.c.0.s8 %v2187
    %v2189 = vlaneseq
    %v2190 = vshrl.u32 %v2189, 7
    %v2191 = vsub.s32 %v2188, %v2190
    %v2192 = vrot.slane %v2184, %v2191
    %v2194 = vunpack.c.l.s4 1966171168
    %v2195 = vunpack.c.0.s8 %v2194
    %v2196 = vlaneseq
    %v2197 = vshrl.u32 %v2196, 7
    %v2198 = vsub.s32 %v2195, %v2197
    %v2199 = vrot.slane %v2192, %v2198
    %2200 = vrot.lane.b32.xlu0 %v2199, 102
    %v2201 = vpop.permute.xlu0 %2200
    %v2202 = vrot.slane %v2201, 7
    %v2203 = vsel %vm169, %v2202, %v2201
    %2205 = vst.msk [vmem:[#allocation2 + $0x4] sm:$0x3] %vm173, %v2203
    %v2206 = vld [vmem:[%s2117 + $0x5] sm:$0x1]
    %v2209 = vunpack.c.l.s4 1966171168
    %v2210 = vunpack.c.0.s8 %v2209
    %v2211 = vlaneseq
    %v2212 = vshrl.u32 %v2211, 7
    %v2213 = vsub.s32 %v2210, %v2212
    %v2214 = vrot.slane %v2206, %v2213
    %v2216 = vunpack.c.l.s4 1966171168
    %v2217 = vunpack.c.0.s8 %v2216
    %v2218 = vlaneseq
    %v2219 = vshrl.u32 %v2218, 7
    %v2220 = vsub.s32 %v2217, %v2219
    %v2221 = vrot.slane %v2214, %v2220
    %2222 = vrot.lane.b32.xlu0 %v2221, 76
    %v2223 = vpop.permute.xlu0 %2222
    %v2224 = vrot.slane %v2223, 7
    %v2225 = vsel %vm194, %v2224, %v2223
    %2227 = vst.msk [vmem:[#allocation2 + $0x5] sm:$0x3] %vm199, %v2225
    %v2228 = vld [vmem:[%s2117 + $0x6] sm:$0x1]
    %v2231 = vunpack.c.l.s4 1966171168
    %v2232 = vunpack.c.0.s8 %v2231
    %v2233 = vlaneseq
    %v2234 = vshrl.u32 %v2233, 7
    %v2235 = vsub.s32 %v2232, %v2234
    %v2236 = vrot.slane %v2228, %v2235
    %v2238 = vunpack.c.l.s4 1966171168
    %v2239 = vunpack.c.0.s8 %v2238
    %v2240 = vlaneseq
    %v2241 = vshrl.u32 %v2240, 7
    %v2242 = vsub.s32 %v2239, %v2241
    %v2243 = vrot.slane %v2236, %v2242
    %2244 = vrot.lane.b32.xlu0 %v2243, 50
    %v2245 = vpop.permute.xlu0 %2244
    %v2246 = vrot.slane %v2245, 7
    %v2247 = vsel %vm220, %v2246, %v2245
    %2249 = vst.msk [vmem:[#allocation2 + $0x6] sm:$0x3] %vm225, %v2247
    %v2250 = vld [vmem:[%s2117 + $0x7] sm:$0x1]
    %v2253 = vunpack.c.l.s4 1966171168
    %v2254 = vunpack.c.0.s8 %v2253
    %v2255 = vlaneseq
    %v2256 = vshrl.u32 %v2255, 7
    %v2257 = vsub.s32 %v2254, %v2256
    %v2258 = vrot.slane %v2250, %v2257
    %v2260 = vunpack.c.l.s4 1966171168
    %v2261 = vunpack.c.0.s8 %v2260
    %v2262 = vlaneseq
    %v2263 = vshrl.u32 %v2262, 7
    %v2264 = vsub.s32 %v2261, %v2263
    %v2265 = vrot.slane %v2258, %v2264
    %2266 = vrot.lane.b32.xlu0 %v2265, 24
    %v2267 = vpop.permute.xlu0 %2266
    %2269 = vst.msk [vmem:[#allocation2 + $0x7] sm:$0x1] %vm248, %v2267
    %v2270 = vld [vmem:[#allocation2] sm:$0xff]
    %v2271 = vld [vmem:[%s1] sm:$0xff]
    %v2272 = vld [vmem:[%s1 + $0x8] sm:$0xff]
    %2274 = vset.pattern.permute.xlu0 0
    %2275 = vperm.xlu0 %2274, %v2271
    %v2276 = vpop.permute.xlu0 %2275
    %2279 = vset.pattern.permute.xlu0 0
    %2280 = vperm.xlu0 %2279, %v2272
    %v2281 = vpop.permute.xlu0 %2280
    %v2284 = vlaneseq
    %v2285 = vshrl.u32 %v2284, 7
    %v2286 = vsub.s32 0, %v2285
    %v2287 = vrot.slane %v2270, %v2286
    %v2288 = vlaneseq
    %v2289 = vshrl.u32 %v2288, 7
    %v2290 = vsub.s32 1, %v2289
    %v2291 = vrot.slane %v2270, %v2290
    %v2292 = vlaneseq
    %v2293 = vshrl.u32 %v2292, 7
    %v2294 = vsub.s32 2, %v2293
    %v2295 = vrot.slane %v2270, %v2294
    %v2296 = vlaneseq
    %v2297 = vshrl.u32 %v2296, 7
    %v2298 = vsub.s32 3, %v2297
    %v2299 = vrot.slane %v2270, %v2298
    %v2300 = vlaneseq
    %v2301 = vshrl.u32 %v2300, 7
    %v2302 = vsub.s32 4, %v2301
    %v2303 = vrot.slane %v2270, %v2302
    %v2304 = vlaneseq
    %v2305 = vshrl.u32 %v2304, 7
    %v2306 = vsub.s32 5, %v2305
    %v2307 = vrot.slane %v2270, %v2306
    %v2308 = vlaneseq
    %v2309 = vshrl.u32 %v2308, 7
    %v2310 = vsub.s32 6, %v2309
    %v2311 = vrot.slane %v2270, %v2310
    %v2312 = vlaneseq
    %v2313 = vshrl.u32 %v2312, 7
    %v2314 = vsub.s32 7, %v2313
    %v2315 = vrot.slane %v2270, %v2314
    %v2324 = vmul.f32 %v2276, %v2287
    %v2325 = vmul.f32 %v2276, %v2291
    %v2326 = vmul.f32 %v2276, %v2295
    %v2327 = vmul.f32 %v2276, %v2299
    %v2328 = vmul.f32 %v2276, %v2303
    %v2329 = vmul.f32 %v2276, %v2307
    %v2330 = vmul.f32 %v2276, %v2311
    %v2331 = vmul.f32 %v2276, %v2315
    %v2332 = vmul.f32 %v2281, %v2287
    %v2333 = vmul.f32 %v2281, %v2291
    %v2334 = vmul.f32 %v2281, %v2295
    %v2335 = vmul.f32 %v2281, %v2299
    %v2336 = vmul.f32 %v2281, %v2303
    %v2337 = vmul.f32 %v2281, %v2307
    %v2338 = vmul.f32 %v2281, %v2311
    %v2339 = vmul.f32 %v2281, %v2315
    %v2340 = vadd.f32 %v2324, 0.0
    %v2341 = vadd.f32 %v2325, 0.0
    %v2342 = vadd.f32 %v2326, 0.0
    %v2343 = vadd.f32 %v2327, 0.0
    %v2344 = vadd.f32 %v2328, 0.0
    %v2345 = vadd.f32 %v2329, 0.0
    %v2346 = vadd.f32 %v2330, 0.0
    %v2347 = vadd.f32 %v2331, 0.0
    %v2348 = vadd.f32 %v2332, 0.0
    %v2349 = vadd.f32 %v2333, 0.0
    %v2350 = vadd.f32 %v2334, 0.0
    %v2351 = vadd.f32 %v2335, 0.0
    %v2352 = vadd.f32 %v2336, 0.0
    %v2353 = vadd.f32 %v2337, 0.0
    %v2354 = vadd.f32 %v2338, 0.0
    %v2355 = vadd.f32 %v2339, 0.0
    %2356 = vset.pattern.permute.xlu0 1
    %2357 = vperm.xlu0 %2356, %v2271
    %v2358 = vpop.permute.xlu0 %2357
    %2360 = vset.pattern.permute.xlu0 1
    %2361 = vperm.xlu0 %2360, %v2272
    %v2362 = vpop.permute.xlu0 %2361
    %v2364 = vmul.f32 %v2358, %v2287
    %v2365 = vmul.f32 %v2358, %v2291
    %v2366 = vmul.f32 %v2358, %v2295
    %v2367 = vmul.f32 %v2358, %v2299
    %v2368 = vmul.f32 %v2358, %v2303
    %v2369 = vmul.f32 %v2358, %v2307
    %v2370 = vmul.f32 %v2358, %v2311
    %v2371 = vmul.f32 %v2358, %v2315
    %v2372 = vmul.f32 %v2362, %v2287
    %v2373 = vmul.f32 %v2362, %v2291
    %v2374 = vmul.f32 %v2362, %v2295
    %v2375 = vmul.f32 %v2362, %v2299
    %v2376 = vmul.f32 %v2362, %v2303
    %v2377 = vmul.f32 %v2362, %v2307
    %v2378 = vmul.f32 %v2362, %v2311
    %v2379 = vmul.f32 %v2362, %v2315
    %2396 = vrot.lane.b32.xlu0 %v2364, 127
    %v2397 = vpop.permute.xlu0 %2396
    %2398 = vrot.lane.b32.xlu0 %v2365, 127
    %v2399 = vpop.permute.xlu0 %2398
    %2400 = vrot.lane.b32.xlu0 %v2366, 127
    %v2401 = vpop.permute.xlu0 %2400
    %2402 = vrot.lane.b32.xlu0 %v2367, 127
    %v2403 = vpop.permute.xlu0 %2402
    %2404 = vrot.lane.b32.xlu0 %v2368, 127
    %v2405 = vpop.permute.xlu0 %2404
    %2406 = vrot.lane.b32.xlu0 %v2369, 127
    %v2407 = vpop.permute.xlu0 %2406
    %2408 = vrot.lane.b32.xlu0 %v2370, 127
    %v2409 = vpop.permute.xlu0 %2408
    %2410 = vrot.lane.b32.xlu0 %v2371, 127
    %v2411 = vpop.permute.xlu0 %2410
    %2412 = vrot.lane.b32.xlu0 %v2372, 127
    %v2413 = vpop.permute.xlu0 %2412
    %2414 = vrot.lane.b32.xlu0 %v2373, 127
    %v2415 = vpop.permute.xlu0 %2414
    %2416 = vrot.lane.b32.xlu0 %v2374, 127
    %v2417 = vpop.permute.xlu0 %2416
    %2418 = vrot.lane.b32.xlu0 %v2375, 127
    %v2419 = vpop.permute.xlu0 %2418
    %2420 = vrot.lane.b32.xlu0 %v2376, 127
    %v2421 = vpop.permute.xlu0 %2420
    %2422 = vrot.lane.b32.xlu0 %v2377, 127
    %v2423 = vpop.permute.xlu0 %2422
    %2424 = vrot.lane.b32.xlu0 %v2378, 127
    %v2425 = vpop.permute.xlu0 %2424
    %2426 = vrot.lane.b32.xlu0 %v2379, 127
    %v2427 = vpop.permute.xlu0 %2426
    %v2428 = vsel %vm408, %v2397, %v2399
    %v2429 = vsel %vm408, %v2399, %v2401
    %v2430 = vsel %vm408, %v2401, %v2403
    %v2431 = vsel %vm408, %v2403, %v2405
    %v2432 = vsel %vm408, %v2405, %v2407
    %v2433 = vsel %vm408, %v2407, %v2409
    %v2434 = vsel %vm408, %v2409, %v2411
    %v2435 = vsel %vm408, %v2413, %v2415
    %v2436 = vsel %vm408, %v2415, %v2417
    %v2437 = vsel %vm408, %v2417, %v2419
    %v2438 = vsel %vm408, %v2419, %v2421
    %v2439 = vsel %vm408, %v2421, %v2423
    %v2440 = vsel %vm408, %v2423, %v2425
    %v2441 = vsel %vm408, %v2425, %v2427
    %v2458 = vadd.f32 %v2340, %v2428
    %v2459 = vadd.f32 %v2341, %v2429
    %v2460 = vadd.f32 %v2342, %v2430
    %v2461 = vadd.f32 %v2343, %v2431
    %v2462 = vadd.f32 %v2344, %v2432
    %v2463 = vadd.f32 %v2345, %v2433
    %v2464 = vadd.f32 %v2346, %v2434
    %v2465 = vadd.f32 %v2347, %v2411
    %v2466 = vadd.f32 %v2348, %v2435
    %v2467 = vadd.f32 %v2349, %v2436
    %v2468 = vadd.f32 %v2350, %v2437
    %v2469 = vadd.f32 %v2351, %v2438
    %v2470 = vadd.f32 %v2352, %v2439
    %v2471 = vadd.f32 %v2353, %v2440
    %v2472 = vadd.f32 %v2354, %v2441
    %v2473 = vadd.f32 %v2355, %v2427
    %2474 = vset.pattern.permute.xlu0 2
    %2475 = vperm.xlu0 %2474, %v2271
    %v2476 = vpop.permute.xlu0 %2475
    %2478 = vset.pattern.permute.xlu0 2
    %2479 = vperm.xlu0 %2478, %v2272
    %v2480 = vpop.permute.xlu0 %2479
    %v2482 = vmul.f32 %v2476, %v2287
    %v2483 = vmul.f32 %v2476, %v2291
    %v2484 = vmul.f32 %v2476, %v2295
    %v2485 = vmul.f32 %v2476, %v2299
    %v2486 = vmul.f32 %v2476, %v2303
    %v2487 = vmul.f32 %v2476, %v2307
    %v2488 = vmul.f32 %v2476, %v2311
    %v2489 = vmul.f32 %v2476, %v2315
    %v2490 = vmul.f32 %v2480, %v2287
    %v2491 = vmul.f32 %v2480, %v2291
    %v2492 = vmul.f32 %v2480, %v2295
    %v2493 = vmul.f32 %v2480, %v2299
    %v2494 = vmul.f32 %v2480, %v2303
    %v2495 = vmul.f32 %v2480, %v2307
    %v2496 = vmul.f32 %v2480, %v2311
    %v2497 = vmul.f32 %v2480, %v2315
    %2514 = vrot.lane.b32.xlu0 %v2482, 126
    %v2515 = vpop.permute.xlu0 %2514
    %2516 = vrot.lane.b32.xlu0 %v2483, 126
    %v2517 = vpop.permute.xlu0 %2516
    %2518 = vrot.lane.b32.xlu0 %v2484, 126
    %v2519 = vpop.permute.xlu0 %2518
    %2520 = vrot.lane.b32.xlu0 %v2485, 126
    %v2521 = vpop.permute.xlu0 %2520
    %2522 = vrot.lane.b32.xlu0 %v2486, 126
    %v2523 = vpop.permute.xlu0 %2522
    %2524 = vrot.lane.b32.xlu0 %v2487, 126
    %v2525 = vpop.permute.xlu0 %2524
    %2526 = vrot.lane.b32.xlu0 %v2488, 126
    %v2527 = vpop.permute.xlu0 %2526
    %2528 = vrot.lane.b32.xlu0 %v2489, 126
    %v2529 = vpop.permute.xlu0 %2528
    %2530 = vrot.lane.b32.xlu0 %v2490, 126
    %v2531 = vpop.permute.xlu0 %2530
    %2532 = vrot.lane.b32.xlu0 %v2491, 126
    %v2533 = vpop.permute.xlu0 %2532
    %2534 = vrot.lane.b32.xlu0 %v2492, 126
    %v2535 = vpop.permute.xlu0 %2534
    %2536 = vrot.lane.b32.xlu0 %v2493, 126
    %v2537 = vpop.permute.xlu0 %2536
    %2538 = vrot.lane.b32.xlu0 %v2494, 126
    %v2539 = vpop.permute.xlu0 %2538
    %2540 = vrot.lane.b32.xlu0 %v2495, 126
    %v2541 = vpop.permute.xlu0 %2540
    %2542 = vrot.lane.b32.xlu0 %v2496, 126
    %v2543 = vpop.permute.xlu0 %2542
    %2544 = vrot.lane.b32.xlu0 %v2497, 126
    %v2545 = vpop.permute.xlu0 %2544
    %v2546 = vsel %vm527, %v2515, %v2517
    %v2547 = vsel %vm527, %v2517, %v2519
    %v2548 = vsel %vm527, %v2519, %v2521
    %v2549 = vsel %vm527, %v2521, %v2523
    %v2550 = vsel %vm527, %v2523, %v2525
    %v2551 = vsel %vm527, %v2525, %v2527
    %v2552 = vsel %vm527, %v2527, %v2529
    %v2553 = vsel %vm527, %v2531, %v2533
    %v2554 = vsel %vm527, %v2533, %v2535
    %v2555 = vsel %vm527, %v2535, %v2537
    %v2556 = vsel %vm527, %v2537, %v2539
    %v2557 = vsel %vm527, %v2539, %v2541
    %v2558 = vsel %vm527, %v2541, %v2543
    %v2559 = vsel %vm527, %v2543, %v2545
    %v2576 = vadd.f32 %v2458, %v2546
    %v2577 = vadd.f32 %v2459, %v2547
    %v2578 = vadd.f32 %v2460, %v2548
    %v2579 = vadd.f32 %v2461, %v2549
    %v2580 = vadd.f32 %v2462, %v2550
    %v2581 = vadd.f32 %v2463, %v2551
    %v2582 = vadd.f32 %v2464, %v2552
    %v2583 = vadd.f32 %v2465, %v2529
    %v2584 = vadd.f32 %v2466, %v2553
    %v2585 = vadd.f32 %v2467, %v2554
    %v2586 = vadd.f32 %v2468, %v2555
    %v2587 = vadd.f32 %v2469, %v2556
    %v2588 = vadd.f32 %v2470, %v2557
    %v2589 = vadd.f32 %v2471, %v2558
    %v2590 = vadd.f32 %v2472, %v2559
    %v2591 = vadd.f32 %v2473, %v2545
    %v2592 = vld [vmem:[#allocation2] sm:$0xff]
    %v2593 = vld [vmem:[#allocation2 + $0x8] sm:$0x1]
    %2594 = vset.pattern.permute.xlu0 3
    %2595 = vperm.xlu0 %2594, %v2271
    %v2596 = vpop.permute.xlu0 %2595
    %2598 = vset.pattern.permute.xlu0 3
    %2599 = vperm.xlu0 %2598, %v2272
    %v2600 = vpop.permute.xlu0 %2599
    %v2604 = vlaneseq
    %v2605 = vshrl.u32 %v2604, 7
    %v2606 = vsub.s32 0, %v2605
    %v2607 = vrot.slane %v2592, %v2606
    %v2608 = vlaneseq
    %v2609 = vshrl.u32 %v2608, 7
    %v2610 = vsub.s32 1, %v2609
    %v2611 = vrot.slane %v2592, %v2610
    %v2612 = vlaneseq
    %v2613 = vshrl.u32 %v2612, 7
    %v2614 = vsub.s32 2, %v2613
    %v2615 = vrot.slane %v2592, %v2614
    %v2616 = vlaneseq
    %v2617 = vshrl.u32 %v2616, 7
    %v2618 = vsub.s32 3, %v2617
    %v2619 = vrot.slane %v2592, %v2618
    %v2620 = vlaneseq
    %v2621 = vshrl.u32 %v2620, 7
    %v2622 = vsub.s32 4, %v2621
    %v2623 = vrot.slane %v2592, %v2622
    %v2624 = vlaneseq
    %v2625 = vshrl.u32 %v2624, 7
    %v2626 = vsub.s32 5, %v2625
    %v2627 = vrot.slane %v2592, %v2626
    %v2628 = vlaneseq
    %v2629 = vshrl.u32 %v2628, 7
    %v2630 = vsub.s32 6, %v2629
    %v2631 = vrot.slane %v2592, %v2630
    %v2632 = vlaneseq
    %v2633 = vshrl.u32 %v2632, 7
    %v2634 = vsub.s32 7, %v2633
    %v2635 = vrot.slane %v2592, %v2634
    %v2636 = vlaneseq
    %v2637 = vshrl.u32 %v2636, 7
    %v2638 = vsub.s32 0, %v2637
    %v2639 = vrot.slane %v2593, %v2638
    %v2649 = vmul.f32 %v2596, %v2607
    %v2650 = vmul.f32 %v2596, %v2611
    %v2651 = vmul.f32 %v2596, %v2615
    %v2652 = vmul.f32 %v2596, %v2619
    %v2653 = vmul.f32 %v2596, %v2623
    %v2654 = vmul.f32 %v2596, %v2627
    %v2655 = vmul.f32 %v2596, %v2631
    %v2656 = vmul.f32 %v2596, %v2635
    %v2657 = vmul.f32 %v2596, %v2639
    %v2658 = vmul.f32 %v2600, %v2607
    %v2659 = vmul.f32 %v2600, %v2611
    %v2660 = vmul.f32 %v2600, %v2615
    %v2661 = vmul.f32 %v2600, %v2619
    %v2662 = vmul.f32 %v2600, %v2623
    %v2663 = vmul.f32 %v2600, %v2627
    %v2664 = vmul.f32 %v2600, %v2631
    %v2665 = vmul.f32 %v2600, %v2635
    %v2666 = vmul.f32 %v2600, %v2639
    %2685 = vrot.lane.b32.xlu0 %v2649, 26
    %v2686 = vpop.permute.xlu0 %2685
    %2687 = vrot.lane.b32.xlu0 %v2650, 26
    %v2688 = vpop.permute.xlu0 %2687
    %2689 = vrot.lane.b32.xlu0 %v2651, 26
    %v2690 = vpop.permute.xlu0 %2689
    %2691 = vrot.lane.b32.xlu0 %v2652, 26
    %v2692 = vpop.permute.xlu0 %2691
    %2693 = vrot.lane.b32.xlu0 %v2653, 26
    %v2694 = vpop.permute.xlu0 %2693
    %2695 = vrot.lane.b32.xlu0 %v2654, 26
    %v2696 = vpop.permute.xlu0 %2695
    %2697 = vrot.lane.b32.xlu0 %v2655, 26
    %v2698 = vpop.permute.xlu0 %2697
    %2699 = vrot.lane.b32.xlu0 %v2656, 26
    %v2700 = vpop.permute.xlu0 %2699
    %2701 = vrot.lane.b32.xlu0 %v2657, 26
    %v2702 = vpop.permute.xlu0 %2701
    %2703 = vrot.lane.b32.xlu0 %v2658, 26
    %v2704 = vpop.permute.xlu0 %2703
    %2705 = vrot.lane.b32.xlu0 %v2659, 26
    %v2706 = vpop.permute.xlu0 %2705
    %2707 = vrot.lane.b32.xlu0 %v2660, 26
    %v2708 = vpop.permute.xlu0 %2707
    %2709 = vrot.lane.b32.xlu0 %v2661, 26
    %v2710 = vpop.permute.xlu0 %2709
    %2711 = vrot.lane.b32.xlu0 %v2662, 26
    %v2712 = vpop.permute.xlu0 %2711
    %2713 = vrot.lane.b32.xlu0 %v2663, 26
    %v2714 = vpop.permute.xlu0 %2713
    %2715 = vrot.lane.b32.xlu0 %v2664, 26
    %v2716 = vpop.permute.xlu0 %2715
    %2717 = vrot.lane.b32.xlu0 %v2665, 26
    %v2718 = vpop.permute.xlu0 %2717
    %2719 = vrot.lane.b32.xlu0 %v2666, 26
    %v2720 = vpop.permute.xlu0 %2719
    %v2721 = vsel %vm703, %v2686, %v2688
    %v2722 = vsel %vm703, %v2688, %v2690
    %v2723 = vsel %vm703, %v2690, %v2692
    %v2724 = vsel %vm703, %v2692, %v2694
    %v2725 = vsel %vm703, %v2694, %v2696
    %v2726 = vsel %vm703, %v2696, %v2698
    %v2727 = vsel %vm703, %v2698, %v2700
    %v2728 = vsel %vm703, %v2700, %v2702
    %v2729 = vsel %vm703, %v2704, %v2706
    %v2730 = vsel %vm703, %v2706, %v2708
    %v2731 = vsel %vm703, %v2708, %v2710
    %v2732 = vsel %vm703, %v2710, %v2712
    %v2733 = vsel %vm703, %v2712, %v2714
    %v2734 = vsel %vm703, %v2714, %v2716
    %v2735 = vsel %vm703, %v2716, %v2718
    %v2736 = vsel %vm703, %v2718, %v2720
    %v2753 = vadd.f32 %v2576, %v2721
    %v2754 = vadd.f32 %v2577, %v2722
    %v2755 = vadd.f32 %v2578, %v2723
    %v2756 = vadd.f32 %v2579, %v2724
    %v2757 = vadd.f32 %v2580, %v2725
    %v2758 = vadd.f32 %v2581, %v2726
    %v2759 = vadd.f32 %v2582, %v2727
    %v2760 = vadd.f32 %v2583, %v2728
    %v2761 = vadd.f32 %v2584, %v2729
    %v2762 = vadd.f32 %v2585, %v2730
    %v2763 = vadd.f32 %v2586, %v2731
    %v2764 = vadd.f32 %v2587, %v2732
    %v2765 = vadd.f32 %v2588, %v2733
    %v2766 = vadd.f32 %v2589, %v2734
    %v2767 = vadd.f32 %v2590, %v2735
    %v2768 = vadd.f32 %v2591, %v2736
    %2769 = vset.pattern.permute.xlu0 4
    %2770 = vperm.xlu0 %2769, %v2271
    %v2771 = vpop.permute.xlu0 %2770
    %2773 = vset.pattern.permute.xlu0 4
    %2774 = vperm.xlu0 %2773, %v2272
    %v2775 = vpop.permute.xlu0 %2774
    %v2777 = vmul.f32 %v2771, %v2607
    %v2778 = vmul.f32 %v2771, %v2611
    %v2779 = vmul.f32 %v2771, %v2615
    %v2780 = vmul.f32 %v2771, %v2619
    %v2781 = vmul.f32 %v2771, %v2623
    %v2782 = vmul.f32 %v2771, %v2627
    %v2783 = vmul.f32 %v2771, %v2631
    %v2784 = vmul.f32 %v2771, %v2635
    %v2785 = vmul.f32 %v2771, %v2639
    %v2786 = vmul.f32 %v2775, %v2607
    %v2787 = vmul.f32 %v2775, %v2611
    %v2788 = vmul.f32 %v2775, %v2615
    %v2789 = vmul.f32 %v2775, %v2619
    %v2790 = vmul.f32 %v2775, %v2623
    %v2791 = vmul.f32 %v2775, %v2627
    %v2792 = vmul.f32 %v2775, %v2631
    %v2793 = vmul.f32 %v2775, %v2635
    %v2794 = vmul.f32 %v2775, %v2639
    %2813 = vrot.lane.b32.xlu0 %v2777, 25
    %v2814 = vpop.permute.xlu0 %2813
    %2815 = vrot.lane.b32.xlu0 %v2778, 25
    %v2816 = vpop.permute.xlu0 %2815
    %2817 = vrot.lane.b32.xlu0 %v2779, 25
    %v2818 = vpop.permute.xlu0 %2817
    %2819 = vrot.lane.b32.xlu0 %v2780, 25
    %v2820 = vpop.permute.xlu0 %2819
    %2821 = vrot.lane.b32.xlu0 %v2781, 25
    %v2822 = vpop.permute.xlu0 %2821
    %2823 = vrot.lane.b32.xlu0 %v2782, 25
    %v2824 = vpop.permute.xlu0 %2823
    %2825 = vrot.lane.b32.xlu0 %v2783, 25
    %v2826 = vpop.permute.xlu0 %2825
    %2827 = vrot.lane.b32.xlu0 %v2784, 25
    %v2828 = vpop.permute.xlu0 %2827
    %2829 = vrot.lane.b32.xlu0 %v2785, 25
    %v2830 = vpop.permute.xlu0 %2829
    %2831 = vrot.lane.b32.xlu0 %v2786, 25
    %v2832 = vpop.permute.xlu0 %2831
    %2833 = vrot.lane.b32.xlu0 %v2787, 25
    %v2834 = vpop.permute.xlu0 %2833
    %2835 = vrot.lane.b32.xlu0 %v2788, 25
    %v2836 = vpop.permute.xlu0 %2835
    %2837 = vrot.lane.b32.xlu0 %v2789, 25
    %v2838 = vpop.permute.xlu0 %2837
    %2839 = vrot.lane.b32.xlu0 %v2790, 25
    %v2840 = vpop.permute.xlu0 %2839
    %2841 = vrot.lane.b32.xlu0 %v2791, 25
    %v2842 = vpop.permute.xlu0 %2841
    %2843 = vrot.lane.b32.xlu0 %v2792, 25
    %v2844 = vpop.permute.xlu0 %2843
    %2845 = vrot.lane.b32.xlu0 %v2793, 25
    %v2846 = vpop.permute.xlu0 %2845
    %2847 = vrot.lane.b32.xlu0 %v2794, 25
    %v2848 = vpop.permute.xlu0 %2847
    %v2849 = vsel %vm832, %v2814, %v2816
    %v2850 = vsel %vm832, %v2816, %v2818
    %v2851 = vsel %vm832, %v2818, %v2820
    %v2852 = vsel %vm832, %v2820, %v2822
    %v2853 = vsel %vm832, %v2822, %v2824
    %v2854 = vsel %vm832, %v2824, %v2826
    %v2855 = vsel %vm832, %v2826, %v2828
    %v2856 = vsel %vm832, %v2828, %v2830
    %v2857 = vsel %vm832, %v2832, %v2834
    %v2858 = vsel %vm832, %v2834, %v2836
    %v2859 = vsel %vm832, %v2836, %v2838
    %v2860 = vsel %vm832, %v2838, %v2840
    %v2861 = vsel %vm832, %v2840, %v2842
    %v2862 = vsel %vm832, %v2842, %v2844
    %v2863 = vsel %vm832, %v2844, %v2846
    %v2864 = vsel %vm832, %v2846, %v2848
    %v2881 = vadd.f32 %v2753, %v2849
    %v2882 = vadd.f32 %v2754, %v2850
    %v2883 = vadd.f32 %v2755, %v2851
    %v2884 = vadd.f32 %v2756, %v2852
    %v2885 = vadd.f32 %v2757, %v2853
    %v2886 = vadd.f32 %v2758, %v2854
    %v2887 = vadd.f32 %v2759, %v2855
    %v2888 = vadd.f32 %v2760, %v2856
    %v2889 = vadd.f32 %v2761, %v2857
    %v2890 = vadd.f32 %v2762, %v2858
    %v2891 = vadd.f32 %v2763, %v2859
    %v2892 = vadd.f32 %v2764, %v2860
    %v2893 = vadd.f32 %v2765, %v2861
    %v2894 = vadd.f32 %v2766, %v2862
    %v2895 = vadd.f32 %v2767, %v2863
    %v2896 = vadd.f32 %v2768, %v2864
    %2897 = vset.pattern.permute.xlu0 5
    %2898 = vperm.xlu0 %2897, %v2271
    %v2899 = vpop.permute.xlu0 %2898
    %2901 = vset.pattern.permute.xlu0 5
    %2902 = vperm.xlu0 %2901, %v2272
    %v2903 = vpop.permute.xlu0 %2902
    %v2905 = vmul.f32 %v2899, %v2607
    %v2906 = vmul.f32 %v2899, %v2611
    %v2907 = vmul.f32 %v2899, %v2615
    %v2908 = vmul.f32 %v2899, %v2619
    %v2909 = vmul.f32 %v2899, %v2623
    %v2910 = vmul.f32 %v2899, %v2627
    %v2911 = vmul.f32 %v2899, %v2631
    %v2912 = vmul.f32 %v2899, %v2635
    %v2913 = vmul.f32 %v2899, %v2639
    %v2914 = vmul.f32 %v2903, %v2607
    %v2915 = vmul.f32 %v2903, %v2611
    %v2916 = vmul.f32 %v2903, %v2615
    %v2917 = vmul.f32 %v2903, %v2619
    %v2918 = vmul.f32 %v2903, %v2623
    %v2919 = vmul.f32 %v2903, %v2627
    %v2920 = vmul.f32 %v2903, %v2631
    %v2921 = vmul.f32 %v2903, %v2635
    %v2922 = vmul.f32 %v2903, %v2639
    %2941 = vrot.lane.b32.xlu0 %v2905, 24
    %v2942 = vpop.permute.xlu0 %2941
    %2943 = vrot.lane.b32.xlu0 %v2906, 24
    %v2944 = vpop.permute.xlu0 %2943
    %2945 = vrot.lane.b32.xlu0 %v2907, 24
    %v2946 = vpop.permute.xlu0 %2945
    %2947 = vrot.lane.b32.xlu0 %v2908, 24
    %v2948 = vpop.permute.xlu0 %2947
    %2949 = vrot.lane.b32.xlu0 %v2909, 24
    %v2950 = vpop.permute.xlu0 %2949
    %2951 = vrot.lane.b32.xlu0 %v2910, 24
    %v2952 = vpop.permute.xlu0 %2951
    %2953 = vrot.lane.b32.xlu0 %v2911, 24
    %v2954 = vpop.permute.xlu0 %2953
    %2955 = vrot.lane.b32.xlu0 %v2912, 24
    %v2956 = vpop.permute.xlu0 %2955
    %2957 = vrot.lane.b32.xlu0 %v2913, 24
    %v2958 = vpop.permute.xlu0 %2957
    %2959 = vrot.lane.b32.xlu0 %v2914, 24
    %v2960 = vpop.permute.xlu0 %2959
    %2961 = vrot.lane.b32.xlu0 %v2915, 24
    %v2962 = vpop.permute.xlu0 %2961
    %2963 = vrot.lane.b32.xlu0 %v2916, 24
    %v2964 = vpop.permute.xlu0 %2963
    %2965 = vrot.lane.b32.xlu0 %v2917, 24
    %v2966 = vpop.permute.xlu0 %2965
    %2967 = vrot.lane.b32.xlu0 %v2918, 24
    %v2968 = vpop.permute.xlu0 %2967
    %2969 = vrot.lane.b32.xlu0 %v2919, 24
    %v2970 = vpop.permute.xlu0 %2969
    %2971 = vrot.lane.b32.xlu0 %v2920, 24
    %v2972 = vpop.permute.xlu0 %2971
    %2973 = vrot.lane.b32.xlu0 %v2921, 24
    %v2974 = vpop.permute.xlu0 %2973
    %2975 = vrot.lane.b32.xlu0 %v2922, 24
    %v2976 = vpop.permute.xlu0 %2975
    %v2977 = vsel %vm961, %v2942, %v2944
    %v2978 = vsel %vm961, %v2944, %v2946
    %v2979 = vsel %vm961, %v2946, %v2948
    %v2980 = vsel %vm961, %v2948, %v2950
    %v2981 = vsel %vm961, %v2950, %v2952
    %v2982 = vsel %vm961, %v2952, %v2954
    %v2983 = vsel %vm961, %v2954, %v2956
    %v2984 = vsel %vm961, %v2956, %v2958
    %v2985 = vsel %vm961, %v2960, %v2962
    %v2986 = vsel %vm961, %v2962, %v2964
    %v2987 = vsel %vm961, %v2964, %v2966
    %v2988 = vsel %vm961, %v2966, %v2968
    %v2989 = vsel %vm961, %v2968, %v2970
    %v2990 = vsel %vm961, %v2970, %v2972
    %v2991 = vsel %vm961, %v2972, %v2974
    %v2992 = vsel %vm961, %v2974, %v2976
    %v3009 = vadd.f32 %v2881, %v2977
    %v3010 = vadd.f32 %v2882, %v2978
    %v3011 = vadd.f32 %v2883, %v2979
    %v3012 = vadd.f32 %v2884, %v2980
    %v3013 = vadd.f32 %v2885, %v2981
    %v3014 = vadd.f32 %v2886, %v2982
    %v3015 = vadd.f32 %v2887, %v2983
    %v3016 = vadd.f32 %v2888, %v2984
    %v3017 = vadd.f32 %v2889, %v2985
    %v3018 = vadd.f32 %v2890, %v2986
    %v3019 = vadd.f32 %v2891, %v2987
    %v3020 = vadd.f32 %v2892, %v2988
    %v3021 = vadd.f32 %v2893, %v2989
    %v3022 = vadd.f32 %v2894, %v2990
    %v3023 = vadd.f32 %v2895, %v2991
    %v3024 = vadd.f32 %v2896, %v2992
    %v3025 = vld [vmem:[#allocation2 + $0x1] sm:$0xff]
    %v3026 = vld [vmem:[#allocation2 + $0x9] sm:$0x1]
    %3027 = vset.pattern.permute.xlu0 6
    %3028 = vperm.xlu0 %3027, %v2271
    %v3029 = vpop.permute.xlu0 %3028
    %3031 = vset.pattern.permute.xlu0 6
    %3032 = vperm.xlu0 %3031, %v2272
    %v3033 = vpop.permute.xlu0 %3032
    %v3037 = vlaneseq
    %v3038 = vshrl.u32 %v3037, 7
    %v3039 = vsub.s32 0, %v3038
    %v3040 = vrot.slane %v3025, %v3039
    %v3041 = vlaneseq
    %v3042 = vshrl.u32 %v3041, 7
    %v3043 = vsub.s32 1, %v3042
    %v3044 = vrot.slane %v3025, %v3043
    %v3045 = vlaneseq
    %v3046 = vshrl.u32 %v3045, 7
    %v3047 = vsub.s32 2, %v3046
    %v3048 = vrot.slane %v3025, %v3047
    %v3049 = vlaneseq
    %v3050 = vshrl.u32 %v3049, 7
    %v3051 = vsub.s32 3, %v3050
    %v3052 = vrot.slane %v3025, %v3051
    %v3053 = vlaneseq
    %v3054 = vshrl.u32 %v3053, 7
    %v3055 = vsub.s32 4, %v3054
    %v3056 = vrot.slane %v3025, %v3055
    %v3057 = vlaneseq
    %v3058 = vshrl.u32 %v3057, 7
    %v3059 = vsub.s32 5, %v3058
    %v3060 = vrot.slane %v3025, %v3059
    %v3061 = vlaneseq
    %v3062 = vshrl.u32 %v3061, 7
    %v3063 = vsub.s32 6, %v3062
    %v3064 = vrot.slane %v3025, %v3063
    %v3065 = vlaneseq
    %v3066 = vshrl.u32 %v3065, 7
    %v3067 = vsub.s32 7, %v3066
    %v3068 = vrot.slane %v3025, %v3067
    %v3069 = vlaneseq
    %v3070 = vshrl.u32 %v3069, 7
    %v3071 = vsub.s32 0, %v3070
    %v3072 = vrot.slane %v3026, %v3071
    %v3082 = vmul.f32 %v3029, %v3040
    %v3083 = vmul.f32 %v3029, %v3044
    %v3084 = vmul.f32 %v3029, %v3048
    %v3085 = vmul.f32 %v3029, %v3052
    %v3086 = vmul.f32 %v3029, %v3056
    %v3087 = vmul.f32 %v3029, %v3060
    %v3088 = vmul.f32 %v3029, %v3064
    %v3089 = vmul.f32 %v3029, %v3068
    %v3090 = vmul.f32 %v3029, %v3072
    %v3091 = vmul.f32 %v3033, %v3040
    %v3092 = vmul.f32 %v3033, %v3044
    %v3093 = vmul.f32 %v3033, %v3048
    %v3094 = vmul.f32 %v3033, %v3052
    %v3095 = vmul.f32 %v3033, %v3056
    %v3096 = vmul.f32 %v3033, %v3060
    %v3097 = vmul.f32 %v3033, %v3064
    %v3098 = vmul.f32 %v3033, %v3068
    %v3099 = vmul.f32 %v3033, %v3072
    %3118 = vrot.lane.b32.xlu0 %v3082, 52
    %v3119 = vpop.permute.xlu0 %3118
    %3120 = vrot.lane.b32.xlu0 %v3083, 52
    %v3121 = vpop.permute.xlu0 %3120
    %3122 = vrot.lane.b32.xlu0 %v3084, 52
    %v3123 = vpop.permute.xlu0 %3122
    %3124 = vrot.lane.b32.xlu0 %v3085, 52
    %v3125 = vpop.permute.xlu0 %3124
    %3126 = vrot.lane.b32.xlu0 %v3086, 52
    %v3127 = vpop.permute.xlu0 %3126
    %3128 = vrot.lane.b32.xlu0 %v3087, 52
    %v3129 = vpop.permute.xlu0 %3128
    %3130 = vrot.lane.b32.xlu0 %v3088, 52
    %v3131 = vpop.permute.xlu0 %3130
    %3132 = vrot.lane.b32.xlu0 %v3089, 52
    %v3133 = vpop.permute.xlu0 %3132
    %3134 = vrot.lane.b32.xlu0 %v3090, 52
    %v3135 = vpop.permute.xlu0 %3134
    %3136 = vrot.lane.b32.xlu0 %v3091, 52
    %v3137 = vpop.permute.xlu0 %3136
    %3138 = vrot.lane.b32.xlu0 %v3092, 52
    %v3139 = vpop.permute.xlu0 %3138
    %3140 = vrot.lane.b32.xlu0 %v3093, 52
    %v3141 = vpop.permute.xlu0 %3140
    %3142 = vrot.lane.b32.xlu0 %v3094, 52
    %v3143 = vpop.permute.xlu0 %3142
    %3144 = vrot.lane.b32.xlu0 %v3095, 52
    %v3145 = vpop.permute.xlu0 %3144
    %3146 = vrot.lane.b32.xlu0 %v3096, 52
    %v3147 = vpop.permute.xlu0 %3146
    %3148 = vrot.lane.b32.xlu0 %v3097, 52
    %v3149 = vpop.permute.xlu0 %3148
    %3150 = vrot.lane.b32.xlu0 %v3098, 52
    %v3151 = vpop.permute.xlu0 %3150
    %3152 = vrot.lane.b32.xlu0 %v3099, 52
    %v3153 = vpop.permute.xlu0 %3152
    %v3154 = vsel %vm116, %v3119, %v3121
    %v3155 = vsel %vm116, %v3121, %v3123
    %v3156 = vsel %vm116, %v3123, %v3125
    %v3157 = vsel %vm116, %v3125, %v3127
    %v3158 = vsel %vm116, %v3127, %v3129
    %v3159 = vsel %vm116, %v3129, %v3131
    %v3160 = vsel %vm116, %v3131, %v3133
    %v3161 = vsel %vm116, %v3133, %v3135
    %v3162 = vsel %vm116, %v3137, %v3139
    %v3163 = vsel %vm116, %v3139, %v3141
    %v3164 = vsel %vm116, %v3141, %v3143
    %v3165 = vsel %vm116, %v3143, %v3145
    %v3166 = vsel %vm116, %v3145, %v3147
    %v3167 = vsel %vm116, %v3147, %v3149
    %v3168 = vsel %vm116, %v3149, %v3151
    %v3169 = vsel %vm116, %v3151, %v3153
    %v3186 = vadd.f32 %v3009, %v3154
    %v3187 = vadd.f32 %v3010, %v3155
    %v3188 = vadd.f32 %v3011, %v3156
    %v3189 = vadd.f32 %v3012, %v3157
    %v3190 = vadd.f32 %v3013, %v3158
    %v3191 = vadd.f32 %v3014, %v3159
    %v3192 = vadd.f32 %v3015, %v3160
    %v3193 = vadd.f32 %v3016, %v3161
    %v3194 = vadd.f32 %v3017, %v3162
    %v3195 = vadd.f32 %v3018, %v3163
    %v3196 = vadd.f32 %v3019, %v3164
    %v3197 = vadd.f32 %v3020, %v3165
    %v3198 = vadd.f32 %v3021, %v3166
    %v3199 = vadd.f32 %v3022, %v3167
    %v3200 = vadd.f32 %v3023, %v3168
    %v3201 = vadd.f32 %v3024, %v3169
    %3202 = vset.pattern.permute.xlu0 7
    %3203 = vperm.xlu0 %3202, %v2271
    %v3204 = vpop.permute.xlu0 %3203
    %3206 = vset.pattern.permute.xlu0 7
    %3207 = vperm.xlu0 %3206, %v2272
    %v3208 = vpop.permute.xlu0 %3207
    %v3210 = vmul.f32 %v3204, %v3040
    %v3211 = vmul.f32 %v3204, %v3044
    %v3212 = vmul.f32 %v3204, %v3048
    %v3213 = vmul.f32 %v3204, %v3052
    %v3214 = vmul.f32 %v3204, %v3056
    %v3215 = vmul.f32 %v3204, %v3060
    %v3216 = vmul.f32 %v3204, %v3064
    %v3217 = vmul.f32 %v3204, %v3068
    %v3218 = vmul.f32 %v3204, %v3072
    %v3219 = vmul.f32 %v3208, %v3040
    %v3220 = vmul.f32 %v3208, %v3044
    %v3221 = vmul.f32 %v3208, %v3048
    %v3222 = vmul.f32 %v3208, %v3052
    %v3223 = vmul.f32 %v3208, %v3056
    %v3224 = vmul.f32 %v3208, %v3060
    %v3225 = vmul.f32 %v3208, %v3064
    %v3226 = vmul.f32 %v3208, %v3068
    %v3227 = vmul.f32 %v3208, %v3072
    %3246 = vrot.lane.b32.xlu0 %v3210, 51
    %v3247 = vpop.permute.xlu0 %3246
    %3248 = vrot.lane.b32.xlu0 %v3211, 51
    %v3249 = vpop.permute.xlu0 %3248
    %3250 = vrot.lane.b32.xlu0 %v3212, 51
    %v3251 = vpop.permute.xlu0 %3250
    %3252 = vrot.lane.b32.xlu0 %v3213, 51
    %v3253 = vpop.permute.xlu0 %3252
    %3254 = vrot.lane.b32.xlu0 %v3214, 51
    %v3255 = vpop.permute.xlu0 %3254
    %3256 = vrot.lane.b32.xlu0 %v3215, 51
    %v3257 = vpop.permute.xlu0 %3256
    %3258 = vrot.lane.b32.xlu0 %v3216, 51
    %v3259 = vpop.permute.xlu0 %3258
    %3260 = vrot.lane.b32.xlu0 %v3217, 51
    %v3261 = vpop.permute.xlu0 %3260
    %3262 = vrot.lane.b32.xlu0 %v3218, 51
    %v3263 = vpop.permute.xlu0 %3262
    %3264 = vrot.lane.b32.xlu0 %v3219, 51
    %v3265 = vpop.permute.xlu0 %3264
    %3266 = vrot.lane.b32.xlu0 %v3220, 51
    %v3267 = vpop.permute.xlu0 %3266
    %3268 = vrot.lane.b32.xlu0 %v3221, 51
    %v3269 = vpop.permute.xlu0 %3268
    %3270 = vrot.lane.b32.xlu0 %v3222, 51
    %v3271 = vpop.permute.xlu0 %3270
    %3272 = vrot.lane.b32.xlu0 %v3223, 51
    %v3273 = vpop.permute.xlu0 %3272
    %3274 = vrot.lane.b32.xlu0 %v3224, 51
    %v3275 = vpop.permute.xlu0 %3274
    %3276 = vrot.lane.b32.xlu0 %v3225, 51
    %v3277 = vpop.permute.xlu0 %3276
    %3278 = vrot.lane.b32.xlu0 %v3226, 51
    %v3279 = vpop.permute.xlu0 %3278
    %3280 = vrot.lane.b32.xlu0 %v3227, 51
    %v3281 = vpop.permute.xlu0 %3280
    %v3282 = vsel %vm1267, %v3247, %v3249
    %v3283 = vsel %vm1267, %v3249, %v3251
    %v3284 = vsel %vm1267, %v3251, %v3253
    %v3285 = vsel %vm1267, %v3253, %v3255
    %v3286 = vsel %vm1267, %v3255, %v3257
    %v3287 = vsel %vm1267, %v3257, %v3259
    %v3288 = vsel %vm1267, %v3259, %v3261
    %v3289 = vsel %vm1267, %v3261, %v3263
    %v3290 = vsel %vm1267, %v3265, %v3267
    %v3291 = vsel %vm1267, %v3267, %v3269
    %v3292 = vsel %vm1267, %v3269, %v3271
    %v3293 = vsel %vm1267, %v3271, %v3273
    %v3294 = vsel %vm1267, %v3273, %v3275
    %v3295 = vsel %vm1267, %v3275, %v3277
    %v3296 = vsel %vm1267, %v3277, %v3279
    %v3297 = vsel %vm1267, %v3279, %v3281
    %v3314 = vadd.f32 %v3186, %v3282
    %v3315 = vadd.f32 %v3187, %v3283
    %v3316 = vadd.f32 %v3188, %v3284
    %v3317 = vadd.f32 %v3189, %v3285
    %v3318 = vadd.f32 %v3190, %v3286
    %v3319 = vadd.f32 %v3191, %v3287
    %v3320 = vadd.f32 %v3192, %v3288
    %v3321 = vadd.f32 %v3193, %v3289
    %v3322 = vadd.f32 %v3194, %v3290
    %v3323 = vadd.f32 %v3195, %v3291
    %v3324 = vadd.f32 %v3196, %v3292
    %v3325 = vadd.f32 %v3197, %v3293
    %v3326 = vadd.f32 %v3198, %v3294
    %v3327 = vadd.f32 %v3199, %v3295
    %v3328 = vadd.f32 %v3200, %v3296
    %v3329 = vadd.f32 %v3201, %v3297
    %3330 = vset.pattern.permute.xlu0 8
    %3331 = vperm.xlu0 %3330, %v2271
    %v3332 = vpop.permute.xlu0 %3331
    %3334 = vset.pattern.permute.xlu0 8
    %3335 = vperm.xlu0 %3334, %v2272
    %v3336 = vpop.permute.xlu0 %3335
    %v3338 = vmul.f32 %v3332, %v3040
    %v3339 = vmul.f32 %v3332, %v3044
    %v3340 = vmul.f32 %v3332, %v3048
    %v3341 = vmul.f32 %v3332, %v3052
    %v3342 = vmul.f32 %v3332, %v3056
    %v3343 = vmul.f32 %v3332, %v3060
    %v3344 = vmul.f32 %v3332, %v3064
    %v3345 = vmul.f32 %v3332, %v3068
    %v3346 = vmul.f32 %v3332, %v3072
    %v3347 = vmul.f32 %v3336, %v3040
    %v3348 = vmul.f32 %v3336, %v3044
    %v3349 = vmul.f32 %v3336, %v3048
    %v3350 = vmul.f32 %v3336, %v3052
    %v3351 = vmul.f32 %v3336, %v3056
    %v3352 = vmul.f32 %v3336, %v3060
    %v3353 = vmul.f32 %v3336, %v3064
    %v3354 = vmul.f32 %v3336, %v3068
    %v3355 = vmul.f32 %v3336, %v3072
    %3374 = vrot.lane.b32.xlu0 %v3338, 50
    %v3375 = vpop.permute.xlu0 %3374
    %3376 = vrot.lane.b32.xlu0 %v3339, 50
    %v3377 = vpop.permute.xlu0 %3376
    %3378 = vrot.lane.b32.xlu0 %v3340, 50
    %v3379 = vpop.permute.xlu0 %3378
    %3380 = vrot.lane.b32.xlu0 %v3341, 50
    %v3381 = vpop.permute.xlu0 %3380
    %3382 = vrot.lane.b32.xlu0 %v3342, 50
    %v3383 = vpop.permute.xlu0 %3382
    %3384 = vrot.lane.b32.xlu0 %v3343, 50
    %v3385 = vpop.permute.xlu0 %3384
    %3386 = vrot.lane.b32.xlu0 %v3344, 50
    %v3387 = vpop.permute.xlu0 %3386
    %3388 = vrot.lane.b32.xlu0 %v3345, 50
    %v3389 = vpop.permute.xlu0 %3388
    %3390 = vrot.lane.b32.xlu0 %v3346, 50
    %v3391 = vpop.permute.xlu0 %3390
    %3392 = vrot.lane.b32.xlu0 %v3347, 50
    %v3393 = vpop.permute.xlu0 %3392
    %3394 = vrot.lane.b32.xlu0 %v3348, 50
    %v3395 = vpop.permute.xlu0 %3394
    %3396 = vrot.lane.b32.xlu0 %v3349, 50
    %v3397 = vpop.permute.xlu0 %3396
    %3398 = vrot.lane.b32.xlu0 %v3350, 50
    %v3399 = vpop.permute.xlu0 %3398
    %3400 = vrot.lane.b32.xlu0 %v3351, 50
    %v3401 = vpop.permute.xlu0 %3400
    %3402 = vrot.lane.b32.xlu0 %v3352, 50
    %v3403 = vpop.permute.xlu0 %3402
    %3404 = vrot.lane.b32.xlu0 %v3353, 50
    %v3405 = vpop.permute.xlu0 %3404
    %3406 = vrot.lane.b32.xlu0 %v3354, 50
    %v3407 = vpop.permute.xlu0 %3406
    %3408 = vrot.lane.b32.xlu0 %v3355, 50
    %v3409 = vpop.permute.xlu0 %3408
    %v3410 = vsel %vm220, %v3375, %v3377
    %v3411 = vsel %vm220, %v3377, %v3379
    %v3412 = vsel %vm220, %v3379, %v3381
    %v3413 = vsel %vm220, %v3381, %v3383
    %v3414 = vsel %vm220, %v3383, %v3385
    %v3415 = vsel %vm220, %v3385, %v3387
    %v3416 = vsel %vm220, %v3387, %v3389
    %v3417 = vsel %vm220, %v3389, %v3391
    %v3418 = vsel %vm220, %v3393, %v3395
    %v3419 = vsel %vm220, %v3395, %v3397
    %v3420 = vsel %vm220, %v3397, %v3399
    %v3421 = vsel %vm220, %v3399, %v3401
    %v3422 = vsel %vm220, %v3401, %v3403
    %v3423 = vsel %vm220, %v3403, %v3405
    %v3424 = vsel %vm220, %v3405, %v3407
    %v3425 = vsel %vm220, %v3407, %v3409
    %v3442 = vadd.f32 %v3314, %v3410
    %v3443 = vadd.f32 %v3315, %v3411
    %v3444 = vadd.f32 %v3316, %v3412
    %v3445 = vadd.f32 %v3317, %v3413
    %v3446 = vadd.f32 %v3318, %v3414
    %v3447 = vadd.f32 %v3319, %v3415
    %v3448 = vadd.f32 %v3320, %v3416
    %v3449 = vadd.f32 %v3321, %v3417
    %v3450 = vadd.f32 %v3322, %v3418
    %v3451 = vadd.f32 %v3323, %v3419
    %v3452 = vadd.f32 %v3324, %v3420
    %v3453 = vadd.f32 %v3325, %v3421
    %v3454 = vadd.f32 %v3326, %v3422
    %v3455 = vadd.f32 %v3327, %v3423
    %v3456 = vadd.f32 %v3328, %v3424
    %v3457 = vadd.f32 %v3329, %v3425
    %v3458 = vld [vmem:[%s2] sm:$0xff]
    %v3459 = vld [vmem:[%s2 + $0x8] sm:$0xff]
    %3461 = vset.pattern.permute.xlu0 0
    %3462 = vperm.xlu0 %3461, %v3458
    %v3463 = vpop.permute.xlu0 %3462
    %3466 = vset.pattern.permute.xlu0 0
    %3467 = vperm.xlu0 %3466, %v3459
    %v3468 = vpop.permute.xlu0 %3467
    %v3470 = vadd.f32 %v3442, %v3463
    %v3471 = vadd.f32 %v3443, %v3463
    %v3472 = vadd.f32 %v3444, %v3463
    %v3473 = vadd.f32 %v3445, %v3463
    %v3474 = vadd.f32 %v3446, %v3463
    %v3475 = vadd.f32 %v3447, %v3463
    %v3476 = vadd.f32 %v3448, %v3463
    %v3477 = vadd.f32 %v3449, %v3463
    %v3478 = vadd.f32 %v3450, %v3468
    %v3479 = vadd.f32 %v3451, %v3468
    %v3480 = vadd.f32 %v3452, %v3468
    %v3481 = vadd.f32 %v3453, %v3468
    %v3482 = vadd.f32 %v3454, %v3468
    %v3483 = vadd.f32 %v3455, %v3468
    %v3484 = vadd.f32 %v3456, %v3468
    %v3485 = vadd.f32 %v3457, %v3468
    %v3486 = vmax.f32 %v3470, 0.0
    %v3487 = vmax.f32 %v3471, 0.0
    %v3488 = vmax.f32 %v3472, 0.0
    %v3489 = vmax.f32 %v3473, 0.0
    %v3490 = vmax.f32 %v3474, 0.0
    %v3491 = vmax.f32 %v3475, 0.0
    %v3492 = vmax.f32 %v3476, 0.0
    %v3493 = vmax.f32 %v3477, 0.0
    %v3494 = vmax.f32 %v3478, 0.0
    %v3495 = vmax.f32 %v3479, 0.0
    %v3496 = vmax.f32 %v3480, 0.0
    %v3497 = vmax.f32 %v3481, 0.0
    %v3498 = vmax.f32 %v3482, 0.0
    %v3499 = vmax.f32 %v3483, 0.0
    %v3500 = vmax.f32 %v3484, 0.0
    %v3501 = vmax.f32 %v3485, 0.0
    %v3502 = vmul.f32 %v3486, %v1492
    %v3503 = vmul.f32 %v3487, %v1496
    %v3504 = vmul.f32 %v3488, %v1500
    %v3505 = vmul.f32 %v3489, %v1504
    %v3506 = vmul.f32 %v3490, %v1508
    %v3507 = vmul.f32 %v3491, %v1512
    %v3508 = vmul.f32 %v3492, %v1516
    %v3509 = vmul.f32 %v3493, %v1520
    %v3510 = vmul.f32 %v3494, %v1492
    %v3511 = vmul.f32 %v3495, %v1496
    %v3512 = vmul.f32 %v3496, %v1500
    %v3513 = vmul.f32 %v3497, %v1504
    %v3514 = vmul.f32 %v3498, %v1508
    %v3515 = vmul.f32 %v3499, %v1512
    %v3516 = vmul.f32 %v3500, %v1516
    %v3517 = vmul.f32 %v3501, %v1520
    %v3518 = vadd.f32 %v3502, %v3503
    %v3519 = vadd.f32 %v3518, %v3504
    %v3520 = vadd.f32 %v3519, %v3505
    %v3521 = vadd.f32 %v3520, %v3506
    %v3522 = vadd.f32 %v3521, %v3507
    %v3523 = vadd.f32 %v3522, %v3508
    %v3524 = vsel %vm1551, %v3509, 0.0
    %v3525 = vadd.f32 %v3523, %v3524
    %3526 = vadd.xlane.f32.xlu0 %v3525
    %v3527 = vpop.xlane.xlu0 %3526
    %v3528 = vadd.f32 %v3510, %v3511
    %v3529 = vadd.f32 %v3528, %v3512
    %v3530 = vadd.f32 %v3529, %v3513
    %v3531 = vadd.f32 %v3530, %v3514
    %v3532 = vadd.f32 %v3531, %v3515
    %v3533 = vadd.f32 %v3532, %v3516
    %v3534 = vsel %vm1551, %v3517, 0.0
    %v3535 = vadd.f32 %v3533, %v3534
    %3536 = vadd.xlane.f32.xlu0 %v3535
    %v3537 = vpop.xlane.xlu0 %3536
    %v3538 = vmul.f32 %v3527, 0.00125
    %v3539 = vmul.f32 %v3537, 0.00125
    %v3540 = vsub.f32 %v3486, %v3538
    %v3541 = vsub.f32 %v3487, %v3538
    %v3542 = vsub.f32 %v3488, %v3538
    %v3543 = vsub.f32 %v3489, %v3538
    %v3544 = vsub.f32 %v3490, %v3538
    %v3545 = vsub.f32 %v3491, %v3538
    %v3546 = vsub.f32 %v3492, %v3538
    %v3547 = vsub.f32 %v3493, %v3538
    %v3548 = vsub.f32 %v3494, %v3539
    %v3549 = vsub.f32 %v3495, %v3539
    %v3550 = vsub.f32 %v3496, %v3539
    %v3551 = vsub.f32 %v3497, %v3539
    %v3552 = vsub.f32 %v3498, %v3539
    %v3553 = vsub.f32 %v3499, %v3539
    %v3554 = vsub.f32 %v3500, %v3539
    %v3555 = vsub.f32 %v3501, %v3539
    %v3556 = vmul.f32 %v3540, %v1492
    %v3557 = vmul.f32 %v3541, %v1496
    %v3558 = vmul.f32 %v3542, %v1500
    %v3559 = vmul.f32 %v3543, %v1504
    %v3560 = vmul.f32 %v3544, %v1508
    %v3561 = vmul.f32 %v3545, %v1512
    %v3562 = vmul.f32 %v3546, %v1516
    %v3563 = vmul.f32 %v3547, %v1520
    %v3564 = vmul.f32 %v3548, %v1492
    %v3565 = vmul.f32 %v3549, %v1496
    %v3566 = vmul.f32 %v3550, %v1500
    %v3567 = vmul.f32 %v3551, %v1504
    %v3568 = vmul.f32 %v3552, %v1508
    %v3569 = vmul.f32 %v3553, %v1512
    %v3570 = vmul.f32 %v3554, %v1516
    %v3571 = vmul.f32 %v3555, %v1520
    %v3572 = vmul.f32 %v3556, %v3556
    %v3573 = vmul.f32 %v3557, %v3557
    %v3574 = vmul.f32 %v3558, %v3558
    %v3575 = vmul.f32 %v3559, %v3559
    %v3576 = vmul.f32 %v3560, %v3560
    %v3577 = vmul.f32 %v3561, %v3561
    %v3578 = vmul.f32 %v3562, %v3562
    %v3579 = vmul.f32 %v3563, %v3563
    %v3580 = vmul.f32 %v3564, %v3564
    %v3581 = vmul.f32 %v3565, %v3565
    %v3582 = vmul.f32 %v3566, %v3566
    %v3583 = vmul.f32 %v3567, %v3567
    %v3584 = vmul.f32 %v3568, %v3568
    %v3585 = vmul.f32 %v3569, %v3569
    %v3586 = vmul.f32 %v3570, %v3570
    %v3587 = vmul.f32 %v3571, %v3571
    %v3588 = vadd.f32 %v3572, %v3573
    %v3589 = vadd.f32 %v3588, %v3574
    %v3590 = vadd.f32 %v3589, %v3575
    %v3591 = vadd.f32 %v3590, %v3576
    %v3592 = vadd.f32 %v3591, %v3577
    %v3593 = vadd.f32 %v3592, %v3578
    %v3594 = vsel %vm1551, %v3579, 0.0
    %v3595 = vadd.f32 %v3593, %v3594
    %3596 = vadd.xlane.f32.xlu0 %v3595
    %v3597 = vpop.xlane.xlu0 %3596
    %v3598 = vadd.f32 %v3580, %v3581
    %v3599 = vadd.f32 %v3598, %v3582
    %v3600 = vadd.f32 %v3599, %v3583
    %v3601 = vadd.f32 %v3600, %v3584
    %v3602 = vadd.f32 %v3601, %v3585
    %v3603 = vadd.f32 %v3602, %v3586
    %v3604 = vsel %vm1551, %v3587, 0.0
    %v3605 = vadd.f32 %v3603, %v3604
    %3606 = vadd.xlane.f32.xlu0 %v3605
    %v3607 = vpop.xlane.xlu0 %3606
    %v3608 = vmul.f32 %v3597, 0.00125
    %v3609 = vmul.f32 %v3607, 0.00125
    %v3610 = vadd.f32 %v3608, 1e-05
    %v3611 = vadd.f32 %v3609, 1e-05
    %v3612 = vrsqrt.pop %v3610
    %v3613 = vrsqrt.pop %v3611
    %v3614 = vmul.f32 %v3556, %v3612
    %v3615 = vmul.f32 %v3557, %v3612
    %v3616 = vmul.f32 %v3558, %v3612
    %v3617 = vmul.f32 %v3559, %v3612
    %v3618 = vmul.f32 %v3560, %v3612
    %v3619 = vmul.f32 %v3561, %v3612
    %v3620 = vmul.f32 %v3562, %v3612
    %v3621 = vmul.f32 %v3563, %v3612
    %v3622 = vmul.f32 %v3564, %v3613
    %v3623 = vmul.f32 %v3565, %v3613
    %v3624 = vmul.f32 %v3566, %v3613
    %v3625 = vmul.f32 %v3567, %v3613
    %v3626 = vmul.f32 %v3568, %v3613
    %v3627 = vmul.f32 %v3569, %v3613
    %v3628 = vmul.f32 %v3570, %v3613
    %v3629 = vmul.f32 %v3571, %v3613
    %v3630 = vmul.f32 %v3614, %v1662
    %v3631 = vmul.f32 %v3615, %v1666
    %v3632 = vmul.f32 %v3616, %v1670
    %v3633 = vmul.f32 %v3617, %v1674
    %v3634 = vmul.f32 %v3618, %v1678
    %v3635 = vmul.f32 %v3619, %v1682
    %v3636 = vmul.f32 %v3620, %v1686
    %v3637 = vmul.f32 %v3621, %v1690
    %v3638 = vmul.f32 %v3622, %v1662
    %v3639 = vmul.f32 %v3623, %v1666
    %v3640 = vmul.f32 %v3624, %v1670
    %v3641 = vmul.f32 %v3625, %v1674
    %v3642 = vmul.f32 %v3626, %v1678
    %v3643 = vmul.f32 %v3627, %v1682
    %v3644 = vmul.f32 %v3628, %v1686
    %v3645 = vmul.f32 %v3629, %v1690
    %v3646 = vadd.f32 %v3630, %v1719
    %v3647 = vadd.f32 %v3631, %v1723
    %v3648 = vadd.f32 %v3632, %v1727
    %v3649 = vadd.f32 %v3633, %v1731
    %v3650 = vadd.f32 %v3634, %v1735
    %v3651 = vadd.f32 %v3635, %v1739
    %v3652 = vadd.f32 %v3636, %v1743
    %v3653 = vadd.f32 %v3637, %v1747
    %v3654 = vadd.f32 %v3638, %v1719
    %v3655 = vadd.f32 %v3639, %v1723
    %v3656 = vadd.f32 %v3640, %v1727
    %v3657 = vadd.f32 %v3641, %v1731
    %v3658 = vadd.f32 %v3642, %v1735
    %v3659 = vadd.f32 %v3643, %v1739
    %v3660 = vadd.f32 %v3644, %v1743
    %v3661 = vadd.f32 %v3645, %v1747
    %3662 = vst [vmem:[#allocation3] sm:$0xff] %v3646
    %3663 = vst [vmem:[#allocation3 + $0x8] sm:$0xff] %v3647
    %3664 = vst [vmem:[#allocation3 + $0x10] sm:$0xff] %v3648
    %3665 = vst [vmem:[#allocation3 + $0x18] sm:$0xff] %v3649
    %3666 = vst [vmem:[#allocation3 + $0x20] sm:$0xff] %v3650
    %3667 = vst [vmem:[#allocation3 + $0x28] sm:$0xff] %v3651
    %3668 = vst [vmem:[#allocation3 + $0x30] sm:$0xff] %v3652
    %3669 = vst.msk [vmem:[#allocation3 + $0x38] sm:$0xff] %vm1551, %v3653
    %3670 = vst [vmem:[#allocation3 + $0x40] sm:$0xff] %v3654
    %3671 = vst [vmem:[#allocation3 + $0x48] sm:$0xff] %v3655
    %3672 = vst [vmem:[#allocation3 + $0x50] sm:$0xff] %v3656
    %3673 = vst [vmem:[#allocation3 + $0x58] sm:$0xff] %v3657
    %3674 = vst [vmem:[#allocation3 + $0x60] sm:$0xff] %v3658
    %3675 = vst [vmem:[#allocation3 + $0x68] sm:$0xff] %v3659
    %3676 = vst [vmem:[#allocation3 + $0x70] sm:$0xff] %v3660
    %3677 = vst.msk [vmem:[#allocation3 + $0x78] sm:$0xff] %vm1551, %v3661
    %v3678 = vld [vmem:[#allocation3] sm:$0xff]
    %v3679 = vld [vmem:[#allocation3 + $0x8] sm:$0xff]
    %v3680 = vld [vmem:[#allocation3 + $0x40] sm:$0xff]
    %v3681 = vld [vmem:[#allocation3 + $0x48] sm:$0xff]
    %3686 = vrot.lane.b32.xlu0 %v3678, 127
    %v3687 = vpop.permute.xlu0 %3686
    %3688 = vrot.lane.b32.xlu0 %v3679, 127
    %v3689 = vpop.permute.xlu0 %3688
    %3690 = vrot.lane.b32.xlu0 %v3680, 127
    %v3691 = vpop.permute.xlu0 %3690
    %3692 = vrot.lane.b32.xlu0 %v3681, 127
    %v3693 = vpop.permute.xlu0 %3692
    %v3694 = vsel %vm408, %v3687, %v3689
    %v3695 = vsel %vm408, %v3691, %v3693
    %v3700 = vmax.f32 %v3678, %v3694
    %v3701 = vmax.f32 %v3679, %v3689
    %v3702 = vmax.f32 %v3680, %v3695
    %v3703 = vmax.f32 %v3681, %v3693
    %v3704 = vld [vmem:[#allocation3 + $0x10] sm:$0xff]
    %v3705 = vld [vmem:[#allocation3 + $0x50] sm:$0xff]
    %3708 = vrot.lane.b32.xlu0 %v3704, 127
    %v3709 = vpop.permute.xlu0 %3708
    %3710 = vrot.lane.b32.xlu0 %v3705, 127
    %v3711 = vpop.permute.xlu0 %3710
    %v3712 = vsel %vm408, %v3689, %v3709
    %v3713 = vsel %vm408, %v3693, %v3711
    %v3718 = vmax.f32 %v3679, %v3712
    %v3719 = vmax.f32 %v3704, %v3709
    %v3720 = vmax.f32 %v3681, %v3713
    %v3721 = vmax.f32 %v3705, %v3711
    %3726 = vrot.lane.b32.xlu0 %v3718, 26
    %v3727 = vpop.permute.xlu0 %3726
    %3728 = vrot.lane.b32.xlu0 %v3719, 26
    %v3729 = vpop.permute.xlu0 %3728
    %3730 = vrot.lane.b32.xlu0 %v3720, 26
    %v3731 = vpop.permute.xlu0 %3730
    %3732 = vrot.lane.b32.xlu0 %v3721, 26
    %v3733 = vpop.permute.xlu0 %3732
    %v3734 = vsel %vm703, %v3727, %v3729
    %v3735 = vsel %vm703, %v3731, %v3733
    %v3740 = vmax.f32 %v3700, %v3727
    %v3741 = vmax.f32 %v3701, %v3734
    %v3742 = vmax.f32 %v3702, %v3731
    %v3743 = vmax.f32 %v3703, %v3735
    %v3744 = vpack.c.bf16 %v3742, %v3740
    %v3745 = vpack.c.bf16 %v3743, %v3741
    %v3748 = vunpack.c.l.b16 %v3744
    %v3749 = vunpack.c.l.b16 %v3745
    %v3750 = vunpack.c.h.b16 %v3744
    %v3751 = vunpack.c.h.b16 %v3745
    %v3752 = vpack.c.b16 %v3749, %v3748
    %v3753 = vpack.c.b16 %v3751, %v3750
    %3754 = vrot.lane.b32.xlu0 %v3752, 26
    %v3755 = vpop.permute.xlu0 %3754
    %3756 = vrot.lane.b32.xlu0 %v3753, 26
    %v3757 = vpop.permute.xlu0 %3756
    %v3758 = vrot.slane %v3755, 4
    %v3759 = vrot.slane %v3757, 4
    %v3760 = vsel %vm1870, %v3755, %v3758
    %v3761 = vsel %vm1870, %v3757, %v3759
    %3764 = vst.msk [vmem:[#allocation4 + $0x20] sm:$0xf] %vm1875, %v3760
    %3765 = vst.msk [vmem:[#allocation4 + $0x24] sm:$0xf] %vm1875, %v3761
    %v3766 = vld [vmem:[#allocation3 + $0x10] sm:$0xff]
    %v3767 = vld [vmem:[#allocation3 + $0x18] sm:$0xff]
    %v3768 = vld [vmem:[#allocation3 + $0x50] sm:$0xff]
    %v3769 = vld [vmem:[#allocation3 + $0x58] sm:$0xff]
    %3774 = vrot.lane.b32.xlu0 %v3766, 127
    %v3775 = vpop.permute.xlu0 %3774
    %3776 = vrot.lane.b32.xlu0 %v3767, 127
    %v3777 = vpop.permute.xlu0 %3776
    %3778 = vrot.lane.b32.xlu0 %v3768, 127
    %v3779 = vpop.permute.xlu0 %3778
    %3780 = vrot.lane.b32.xlu0 %v3769, 127
    %v3781 = vpop.permute.xlu0 %3780
    %v3782 = vsel %vm408, %v3775, %v3777
    %v3783 = vsel %vm408, %v3779, %v3781
    %v3788 = vmax.f32 %v3766, %v3782
    %v3789 = vmax.f32 %v3767, %v3777
    %v3790 = vmax.f32 %v3768, %v3783
    %v3791 = vmax.f32 %v3769, %v3781
    %3794 = vrot.lane.b32.xlu0 %v3789, 26
    %v3795 = vpop.permute.xlu0 %3794
    %3796 = vrot.lane.b32.xlu0 %v3791, 26
    %v3797 = vpop.permute.xlu0 %3796
    %v3800 = vmax.f32 %v3788, %v3795
    %v3801 = vmax.f32 %v3789, %v3795
    %v3802 = vmax.f32 %v3790, %v3797
    %v3803 = vmax.f32 %v3791, %v3797
    %v3804 = vpack.c.bf16 %v3802, %v3800
    %v3805 = vpack.c.bf16 %v3803, %v3801
    %v3808 = vunpack.c.l.b16 %v3804
    %v3809 = vunpack.c.l.b16 %v3805
    %v3810 = vunpack.c.h.b16 %v3804
    %v3811 = vunpack.c.h.b16 %v3805
    %v3812 = vpack.c.b16 %v3809, %v3808
    %v3813 = vpack.c.b16 %v3811, %v3810
    %3814 = vrot.lane.b32.xlu0 %v3812, 78
    %v3815 = vpop.permute.xlu0 %3814
    %3816 = vrot.lane.b32.xlu0 %v3813, 78
    %v3817 = vpop.permute.xlu0 %3816
    %v3818 = vrot.slane %v3815, 4
    %v3819 = vrot.slane %v3817, 4
    %v3820 = vsel %vm1932, %v3815, %v3818
    %v3821 = vsel %vm1932, %v3817, %v3819
    %3824 = vst.msk [vmem:[#allocation4 + $0x28] sm:$0xf] %vm1875, %v3820
    %3825 = vst.msk [vmem:[#allocation4 + $0x2c] sm:$0xf] %vm1875, %v3821
    %v3826 = vld [vmem:[#allocation3 + $0x18] sm:$0xff]
    %v3827 = vld [vmem:[#allocation3 + $0x20] sm:$0xff]
    %v3828 = vld [vmem:[#allocation3 + $0x58] sm:$0xff]
    %v3829 = vld [vmem:[#allocation3 + $0x60] sm:$0xff]
    %3834 = vrot.lane.b32.xlu0 %v3826, 127
    %v3835 = vpop.permute.xlu0 %3834
    %3836 = vrot.lane.b32.xlu0 %v3827, 127
    %v3837 = vpop.permute.xlu0 %3836
    %3838 = vrot.lane.b32.xlu0 %v3828, 127
    %v3839 = vpop.permute.xlu0 %3838
    %3840 = vrot.lane.b32.xlu0 %v3829, 127
    %v3841 = vpop.permute.xlu0 %3840
    %v3842 = vsel %vm408, %v3835, %v3837
    %v3843 = vsel %vm408, %v3839, %v3841
    %v3848 = vmax.f32 %v3826, %v3842
    %v3849 = vmax.f32 %v3827, %v3837
    %v3850 = vmax.f32 %v3828, %v3843
    %v3851 = vmax.f32 %v3829, %v3841
    %v3852 = vld [vmem:[#allocation3 + $0x28] sm:$0xff]
    %v3853 = vld [vmem:[#allocation3 + $0x68] sm:$0xff]
    %3856 = vrot.lane.b32.xlu0 %v3852, 127
    %v3857 = vpop.permute.xlu0 %3856
    %3858 = vrot.lane.b32.xlu0 %v3853, 127
    %v3859 = vpop.permute.xlu0 %3858
    %v3860 = vsel %vm408, %v3837, %v3857
    %v3861 = vsel %vm408, %v3841, %v3859
    %v3866 = vmax.f32 %v3827, %v3860
    %v3867 = vmax.f32 %v3852, %v3857
    %v3868 = vmax.f32 %v3829, %v3861
    %v3869 = vmax.f32 %v3853, %v3859
    %3874 = vrot.lane.b32.xlu0 %v3866, 26
    %v3875 = vpop.permute.xlu0 %3874
    %3876 = vrot.lane.b32.xlu0 %v3867, 26
    %v3877 = vpop.permute.xlu0 %3876
    %3878 = vrot.lane.b32.xlu0 %v3868, 26
    %v3879 = vpop.permute.xlu0 %3878
    %3880 = vrot.lane.b32.xlu0 %v3869, 26
    %v3881 = vpop.permute.xlu0 %3880
    %v3882 = vsel %vm703, %v3875, %v3877
    %v3883 = vsel %vm703, %v3879, %v3881
    %v3888 = vmax.f32 %v3848, %v3875
    %v3889 = vmax.f32 %v3849, %v3882
    %v3890 = vmax.f32 %v3850, %v3879
    %v3891 = vmax.f32 %v3851, %v3883
    %v3892 = vpack.c.bf16 %v3890, %v3888
    %v3893 = vpack.c.bf16 %v3891, %v3889
    %v3896 = vunpack.c.l.b16 %v3892
    %v3897 = vunpack.c.l.b16 %v3893
    %v3898 = vunpack.c.h.b16 %v3892
    %v3899 = vunpack.c.h.b16 %v3893
    %v3900 = vpack.c.b16 %v3897, %v3896
    %v3901 = vpack.c.b16 %v3899, %v3898
    %3902 = vrot.lane.b32.xlu0 %v3900, 2
    %v3903 = vpop.permute.xlu0 %3902
    %3904 = vrot.lane.b32.xlu0 %v3901, 2
    %v3905 = vpop.permute.xlu0 %3904
    %v3906 = vrot.slane %v3903, 4
    %v3907 = vrot.slane %v3905, 4
    %v3908 = vsel %vm2021, %v3903, %v3906
    %v3909 = vsel %vm2021, %v3905, %v3907
    %3912 = vst.msk [vmem:[#allocation4 + $0x30] sm:$0xf] %vm1875, %v3908
    %3913 = vst.msk [vmem:[#allocation4 + $0x34] sm:$0xf] %vm1875, %v3909
    %v3914 = vld [vmem:[#allocation3 + $0x28] sm:$0xff]
    %v3915 = vld [vmem:[#allocation3 + $0x30] sm:$0xff]
    %v3916 = vld [vmem:[#allocation3 + $0x68] sm:$0xff]
    %v3917 = vld [vmem:[#allocation3 + $0x70] sm:$0xff]
    %3922 = vrot.lane.b32.xlu0 %v3914, 127
    %v3923 = vpop.permute.xlu0 %3922
    %3924 = vrot.lane.b32.xlu0 %v3915, 127
    %v3925 = vpop.permute.xlu0 %3924
    %3926 = vrot.lane.b32.xlu0 %v3916, 127
    %v3927 = vpop.permute.xlu0 %3926
    %3928 = vrot.lane.b32.xlu0 %v3917, 127
    %v3929 = vpop.permute.xlu0 %3928
    %v3930 = vsel %vm408, %v3923, %v3925
    %v3931 = vsel %vm408, %v3927, %v3929
    %v3936 = vmax.f32 %v3914, %v3930
    %v3937 = vmax.f32 %v3915, %v3925
    %v3938 = vmax.f32 %v3916, %v3931
    %v3939 = vmax.f32 %v3917, %v3929
    %v3940 = vld [vmem:[#allocation3 + $0x38] sm:$0xff]
    %v3941 = vld [vmem:[#allocation3 + $0x78] sm:$0xff]
    %3944 = vrot.lane.b32.xlu0 %v3940, 127
    %v3945 = vpop.permute.xlu0 %3944
    %3946 = vrot.lane.b32.xlu0 %v3941, 127
    %v3947 = vpop.permute.xlu0 %3946
    %v3948 = vsel %vm408, %v3925, %v3945
    %v3949 = vsel %vm408, %v3929, %v3947
    %v3954 = vmax.f32 %v3915, %v3948
    %v3955 = vmax.f32 %v3940, %v3945
    %v3956 = vmax.f32 %v3917, %v3949
    %v3957 = vmax.f32 %v3941, %v3947
    %3962 = vrot.lane.b32.xlu0 %v3954, 26
    %v3963 = vpop.permute.xlu0 %3962
    %3964 = vrot.lane.b32.xlu0 %v3955, 26
    %v3965 = vpop.permute.xlu0 %3964
    %3966 = vrot.lane.b32.xlu0 %v3956, 26
    %v3967 = vpop.permute.xlu0 %3966
    %3968 = vrot.lane.b32.xlu0 %v3957, 26
    %v3969 = vpop.permute.xlu0 %3968
    %v3970 = vsel %vm703, %v3963, %v3965
    %v3971 = vsel %vm703, %v3967, %v3969
    %v3976 = vmax.f32 %v3936, %v3963
    %v3977 = vmax.f32 %v3937, %v3970
    %v3978 = vmax.f32 %v3938, %v3967
    %v3979 = vmax.f32 %v3939, %v3971
    %v3980 = vpack.c.bf16 %v3978, %v3976
    %v3981 = vpack.c.bf16 %v3979, %v3977
    %v3984 = vunpack.c.l.b16 %v3980
    %v3985 = vunpack.c.l.b16 %v3981
    %v3986 = vunpack.c.h.b16 %v3980
    %v3987 = vunpack.c.h.b16 %v3981
    %v3988 = vpack.c.b16 %v3985, %v3984
    %v3989 = vpack.c.b16 %v3987, %v3986
    %3990 = vrot.lane.b32.xlu0 %v3988, 54
    %v3991 = vpop.permute.xlu0 %3990
    %3992 = vrot.lane.b32.xlu0 %v3989, 54
    %v3993 = vpop.permute.xlu0 %3992
    %v3994 = vrot.slane %v3991, 4
    %v3995 = vrot.slane %v3993, 4
    %v3996 = vsel %vm2110, %v3991, %v3994
    %v3997 = vsel %vm2110, %v3993, %v3995
    %4000 = vst.msk [vmem:[#allocation4 + $0x38] sm:$0xf] %vm1875, %v3996
    %4001 = vst.msk [vmem:[#allocation4 + $0x3c] sm:$0xf] %vm1875, %v3997
    %v4002 = vld [vmem:[#allocation4] sm:$0xf]
    %v4003 = vld [vmem:[#allocation4 + $0x4] sm:$0xf]
    %v4004 = vld [vmem:[#allocation4 + $0x8] sm:$0xf]
    %v4005 = vld [vmem:[#allocation4 + $0xc] sm:$0xf]
    %v4006 = vld [vmem:[#allocation4 + $0x10] sm:$0xf]
    %v4007 = vld [vmem:[#allocation4 + $0x14] sm:$0xf]
    %v4008 = vld [vmem:[#allocation4 + $0x18] sm:$0xf]
    %v4009 = vld [vmem:[#allocation4 + $0x1c] sm:$0xf]
    %v4010 = vld [vmem:[#allocation4 + $0x20] sm:$0xf]
    %v4011 = vld [vmem:[#allocation4 + $0x24] sm:$0xf]
    %v4012 = vld [vmem:[#allocation4 + $0x28] sm:$0xf]
    %v4013 = vld [vmem:[#allocation4 + $0x2c] sm:$0xf]
    %v4014 = vld [vmem:[#allocation4 + $0x30] sm:$0xf]
    %v4015 = vld [vmem:[#allocation4 + $0x34] sm:$0xf]
    %v4016 = vld [vmem:[#allocation4 + $0x38] sm:$0xf]
    %v4017 = vld [vmem:[#allocation4 + $0x3c] sm:$0xf]
    %v4018 = vld [vmem:[%s4] sm:$0xf]
    %v4019 = vld [vmem:[%s4 + $0x4] sm:$0xf]
    %v4020 = vld [vmem:[%s4 + $0x8] sm:$0xf]
    %v4021 = vld [vmem:[%s4 + $0xc] sm:$0xf]
    %v4022 = vld [vmem:[%s4 + $0x10] sm:$0xf]
    %v4023 = vld [vmem:[%s4 + $0x14] sm:$0xf]
    %v4024 = vld [vmem:[%s4 + $0x18] sm:$0xf]
    %v4025 = vld [vmem:[%s4 + $0x1c] sm:$0xf]
    %v4026 = vld [vmem:[%s4 + $0x20] sm:$0xf]
    %v4027 = vld [vmem:[%s4 + $0x24] sm:$0xf]
    %v4028 = vld [vmem:[%s4 + $0x28] sm:$0xf]
    %v4029 = vld [vmem:[%s4 + $0x2c] sm:$0xf]
    %v4030 = vld [vmem:[%s4 + $0x30] sm:$0x7]
    %v4047 = vunpack.c.l.b16 %v4002
    %v4048 = vunpack.c.l.b16 %v4003
    %v4049 = vunpack.c.l.b16 %v4004
    %v4050 = vunpack.c.l.b16 %v4005
    %v4051 = vunpack.c.l.b16 %v4006
    %v4052 = vunpack.c.l.b16 %v4007
    %v4053 = vunpack.c.l.b16 %v4008
    %v4054 = vunpack.c.l.b16 %v4009
    %v4055 = vunpack.c.l.b16 %v4010
    %v4056 = vunpack.c.l.b16 %v4011
    %v4057 = vunpack.c.l.b16 %v4012
    %v4058 = vunpack.c.l.b16 %v4013
    %v4059 = vunpack.c.l.b16 %v4014
    %v4060 = vunpack.c.l.b16 %v4015
    %v4061 = vunpack.c.l.b16 %v4016
    %v4062 = vunpack.c.l.b16 %v4017
    %v4063 = vpack.c.b16 %v4048, %v4047
    %v4064 = vpack.c.b16 %v4050, %v4049
    %v4065 = vpack.c.b16 %v4052, %v4051
    %v4066 = vpack.c.b16 %v4054, %v4053
    %v4067 = vpack.c.b16 %v4056, %v4055
    %v4068 = vpack.c.b16 %v4058, %v4057
    %v4069 = vpack.c.b16 %v4060, %v4059
    %v4070 = vpack.c.b16 %v4062, %v4061
    %v4084 = vunpack.c.l.b16 %v4018
    %v4085 = vunpack.c.l.b16 %v4019
    %v4086 = vunpack.c.l.b16 %v4020
    %v4087 = vunpack.c.l.b16 %v4021
    %v4088 = vunpack.c.l.b16 %v4022
    %v4089 = vunpack.c.l.b16 %v4023
    %v4090 = vunpack.c.l.b16 %v4024
    %v4091 = vunpack.c.l.b16 %v4025
    %v4092 = vunpack.c.l.b16 %v4026
    %v4093 = vunpack.c.l.b16 %v4027
    %v4094 = vunpack.c.l.b16 %v4028
    %v4095 = vunpack.c.l.b16 %v4029
    %v4096 = vunpack.c.l.b16 %v4030
    %v4097 = vpack.c.b16 %v4085, %v4084
    %v4098 = vpack.c.b16 %v4087, %v4086
    %v4099 = vpack.c.b16 %v4089, %v4088
    %v4100 = vpack.c.b16 %v4091, %v4090
    %v4101 = vpack.c.b16 %v4093, %v4092
    %v4102 = vpack.c.b16 %v4095, %v4094
    %v4103 = vpack.c.b16 %v4096, %v4096
    %v4111 = vsel %vm169, %v4063, 0
    %v4114 = vsel %vm169, %v4064, 0
    %v4117 = vsel %vm169, %v4065, 0
    %v4120 = vsel %vm169, %v4066, 0
    %v4123 = vsel %vm169, %v4067, 0
    %v4126 = vsel %vm169, %v4068, 0
    %v4129 = vsel %vm169, %v4069, 0
    %v4132 = vsel %vm169, %v4070, 0
    %vm4134 = vcmask 1042432
    %v4136 = vsel %vm4134, %v4103, 0
    %4138 = vmatprep.subr.bf16.mxu0 0
    %4139 = vmatpush1.bf16.msra.mxu0 0
    %4140 = vmatprep.subr.bf16.mxu0 0
    %4141 = vmatpush1.bf16.msra.mxu0 %v4136
    %4142 = vmatprep.subr.bf16.mxu0 0
    %4143 = vmatpush1.bf16.msra.mxu0 %v4102
    %4144 = vmatprep.subr.bf16.mxu0 0
    %4145 = vmatpush1.bf16.msra.mxu0 %v4101
    %4146 = vmatprep.subr.bf16.mxu0 0
    %4147 = vmatpush1.bf16.msra.mxu0 %v4100
    %4148 = vmatprep.subr.bf16.mxu0 0
    %4149 = vmatpush1.bf16.msra.mxu0 %v4099
    %4150 = vmatprep.subr.bf16.mxu0 0
    %4151 = vmatpush1.bf16.msra.mxu0 %v4098
    %4152 = vmatprep.subr.bf16.mxu0 0
    %4153 = vmatpush1.bf16.msra.mxu0 %v4097
    %4154 = vmatprep.subr.bf16.mxu0 0
    %4155 = vmatpush2.bf16.msra.mxu0 0
    %4156 = vmatprep.subr.bf16.mxu0 0
    %4157 = vmatpush2.bf16.msra.mxu0 0
    %4158 = vmatprep.subr.bf16.mxu0 0
    %4159 = vmatpush2.bf16.msra.mxu0 0
    %4160 = vmatprep.subr.bf16.mxu0 0
    %4161 = vmatpush2.bf16.msra.mxu0 0
    %4162 = vmatprep.subr.bf16.mxu0 0
    %4163 = vmatpush2.bf16.msra.mxu0 0
    %4164 = vmatprep.subr.bf16.mxu0 0
    %4165 = vmatpush2.bf16.msra.mxu0 0
    %4166 = vmatprep.subr.bf16.mxu0 0
    %4167 = vmatpush2.bf16.msra.mxu0 0
    %4168 = vmatprep.subr.bf16.mxu0 0
    %4169 = vmatpush2.bf16.msra.mxu0 0
    %4170 = vmatprep.mubr.bf16.mxu0 0
    %4171 = vmatmul.mubr.bf16.gmra.mxu0 %v4111
    %v4172 = vpop.f32.mrf.mxu0
    %v4173 = vadd.f32 0.0, %v4172
    %v4174 = vpop.f32.mrf.mxu0
    %v4175 = vpop.f32.mrf.mxu0
    %v4176 = vadd.f32 0.0, %v4175
    %v4177 = vpop.f32.mrf.mxu0
    %4178 = vmatprep.mubr.bf16.mxu0 0
    %4179 = vmatmul.mubr.bf16.gmra.mxu0 %v4114
    %v4180 = vpop.f32.mrf.mxu0
    %v4181 = vadd.f32 0.0, %v4180
    %v4182 = vpop.f32.mrf.mxu0
    %v4183 = vpop.f32.mrf.mxu0
    %v4184 = vadd.f32 0.0, %v4183
    %v4185 = vpop.f32.mrf.mxu0
    %4186 = vmatprep.mubr.bf16.mxu0 0
    %4187 = vmatmul.mubr.bf16.gmra.mxu0 %v4117
    %v4188 = vpop.f32.mrf.mxu0
    %v4189 = vadd.f32 0.0, %v4188
    %v4190 = vpop.f32.mrf.mxu0
    %v4191 = vpop.f32.mrf.mxu0
    %v4192 = vadd.f32 0.0, %v4191
    %v4193 = vpop.f32.mrf.mxu0
    %4194 = vmatprep.mubr.bf16.mxu0 0
    %4195 = vmatmul.mubr.bf16.gmra.mxu0 %v4120
    %v4196 = vpop.f32.mrf.mxu0
    %v4197 = vadd.f32 0.0, %v4196
    %v4198 = vpop.f32.mrf.mxu0
    %v4199 = vpop.f32.mrf.mxu0
    %v4200 = vadd.f32 0.0, %v4199
    %v4201 = vpop.f32.mrf.mxu0
    %4202 = vmatprep.mubr.bf16.mxu0 0
    %4203 = vmatmul.mubr.bf16.gmra.mxu0 %v4123
    %v4204 = vpop.f32.mrf.mxu0
    %v4205 = vadd.f32 0.0, %v4204
    %v4206 = vpop.f32.mrf.mxu0
    %v4207 = vpop.f32.mrf.mxu0
    %v4208 = vadd.f32 0.0, %v4207
    %v4209 = vpop.f32.mrf.mxu0
    %4210 = vmatprep.mubr.bf16.mxu0 0
    %4211 = vmatmul.mubr.bf16.gmra.mxu0 %v4126
    %v4212 = vpop.f32.mrf.mxu0
    %v4213 = vadd.f32 0.0, %v4212
    %v4214 = vpop.f32.mrf.mxu0
    %v4215 = vpop.f32.mrf.mxu0
    %v4216 = vadd.f32 0.0, %v4215
    %v4217 = vpop.f32.mrf.mxu0
    %4218 = vmatprep.mubr.bf16.mxu0 0
    %4219 = vmatmul.mubr.bf16.gmra.mxu0 %v4129
    %v4220 = vpop.f32.mrf.mxu0
    %v4221 = vadd.f32 0.0, %v4220
    %v4222 = vpop.f32.mrf.mxu0
    %v4223 = vpop.f32.mrf.mxu0
    %v4224 = vadd.f32 0.0, %v4223
    %v4225 = vpop.f32.mrf.mxu0
    %4226 = vmatprep.mubr.bf16.mxu0 0
    %4227 = vmatmul.mubr.bf16.gmra.mxu0 %v4132
    %v4228 = vpop.f32.mrf.mxu0
    %v4229 = vadd.f32 0.0, %v4228
    %v4230 = vpop.f32.mrf.mxu0
    %v4231 = vpop.f32.mrf.mxu0
    %v4232 = vadd.f32 0.0, %v4231
    %v4233 = vpop.f32.mrf.mxu0
    %4234 = vdwg.mxu0
    %v4235 = vpack.c.bf16 %v4176, %v4173
    %v4236 = vpack.c.bf16 %v4184, %v4181
    %v4237 = vpack.c.bf16 %v4192, %v4189
    %v4238 = vpack.c.bf16 %v4200, %v4197
    %v4239 = vpack.c.bf16 %v4208, %v4205
    %v4240 = vpack.c.bf16 %v4216, %v4213
    %v4241 = vpack.c.bf16 %v4224, %v4221
    %v4242 = vpack.c.bf16 %v4232, %v4229
    %v4251 = vunpack.c.l.b16 %v4235
    %v4252 = vunpack.c.h.b16 %v4235
    %v4253 = vunpack.c.l.b16 %v4236
    %v4254 = vunpack.c.h.b16 %v4236
    %v4255 = vunpack.c.l.b16 %v4237
    %v4256 = vunpack.c.h.b16 %v4237
    %v4257 = vunpack.c.l.b16 %v4238
    %v4258 = vunpack.c.h.b16 %v4238
    %v4259 = vunpack.c.l.b16 %v4239
    %v4260 = vunpack.c.h.b16 %v4239
    %v4261 = vunpack.c.l.b16 %v4240
    %v4262 = vunpack.c.h.b16 %v4240
    %v4263 = vunpack.c.l.b16 %v4241
    %v4264 = vunpack.c.h.b16 %v4241
    %v4265 = vunpack.c.l.b16 %v4242
    %v4266 = vunpack.c.h.b16 %v4242
    %v4267 = vpack.c.b16 %v4251, %v4251
    %v4268 = vpack.c.b16 %v4252, %v4252
    %v4269 = vpack.c.b16 %v4253, %v4253
    %v4270 = vpack.c.b16 %v4254, %v4254
    %v4271 = vpack.c.b16 %v4255, %v4255
    %v4272 = vpack.c.b16 %v4256, %v4256
    %v4273 = vpack.c.b16 %v4257, %v4257
    %v4274 = vpack.c.b16 %v4258, %v4258
    %v4275 = vpack.c.b16 %v4259, %v4259
    %v4276 = vpack.c.b16 %v4260, %v4260
    %v4277 = vpack.c.b16 %v4261, %v4261
    %v4278 = vpack.c.b16 %v4262, %v4262
    %v4279 = vpack.c.b16 %v4263, %v4263
    %v4280 = vpack.c.b16 %v4264, %v4264
    %v4281 = vpack.c.b16 %v4265, %v4265
    %v4282 = vpack.c.b16 %v4266, %v4266
    %vm4299 = vcmask 404480
    %4300 = vst.msk [vmem:[#allocation5] sm:$0xf] %vm4299, %v4267
    %4301 = vst.msk [vmem:[#allocation5 + $0x4] sm:$0xf] %vm4299, %v4268
    %4302 = vst.msk [vmem:[#allocation5 + $0x8] sm:$0xf] %vm4299, %v4269
    %4303 = vst.msk [vmem:[#allocation5 + $0xc] sm:$0xf] %vm4299, %v4270
    %4304 = vst.msk [vmem:[#allocation5 + $0x10] sm:$0xf] %vm4299, %v4271
    %4305 = vst.msk [vmem:[#allocation5 + $0x14] sm:$0xf] %vm4299, %v4272
    %4306 = vst.msk [vmem:[#allocation5 + $0x18] sm:$0xf] %vm4299, %v4273
    %4307 = vst.msk [vmem:[#allocation5 + $0x1c] sm:$0xf] %vm4299, %v4274
    %4308 = vst.msk [vmem:[#allocation5 + $0x20] sm:$0xf] %vm4299, %v4275
    %4309 = vst.msk [vmem:[#allocation5 + $0x24] sm:$0xf] %vm4299, %v4276
    %4310 = vst.msk [vmem:[#allocation5 + $0x28] sm:$0xf] %vm4299, %v4277
    %4311 = vst.msk [vmem:[#allocation5 + $0x2c] sm:$0xf] %vm4299, %v4278
    %4312 = vst.msk [vmem:[#allocation5 + $0x30] sm:$0xf] %vm4299, %v4279
    %4313 = vst.msk [vmem:[#allocation5 + $0x34] sm:$0xf] %vm4299, %v4280
    %4314 = vst.msk [vmem:[#allocation5 + $0x38] sm:$0xf] %vm4299, %v4281
    %4315 = vst.msk [vmem:[#allocation5 + $0x3c] sm:$0xf] %vm4299, %v4282
    %v4316 = vld [vmem:[#allocation5] sm:$0xf]
    %v4317 = vld [vmem:[#allocation5 + $0x4] sm:$0xf]
    %4320 = vrot.lane.b32.xlu0 %v4316, 106
    %v4321 = vpop.permute.xlu0 %4320
    %4322 = vrot.lane.b32.xlu0 %v4317, 106
    %v4323 = vpop.permute.xlu0 %4322
    %v4324 = vrot.slane %v4321, 4
    %v4325 = vrot.slane %v4323, 4
    %vm4326 = vcmask 867328
    %v4327 = vsel %vm4326, %v4324, %v4321
    %v4328 = vsel %vm4326, %v4325, %v4323
    %vm4331 = vcmask 1044304
    %vm4332 = vcmask 228356
    %vm4333 = vmor %vm4332, %vm4331
    %4334 = vst.msk [vmem:[#allocation6] sm:$0xff] %vm4333, %v4327
    %4335 = vst.msk [vmem:[#allocation6 + $0x10] sm:$0xff] %vm4333, %v4328
    %v4336 = vld [vmem:[#allocation5 + $0x8] sm:$0xf]
    %v4337 = vld [vmem:[#allocation5 + $0xc] sm:$0xf]
    %4340 = vrot.lane.b32.xlu0 %v4336, 30
    %v4341 = vpop.permute.xlu0 %4340
    %4342 = vrot.lane.b32.xlu0 %v4337, 30
    %v4343 = vpop.permute.xlu0 %4342
    %vm4346 = vcmask 650480
    %4347 = vst.msk [vmem:[#allocation6 + $0x4] sm:$0xf] %vm4346, %v4341
    %4348 = vst.msk [vmem:[#allocation6 + $0x14] sm:$0xf] %vm4346, %v4343
    %v4349 = vld [vmem:[#allocation5 + $0x10] sm:$0xf]
    %v4350 = vld [vmem:[#allocation5 + $0x14] sm:$0xf]
    %4353 = vrot.lane.b32.xlu0 %v4349, 82
    %v4354 = vpop.permute.xlu0 %4353
    %4355 = vrot.lane.b32.xlu0 %v4350, 82
    %v4356 = vpop.permute.xlu0 %4355
    %v4357 = vrot.slane %v4354, 4
    %v4358 = vrot.slane %v4356, 4
    %vm4359 = vcmask 670720
    %v4360 = vsel %vm4359, %v4357, %v4354
    %v4361 = vsel %vm4359, %v4358, %v4356
    %vm4364 = vcmask 1044112
    %vm4365 = vcmask 31748
    %vm4366 = vmor %vm4365, %vm4364
    %4367 = vst.msk [vmem:[#allocation6 + $0x4] sm:$0xff] %vm4366, %v4360
    %4368 = vst.msk [vmem:[#allocation6 + $0x14] sm:$0xff] %vm4366, %v4361
    %v4369 = vld [vmem:[#allocation5 + $0x18] sm:$0xf]
    %v4370 = vld [vmem:[#allocation5 + $0x1c] sm:$0xf]
    %4373 = vrot.lane.b32.xlu0 %v4369, 6
    %v4374 = vpop.permute.xlu0 %4373
    %4375 = vrot.lane.b32.xlu0 %v4370, 6
    %v4376 = vpop.permute.xlu0 %4375
    %vm4379 = vcmask 453680
    %4380 = vst.msk [vmem:[#allocation6 + $0x8] sm:$0xf] %vm4379, %v4374
    %4381 = vst.msk [vmem:[#allocation6 + $0x18] sm:$0xf] %vm4379, %v4376
    %v4382 = vld [vmem:[#allocation6] sm:$0xff]
    %v4383 = vld [vmem:[#allocation6 + $0x8] sm:$0xf]
    %v4384 = vld [vmem:[#allocation6 + $0x10] sm:$0xff]
    %v4385 = vld [vmem:[#allocation6 + $0x18] sm:$0xf]
    %4386 = vst [vmem:[#allocation7] sm:$0xff] %v4382
    %vm4387 = vcmask 453632
    %4388 = vst.msk [vmem:[#allocation7 + $0x8] sm:$0xf] %vm4387, %v4383
    %4389 = vst [vmem:[#allocation7 + $0x14] sm:$0xff] %v4384
    %4390 = vst.msk [vmem:[#allocation7 + $0x1c] sm:$0xf] %vm4387, %v4385
    %v4391 = vld [vmem:[#allocation6] sm:$0xff]
    %v4392 = vld [vmem:[#allocation6 + $0x8] sm:$0xf]
    %v4393 = vld [vmem:[#allocation6 + $0x10] sm:$0xff]
    %v4394 = vld [vmem:[#allocation6 + $0x18] sm:$0xf]
    %4399 = vrot.lane.b32.xlu0 %v4391, 127
    %v4400 = vpop.permute.xlu0 %4399
    %4401 = vrot.lane.b32.xlu0 %v4392, 127
    %v4402 = vpop.permute.xlu0 %4401
    %4403 = vrot.lane.b32.xlu0 %v4393, 127
    %v4404 = vpop.permute.xlu0 %4403
    %4405 = vrot.lane.b32.xlu0 %v4394, 127
    %v4406 = vpop.permute.xlu0 %4405
    %v4407 = vrot.slane %v4400, 4
    %v4408 = vrot.slane %v4402, 4
    %v4409 = vrot.slane %v4404, 4
    %v4410 = vrot.slane %v4406, 4
    %vm4411 = vcmask 1043456
    %v4412 = vsel %vm4411, %v4407, %v4408
    %vm4413 = vcmask 1039360
    %v4414 = vsel %vm4413, %v4400, %v4412
    %v4415 = vsel %vm4411, %v4409, %v4410
    %v4416 = vsel %vm4413, %v4404, %v4415
    %4421 = vst [vmem:[#allocation7 + $0x28] sm:$0xff] %v4414
    %4422 = vst.msk [vmem:[#allocation7 + $0x30] sm:$0xf] %vm4387, %v4402
    %4423 = vst [vmem:[#allocation7 + $0x3c] sm:$0xff] %v4416
    %4424 = vst.msk [vmem:[#allocation7 + $0x44] sm:$0xf] %vm4387, %v4406
    %v4425 = vld [vmem:[#allocation6] sm:$0xff]
    %v4426 = vld [vmem:[#allocation6 + $0x8] sm:$0xf]
    %v4427 = vld [vmem:[#allocation6 + $0x10] sm:$0xff]
    %v4428 = vld [vmem:[#allocation6 + $0x18] sm:$0xf]
    %4433 = vrot.lane.b32.xlu0 %v4425, 126
    %v4434 = vpop.permute.xlu0 %4433
    %4435 = vrot.lane.b32.xlu0 %v4426, 126
    %v4436 = vpop.permute.xlu0 %4435
    %4437 = vrot.lane.b32.xlu0 %v4427, 126
    %v4438 = vpop.permute.xlu0 %4437
    %4439 = vrot.lane.b32.xlu0 %v4428, 126
    %v4440 = vpop.permute.xlu0 %4439
    %v4441 = vrot.slane %v4434, 4
    %v4442 = vrot.slane %v4436, 4
    %v4443 = vrot.slane %v4438, 4
    %v4444 = vrot.slane %v4440, 4
    %v4445 = vsel %vm4411, %v4441, %v4442
    %vm4446 = vcmask 1031168
    %v4447 = vsel %vm4446, %v4434, %v4445
    %v4448 = vsel %vm4411, %v4443, %v4444
    %v4449 = vsel %vm4446, %v4438, %v4448
    %4454 = vst [vmem:[#allocation7 + $0x50] sm:$0xff] %v4447
    %4455 = vst.msk [vmem:[#allocation7 + $0x58] sm:$0xf] %vm4387, %v4436
    %4456 = vst [vmem:[#allocation7 + $0x64] sm:$0xff] %v4449
    %4457 = vst.msk [vmem:[#allocation7 + $0x6c] sm:$0xf] %vm4387, %v4440
    %v4458 = vld [vmem:[#allocation6] sm:$0xff]
    %v4459 = vld [vmem:[#allocation6 + $0x8] sm:$0xf]
    %v4460 = vld [vmem:[#allocation6 + $0x10] sm:$0xff]
    %v4461 = vld [vmem:[#allocation6 + $0x18] sm:$0xf]
    %4466 = vrot.lane.b32.xlu0 %v4458, 76
    %v4467 = vpop.permute.xlu0 %4466
    %4468 = vrot.lane.b32.xlu0 %v4459, 76
    %v4469 = vpop.permute.xlu0 %4468
    %4470 = vrot.lane.b32.xlu0 %v4460, 76
    %v4471 = vpop.permute.xlu0 %4470
    %4472 = vrot.lane.b32.xlu0 %v4461, 76
    %v4473 = vpop.permute.xlu0 %4472
    %v4474 = vrot.slane %v4467, 4
    %v4475 = vrot.slane %v4469, 4
    %v4476 = vrot.slane %v4471, 4
    %v4477 = vrot.slane %v4473, 4
    %v4478 = vsel %vm4411, %v4474, %v4475
    %vm4479 = vcmask 621568
    %v4480 = vsel %vm4479, %v4467, %v4478
    %v4481 = vsel %vm4411, %v4476, %v4477
    %v4482 = vsel %vm4479, %v4471, %v4481
    %4487 = vst [vmem:[#allocation7 + $0x78] sm:$0xff] %v4480
    %4488 = vst.msk [vmem:[#allocation7 + $0x80] sm:$0xf] %vm4387, %v4469
    %4489 = vst [vmem:[#allocation7 + $0x8c] sm:$0xff] %v4482
    %4490 = vst.msk [vmem:[#allocation7 + $0x94] sm:$0xf] %vm4387, %v4473
    %v4491 = vld [vmem:[#allocation6] sm:$0xff]
    %v4492 = vld [vmem:[#allocation6 + $0x8] sm:$0xf]
    %v4493 = vld [vmem:[#allocation6 + $0x10] sm:$0xff]
    %v4494 = vld [vmem:[#allocation6 + $0x18] sm:$0xf]
    %4499 = vrot.lane.b32.xlu0 %v4491, 75
    %v4500 = vpop.permute.xlu0 %4499
    %4501 = vrot.lane.b32.xlu0 %v4492, 75
    %v4502 = vpop.permute.xlu0 %4501
    %4503 = vrot.lane.b32.xlu0 %v4493, 75
    %v4504 = vpop.permute.xlu0 %4503
    %4505 = vrot.lane.b32.xlu0 %v4494, 75
    %v4506 = vpop.permute.xlu0 %4505
    %v4507 = vrot.slane %v4500, 4
    %v4508 = vrot.slane %v4502, 4
    %v4509 = vrot.slane %v4504, 4
    %v4510 = vrot.slane %v4506, 4
    %v4511 = vsel %vm4411, %v4507, %v4508
    %vm4512 = vcmask 613376
    %v4513 = vsel %vm4512, %v4500, %v4511
    %v4514 = vsel %vm4411, %v4509, %v4510
    %v4515 = vsel %vm4512, %v4504, %v4514
    %4520 = vst [vmem:[#allocation7 + $0xa0] sm:$0xff] %v4513
    %4521 = vst.msk [vmem:[#allocation7 + $0xa8] sm:$0xf] %vm4387, %v4502
    %4522 = vst [vmem:[#allocation7 + $0xb4] sm:$0xff] %v4515
    %4523 = vst.msk [vmem:[#allocation7 + $0xbc] sm:$0xf] %vm4387, %v4506
    %v4524 = vld [vmem:[#allocation6] sm:$0xff]
    %v4525 = vld [vmem:[#allocation6 + $0x8] sm:$0xf]
    %v4526 = vld [vmem:[#allocation6 + $0x10] sm:$0xff]
    %v4527 = vld [vmem:[#allocation6 + $0x18] sm:$0xf]
    %4532 = vrot.lane.b32.xlu0 %v4524, 74
    %v4533 = vpop.permute.xlu0 %4532
    %4534 = vrot.lane.b32.xlu0 %v4525, 74
    %v4535 = vpop.permute.xlu0 %4534
    %4536 = vrot.lane.b32.xlu0 %v4526, 74
    %v4537 = vpop.permute.xlu0 %4536
    %4538 = vrot.lane.b32.xlu0 %v4527, 74
    %v4539 = vpop.permute.xlu0 %4538
    %v4540 = vrot.slane %v4533, 4
    %v4541 = vrot.slane %v4535, 4
    %v4542 = vrot.slane %v4537, 4
    %v4543 = vrot.slane %v4539, 4
    %v4544 = vsel %vm4411, %v4540, %v4541
    %vm4545 = vcmask 605184
    %v4546 = vsel %vm4545, %v4533, %v4544
    %v4547 = vsel %vm4411, %v4542, %v4543
    %v4548 = vsel %vm4545, %v4537, %v4547
    %4553 = vst [vmem:[#allocation7 + $0xc8] sm:$0xff] %v4546
    %4554 = vst.msk [vmem:[#allocation7 + $0xd0] sm:$0xf] %vm4387, %v4535
    %4555 = vst [vmem:[#allocation7 + $0xdc] sm:$0xff] %v4548
    %4556 = vst.msk [vmem:[#allocation7 + $0xe4] sm:$0xf] %vm4387, %v4539
    %v4557 = vld [vmem:[#allocation6] sm:$0xff]
    %v4558 = vld [vmem:[#allocation6 + $0x8] sm:$0xff]
    %v4559 = vld [vmem:[#allocation6 + $0x10] sm:$0xff]
    %v4560 = vld [vmem:[#allocation6 + $0x18] sm:$0xff]
    %4565 = vrot.lane.b32.xlu0 %v4557, 24
    %v4566 = vpop.permute.xlu0 %4565
    %4567 = vrot.lane.b32.xlu0 %v4558, 24
    %v4568 = vpop.permute.xlu0 %4567
    %4569 = vrot.lane.b32.xlu0 %v4559, 24
    %v4570 = vpop.permute.xlu0 %4569
    %4571 = vrot.lane.b32.xlu0 %v4560, 24
    %v4572 = vpop.permute.xlu0 %4571
    %v4573 = vrot.slane %v4566, 4
    %v4574 = vrot.slane %v4568, 4
    %v4575 = vrot.slane %v4570, 4
    %v4576 = vrot.slane %v4572, 4
    %v4577 = vsel %vm4411, %v4573, %v4574
    %vm4578 = vcmask 195584
    %v4579 = vsel %vm4578, %v4566, %v4577
    %v4580 = vsel %vm4578, %v4568, %v4574
    %v4581 = vsel %vm4411, %v4575, %v4576
    %v4582 = vsel %vm4578, %v4570, %v4581
    %v4583 = vsel %vm4578, %v4572, %v4576
    %4588 = vst [vmem:[#allocation7 + $0xf0] sm:$0xff] %v4579
    %4589 = vst.msk [vmem:[#allocation7 + $0xf8] sm:$0xf] %vm4387, %v4580
    %4590 = vst [vmem:[#allocation7 + $0x104] sm:$0xff] %v4582
    %4591 = vst.msk [vmem:[#allocation7 + $0x10c] sm:$0xf] %vm4387, %v4583
    %v4592 = vld [vmem:[#allocation6] sm:$0xff]
    %v4593 = vld [vmem:[#allocation6 + $0x8] sm:$0xff]
    %v4594 = vld [vmem:[#allocation6 + $0x10] sm:$0xff]
    %v4595 = vld [vmem:[#allocation6 + $0x18] sm:$0xff]
    %4600 = vrot.lane.b32.xlu0 %v4592, 23
    %v4601 = vpop.permute.xlu0 %4600
    %4602 = vrot.lane.b32.xlu0 %v4593, 23
    %v4603 = vpop.permute.xlu0 %4602
    %4604 = vrot.lane.b32.xlu0 %v4594, 23
    %v4605 = vpop.permute.xlu0 %4604
    %4606 = vrot.lane.b32.xlu0 %v4595, 23
    %v4607 = vpop.permute.xlu0 %4606
    %v4608 = vrot.slane %v4601, 4
    %v4609 = vrot.slane %v4603, 4
    %v4610 = vrot.slane %v4605, 4
    %v4611 = vrot.slane %v4607, 4
    %v4612 = vsel %vm4411, %v4608, %v4609
    %vm4613 = vcmask 187392
    %v4614 = vsel %vm4613, %v4601, %v4612
    %v4615 = vsel %vm4613, %v4603, %v4609
    %v4616 = vsel %vm4411, %v4610, %v4611
    %v4617 = vsel %vm4613, %v4605, %v4616
    %v4618 = vsel %vm4613, %v4607, %v4611
    %4623 = vst [vmem:[#allocation7 + $0x118] sm:$0xff] %v4614
    %4624 = vst.msk [vmem:[#allocation7 + $0x120] sm:$0xf] %vm4387, %v4615
    %4625 = vst [vmem:[#allocation7 + $0x12c] sm:$0xff] %v4617
    %4626 = vst.msk [vmem:[#allocation7 + $0x134] sm:$0xf] %vm4387, %v4618
    %v4627 = vld [vmem:[#allocation6] sm:$0xff]
    %v4628 = vld [vmem:[#allocation6 + $0x8] sm:$0xff]
    %v4629 = vld [vmem:[#allocation6 + $0x10] sm:$0xff]
    %v4630 = vld [vmem:[#allocation6 + $0x18] sm:$0xff]
    %4635 = vrot.lane.b32.xlu0 %v4627, 22
    %v4636 = vpop.permute.xlu0 %4635
    %4637 = vrot.lane.b32.xlu0 %v4628, 22
    %v4638 = vpop.permute.xlu0 %4637
    %4639 = vrot.lane.b32.xlu0 %v4629, 22
    %v4640 = vpop.permute.xlu0 %4639
    %4641 = vrot.lane.b32.xlu0 %v4630, 22
    %v4642 = vpop.permute.xlu0 %4641
    %v4643 = vrot.slane %v4636, 4
    %v4644 = vrot.slane %v4638, 4
    %v4645 = vrot.slane %v4640, 4
    %v4646 = vrot.slane %v4642, 4
    %v4647 = vsel %vm4411, %v4643, %v4644
    %vm4648 = vcmask 179200
    %v4649 = vsel %vm4648, %v4636, %v4647
    %v4650 = vsel %vm4648, %v4638, %v4644
    %v4651 = vsel %vm4411, %v4645, %v4646
    %v4652 = vsel %vm4648, %v4640, %v4651
    %v4653 = vsel %vm4648, %v4642, %v4646
    %4658 = vst [vmem:[#allocation7 + $0x140] sm:$0xff] %v4649
    %4659 = vst.msk [vmem:[#allocation7 + $0x148] sm:$0xf] %vm4387, %v4650
    %4660 = vst [vmem:[#allocation7 + $0x154] sm:$0xff] %v4652
    %4661 = vst.msk [vmem:[#allocation7 + $0x15c] sm:$0xf] %vm4387, %v4653
    %v4662 = vld [vmem:[#allocation5 + $0x20] sm:$0xf]
    %v4663 = vld [vmem:[#allocation5 + $0x24] sm:$0xf]
    %4666 = vrot.lane.b32.xlu0 %v4662, 106
    %v4667 = vpop.permute.xlu0 %4666
    %4668 = vrot.lane.b32.xlu0 %v4663, 106
    %v4669 = vpop.permute.xlu0 %4668
    %v4670 = vrot.slane %v4667, 4
    %v4671 = vrot.slane %v4669, 4
    %v4672 = vsel %vm4326, %v4670, %v4667
    %v4673 = vsel %vm4326, %v4671, %v4669
    %4676 = vst.msk [vmem:[#allocation6] sm:$0xff] %vm4333, %v4672
    %4677 = vst.msk [vmem:[#allocation6 + $0x10] sm:$0xff] %vm4333, %v4673
    %v4678 = vld [vmem:[#allocation5 + $0x28] sm:$0xf]
    %v4679 = vld [vmem:[#allocation5 + $0x2c] sm:$0xf]
    %4682 = vrot.lane.b32.xlu0 %v4678, 30
    %v4683 = vpop.permute.xlu0 %4682
    %4684 = vrot.lane.b32.xlu0 %v4679, 30
    %v4685 = vpop.permute.xlu0 %4684
    %4688 = vst.msk [vmem:[#allocation6 + $0x4] sm:$0xf] %vm4346, %v4683
    %4689 = vst.msk [vmem:[#allocation6 + $0x14] sm:$0xf] %vm4346, %v4685
    %v4690 = vld [vmem:[#allocation5 + $0x30] sm:$0xf]
    %v4691 = vld [vmem:[#allocation5 + $0x34] sm:$0xf]
    %4694 = vrot.lane.b32.xlu0 %v4690, 82
    %v4695 = vpop.permute.xlu0 %4694
    %4696 = vrot.lane.b32.xlu0 %v4691, 82
    %v4697 = vpop.permute.xlu0 %4696
    %v4698 = vrot.slane %v4695, 4
    %v4699 = vrot.slane %v4697, 4
    %v4700 = vsel %vm4359, %v4698, %v4695
    %v4701 = vsel %vm4359, %v4699, %v4697
    %4704 = vst.msk [vmem:[#allocation6 + $0x4] sm:$0xff] %vm4366, %v4700
    %4705 = vst.msk [vmem:[#allocation6 + $0x14] sm:$0xff] %vm4366, %v4701
    %v4706 = vld [vmem:[#allocation5 + $0x38] sm:$0xf]
    %v4707 = vld [vmem:[#allocation5 + $0x3c] sm:$0xf]
    %4710 = vrot.lane.b32.xlu0 %v4706, 6
    %v4711 = vpop.permute.xlu0 %4710
    %4712 = vrot.lane.b32.xlu0 %v4707, 6
    %v4713 = vpop.permute.xlu0 %4712
    %4716 = vst.msk [vmem:[#allocation6 + $0x8] sm:$0xf] %vm4379, %v4711
    %4717 = vst.msk [vmem:[#allocation6 + $0x18] sm:$0xf] %vm4379, %v4713
    %v4718 = vld [vmem:[#allocation6] sm:$0xff]
    %v4719 = vld [vmem:[#allocation6 + $0x8] sm:$0xf]
    %v4720 = vld [vmem:[#allocation6 + $0x10] sm:$0xff]
    %v4721 = vld [vmem:[#allocation6 + $0x18] sm:$0xf]
    %4726 = vrot.lane.b32.xlu0 %v4718, 56
    %v4727 = vpop.permute.xlu0 %4726
    %4728 = vrot.lane.b32.xlu0 %v4719, 56
    %v4729 = vpop.permute.xlu0 %4728
    %4730 = vrot.lane.b32.xlu0 %v4720, 56
    %v4731 = vpop.permute.xlu0 %4730
    %4732 = vrot.lane.b32.xlu0 %v4721, 56
    %v4733 = vpop.permute.xlu0 %4732
    %v4734 = vrot.slane %v4727, 4
    %v4735 = vrot.slane %v4731, 4
    %vm4736 = vcmask 457728
    %v4737 = vsel %vm4736, %v4734, %v4727
    %v4738 = vsel %vm4736, %v4734, %v4729
    %v4739 = vsel %vm4736, %v4735, %v4731
    %v4740 = vsel %vm4736, %v4735, %v4733
    %vm4745 = vcmask 1043904
    %vm4746 = vcmask 1047556
    %vm4747 = vmor %vm4746, %vm4745
    %4748 = vst.msk [vmem:[#allocation7 + $0x8] sm:$0xff] %vm4747, %v4737
    %vm4749 = vcmask 912384
    %4750 = vst.msk [vmem:[#allocation7 + $0x10] sm:$0xf] %vm4749, %v4738
    %4751 = vst.msk [vmem:[#allocation7 + $0x1c] sm:$0xff] %vm4747, %v4739
    %4752 = vst.msk [vmem:[#allocation7 + $0x24] sm:$0xf] %vm4749, %v4740
    %v4753 = vld [vmem:[#allocation6] sm:$0xff]
    %v4754 = vld [vmem:[#allocation6 + $0x8] sm:$0xf]
    %v4755 = vld [vmem:[#allocation6 + $0x10] sm:$0xff]
    %v4756 = vld [vmem:[#allocation6 + $0x18] sm:$0xf]
    %4761 = vrot.lane.b32.xlu0 %v4753, 55
    %v4762 = vpop.permute.xlu0 %4761
    %4763 = vrot.lane.b32.xlu0 %v4754, 55
    %v4764 = vpop.permute.xlu0 %4763
    %4765 = vrot.lane.b32.xlu0 %v4755, 55
    %v4766 = vpop.permute.xlu0 %4765
    %4767 = vrot.lane.b32.xlu0 %v4756, 55
    %v4768 = vpop.permute.xlu0 %4767
    %v4769 = vrot.slane %v4762, 4
    %v4770 = vrot.slane %v4766, 4
    %vm4771 = vcmask 449536
    %v4772 = vsel %vm4771, %v4769, %v4762
    %v4773 = vsel %vm4771, %v4769, %v4764
    %v4774 = vsel %vm4771, %v4770, %v4766
    %v4775 = vsel %vm4771, %v4770, %v4768
    %4780 = vst.msk [vmem:[#allocation7 + $0x30] sm:$0xff] %vm4747, %v4772
    %4781 = vst.msk [vmem:[#allocation7 + $0x38] sm:$0xf] %vm4749, %v4773
    %4782 = vst.msk [vmem:[#allocation7 + $0x44] sm:$0xff] %vm4747, %v4774
    %4783 = vst.msk [vmem:[#allocation7 + $0x4c] sm:$0xf] %vm4749, %v4775
    %v4784 = vld [vmem:[#allocation6] sm:$0xff]
    %v4785 = vld [vmem:[#allocation6 + $0x8] sm:$0xf]
    %v4786 = vld [vmem:[#allocation6 + $0x10] sm:$0xff]
    %v4787 = vld [vmem:[#allocation6 + $0x18] sm:$0xf]
    %4792 = vrot.lane.b32.xlu0 %v4784, 54
    %v4793 = vpop.permute.xlu0 %4792
    %4794 = vrot.lane.b32.xlu0 %v4785, 54
    %v4795 = vpop.permute.xlu0 %4794
    %4796 = vrot.lane.b32.xlu0 %v4786, 54
    %v4797 = vpop.permute.xlu0 %4796
    %4798 = vrot.lane.b32.xlu0 %v4787, 54
    %v4799 = vpop.permute.xlu0 %4798
    %v4800 = vrot.slane %v4793, 4
    %v4801 = vrot.slane %v4797, 4
    %v4802 = vsel %vm2110, %v4800, %v4793
    %v4803 = vsel %vm2110, %v4800, %v4795
    %v4804 = vsel %vm2110, %v4801, %v4797
    %v4805 = vsel %vm2110, %v4801, %v4799
    %4810 = vst.msk [vmem:[#allocation7 + $0x58] sm:$0xff] %vm4747, %v4802
    %4811 = vst.msk [vmem:[#allocation7 + $0x60] sm:$0xf] %vm4749, %v4803
    %4812 = vst.msk [vmem:[#allocation7 + $0x6c] sm:$0xff] %vm4747, %v4804
    %4813 = vst.msk [vmem:[#allocation7 + $0x74] sm:$0xf] %vm4749, %v4805
    %v4814 = vld [vmem:[#allocation6] sm:$0xff]
    %v4815 = vld [vmem:[#allocation6 + $0x8] sm:$0xf]
    %v4816 = vld [vmem:[#allocation6 + $0x10] sm:$0xff]
    %v4817 = vld [vmem:[#allocation6 + $0x18] sm:$0xf]
    %4822 = vrot.lane.b32.xlu0 %v4814, 4
    %v4823 = vpop.permute.xlu0 %4822
    %4824 = vrot.lane.b32.xlu0 %v4815, 4
    %v4825 = vpop.permute.xlu0 %4824
    %4826 = vrot.lane.b32.xlu0 %v4816, 4
    %v4827 = vpop.permute.xlu0 %4826
    %4828 = vrot.lane.b32.xlu0 %v4817, 4
    %v4829 = vpop.permute.xlu0 %4828
    %v4830 = vrot.slane %v4823, 4
    %v4831 = vrot.slane %v4827, 4
    %vm4832 = vcmask 31744
    %v4833 = vsel %vm4832, %v4830, %v4823
    %v4834 = vsel %vm4832, %v4830, %v4825
    %v4835 = vsel %vm4832, %v4831, %v4827
    %v4836 = vsel %vm4832, %v4831, %v4829
    %4841 = vst.msk [vmem:[#allocation7 + $0x80] sm:$0xff] %vm4747, %v4833
    %4842 = vst.msk [vmem:[#allocation7 + $0x88] sm:$0xf] %vm4749, %v4834
    %4843 = vst.msk [vmem:[#allocation7 + $0x94] sm:$0xff] %vm4747, %v4835
    %4844 = vst.msk [vmem:[#allocation7 + $0x9c] sm:$0xf] %vm4749, %v4836
    %v4845 = vld [vmem:[#allocation6] sm:$0xff]
    %v4846 = vld [vmem:[#allocation6 + $0x8] sm:$0xf]
    %v4847 = vld [vmem:[#allocation6 + $0x10] sm:$0xff]
    %v4848 = vld [vmem:[#allocation6 + $0x18] sm:$0xf]
    %4853 = vrot.lane.b32.xlu0 %v4845, 3
    %v4854 = vpop.permute.xlu0 %4853
    %4855 = vrot.lane.b32.xlu0 %v4846, 3
    %v4856 = vpop.permute.xlu0 %4855
    %4857 = vrot.lane.b32.xlu0 %v4847, 3
    %v4858 = vpop.permute.xlu0 %4857
    %4859 = vrot.lane.b32.xlu0 %v4848, 3
    %v4860 = vpop.permute.xlu0 %4859
    %v4861 = vrot.slane %v4854, 4
    %v4862 = vrot.slane %v4858, 4
    %vm4863 = vcmask 23552
    %v4864 = vsel %vm4863, %v4861, %v4854
    %v4865 = vsel %vm4863, %v4861, %v4856
    %v4866 = vsel %vm4863, %v4862, %v4858
    %v4867 = vsel %vm4863, %v4862, %v4860
    %4872 = vst.msk [vmem:[#allocation7 + $0xa8] sm:$0xff] %vm4747, %v4864
    %4873 = vst.msk [vmem:[#allocation7 + $0xb0] sm:$0xf] %vm4749, %v4865
    %4874 = vst.msk [vmem:[#allocation7 + $0xbc] sm:$0xff] %vm4747, %v4866
    %4875 = vst.msk [vmem:[#allocation7 + $0xc4] sm:$0xf] %vm4749, %v4867
    %v4876 = vld [vmem:[#allocation6] sm:$0xff]
    %v4877 = vld [vmem:[#allocation6 + $0x8] sm:$0xf]
    %v4878 = vld [vmem:[#allocation6 + $0x10] sm:$0xff]
    %v4879 = vld [vmem:[#allocation6 + $0x18] sm:$0xf]
    %4884 = vrot.lane.b32.xlu0 %v4876, 2
    %v4885 = vpop.permute.xlu0 %4884
    %4886 = vrot.lane.b32.xlu0 %v4877, 2
    %v4887 = vpop.permute.xlu0 %4886
    %4888 = vrot.lane.b32.xlu0 %v4878, 2
    %v4889 = vpop.permute.xlu0 %4888
    %4890 = vrot.lane.b32.xlu0 %v4879, 2
    %v4891 = vpop.permute.xlu0 %4890
    %v4892 = vrot.slane %v4885, 4
    %v4893 = vrot.slane %v4889, 4
    %v4894 = vsel %vm2021, %v4892, %v4885
    %v4895 = vsel %vm2021, %v4892, %v4887
    %v4896 = vsel %vm2021, %v4893, %v4889
    %v4897 = vsel %vm2021, %v4893, %v4891
    %4902 = vst.msk [vmem:[#allocation7 + $0xd0] sm:$0xff] %vm4747, %v4894
    %4903 = vst.msk [vmem:[#allocation7 + $0xd8] sm:$0xf] %vm4749, %v4895
    %4904 = vst.msk [vmem:[#allocation7 + $0xe4] sm:$0xff] %vm4747, %v4896
    %4905 = vst.msk [vmem:[#allocation7 + $0xec] sm:$0xf] %vm4749, %v4897
    %v4906 = vld [vmem:[#allocation6] sm:$0xff]
    %v4907 = vld [vmem:[#allocation6 + $0x8] sm:$0xff]
    %v4908 = vld [vmem:[#allocation6 + $0x10] sm:$0xff]
    %v4909 = vld [vmem:[#allocation6 + $0x18] sm:$0xff]
    %4914 = vrot.lane.b32.xlu0 %v4906, 80
    %v4915 = vpop.permute.xlu0 %4914
    %4916 = vrot.lane.b32.xlu0 %v4907, 80
    %v4917 = vpop.permute.xlu0 %4916
    %4918 = vrot.lane.b32.xlu0 %v4908, 80
    %v4919 = vpop.permute.xlu0 %4918
    %4920 = vrot.lane.b32.xlu0 %v4909, 80
    %v4921 = vpop.permute.xlu0 %4920
    %v4922 = vrot.slane %v4915, 4
    %v4923 = vrot.slane %v4917, 4
    %v4924 = vrot.slane %v4919, 4
    %v4925 = vrot.slane %v4921, 4
    %v4926 = vsel %vm4411, %v4922, %v4923
    %vm4927 = vcmask 654336
    %v4928 = vsel %vm4927, %v4915, %v4926
    %v4929 = vsel %vm4927, %v4917, %v4923
    %v4930 = vsel %vm4411, %v4924, %v4925
    %v4931 = vsel %vm4927, %v4919, %v4930
    %v4932 = vsel %vm4927, %v4921, %v4925
    %4937 = vst.msk [vmem:[#allocation7 + $0xf8] sm:$0xff] %vm4747, %v4928
    %4938 = vst.msk [vmem:[#allocation7 + $0x100] sm:$0xf] %vm4749, %v4929
    %4939 = vst.msk [vmem:[#allocation7 + $0x10c] sm:$0xff] %vm4747, %v4931
    %4940 = vst.msk [vmem:[#allocation7 + $0x114] sm:$0xf] %vm4749, %v4932
    %v4941 = vld [vmem:[#allocation6] sm:$0xff]
    %v4942 = vld [vmem:[#allocation6 + $0x8] sm:$0xff]
    %v4943 = vld [vmem:[#allocation6 + $0x10] sm:$0xff]
    %v4944 = vld [vmem:[#allocation6 + $0x18] sm:$0xff]
    %4949 = vrot.lane.b32.xlu0 %v4941, 79
    %v4950 = vpop.permute.xlu0 %4949
    %4951 = vrot.lane.b32.xlu0 %v4942, 79
    %v4952 = vpop.permute.xlu0 %4951
    %4953 = vrot.lane.b32.xlu0 %v4943, 79
    %v4954 = vpop.permute.xlu0 %4953
    %4955 = vrot.lane.b32.xlu0 %v4944, 79
    %v4956 = vpop.permute.xlu0 %4955
    %v4957 = vrot.slane %v4950, 4
    %v4958 = vrot.slane %v4952, 4
    %v4959 = vrot.slane %v4954, 4
    %v4960 = vrot.slane %v4956, 4
    %v4961 = vsel %vm4411, %v4957, %v4958
    %vm4962 = vcmask 646144
    %v4963 = vsel %vm4962, %v4950, %v4961
    %v4964 = vsel %vm4962, %v4952, %v4958
    %v4965 = vsel %vm4411, %v4959, %v4960
    %v4966 = vsel %vm4962, %v4954, %v4965
    %v4967 = vsel %vm4962, %v4956, %v4960
    %4972 = vst.msk [vmem:[#allocation7 + $0x120] sm:$0xff] %vm4747, %v4963
    %4973 = vst.msk [vmem:[#allocation7 + $0x128] sm:$0xf] %vm4749, %v4964
    %4974 = vst.msk [vmem:[#allocation7 + $0x134] sm:$0xff] %vm4747, %v4966
    %4975 = vst.msk [vmem:[#allocation7 + $0x13c] sm:$0xf] %vm4749, %v4967
    %v4976 = vld [vmem:[#allocation6] sm:$0xff]
    %v4977 = vld [vmem:[#allocation6 + $0x8] sm:$0xff]
    %v4978 = vld [vmem:[#allocation6 + $0x10] sm:$0xff]
    %v4979 = vld [vmem:[#allocation6 + $0x18] sm:$0xff]
    %4984 = vrot.lane.b32.xlu0 %v4976, 78
    %v4985 = vpop.permute.xlu0 %4984
    %4986 = vrot.lane.b32.xlu0 %v4977, 78
    %v4987 = vpop.permute.xlu0 %4986
    %4988 = vrot.lane.b32.xlu0 %v4978, 78
    %v4989 = vpop.permute.xlu0 %4988
    %4990 = vrot.lane.b32.xlu0 %v4979, 78
    %v4991 = vpop.permute.xlu0 %4990
    %v4992 = vrot.slane %v4985, 4
    %v4993 = vrot.slane %v4987, 4
    %v4994 = vrot.slane %v4989, 4
    %v4995 = vrot.slane %v4991, 4
    %v4996 = vsel %vm4411, %v4992, %v4993
    %v4997 = vsel %vm1932, %v4985, %v4996
    %v4998 = vsel %vm1932, %v4987, %v4993
    %v4999 = vsel %vm4411, %v4994, %v4995
    %v5000 = vsel %vm1932, %v4989, %v4999
    %v5001 = vsel %vm1932, %v4991, %v4995
    %5006 = vst.msk [vmem:[#allocation7 + $0x148] sm:$0xff] %vm4747, %v4997
    %5007 = vst.msk [vmem:[#allocation7 + $0x150] sm:$0xf] %vm4749, %v4998
    %5008 = vst.msk [vmem:[#allocation7 + $0x15c] sm:$0xff] %vm4747, %v5000
    %5009 = vst.msk [vmem:[#allocation7 + $0x164] sm:$0xf] %vm4749, %v5001
    %v5010 = vld [vmem:[%s5] sm:$0xff]
    %v5011 = vld [vmem:[%s5 + $0x8] sm:$0xff]
    %v5012 = vld [vmem:[%s5 + $0x10] sm:$0xff]
    %v5013 = vld [vmem:[%s5 + $0x18] sm:$0xff]
    %v5014 = vld [vmem:[#allocation7] sm:$0xff]
    %v5015 = vld [vmem:[#allocation7 + $0x8] sm:$0xff]
    %v5016 = vld [vmem:[#allocation7 + $0x10] sm:$0xf]
    %v5017 = vld [vmem:[#allocation7 + $0x14] sm:$0xff]
    %v5018 = vld [vmem:[#allocation7 + $0x1c] sm:$0xff]
    %v5019 = vld [vmem:[#allocation7 + $0x24] sm:$0xf]
    %v5020 = vld [vmem:[#allocation7 + $0x28] sm:$0xff]
    %v5021 = vld [vmem:[#allocation7 + $0x30] sm:$0xff]
    %v5022 = vld [vmem:[#allocation7 + $0x38] sm:$0xf]
    %v5023 = vld [vmem:[#allocation7 + $0x3c] sm:$0xff]
    %v5024 = vld [vmem:[#allocation7 + $0x44] sm:$0xff]
    %v5025 = vld [vmem:[#allocation7 + $0x4c] sm:$0xf]
    %v5026 = vld [vmem:[#allocation7 + $0x50] sm:$0xff]
    %v5027 = vld [vmem:[#allocation7 + $0x58] sm:$0xff]
    %v5028 = vld [vmem:[#allocation7 + $0x60] sm:$0xf]
    %v5029 = vld [vmem:[#allocation7 + $0x64] sm:$0xff]
    %v5030 = vld [vmem:[#allocation7 + $0x6c] sm:$0xff]
    %v5031 = vld [vmem:[#allocation7 + $0x74] sm:$0xf]
    %v5032 = vld [vmem:[#allocation7 + $0x78] sm:$0xff]
    %v5033 = vld [vmem:[#allocation7 + $0x80] sm:$0xff]
    %v5034 = vld [vmem:[#allocation7 + $0x88] sm:$0xf]
    %v5035 = vld [vmem:[#allocation7 + $0x8c] sm:$0xff]
    %v5036 = vld [vmem:[#allocation7 + $0x94] sm:$0xff]
    %v5037 = vld [vmem:[#allocation7 + $0x9c] sm:$0xf]
    %v5038 = vld [vmem:[#allocation7 + $0xa0] sm:$0xff]
    %v5039 = vld [vmem:[#allocation7 + $0xa8] sm:$0xff]
    %v5040 = vld [vmem:[#allocation7 + $0xb0] sm:$0xf]
    %v5041 = vld [vmem:[#allocation7 + $0xb4] sm:$0xff]
    %v5042 = vld [vmem:[#allocation7 + $0xbc] sm:$0xff]
    %v5043 = vld [vmem:[#allocation7 + $0xc4] sm:$0xf]
    %v5044 = vld [vmem:[#allocation7 + $0xc8] sm:$0xff]
    %v5045 = vld [vmem:[#allocation7 + $0xd0] sm:$0xff]
    %v5046 = vld [vmem:[#allocation7 + $0xd8] sm:$0xf]
    %v5047 = vld [vmem:[#allocation7 + $0xdc] sm:$0xff]
    %v5048 = vld [vmem:[#allocation7 + $0xe4] sm:$0xff]
    %v5049 = vld [vmem:[#allocation7 + $0xec] sm:$0xf]
    %v5050 = vld [vmem:[#allocation7 + $0xf0] sm:$0xff]
    %v5051 = vld [vmem:[#allocation7 + $0xf8] sm:$0xff]
    %v5052 = vld [vmem:[#allocation7 + $0x100] sm:$0xf]
    %v5053 = vld [vmem:[#allocation7 + $0x104] sm:$0xff]
    %v5054 = vld [vmem:[#allocation7 + $0x10c] sm:$0xff]
    %v5055 = vld [vmem:[#allocation7 + $0x114] sm:$0xf]
    %v5056 = vld [vmem:[#allocation7 + $0x118] sm:$0xff]
    %v5057 = vld [vmem:[#allocation7 + $0x120] sm:$0xff]
    %v5058 = vld [vmem:[#allocation7 + $0x128] sm:$0xf]
    %v5059 = vld [vmem:[#allocation7 + $0x12c] sm:$0xff]
    %v5060 = vld [vmem:[#allocation7 + $0x134] sm:$0xff]
    %v5061 = vld [vmem:[#allocation7 + $0x13c] sm:$0xf]
    %v5062 = vld [vmem:[#allocation7 + $0x140] sm:$0xff]
    %v5063 = vld [vmem:[#allocation7 + $0x148] sm:$0xff]
    %v5064 = vld [vmem:[#allocation7 + $0x150] sm:$0xf]
    %v5065 = vld [vmem:[#allocation7 + $0x154] sm:$0xff]
    %v5066 = vld [vmem:[#allocation7 + $0x15c] sm:$0xff]
    %v5067 = vld [vmem:[#allocation7 + $0x164] sm:$0xf]
    %v5072 = vunpack.c.l.b16 %v5010
    %v5073 = vunpack.c.h.b16 %v5010
    %v5074 = vunpack.c.l.b16 %v5011
    %v5075 = vunpack.c.h.b16 %v5011
    %v5076 = vunpack.c.l.b16 %v5012
    %v5077 = vunpack.c.h.b16 %v5012
    %v5078 = vunpack.c.l.b16 %v5013
    %v5079 = vunpack.c.h.b16 %v5013
    %v5080 = vpack.c.b16 %v5074, %v5072
    %v5081 = vpack.c.b16 %v5075, %v5073
    %v5082 = vpack.c.b16 %v5078, %v5076
    %v5083 = vpack.c.b16 %v5079, %v5077
    %v5140 = vunpack.c.l.b16 %v5014
    %v5141 = vunpack.c.h.b16 %v5014
    %v5142 = vunpack.c.l.b16 %v5015
    %v5143 = vunpack.c.h.b16 %v5015
    %v5144 = vunpack.c.l.b16 %v5016
    %v5145 = vunpack.c.l.b16 %v5017
    %v5146 = vunpack.c.h.b16 %v5017
    %v5147 = vunpack.c.l.b16 %v5018
    %v5148 = vunpack.c.h.b16 %v5018
    %v5149 = vunpack.c.l.b16 %v5019
    %v5150 = vunpack.c.l.b16 %v5020
    %v5151 = vunpack.c.h.b16 %v5020
    %v5152 = vunpack.c.l.b16 %v5021
    %v5153 = vunpack.c.h.b16 %v5021
    %v5154 = vunpack.c.l.b16 %v5022
    %v5155 = vunpack.c.l.b16 %v5023
    %v5156 = vunpack.c.h.b16 %v5023
    %v5157 = vunpack.c.l.b16 %v5024
    %v5158 = vunpack.c.h.b16 %v5024
    %v5159 = vunpack.c.l.b16 %v5025
    %v5160 = vunpack.c.l.b16 %v5026
    %v5161 = vunpack.c.h.b16 %v5026
    %v5162 = vunpack.c.l.b16 %v5027
    %v5163 = vunpack.c.h.b16 %v5027
    %v5164 = vunpack.c.l.b16 %v5028
    %v5165 = vunpack.c.l.b16 %v5029
    %v5166 = vunpack.c.h.b16 %v5029
    %v5167 = vunpack.c.l.b16 %v5030
    %v5168 = vunpack.c.h.b16 %v5030
    %v5169 = vunpack.c.l.b16 %v5031
    %v5170 = vunpack.c.l.b16 %v5032
    %v5171 = vunpack.c.h.b16 %v5032
    %v5172 = vunpack.c.l.b16 %v5033
    %v5173 = vunpack.c.h.b16 %v5033
    %v5174 = vunpack.c.l.b16 %v5034
    %v5175 = vunpack.c.l.b16 %v5035
    %v5176 = vunpack.c.h.b16 %v5035
    %v5177 = vunpack.c.l.b16 %v5036
    %v5178 = vunpack.c.h.b16 %v5036
    %v5179 = vunpack.c.l.b16 %v5037
    %v5180 = vunpack.c.l.b16 %v5038
    %v5181 = vunpack.c.h.b16 %v5038
    %v5182 = vunpack.c.l.b16 %v5039
    %v5183 = vunpack.c.h.b16 %v5039
    %v5184 = vunpack.c.l.b16 %v5040
    %v5185 = vunpack.c.l.b16 %v5041
    %v5186 = vunpack.c.h.b16 %v5041
    %v5187 = vunpack.c.l.b16 %v5042
    %v5188 = vunpack.c.h.b16 %v5042
    %v5189 = vunpack.c.l.b16 %v5043
    %v5190 = vunpack.c.l.b16 %v5044
    %v5191 = vunpack.c.h.b16 %v5044
    %v5192 = vunpack.c.l.b16 %v5045
    %v5193 = vunpack.c.h.b16 %v5045
    %v5194 = vunpack.c.l.b16 %v5046
    %v5195 = vunpack.c.l.b16 %v5047
    %v5196 = vunpack.c.h.b16 %v5047
    %v5197 = vunpack.c.l.b16 %v5048
    %v5198 = vunpack.c.h.b16 %v5048
    %v5199 = vunpack.c.l.b16 %v5049
    %v5200 = vunpack.c.l.b16 %v5050
    %v5201 = vunpack.c.h.b16 %v5050
    %v5202 = vunpack.c.l.b16 %v5051
    %v5203 = vunpack.c.h.b16 %v5051
    %v5204 = vunpack.c.l.b16 %v5052
    %v5205 = vunpack.c.l.b16 %v5053
    %v5206 = vunpack.c.h.b16 %v5053
    %v5207 = vunpack.c.l.b16 %v5054
    %v5208 = vunpack.c.h.b16 %v5054
    %v5209 = vunpack.c.l.b16 %v5055
    %v5210 = vunpack.c.l.b16 %v5056
    %v5211 = vunpack.c.h.b16 %v5056
    %v5212 = vunpack.c.l.b16 %v5057
    %v5213 = vunpack.c.h.b16 %v5057
    %v5214 = vunpack.c.l.b16 %v5058
    %v5215 = vunpack.c.l.b16 %v5059
    %v5216 = vunpack.c.h.b16 %v5059
    %v5217 = vunpack.c.l.b16 %v5060
    %v5218 = vunpack.c.h.b16 %v5060
    %v5219 = vunpack.c.l.b16 %v5061
    %v5220 = vunpack.c.l.b16 %v5062
    %v5221 = vunpack.c.h.b16 %v5062
    %v5222 = vunpack.c.l.b16 %v5063
    %v5223 = vunpack.c.h.b16 %v5063
    %v5224 = vunpack.c.l.b16 %v5064
    %v5225 = vunpack.c.l.b16 %v5065
    %v5226 = vunpack.c.h.b16 %v5065
    %v5227 = vunpack.c.l.b16 %v5066
    %v5228 = vunpack.c.h.b16 %v5066
    %v5229 = vunpack.c.l.b16 %v5067
    %v5230 = vpack.c.b16 %v5145, %v5140
    %v5231 = vpack.c.b16 %v5146, %v5141
    %v5232 = vpack.c.b16 %v5147, %v5142
    %v5233 = vpack.c.b16 %v5148, %v5143
    %v5234 = vpack.c.b16 %v5149, %v5144
    %v5235 = vpack.c.b16 %v5155, %v5150
    %v5236 = vpack.c.b16 %v5156, %v5151
    %v5237 = vpack.c.b16 %v5157, %v5152
    %v5238 = vpack.c.b16 %v5158, %v5153
    %v5239 = vpack.c.b16 %v5159, %v5154
    %v5240 = vpack.c.b16 %v5165, %v5160
    %v5241 = vpack.c.b16 %v5166, %v5161
    %v5242 = vpack.c.b16 %v5167, %v5162
    %v5243 = vpack.c.b16 %v5168, %v5163
    %v5244 = vpack.c.b16 %v5169, %v5164
    %v5245 = vpack.c.b16 %v5175, %v5170
    %v5246 = vpack.c.b16 %v5176, %v5171
    %v5247 = vpack.c.b16 %v5177, %v5172
    %v5248 = vpack.c.b16 %v5178, %v5173
    %v5249 = vpack.c.b16 %v5179, %v5174
    %v5250 = vpack.c.b16 %v5185, %v5180
    %v5251 = vpack.c.b16 %v5186, %v5181
    %v5252 = vpack.c.b16 %v5187, %v5182
    %v5253 = vpack.c.b16 %v5188, %v5183
    %v5254 = vpack.c.b16 %v5189, %v5184
    %v5255 = vpack.c.b16 %v5195, %v5190
    %v5256 = vpack.c.b16 %v5196, %v5191
    %v5257 = vpack.c.b16 %v5197, %v5192
    %v5258 = vpack.c.b16 %v5198, %v5193
    %v5259 = vpack.c.b16 %v5199, %v5194
    %v5260 = vpack.c.b16 %v5205, %v5200
    %v5261 = vpack.c.b16 %v5206, %v5201
    %v5262 = vpack.c.b16 %v5207, %v5202
    %v5263 = vpack.c.b16 %v5208, %v5203
    %v5264 = vpack.c.b16 %v5209, %v5204
    %v5265 = vpack.c.b16 %v5215, %v5210
    %v5266 = vpack.c.b16 %v5216, %v5211
    %v5267 = vpack.c.b16 %v5217, %v5212
    %v5268 = vpack.c.b16 %v5218, %v5213
    %v5269 = vpack.c.b16 %v5219, %v5214
    %v5270 = vpack.c.b16 %v5225, %v5220
    %v5271 = vpack.c.b16 %v5226, %v5221
    %v5272 = vpack.c.b16 %v5227, %v5222
    %v5273 = vpack.c.b16 %v5228, %v5223
    %v5274 = vpack.c.b16 %v5229, %v5224
    %vm5320 = vcmask 130048
    %v5322 = vsel %vm5320, %v5081, 0
    %v5325 = vsel %vm5320, %v5083, 0
    %5327 = vmatprep.subr.bf16.mxu0 %v5266
    %5328 = vmatpush1.bf16.msra.mxu0 %v5265
    %5329 = vmatprep.subr.bf16.mxu0 %v5261
    %5330 = vmatpush1.bf16.msra.mxu0 %v5260
    %5331 = vmatprep.subr.bf16.mxu0 %v5256
    %5332 = vmatpush1.bf16.msra.mxu0 %v5255
    %5333 = vmatprep.subr.bf16.mxu0 %v5251
    %5334 = vmatpush1.bf16.msra.mxu0 %v5250
    %5335 = vmatprep.subr.bf16.mxu0 %v5246
    %5336 = vmatpush1.bf16.msra.mxu0 %v5245
    %5337 = vmatprep.subr.bf16.mxu0 %v5241
    %5338 = vmatpush1.bf16.msra.mxu0 %v5240
    %5339 = vmatprep.subr.bf16.mxu0 %v5236
    %5340 = vmatpush1.bf16.msra.mxu0 %v5235
    %5341 = vmatprep.subr.bf16.mxu0 %v5231
    %5342 = vmatpush1.bf16.msra.mxu0 %v5230
    %5343 = vmatprep.subr.bf16.mxu0 0
    %5344 = vmatpush2.bf16.msra.mxu0 0
    %5345 = vmatprep.subr.bf16.mxu0 0
    %5346 = vmatpush2.bf16.msra.mxu0 0
    %5347 = vmatprep.subr.bf16.mxu0 0
    %5348 = vmatpush2.bf16.msra.mxu0 0
    %5349 = vmatprep.subr.bf16.mxu0 0
    %5350 = vmatpush2.bf16.msra.mxu0 0
    %5351 = vmatprep.subr.bf16.mxu0 0
    %5352 = vmatpush2.bf16.msra.mxu0 0
    %5353 = vmatprep.subr.bf16.mxu0 0
    %5354 = vmatpush2.bf16.msra.mxu0 0
    %5355 = vmatprep.subr.bf16.mxu0 0
    %5356 = vmatpush2.bf16.msra.mxu0 0
    %5357 = vmatprep.subr.bf16.mxu0 %v5271
    %5358 = vmatpush2.bf16.msra.mxu0 %v5270
    %5359 = vmatprep.mubr.bf16.mxu0 %v5322
    %5360 = vmatmul.mubr.bf16.gmra.mxu0 %v5080
    %v5361 = vpop.f32.mrf.mxu0
    %v5362 = vadd.f32 0.0, %v5361
    %v5363 = vpop.f32.mrf.mxu0
    %v5364 = vadd.f32 0.0, %v5363
    %v5365 = vpop.f32.mrf.mxu0
    %v5366 = vadd.f32 0.0, %v5365
    %v5367 = vpop.f32.mrf.mxu0
    %v5368 = vadd.f32 0.0, %v5367
    %5369 = vmatprep.mubr.bf16.mxu0 %v5325
    %5370 = vmatmul.mubr.bf16.gmra.mxu0 %v5082
    %v5371 = vpop.f32.mrf.mxu0
    %v5372 = vadd.f32 0.0, %v5371
    %v5373 = vpop.f32.mrf.mxu0
    %v5374 = vadd.f32 0.0, %v5373
    %v5375 = vpop.f32.mrf.mxu0
    %v5376 = vadd.f32 0.0, %v5375
    %v5377 = vpop.f32.mrf.mxu0
    %v5378 = vadd.f32 0.0, %v5377
    %5379 = vdwg.mxu0
    %5380 = vmatprep.subr.bf16.mxu0 %v5268
    %5381 = vmatpush1.bf16.msra.mxu0 %v5267
    %5382 = vmatprep.subr.bf16.mxu0 %v5263
    %5383 = vmatpush1.bf16.msra.mxu0 %v5262
    %5384 = vmatprep.subr.bf16.mxu0 %v5258
    %5385 = vmatpush1.bf16.msra.mxu0 %v5257
    %5386 = vmatprep.subr.bf16.mxu0 %v5253
    %5387 = vmatpush1.bf16.msra.mxu0 %v5252
    %5388 = vmatprep.subr.bf16.mxu0 %v5248
    %5389 = vmatpush1.bf16.msra.mxu0 %v5247
    %5390 = vmatprep.subr.bf16.mxu0 %v5243
    %5391 = vmatpush1.bf16.msra.mxu0 %v5242
    %5392 = vmatprep.subr.bf16.mxu0 %v5238
    %5393 = vmatpush1.bf16.msra.mxu0 %v5237
    %5394 = vmatprep.subr.bf16.mxu0 %v5233
    %5395 = vmatpush1.bf16.msra.mxu0 %v5232
    %5396 = vmatprep.subr.bf16.mxu0 0
    %5397 = vmatpush2.bf16.msra.mxu0 0
    %5398 = vmatprep.subr.bf16.mxu0 0
    %5399 = vmatpush2.bf16.msra.mxu0 0
    %5400 = vmatprep.subr.bf16.mxu0 0
    %5401 = vmatpush2.bf16.msra.mxu0 0
    %5402 = vmatprep.subr.bf16.mxu0 0
    %5403 = vmatpush2.bf16.msra.mxu0 0
    %5404 = vmatprep.subr.bf16.mxu0 0
    %5405 = vmatpush2.bf16.msra.mxu0 0
    %5406 = vmatprep.subr.bf16.mxu0 0
    %5407 = vmatpush2.bf16.msra.mxu0 0
    %5408 = vmatprep.subr.bf16.mxu0 0
    %5409 = vmatpush2.bf16.msra.mxu0 0
    %5410 = vmatprep.subr.bf16.mxu0 %v5273
    %5411 = vmatpush2.bf16.msra.mxu0 %v5272
    %5412 = vmatprep.mubr.bf16.mxu0 %v5322
    %5413 = vmatmul.mubr.bf16.gmra.mxu0 %v5080
    %v5414 = vpop.f32.mrf.mxu0
    %v5415 = vadd.f32 0.0, %v5414
    %v5416 = vpop.f32.mrf.mxu0
    %v5417 = vadd.f32 0.0, %v5416
    %v5418 = vpop.f32.mrf.mxu0
    %v5419 = vadd.f32 0.0, %v5418
    %v5420 = vpop.f32.mrf.mxu0
    %v5421 = vadd.f32 0.0, %v5420
    %5422 = vmatprep.mubr.bf16.mxu0 %v5325
    %5423 = vmatmul.mubr.bf16.gmra.mxu0 %v5082
    %v5424 = vpop.f32.mrf.mxu0
    %v5425 = vadd.f32 0.0, %v5424
    %v5426 = vpop.f32.mrf.mxu0
    %v5427 = vadd.f32 0.0, %v5426
    %v5428 = vpop.f32.mrf.mxu0
    %v5429 = vadd.f32 0.0, %v5428
    %v5430 = vpop.f32.mrf.mxu0
    %v5431 = vadd.f32 0.0, %v5430
    %5432 = vdwg.mxu0
    %5433 = vmatprep.subr.bf16.mxu0 0
    %5434 = vmatpush1.bf16.msra.mxu0 %v5269
    %5435 = vmatprep.subr.bf16.mxu0 0
    %5436 = vmatpush1.bf16.msra.mxu0 %v5264
    %5437 = vmatprep.subr.bf16.mxu0 0
    %5438 = vmatpush1.bf16.msra.mxu0 %v5259
    %5439 = vmatprep.subr.bf16.mxu0 0
    %5440 = vmatpush1.bf16.msra.mxu0 %v5254
    %5441 = vmatprep.subr.bf16.mxu0 0
    %5442 = vmatpush1.bf16.msra.mxu0 %v5249
    %5443 = vmatprep.subr.bf16.mxu0 0
    %5444 = vmatpush1.bf16.msra.mxu0 %v5244
    %5445 = vmatprep.subr.bf16.mxu0 0
    %5446 = vmatpush1.bf16.msra.mxu0 %v5239
    %5447 = vmatprep.subr.bf16.mxu0 0
    %5448 = vmatpush1.bf16.msra.mxu0 %v5234
    %5449 = vmatprep.subr.bf16.mxu0 0
    %5450 = vmatpush2.bf16.msra.mxu0 0
    %5451 = vmatprep.subr.bf16.mxu0 0
    %5452 = vmatpush2.bf16.msra.mxu0 0
    %5453 = vmatprep.subr.bf16.mxu0 0
    %5454 = vmatpush2.bf16.msra.mxu0 0
    %5455 = vmatprep.subr.bf16.mxu0 0
    %5456 = vmatpush2.bf16.msra.mxu0 0
    %5457 = vmatprep.subr.bf16.mxu0 0
    %5458 = vmatpush2.bf16.msra.mxu0 0
    %5459 = vmatprep.subr.bf16.mxu0 0
    %5460 = vmatpush2.bf16.msra.mxu0 0
    %5461 = vmatprep.subr.bf16.mxu0 0
    %5462 = vmatpush2.bf16.msra.mxu0 0
    %5463 = vmatprep.subr.bf16.mxu0 0
    %5464 = vmatpush2.bf16.msra.mxu0 %v5274
    %5465 = vmatprep.mubr.bf16.mxu0 %v5322
    %5466 = vmatmul.mubr.bf16.gmra.mxu0 %v5080
    %v5467 = vpop.f32.mrf.mxu0
    %v5468 = vadd.f32 0.0, %v5467
    %v5469 = vpop.f32.mrf.mxu0
    %v5470 = vpop.f32.mrf.mxu0
    %v5471 = vadd.f32 0.0, %v5470
    %v5472 = vpop.f32.mrf.mxu0
    %5473 = vmatprep.mubr.bf16.mxu0 %v5325
    %5474 = vmatmul.mubr.bf16.gmra.mxu0 %v5082
    %v5475 = vpop.f32.mrf.mxu0
    %v5476 = vadd.f32 0.0, %v5475
    %v5477 = vpop.f32.mrf.mxu0
    %v5478 = vpop.f32.mrf.mxu0
    %v5479 = vadd.f32 0.0, %v5478
    %v5480 = vpop.f32.mrf.mxu0
    %5481 = vdwg.mxu0
    %5482 = vst [vmem:[#allocation8] sm:$0xff] %v5362
    %5483 = vst [vmem:[#allocation8 + $0x8] sm:$0xff] %v5364
    %5484 = vst [vmem:[#allocation8 + $0x10] sm:$0xff] %v5415
    %5485 = vst [vmem:[#allocation8 + $0x18] sm:$0xff] %v5417
    %vm5486 = vcmask 916480
    %5487 = vst.msk [vmem:[#allocation8 + $0x20] sm:$0xff] %vm5486, %v5468
    %5488 = vst [vmem:[#allocation8 + $0x28] sm:$0xff] %v5366
    %5489 = vst [vmem:[#allocation8 + $0x30] sm:$0xff] %v5368
    %5490 = vst [vmem:[#allocation8 + $0x38] sm:$0xff] %v5419
    %5491 = vst [vmem:[#allocation8 + $0x40] sm:$0xff] %v5421
    %5492 = vst.msk [vmem:[#allocation8 + $0x48] sm:$0xff] %vm5486, %v5471
    %5493 = vst [vmem:[#allocation8 + $0x50] sm:$0xff] %v5372
    %5494 = vst [vmem:[#allocation8 + $0x58] sm:$0xff] %v5374
    %5495 = vst [vmem:[#allocation8 + $0x60] sm:$0xff] %v5425
    %5496 = vst [vmem:[#allocation8 + $0x68] sm:$0xff] %v5427
    %5497 = vst.msk [vmem:[#allocation8 + $0x70] sm:$0xff] %vm5486, %v5476
    %5498 = vst [vmem:[#allocation8 + $0x78] sm:$0xff] %v5376
    %5499 = vst [vmem:[#allocation8 + $0x80] sm:$0xff] %v5378
    %5500 = vst [vmem:[#allocation8 + $0x88] sm:$0xff] %v5429
    %5501 = vst [vmem:[#allocation8 + $0x90] sm:$0xff] %v5431
    %5502 = vst.msk [vmem:[#allocation8 + $0x98] sm:$0xff] %vm5486, %v5479
    %v5503 = vld [vmem:[#allocation8] sm:$0xff]
    %v5504 = vld [vmem:[#allocation8 + $0x8] sm:$0xff]
    %v5505 = vld [vmem:[#allocation8 + $0x10] sm:$0xff]
    %v5506 = vld [vmem:[#allocation8 + $0x28] sm:$0xff]
    %v5507 = vld [vmem:[#allocation8 + $0x30] sm:$0xff]
    %v5508 = vld [vmem:[#allocation8 + $0x38] sm:$0xff]
    %v5509 = vld [vmem:[#allocation8 + $0x50] sm:$0xff]
    %v5510 = vld [vmem:[#allocation8 + $0x58] sm:$0xff]
    %v5511 = vld [vmem:[#allocation8 + $0x60] sm:$0xff]
    %v5512 = vld [vmem:[#allocation8 + $0x78] sm:$0xff]
    %v5513 = vld [vmem:[#allocation8 + $0x80] sm:$0xff]
    %v5514 = vld [vmem:[#allocation8 + $0x88] sm:$0xff]
    %v5515 = vld [vmem:[%s6] sm:$0xff]
    %v5516 = vld [vmem:[%s6 + $0x8] sm:$0xff]
    %v5517 = vld [vmem:[%s6 + $0x10] sm:$0xff]
    %v5518 = vld [vmem:[%s6 + $0x18] sm:$0xff]
    %5520 = vset.pattern.permute.xlu0 0
    %5521 = vperm.xlu0 %5520, %v5515
    %v5522 = vpop.permute.xlu0 %5521
    %5525 = vset.pattern.permute.xlu0 0
    %5526 = vperm.xlu0 %5525, %v5516
    %v5527 = vpop.permute.xlu0 %5526
    %5530 = vset.pattern.permute.xlu0 0
    %5531 = vperm.xlu0 %5530, %v5517
    %v5532 = vpop.permute.xlu0 %5531
    %5535 = vset.pattern.permute.xlu0 0
    %5536 = vperm.xlu0 %5535, %v5518
    %v5537 = vpop.permute.xlu0 %5536
    %v5539 = vadd.f32 %v5503, %v5522
    %v5540 = vadd.f32 %v5504, %v5522
    %v5541 = vadd.f32 %v5505, %v5522
    %v5542 = vadd.f32 %v5506, %v5527
    %v5543 = vadd.f32 %v5507, %v5527
    %v5544 = vadd.f32 %v5508, %v5527
    %v5545 = vadd.f32 %v5509, %v5532
    %v5546 = vadd.f32 %v5510, %v5532
    %v5547 = vadd.f32 %v5511, %v5532
    %v5548 = vadd.f32 %v5512, %v5537
    %v5549 = vadd.f32 %v5513, %v5537
    %v5550 = vadd.f32 %v5514, %v5537
    %v5551 = vmax.f32 %v5539, 0.0
    %v5552 = vmax.f32 %v5540, 0.0
    %v5553 = vmax.f32 %v5541, 0.0
    %v5554 = vmax.f32 %v5542, 0.0
    %v5555 = vmax.f32 %v5543, 0.0
    %v5556 = vmax.f32 %v5544, 0.0
    %v5557 = vmax.f32 %v5545, 0.0
    %v5558 = vmax.f32 %v5546, 0.0
    %v5559 = vmax.f32 %v5547, 0.0
    %v5560 = vmax.f32 %v5548, 0.0
    %v5561 = vmax.f32 %v5549, 0.0
    %v5562 = vmax.f32 %v5550, 0.0
    %v5564 = vlaneseq
    %v5565 = vshrl.u32 %v5564, 7
    %v5566 = vsub.s32 0, %v5565
    %v5567 = vrot.slane %v66, %v5566
    %v5568 = vlaneseq
    %v5569 = vshrl.u32 %v5568, 7
    %v5570 = vsub.s32 1, %v5569
    %v5571 = vrot.slane %v66, %v5570
    %v5572 = vlaneseq
    %v5573 = vshrl.u32 %v5572, 7
    %v5574 = vsub.s32 2, %v5573
    %v5575 = vrot.slane %v66, %v5574
    %v5579 = vmul.f32 %v5551, %v5567
    %v5580 = vmul.f32 %v5552, %v5571
    %v5581 = vmul.f32 %v5553, %v5575
    %v5582 = vmul.f32 %v5554, %v5567
    %v5583 = vmul.f32 %v5555, %v5571
    %v5584 = vmul.f32 %v5556, %v5575
    %v5585 = vmul.f32 %v5557, %v5567
    %v5586 = vmul.f32 %v5558, %v5571
    %v5587 = vmul.f32 %v5559, %v5575
    %v5588 = vmul.f32 %v5560, %v5567
    %v5589 = vmul.f32 %v5561, %v5571
    %v5590 = vmul.f32 %v5562, %v5575
    %v5591 = vadd.f32 %v5579, %v5580
    %vm5592 = vcmask 457728
    %v5593 = vsel %vm5592, %v5581, 0.0
    %v5594 = vadd.f32 %v5591, %v5593
    %5595 = vadd.xlane.f32.xlu0 %v5594
    %v5596 = vpop.xlane.xlu0 %5595
    %v5597 = vadd.f32 %v5582, %v5583
    %v5598 = vsel %vm5592, %v5584, 0.0
    %v5599 = vadd.f32 %v5597, %v5598
    %5600 = vadd.xlane.f32.xlu0 %v5599
    %v5601 = vpop.xlane.xlu0 %5600
    %v5602 = vadd.f32 %v5585, %v5586
    %v5603 = vsel %vm5592, %v5587, 0.0
    %v5604 = vadd.f32 %v5602, %v5603
    %5605 = vadd.xlane.f32.xlu0 %v5604
    %v5606 = vpop.xlane.xlu0 %5605
    %v5607 = vadd.f32 %v5588, %v5589
    %v5608 = vsel %vm5592, %v5590, 0.0
    %v5609 = vadd.f32 %v5607, %v5608
    %5610 = vadd.xlane.f32.xlu0 %v5609
    %v5611 = vpop.xlane.xlu0 %5610
    %v5612 = vmul.f32 %v5596, 0.005
    %v5613 = vmul.f32 %v5601, 0.005
    %v5614 = vmul.f32 %v5606, 0.005
    %v5615 = vmul.f32 %v5611, 0.005
    %v5616 = vsub.f32 %v5551, %v5612
    %v5617 = vsub.f32 %v5552, %v5612
    %v5618 = vsub.f32 %v5553, %v5612
    %v5619 = vsub.f32 %v5554, %v5613
    %v5620 = vsub.f32 %v5555, %v5613
    %v5621 = vsub.f32 %v5556, %v5613
    %v5622 = vsub.f32 %v5557, %v5614
    %v5623 = vsub.f32 %v5558, %v5614
    %v5624 = vsub.f32 %v5559, %v5614
    %v5625 = vsub.f32 %v5560, %v5615
    %v5626 = vsub.f32 %v5561, %v5615
    %v5627 = vsub.f32 %v5562, %v5615
    %v5628 = vmul.f32 %v5616, %v5567
    %v5629 = vmul.f32 %v5617, %v5571
    %v5630 = vmul.f32 %v5618, %v5575
    %v5631 = vmul.f32 %v5619, %v5567
    %v5632 = vmul.f32 %v5620, %v5571
    %v5633 = vmul.f32 %v5621, %v5575
    %v5634 = vmul.f32 %v5622, %v5567
    %v5635 = vmul.f32 %v5623, %v5571
    %v5636 = vmul.f32 %v5624, %v5575
    %v5637 = vmul.f32 %v5625, %v5567
    %v5638 = vmul.f32 %v5626, %v5571
    %v5639 = vmul.f32 %v5627, %v5575
    %v5640 = vmul.f32 %v5628, %v5628
    %v5641 = vmul.f32 %v5629, %v5629
    %v5642 = vmul.f32 %v5630, %v5630
    %v5643 = vmul.f32 %v5631, %v5631
    %v5644 = vmul.f32 %v5632, %v5632
    %v5645 = vmul.f32 %v5633, %v5633
    %v5646 = vmul.f32 %v5634, %v5634
    %v5647 = vmul.f32 %v5635, %v5635
    %v5648 = vmul.f32 %v5636, %v5636
    %v5649 = vmul.f32 %v5637, %v5637
    %v5650 = vmul.f32 %v5638, %v5638
    %v5651 = vmul.f32 %v5639, %v5639
    %v5652 = vadd.f32 %v5640, %v5641
    %v5653 = vsel %vm5592, %v5642, 0.0
    %v5654 = vadd.f32 %v5652, %v5653
    %5655 = vadd.xlane.f32.xlu0 %v5654
    %v5656 = vpop.xlane.xlu0 %5655
    %v5657 = vadd.f32 %v5643, %v5644
    %v5658 = vsel %vm5592, %v5645, 0.0
    %v5659 = vadd.f32 %v5657, %v5658
    %5660 = vadd.xlane.f32.xlu0 %v5659
    %v5661 = vpop.xlane.xlu0 %5660
    %v5662 = vadd.f32 %v5646, %v5647
    %v5663 = vsel %vm5592, %v5648, 0.0
    %v5664 = vadd.f32 %v5662, %v5663
    %5665 = vadd.xlane.f32.xlu0 %v5664
    %v5666 = vpop.xlane.xlu0 %5665
    %v5667 = vadd.f32 %v5649, %v5650
    %v5668 = vsel %vm5592, %v5651, 0.0
    %v5669 = vadd.f32 %v5667, %v5668
    %5670 = vadd.xlane.f32.xlu0 %v5669
    %v5671 = vpop.xlane.xlu0 %5670
    %v5672 = vmul.f32 %v5656, 0.005
    %v5673 = vmul.f32 %v5661, 0.005
    %v5674 = vmul.f32 %v5666, 0.005
    %v5675 = vmul.f32 %v5671, 0.005
    %v5676 = vadd.f32 %v5672, 1e-05
    %v5677 = vadd.f32 %v5673, 1e-05
    %v5678 = vadd.f32 %v5674, 1e-05
    %v5679 = vadd.f32 %v5675, 1e-05
    %v5680 = vrsqrt.pop %v5676
    %v5681 = vrsqrt.pop %v5677
    %v5682 = vrsqrt.pop %v5678
    %v5683 = vrsqrt.pop %v5679
    %v5684 = vmul.f32 %v5628, %v5680
    %v5685 = vmul.f32 %v5629, %v5680
    %v5686 = vmul.f32 %v5630, %v5680
    %v5687 = vmul.f32 %v5631, %v5681
    %v5688 = vmul.f32 %v5632, %v5681
    %v5689 = vmul.f32 %v5633, %v5681
    %v5690 = vmul.f32 %v5634, %v5682
    %v5691 = vmul.f32 %v5635, %v5682
    %v5692 = vmul.f32 %v5636, %v5682
    %v5693 = vmul.f32 %v5637, %v5683
    %v5694 = vmul.f32 %v5638, %v5683
    %v5695 = vmul.f32 %v5639, %v5683
    %v5697 = vlaneseq
    %v5698 = vshrl.u32 %v5697, 7
    %v5699 = vsub.s32 0, %v5698
    %v5700 = vrot.slane %v68, %v5699
    %v5701 = vlaneseq
    %v5702 = vshrl.u32 %v5701, 7
    %v5703 = vsub.s32 1, %v5702
    %v5704 = vrot.slane %v68, %v5703
    %v5705 = vlaneseq
    %v5706 = vshrl.u32 %v5705, 7
    %v5707 = vsub.s32 2, %v5706
    %v5708 = vrot.slane %v68, %v5707
    %v5712 = vmul.f32 %v5684, %v5700
    %v5713 = vmul.f32 %v5685, %v5704
    %v5714 = vmul.f32 %v5686, %v5708
    %v5715 = vmul.f32 %v5687, %v5700
    %v5716 = vmul.f32 %v5688, %v5704
    %v5717 = vmul.f32 %v5689, %v5708
    %v5718 = vmul.f32 %v5690, %v5700
    %v5719 = vmul.f32 %v5691, %v5704
    %v5720 = vmul.f32 %v5692, %v5708
    %v5721 = vmul.f32 %v5693, %v5700
    %v5722 = vmul.f32 %v5694, %v5704
    %v5723 = vmul.f32 %v5695, %v5708
    %v5725 = vlaneseq
    %v5726 = vshrl.u32 %v5725, 7
    %v5727 = vsub.s32 0, %v5726
    %v5728 = vrot.slane %v70, %v5727
    %v5729 = vlaneseq
    %v5730 = vshrl.u32 %v5729, 7
    %v5731 = vsub.s32 1, %v5730
    %v5732 = vrot.slane %v70, %v5731
    %v5733 = vlaneseq
    %v5734 = vshrl.u32 %v5733, 7
    %v5735 = vsub.s32 2, %v5734
    %v5736 = vrot.slane %v70, %v5735
    %v5740 = vadd.f32 %v5712, %v5728
    %v5741 = vadd.f32 %v5713, %v5732
    %v5742 = vadd.f32 %v5714, %v5736
    %v5743 = vadd.f32 %v5715, %v5728
    %v5744 = vadd.f32 %v5716, %v5732
    %v5745 = vadd.f32 %v5717, %v5736
    %v5746 = vadd.f32 %v5718, %v5728
    %v5747 = vadd.f32 %v5719, %v5732
    %v5748 = vadd.f32 %v5720, %v5736
    %v5749 = vadd.f32 %v5721, %v5728
    %v5750 = vadd.f32 %v5722, %v5732
    %v5751 = vadd.f32 %v5723, %v5736
    %5752 = vst [vmem:[#allocation9] sm:$0xff] %v5740
    %5753 = vst [vmem:[#allocation9 + $0x8] sm:$0xff] %v5741
    %5754 = vst.msk [vmem:[#allocation9 + $0x10] sm:$0xff] %vm5592, %v5742
    %5755 = vst [vmem:[#allocation9 + $0x18] sm:$0xff] %v5743
    %5756 = vst [vmem:[#allocation9 + $0x20] sm:$0xff] %v5744
    %5757 = vst.msk [vmem:[#allocation9 + $0x28] sm:$0xff] %vm5592, %v5745
    %5758 = vst [vmem:[#allocation9 + $0x30] sm:$0xff] %v5746
    %5759 = vst [vmem:[#allocation9 + $0x38] sm:$0xff] %v5747
    %5760 = vst.msk [vmem:[#allocation9 + $0x40] sm:$0xff] %vm5592, %v5748
    %5761 = vst [vmem:[#allocation9 + $0x48] sm:$0xff] %v5749
    %5762 = vst [vmem:[#allocation9 + $0x50] sm:$0xff] %v5750
    %5763 = vst.msk [vmem:[#allocation9 + $0x58] sm:$0xff] %vm5592, %v5751
    %v5764 = vld [vmem:[#allocation9] sm:$0xff]
    %v5765 = vld [vmem:[#allocation9 + $0x18] sm:$0xff]
    %v5766 = vld [vmem:[#allocation9 + $0x30] sm:$0xff]
    %v5767 = vld [vmem:[#allocation9 + $0x48] sm:$0xff]
    %5772 = vrot.lane.b32.xlu0 %v5764, 127
    %v5773 = vpop.permute.xlu0 %5772
    %5774 = vrot.lane.b32.xlu0 %v5765, 127
    %v5775 = vpop.permute.xlu0 %5774
    %5776 = vrot.lane.b32.xlu0 %v5766, 127
    %v5777 = vpop.permute.xlu0 %5776
    %5778 = vrot.lane.b32.xlu0 %v5767, 127
    %v5779 = vpop.permute.xlu0 %5778
    %v5784 = vmax.f32 %v5764, %v5773
    %v5785 = vmax.f32 %v5765, %v5775
    %v5786 = vmax.f32 %v5766, %v5777
    %v5787 = vmax.f32 %v5767, %v5779
    %v5788 = vld [vmem:[#allocation9 + $0x8] sm:$0xff]
    %v5789 = vld [vmem:[#allocation9 + $0x20] sm:$0xff]
    %v5790 = vld [vmem:[#allocation9 + $0x38] sm:$0xff]
    %v5791 = vld [vmem:[#allocation9 + $0x50] sm:$0xff]
    %5796 = vrot.lane.b32.xlu0 %v5788, 127
    %v5797 = vpop.permute.xlu0 %5796
    %5798 = vrot.lane.b32.xlu0 %v5789, 127
    %v5799 = vpop.permute.xlu0 %5798
    %5800 = vrot.lane.b32.xlu0 %v5790, 127
    %v5801 = vpop.permute.xlu0 %5800
    %5802 = vrot.lane.b32.xlu0 %v5791, 127
    %v5803 = vpop.permute.xlu0 %5802
    %v5804 = vsel %vm408, %v5773, %v5797
    %v5805 = vsel %vm408, %v5775, %v5799
    %v5806 = vsel %vm408, %v5777, %v5801
    %v5807 = vsel %vm408, %v5779, %v5803
    %v5816 = vmax.f32 %v5764, %v5804
    %v5817 = vmax.f32 %v5788, %v5797
    %v5818 = vmax.f32 %v5765, %v5805
    %v5819 = vmax.f32 %v5789, %v5799
    %v5820 = vmax.f32 %v5766, %v5806
    %v5821 = vmax.f32 %v5790, %v5801
    %v5822 = vmax.f32 %v5767, %v5807
    %v5823 = vmax.f32 %v5791, %v5803
    %5832 = vrot.lane.b32.xlu0 %v5816, 76
    %v5833 = vpop.permute.xlu0 %5832
    %5834 = vrot.lane.b32.xlu0 %v5817, 76
    %v5835 = vpop.permute.xlu0 %5834
    %5836 = vrot.lane.b32.xlu0 %v5818, 76
    %v5837 = vpop.permute.xlu0 %5836
    %5838 = vrot.lane.b32.xlu0 %v5819, 76
    %v5839 = vpop.permute.xlu0 %5838
    %5840 = vrot.lane.b32.xlu0 %v5820, 76
    %v5841 = vpop.permute.xlu0 %5840
    %5842 = vrot.lane.b32.xlu0 %v5821, 76
    %v5843 = vpop.permute.xlu0 %5842
    %5844 = vrot.lane.b32.xlu0 %v5822, 76
    %v5845 = vpop.permute.xlu0 %5844
    %5846 = vrot.lane.b32.xlu0 %v5823, 76
    %v5847 = vpop.permute.xlu0 %5846
    %v5848 = vsel %vm194, %v5833, %v5835
    %v5849 = vsel %vm194, %v5837, %v5839
    %v5850 = vsel %vm194, %v5841, %v5843
    %v5851 = vsel %vm194, %v5845, %v5847
    %v5856 = vmax.f32 %v5784, %v5848
    %v5857 = vmax.f32 %v5785, %v5849
    %v5858 = vmax.f32 %v5786, %v5850
    %v5859 = vmax.f32 %v5787, %v5851
    %v5860 = vpack.c.bf16 %v5857, %v5856
    %v5861 = vpack.c.bf16 %v5859, %v5858
    %v5862 = vld [vmem:[%s8] sm:$0xf]
    %v5863 = vld [vmem:[%s8 + $0x4] sm:$0xf]
    %v5864 = vld [vmem:[%s8 + $0x8] sm:$0xf]
    %v5865 = vld [vmem:[%s8 + $0xc] sm:$0xf]
    %v5866 = vld [vmem:[%s8 + $0x10] sm:$0xf]
    %v5867 = vld [vmem:[%s8 + $0x14] sm:$0xf]
    %v5868 = vld [vmem:[%s8 + $0x18] sm:$0x3]
    %5871 = vrot.lane.b32.xlu0 %v5860, 76
    %v5872 = vpop.permute.xlu0 %5871
    %5873 = vrot.lane.b32.xlu0 %v5861, 76
    %v5874 = vpop.permute.xlu0 %5873
    %v5882 = vunpack.c.l.b16 %v5862
    %v5883 = vunpack.c.l.b16 %v5863
    %v5884 = vunpack.c.l.b16 %v5864
    %v5885 = vunpack.c.l.b16 %v5865
    %v5886 = vunpack.c.l.b16 %v5866
    %v5887 = vunpack.c.l.b16 %v5867
    %v5888 = vunpack.c.l.b16 %v5868
    %v5889 = vpack.c.b16 %v5883, %v5882
    %v5890 = vpack.c.b16 %v5885, %v5884
    %v5891 = vpack.c.b16 %v5887, %v5886
    %v5892 = vpack.c.b16 %v5888, %v5888
    %v5897 = vsel %vm116, %v5872, 0
    %v5900 = vsel %vm116, %v5874, 0
    %vm5902 = vcmask 1041408
    %v5904 = vsel %vm5902, %v5892, 0
    %5906 = vmatprep.subr.bf16.mxu0 0
    %5907 = vmatpush1.bf16.msra.mxu0 0
    %5908 = vmatprep.subr.bf16.mxu0 0
    %5909 = vmatpush1.bf16.msra.mxu0 0
    %5910 = vmatprep.subr.bf16.mxu0 0
    %5911 = vmatpush1.bf16.msra.mxu0 0
    %5912 = vmatprep.subr.bf16.mxu0 0
    %5913 = vmatpush1.bf16.msra.mxu0 0
    %5914 = vmatprep.subr.bf16.mxu0 0
    %5915 = vmatpush1.bf16.msra.mxu0 %v5904
    %5916 = vmatprep.subr.bf16.mxu0 0
    %5917 = vmatpush1.bf16.msra.mxu0 %v5891
    %5918 = vmatprep.subr.bf16.mxu0 0
    %5919 = vmatpush1.bf16.msra.mxu0 %v5890
    %5920 = vmatprep.subr.bf16.mxu0 0
    %5921 = vmatpush1.bf16.msra.mxu0 %v5889
    %5922 = vmatprep.subr.bf16.mxu0 0
    %5923 = vmatpush2.bf16.msra.mxu0 0
    %5924 = vmatprep.subr.bf16.mxu0 0
    %5925 = vmatpush2.bf16.msra.mxu0 0
    %5926 = vmatprep.subr.bf16.mxu0 0
    %5927 = vmatpush2.bf16.msra.mxu0 0
    %5928 = vmatprep.subr.bf16.mxu0 0
    %5929 = vmatpush2.bf16.msra.mxu0 0
    %5930 = vmatprep.subr.bf16.mxu0 0
    %5931 = vmatpush2.bf16.msra.mxu0 0
    %5932 = vmatprep.subr.bf16.mxu0 0
    %5933 = vmatpush2.bf16.msra.mxu0 0
    %5934 = vmatprep.subr.bf16.mxu0 0
    %5935 = vmatpush2.bf16.msra.mxu0 0
    %5936 = vmatprep.subr.bf16.mxu0 0
    %5937 = vmatpush2.bf16.msra.mxu0 0
    %5938 = vmatprep.mubr.bf16.mxu0 0
    %5939 = vmatmul.mubr.bf16.gmra.mxu0 %v5897
    %v5940 = vpop.f32.mrf.mxu0
    %v5941 = vadd.f32 0.0, %v5940
    %v5942 = vpop.f32.mrf.mxu0
    %v5943 = vpop.f32.mrf.mxu0
    %v5944 = vadd.f32 0.0, %v5943
    %v5945 = vpop.f32.mrf.mxu0
    %5946 = vmatprep.mubr.bf16.mxu0 0
    %5947 = vmatmul.mubr.bf16.gmra.mxu0 %v5900
    %v5948 = vpop.f32.mrf.mxu0
    %v5949 = vadd.f32 0.0, %v5948
    %v5950 = vpop.f32.mrf.mxu0
    %v5951 = vpop.f32.mrf.mxu0
    %v5952 = vadd.f32 0.0, %v5951
    %v5953 = vpop.f32.mrf.mxu0
    %5954 = vdwg.mxu0
    %5955 = vst.msk [vmem:[#allocation10] sm:$0xff] %vm832, %v5941
    %5956 = vst.msk [vmem:[#allocation10 + $0x8] sm:$0xff] %vm832, %v5944
    %5957 = vst.msk [vmem:[#allocation10 + $0x10] sm:$0xff] %vm832, %v5949
    %5958 = vst.msk [vmem:[#allocation10 + $0x18] sm:$0xff] %vm832, %v5952
    %v5959 = vld [vmem:[#allocation9 + $0x8] sm:$0xff]
    %v5960 = vld [vmem:[#allocation9 + $0x20] sm:$0xff]
    %v5961 = vld [vmem:[#allocation9 + $0x38] sm:$0xff]
    %v5962 = vld [vmem:[#allocation9 + $0x50] sm:$0xff]
    %5967 = vrot.lane.b32.xlu0 %v5959, 127
    %v5968 = vpop.permute.xlu0 %5967
    %5969 = vrot.lane.b32.xlu0 %v5960, 127
    %v5970 = vpop.permute.xlu0 %5969
    %5971 = vrot.lane.b32.xlu0 %v5961, 127
    %v5972 = vpop.permute.xlu0 %5971
    %5973 = vrot.lane.b32.xlu0 %v5962, 127
    %v5974 = vpop.permute.xlu0 %5973
    %v5979 = vmax.f32 %v5959, %v5968
    %v5980 = vmax.f32 %v5960, %v5970
    %v5981 = vmax.f32 %v5961, %v5972
    %v5982 = vmax.f32 %v5962, %v5974
    %v5983 = vld [vmem:[#allocation9 + $0x10] sm:$0xff]
    %v5984 = vld [vmem:[#allocation9 + $0x28] sm:$0xff]
    %v5985 = vld [vmem:[#allocation9 + $0x40] sm:$0xff]
    %v5986 = vld [vmem:[#allocation9 + $0x58] sm:$0xff]
    %5991 = vrot.lane.b32.xlu0 %v5983, 127
    %v5992 = vpop.permute.xlu0 %5991
    %5993 = vrot.lane.b32.xlu0 %v5984, 127
    %v5994 = vpop.permute.xlu0 %5993
    %5995 = vrot.lane.b32.xlu0 %v5985, 127
    %v5996 = vpop.permute.xlu0 %5995
    %5997 = vrot.lane.b32.xlu0 %v5986, 127
    %v5998 = vpop.permute.xlu0 %5997
    %v5999 = vsel %vm408, %v5968, %v5992
    %v6000 = vsel %vm408, %v5970, %v5994
    %v6001 = vsel %vm408, %v5972, %v5996
    %v6002 = vsel %vm408, %v5974, %v5998
    %v6011 = vmax.f32 %v5959, %v5999
    %v6012 = vmax.f32 %v5983, %v5992
    %v6013 = vmax.f32 %v5960, %v6000
    %v6014 = vmax.f32 %v5984, %v5994
    %v6015 = vmax.f32 %v5961, %v6001
    %v6016 = vmax.f32 %v5985, %v5996
    %v6017 = vmax.f32 %v5962, %v6002
    %v6018 = vmax.f32 %v5986, %v5998
    %6027 = vrot.lane.b32.xlu0 %v6011, 76
    %v6028 = vpop.permute.xlu0 %6027
    %6029 = vrot.lane.b32.xlu0 %v6012, 76
    %v6030 = vpop.permute.xlu0 %6029
    %6031 = vrot.lane.b32.xlu0 %v6013, 76
    %v6032 = vpop.permute.xlu0 %6031
    %6033 = vrot.lane.b32.xlu0 %v6014, 76
    %v6034 = vpop.permute.xlu0 %6033
    %6035 = vrot.lane.b32.xlu0 %v6015, 76
    %v6036 = vpop.permute.xlu0 %6035
    %6037 = vrot.lane.b32.xlu0 %v6016, 76
    %v6038 = vpop.permute.xlu0 %6037
    %6039 = vrot.lane.b32.xlu0 %v6017, 76
    %v6040 = vpop.permute.xlu0 %6039
    %6041 = vrot.lane.b32.xlu0 %v6018, 76
    %v6042 = vpop.permute.xlu0 %6041
    %v6043 = vsel %vm194, %v6028, %v6030
    %v6044 = vsel %vm194, %v6032, %v6034
    %v6045 = vsel %vm194, %v6036, %v6038
    %v6046 = vsel %vm194, %v6040, %v6042
    %v6051 = vmax.f32 %v5979, %v6043
    %v6052 = vmax.f32 %v5980, %v6044
    %v6053 = vmax.f32 %v5981, %v6045
    %v6054 = vmax.f32 %v5982, %v6046
    %v6055 = vpack.c.bf16 %v6052, %v6051
    %v6056 = vpack.c.bf16 %v6054, %v6053
    %v6057 = vld [vmem:[%s8] sm:$0xf]
    %v6058 = vld [vmem:[%s8 + $0x4] sm:$0xf]
    %v6059 = vld [vmem:[%s8 + $0x8] sm:$0xf]
    %v6060 = vld [vmem:[%s8 + $0xc] sm:$0xf]
    %v6061 = vld [vmem:[%s8 + $0x10] sm:$0xf]
    %v6062 = vld [vmem:[%s8 + $0x14] sm:$0xf]
    %v6063 = vld [vmem:[%s8 + $0x18] sm:$0x3]
    %6066 = vrot.lane.b32.xlu0 %v6055, 100
    %v6067 = vpop.permute.xlu0 %6066
    %6068 = vrot.lane.b32.xlu0 %v6056, 100
    %v6069 = vpop.permute.xlu0 %6068
    %v6077 = vunpack.c.l.b16 %v6057
    %v6078 = vunpack.c.l.b16 %v6058
    %v6079 = vunpack.c.l.b16 %v6059
    %v6080 = vunpack.c.l.b16 %v6060
    %v6081 = vunpack.c.l.b16 %v6061
    %v6082 = vunpack.c.l.b16 %v6062
    %v6083 = vunpack.c.l.b16 %v6063
    %v6084 = vpack.c.b16 %v6078, %v6077
    %v6085 = vpack.c.b16 %v6080, %v6079
    %v6086 = vpack.c.b16 %v6082, %v6081
    %v6087 = vpack.c.b16 %v6083, %v6083
    %v6092 = vsel %vm116, %v6067, 0
    %v6095 = vsel %vm116, %v6069, 0
    %v6098 = vsel %vm5902, %v6087, 0
    %6100 = vmatprep.subr.bf16.mxu0 0
    %6101 = vmatpush1.bf16.msra.mxu0 0
    %6102 = vmatprep.subr.bf16.mxu0 0
    %6103 = vmatpush1.bf16.msra.mxu0 0
    %6104 = vmatprep.subr.bf16.mxu0 0
    %6105 = vmatpush1.bf16.msra.mxu0 0
    %6106 = vmatprep.subr.bf16.mxu0 0
    %6107 = vmatpush1.bf16.msra.mxu0 0
    %6108 = vmatprep.subr.bf16.mxu0 0
    %6109 = vmatpush1.bf16.msra.mxu0 %v6098
    %6110 = vmatprep.subr.bf16.mxu0 0
    %6111 = vmatpush1.bf16.msra.mxu0 %v6086
    %6112 = vmatprep.subr.bf16.mxu0 0
    %6113 = vmatpush1.bf16.msra.mxu0 %v6085
    %6114 = vmatprep.subr.bf16.mxu0 0
    %6115 = vmatpush1.bf16.msra.mxu0 %v6084
    %6116 = vmatprep.subr.bf16.mxu0 0
    %6117 = vmatpush2.bf16.msra.mxu0 0
    %6118 = vmatprep.subr.bf16.mxu0 0
    %6119 = vmatpush2.bf16.msra.mxu0 0
    %6120 = vmatprep.subr.bf16.mxu0 0
    %6121 = vmatpush2.bf16.msra.mxu0 0
    %6122 = vmatprep.subr.bf16.mxu0 0
    %6123 = vmatpush2.bf16.msra.mxu0 0
    %6124 = vmatprep.subr.bf16.mxu0 0
    %6125 = vmatpush2.bf16.msra.mxu0 0
    %6126 = vmatprep.subr.bf16.mxu0 0
    %6127 = vmatpush2.bf16.msra.mxu0 0
    %6128 = vmatprep.subr.bf16.mxu0 0
    %6129 = vmatpush2.bf16.msra.mxu0 0
    %6130 = vmatprep.subr.bf16.mxu0 0
    %6131 = vmatpush2.bf16.msra.mxu0 0
    %6132 = vmatprep.mubr.bf16.mxu0 0
    %6133 = vmatmul.mubr.bf16.gmra.mxu0 %v6092
    %v6134 = vpop.f32.mrf.mxu0
    %v6135 = vadd.f32 0.0, %v6134
    %v6136 = vpop.f32.mrf.mxu0
    %v6137 = vpop.f32.mrf.mxu0
    %v6138 = vadd.f32 0.0, %v6137
    %v6139 = vpop.f32.mrf.mxu0
    %6140 = vmatprep.mubr.bf16.mxu0 0
    %6141 = vmatmul.mubr.bf16.gmra.mxu0 %v6095
    %v6142 = vpop.f32.mrf.mxu0
    %v6143 = vadd.f32 0.0, %v6142
    %v6144 = vpop.f32.mrf.mxu0
    %v6145 = vpop.f32.mrf.mxu0
    %v6146 = vadd.f32 0.0, %v6145
    %v6147 = vpop.f32.mrf.mxu0
    %6148 = vdwg.mxu0
    %6153 = vrot.lane.b32.xlu0 %v6135, 25
    %v6154 = vpop.permute.xlu0 %6153
    %6155 = vrot.lane.b32.xlu0 %v6138, 25
    %v6156 = vpop.permute.xlu0 %6155
    %6157 = vrot.lane.b32.xlu0 %v6143, 25
    %v6158 = vpop.permute.xlu0 %6157
    %6159 = vrot.lane.b32.xlu0 %v6146, 25
    %v6160 = vpop.permute.xlu0 %6159
    %vm6165 = vcmask 408776
    %6166 = vst.msk [vmem:[#allocation10] sm:$0xff] %vm6165, %v6154
    %6167 = vst.msk [vmem:[#allocation10 + $0x8] sm:$0xff] %vm6165, %v6156
    %6168 = vst.msk [vmem:[#allocation10 + $0x10] sm:$0xff] %vm6165, %v6158
    %6169 = vst.msk [vmem:[#allocation10 + $0x18] sm:$0xff] %vm6165, %v6160
    %v6170 = vld [vmem:[#allocation10] sm:$0x1]
    %vm6171 = vcmask 401408
    %6172 = vst.msk [vmem:[#allocation11] sm:$0x1] %vm6171, %v6170
    %v6173 = vld [vmem:[#allocation10 + $0x1] sm:$0x1]
    %6174 = vst.msk [vmem:[#allocation11 + $0x2] sm:$0x1] %vm6171, %v6173
    %v6175 = vld [vmem:[#allocation10 + $0x2] sm:$0x1]
    %6176 = vst.msk [vmem:[#allocation11 + $0x4] sm:$0x1] %vm6171, %v6175
    %v6177 = vld [vmem:[#allocation10 + $0x3] sm:$0x1]
    %6178 = vst.msk [vmem:[#allocation11 + $0x6] sm:$0x1] %vm6171, %v6177
    %v6179 = vld [vmem:[#allocation10 + $0x4] sm:$0x1]
    %6180 = vst.msk [vmem:[#allocation11 + $0x8] sm:$0x1] %vm6171, %v6179
    %v6181 = vld [vmem:[#allocation10 + $0x5] sm:$0x1]
    %6182 = vst.msk [vmem:[#allocation11 + $0xa] sm:$0x1] %vm6171, %v6181
    %v6183 = vld [vmem:[#allocation10 + $0x6] sm:$0x1]
    %6184 = vst.msk [vmem:[#allocation11 + $0xc] sm:$0x1] %vm6171, %v6183
    %v6185 = vld [vmem:[#allocation10 + $0x7] sm:$0x1]
    %6186 = vst.msk [vmem:[#allocation11 + $0xe] sm:$0x1] %vm6171, %v6185
    %v6187 = vld [vmem:[#allocation10 + $0x8] sm:$0x1]
    %6188 = vst.msk [vmem:[#allocation11 + $0x10] sm:$0x1] %vm6171, %v6187
    %v6189 = vld [vmem:[#allocation10 + $0x9] sm:$0x1]
    %6190 = vst.msk [vmem:[#allocation11 + $0x12] sm:$0x1] %vm6171, %v6189
    %v6191 = vld [vmem:[#allocation10 + $0xa] sm:$0x1]
    %6192 = vst.msk [vmem:[#allocation11 + $0x14] sm:$0x1] %vm6171, %v6191
    %v6193 = vld [vmem:[#allocation10 + $0xb] sm:$0x1]
    %6194 = vst.msk [vmem:[#allocation11 + $0x16] sm:$0x1] %vm6171, %v6193
    %v6195 = vld [vmem:[#allocation10 + $0xc] sm:$0x1]
    %6196 = vst.msk [vmem:[#allocation11 + $0x18] sm:$0x1] %vm6171, %v6195
    %v6197 = vld [vmem:[#allocation10 + $0xd] sm:$0x1]
    %6198 = vst.msk [vmem:[#allocation11 + $0x1a] sm:$0x1] %vm6171, %v6197
    %v6199 = vld [vmem:[#allocation10 + $0xe] sm:$0x1]
    %6200 = vst.msk [vmem:[#allocation11 + $0x1c] sm:$0x1] %vm6171, %v6199
    %v6201 = vld [vmem:[#allocation10 + $0xf] sm:$0x1]
    %6202 = vst.msk [vmem:[#allocation11 + $0x1e] sm:$0x1] %vm6171, %v6201
    %v6203 = vld [vmem:[#allocation10 + $0x10] sm:$0x1]
    %6204 = vst.msk [vmem:[#allocation11 + $0x20] sm:$0x1] %vm6171, %v6203
    %v6205 = vld [vmem:[#allocation10 + $0x11] sm:$0x1]
    %6206 = vst.msk [vmem:[#allocation11 + $0x22] sm:$0x1] %vm6171, %v6205
    %v6207 = vld [vmem:[#allocation10 + $0x12] sm:$0x1]
    %6208 = vst.msk [vmem:[#allocation11 + $0x24] sm:$0x1] %vm6171, %v6207
    %v6209 = vld [vmem:[#allocation10 + $0x13] sm:$0x1]
    %6210 = vst.msk [vmem:[#allocation11 + $0x26] sm:$0x1] %vm6171, %v6209
    %v6211 = vld [vmem:[#allocation10 + $0x14] sm:$0x1]
    %6212 = vst.msk [vmem:[#allocation11 + $0x28] sm:$0x1] %vm6171, %v6211
    %v6213 = vld [vmem:[#allocation10 + $0x15] sm:$0x1]
    %6214 = vst.msk [vmem:[#allocation11 + $0x2a] sm:$0x1] %vm6171, %v6213
    %v6215 = vld [vmem:[#allocation10 + $0x16] sm:$0x1]
    %6216 = vst.msk [vmem:[#allocation11 + $0x2c] sm:$0x1] %vm6171, %v6215
    %v6217 = vld [vmem:[#allocation10 + $0x17] sm:$0x1]
    %6218 = vst.msk [vmem:[#allocation11 + $0x2e] sm:$0x1] %vm6171, %v6217
    %v6219 = vld [vmem:[#allocation10 + $0x18] sm:$0x1]
    %6220 = vst.msk [vmem:[#allocation11 + $0x30] sm:$0x1] %vm6171, %v6219
    %v6221 = vld [vmem:[#allocation10 + $0x19] sm:$0x1]
    %6222 = vst.msk [vmem:[#allocation11 + $0x32] sm:$0x1] %vm6171, %v6221
    %v6223 = vld [vmem:[#allocation10 + $0x1a] sm:$0x1]
    %6224 = vst.msk [vmem:[#allocation11 + $0x34] sm:$0x1] %vm6171, %v6223
    %v6225 = vld [vmem:[#allocation10 + $0x1b] sm:$0x1]
    %6226 = vst.msk [vmem:[#allocation11 + $0x36] sm:$0x1] %vm6171, %v6225
    %v6227 = vld [vmem:[#allocation10 + $0x1c] sm:$0x1]
    %6228 = vst.msk [vmem:[#allocation11 + $0x38] sm:$0x1] %vm6171, %v6227
    %v6229 = vld [vmem:[#allocation10 + $0x1d] sm:$0x1]
    %6230 = vst.msk [vmem:[#allocation11 + $0x3a] sm:$0x1] %vm6171, %v6229
    %v6231 = vld [vmem:[#allocation10 + $0x1e] sm:$0x1]
    %6232 = vst.msk [vmem:[#allocation11 + $0x3c] sm:$0x1] %vm6171, %v6231
    %v6233 = vld [vmem:[#allocation10 + $0x1f] sm:$0x1]
    %6234 = vst.msk [vmem:[#allocation11 + $0x3e] sm:$0x1] %vm6171, %v6233
    %v6235 = vld [vmem:[#allocation8 + $0x10] sm:$0xff]
    %v6236 = vld [vmem:[#allocation8 + $0x18] sm:$0xff]
    %v6237 = vld [vmem:[#allocation8 + $0x20] sm:$0xff]
    %v6238 = vld [vmem:[#allocation8 + $0x38] sm:$0xff]
    %v6239 = vld [vmem:[#allocation8 + $0x40] sm:$0xff]
    %v6240 = vld [vmem:[#allocation8 + $0x48] sm:$0xff]
    %v6241 = vld [vmem:[#allocation8 + $0x60] sm:$0xff]
    %v6242 = vld [vmem:[#allocation8 + $0x68] sm:$0xff]
    %v6243 = vld [vmem:[#allocation8 + $0x70] sm:$0xff]
    %v6244 = vld [vmem:[#allocation8 + $0x88] sm:$0xff]
    %v6245 = vld [vmem:[#allocation8 + $0x90] sm:$0xff]
    %v6246 = vld [vmem:[#allocation8 + $0x98] sm:$0xff]
    %v6247 = vld [vmem:[%s6] sm:$0xff]
    %v6248 = vld [vmem:[%s6 + $0x8] sm:$0xff]
    %v6249 = vld [vmem:[%s6 + $0x10] sm:$0xff]
    %v6250 = vld [vmem:[%s6 + $0x18] sm:$0xff]
    %6252 = vset.pattern.permute.xlu0 0
    %6253 = vperm.xlu0 %6252, %v6247
    %v6254 = vpop.permute.xlu0 %6253
    %6257 = vset.pattern.permute.xlu0 0
    %6258 = vperm.xlu0 %6257, %v6248
    %v6259 = vpop.permute.xlu0 %6258
    %6262 = vset.pattern.permute.xlu0 0
    %6263 = vperm.xlu0 %6262, %v6249
    %v6264 = vpop.permute.xlu0 %6263
    %6267 = vset.pattern.permute.xlu0 0
    %6268 = vperm.xlu0 %6267, %v6250
    %v6269 = vpop.permute.xlu0 %6268
    %v6271 = vadd.f32 %v6235, %v6254
    %v6272 = vadd.f32 %v6236, %v6254
    %v6273 = vadd.f32 %v6237, %v6254
    %v6274 = vadd.f32 %v6238, %v6259
    %v6275 = vadd.f32 %v6239, %v6259
    %v6276 = vadd.f32 %v6240, %v6259
    %v6277 = vadd.f32 %v6241, %v6264
    %v6278 = vadd.f32 %v6242, %v6264
    %v6279 = vadd.f32 %v6243, %v6264
    %v6280 = vadd.f32 %v6244, %v6269
    %v6281 = vadd.f32 %v6245, %v6269
    %v6282 = vadd.f32 %v6246, %v6269
    %v6283 = vmax.f32 %v6271, 0.0
    %v6284 = vmax.f32 %v6272, 0.0
    %v6285 = vmax.f32 %v6273, 0.0
    %v6286 = vmax.f32 %v6274, 0.0
    %v6287 = vmax.f32 %v6275, 0.0
    %v6288 = vmax.f32 %v6276, 0.0
    %v6289 = vmax.f32 %v6277, 0.0
    %v6290 = vmax.f32 %v6278, 0.0
    %v6291 = vmax.f32 %v6279, 0.0
    %v6292 = vmax.f32 %v6280, 0.0
    %v6293 = vmax.f32 %v6281, 0.0
    %v6294 = vmax.f32 %v6282, 0.0
    %6295 = vrot.lane.b32.xlu0 %v5567, 56
    %v6296 = vpop.permute.xlu0 %6295
    %6297 = vrot.lane.b32.xlu0 %v5571, 56
    %v6298 = vpop.permute.xlu0 %6297
    %6299 = vrot.lane.b32.xlu0 %v5575, 56
    %v6300 = vpop.permute.xlu0 %6299
    %v6301 = vsel %vm5592, %v6296, %v6298
    %v6302 = vsel %vm5592, %v6298, %v6300
    %v6306 = vmul.f32 %v6283, %v6296
    %v6307 = vmul.f32 %v6284, %v6301
    %v6308 = vmul.f32 %v6285, %v6302
    %v6309 = vmul.f32 %v6286, %v6296
    %v6310 = vmul.f32 %v6287, %v6301
    %v6311 = vmul.f32 %v6288, %v6302
    %v6312 = vmul.f32 %v6289, %v6296
    %v6313 = vmul.f32 %v6290, %v6301
    %v6314 = vmul.f32 %v6291, %v6302
    %v6315 = vmul.f32 %v6292, %v6296
    %v6316 = vmul.f32 %v6293, %v6301
    %v6317 = vmul.f32 %v6294, %v6302
    %6330 = vrot.lane.b32.xlu0 %v6306, 72
    %v6331 = vpop.permute.xlu0 %6330
    %6332 = vrot.lane.b32.xlu0 %v6307, 72
    %v6333 = vpop.permute.xlu0 %6332
    %6334 = vrot.lane.b32.xlu0 %v6308, 72
    %v6335 = vpop.permute.xlu0 %6334
    %6336 = vrot.lane.b32.xlu0 %v6309, 72
    %v6337 = vpop.permute.xlu0 %6336
    %6338 = vrot.lane.b32.xlu0 %v6310, 72
    %v6339 = vpop.permute.xlu0 %6338
    %6340 = vrot.lane.b32.xlu0 %v6311, 72
    %v6341 = vpop.permute.xlu0 %6340
    %6342 = vrot.lane.b32.xlu0 %v6312, 72
    %v6343 = vpop.permute.xlu0 %6342
    %6344 = vrot.lane.b32.xlu0 %v6313, 72
    %v6345 = vpop.permute.xlu0 %6344
    %6346 = vrot.lane.b32.xlu0 %v6314, 72
    %v6347 = vpop.permute.xlu0 %6346
    %6348 = vrot.lane.b32.xlu0 %v6315, 72
    %v6349 = vpop.permute.xlu0 %6348
    %6350 = vrot.lane.b32.xlu0 %v6316, 72
    %v6351 = vpop.permute.xlu0 %6350
    %6352 = vrot.lane.b32.xlu0 %v6317, 72
    %v6353 = vpop.permute.xlu0 %6352
    %vm6354 = vcmask 588800
    %v6355 = vsel %vm6354, %v6331, %v6333
    %v6356 = vsel %vm6354, %v6333, %v6335
    %v6357 = vsel %vm6354, %v6337, %v6339
    %v6358 = vsel %vm6354, %v6339, %v6341
    %v6359 = vsel %vm6354, %v6343, %v6345
    %v6360 = vsel %vm6354, %v6345, %v6347
    %v6361 = vsel %vm6354, %v6349, %v6351
    %v6362 = vsel %vm6354, %v6351, %v6353
    %v6375 = vadd.f32 %v6355, %v6356
    %v6376 = vsel %vm5592, %v6335, 0.0
    %v6377 = vadd.f32 %v6375, %v6376
    %6378 = vadd.xlane.f32.xlu0 %v6377
    %v6379 = vpop.xlane.xlu0 %6378
    %v6380 = vadd.f32 %v6357, %v6358
    %v6381 = vsel %vm5592, %v6341, 0.0
    %v6382 = vadd.f32 %v6380, %v6381
    %6383 = vadd.xlane.f32.xlu0 %v6382
    %v6384 = vpop.xlane.xlu0 %6383
    %v6385 = vadd.f32 %v6359, %v6360
    %v6386 = vsel %vm5592, %v6347, 0.0
    %v6387 = vadd.f32 %v6385, %v6386
    %6388 = vadd.xlane.f32.xlu0 %v6387
    %v6389 = vpop.xlane.xlu0 %6388
    %v6390 = vadd.f32 %v6361, %v6362
    %v6391 = vsel %vm5592, %v6353, 0.0
    %v6392 = vadd.f32 %v6390, %v6391
    %6393 = vadd.xlane.f32.xlu0 %v6392
    %v6394 = vpop.xlane.xlu0 %6393
    %v6395 = vmul.f32 %v6379, 0.005
    %v6396 = vmul.f32 %v6384, 0.005
    %v6397 = vmul.f32 %v6389, 0.005
    %v6398 = vmul.f32 %v6394, 0.005
    %v6399 = vsub.f32 %v6283, %v6395
    %v6400 = vsub.f32 %v6284, %v6395
    %v6401 = vsub.f32 %v6285, %v6395
    %v6402 = vsub.f32 %v6286, %v6396
    %v6403 = vsub.f32 %v6287, %v6396
    %v6404 = vsub.f32 %v6288, %v6396
    %v6405 = vsub.f32 %v6289, %v6397
    %v6406 = vsub.f32 %v6290, %v6397
    %v6407 = vsub.f32 %v6291, %v6397
    %v6408 = vsub.f32 %v6292, %v6398
    %v6409 = vsub.f32 %v6293, %v6398
    %v6410 = vsub.f32 %v6294, %v6398
    %v6411 = vmul.f32 %v6399, %v6296
    %v6412 = vmul.f32 %v6400, %v6301
    %v6413 = vmul.f32 %v6401, %v6302
    %v6414 = vmul.f32 %v6402, %v6296
    %v6415 = vmul.f32 %v6403, %v6301
    %v6416 = vmul.f32 %v6404, %v6302
    %v6417 = vmul.f32 %v6405, %v6296
    %v6418 = vmul.f32 %v6406, %v6301
    %v6419 = vmul.f32 %v6407, %v6302
    %v6420 = vmul.f32 %v6408, %v6296
    %v6421 = vmul.f32 %v6409, %v6301
    %v6422 = vmul.f32 %v6410, %v6302
    %v6423 = vmul.f32 %v6411, %v6411
    %v6424 = vmul.f32 %v6412, %v6412
    %v6425 = vmul.f32 %v6413, %v6413
    %v6426 = vmul.f32 %v6414, %v6414
    %v6427 = vmul.f32 %v6415, %v6415
    %v6428 = vmul.f32 %v6416, %v6416
    %v6429 = vmul.f32 %v6417, %v6417
    %v6430 = vmul.f32 %v6418, %v6418
    %v6431 = vmul.f32 %v6419, %v6419
    %v6432 = vmul.f32 %v6420, %v6420
    %v6433 = vmul.f32 %v6421, %v6421
    %v6434 = vmul.f32 %v6422, %v6422
    %6447 = vrot.lane.b32.xlu0 %v6423, 72
    %v6448 = vpop.permute.xlu0 %6447
    %6449 = vrot.lane.b32.xlu0 %v6424, 72
    %v6450 = vpop.permute.xlu0 %6449
    %6451 = vrot.lane.b32.xlu0 %v6425, 72
    %v6452 = vpop.permute.xlu0 %6451
    %6453 = vrot.lane.b32.xlu0 %v6426, 72
    %v6454 = vpop.permute.xlu0 %6453
    %6455 = vrot.lane.b32.xlu0 %v6427, 72
    %v6456 = vpop.permute.xlu0 %6455
    %6457 = vrot.lane.b32.xlu0 %v6428, 72
    %v6458 = vpop.permute.xlu0 %6457
    %6459 = vrot.lane.b32.xlu0 %v6429, 72
    %v6460 = vpop.permute.xlu0 %6459
    %6461 = vrot.lane.b32.xlu0 %v6430, 72
    %v6462 = vpop.permute.xlu0 %6461
    %6463 = vrot.lane.b32.xlu0 %v6431, 72
    %v6464 = vpop.permute.xlu0 %6463
    %6465 = vrot.lane.b32.xlu0 %v6432, 72
    %v6466 = vpop.permute.xlu0 %6465
    %6467 = vrot.lane.b32.xlu0 %v6433, 72
    %v6468 = vpop.permute.xlu0 %6467
    %6469 = vrot.lane.b32.xlu0 %v6434, 72
    %v6470 = vpop.permute.xlu0 %6469
    %v6471 = vsel %vm6354, %v6448, %v6450
    %v6472 = vsel %vm6354, %v6450, %v6452
    %v6473 = vsel %vm6354, %v6454, %v6456
    %v6474 = vsel %vm6354, %v6456, %v6458
    %v6475 = vsel %vm6354, %v6460, %v6462
    %v6476 = vsel %vm6354, %v6462, %v6464
    %v6477 = vsel %vm6354, %v6466, %v6468
    %v6478 = vsel %vm6354, %v6468, %v6470
    %v6491 = vadd.f32 %v6471, %v6472
    %v6492 = vsel %vm5592, %v6452, 0.0
    %v6493 = vadd.f32 %v6491, %v6492
    %6494 = vadd.xlane.f32.xlu0 %v6493
    %v6495 = vpop.xlane.xlu0 %6494
    %v6496 = vadd.f32 %v6473, %v6474
    %v6497 = vsel %vm5592, %v6458, 0.0
    %v6498 = vadd.f32 %v6496, %v6497
    %6499 = vadd.xlane.f32.xlu0 %v6498
    %v6500 = vpop.xlane.xlu0 %6499
    %v6501 = vadd.f32 %v6475, %v6476
    %v6502 = vsel %vm5592, %v6464, 0.0
    %v6503 = vadd.f32 %v6501, %v6502
    %6504 = vadd.xlane.f32.xlu0 %v6503
    %v6505 = vpop.xlane.xlu0 %6504
    %v6506 = vadd.f32 %v6477, %v6478
    %v6507 = vsel %vm5592, %v6470, 0.0
    %v6508 = vadd.f32 %v6506, %v6507
    %6509 = vadd.xlane.f32.xlu0 %v6508
    %v6510 = vpop.xlane.xlu0 %6509
    %v6511 = vmul.f32 %v6495, 0.005
    %v6512 = vmul.f32 %v6500, 0.005
    %v6513 = vmul.f32 %v6505, 0.005
    %v6514 = vmul.f32 %v6510, 0.005
    %v6515 = vadd.f32 %v6511, 1e-05
    %v6516 = vadd.f32 %v6512, 1e-05
    %v6517 = vadd.f32 %v6513, 1e-05
    %v6518 = vadd.f32 %v6514, 1e-05
    %v6519 = vrsqrt.pop %v6515
    %v6520 = vrsqrt.pop %v6516
    %v6521 = vrsqrt.pop %v6517
    %v6522 = vrsqrt.pop %v6518
    %v6523 = vmul.f32 %v6411, %v6519
    %v6524 = vmul.f32 %v6412, %v6519
    %v6525 = vmul.f32 %v6413, %v6519
    %v6526 = vmul.f32 %v6414, %v6520
    %v6527 = vmul.f32 %v6415, %v6520
    %v6528 = vmul.f32 %v6416, %v6520
    %v6529 = vmul.f32 %v6417, %v6521
    %v6530 = vmul.f32 %v6418, %v6521
    %v6531 = vmul.f32 %v6419, %v6521
    %v6532 = vmul.f32 %v6420, %v6522
    %v6533 = vmul.f32 %v6421, %v6522
    %v6534 = vmul.f32 %v6422, %v6522
    %6535 = vrot.lane.b32.xlu0 %v5700, 56
    %v6536 = vpop.permute.xlu0 %6535
    %6537 = vrot.lane.b32.xlu0 %v5704, 56
    %v6538 = vpop.permute.xlu0 %6537
    %6539 = vrot.lane.b32.xlu0 %v5708, 56
    %v6540 = vpop.permute.xlu0 %6539
    %v6541 = vsel %vm5592, %v6536, %v6538
    %v6542 = vsel %vm5592, %v6538, %v6540
    %v6546 = vmul.f32 %v6523, %v6536
    %v6547 = vmul.f32 %v6524, %v6541
    %v6548 = vmul.f32 %v6525, %v6542
    %v6549 = vmul.f32 %v6526, %v6536
    %v6550 = vmul.f32 %v6527, %v6541
    %v6551 = vmul.f32 %v6528, %v6542
    %v6552 = vmul.f32 %v6529, %v6536
    %v6553 = vmul.f32 %v6530, %v6541
    %v6554 = vmul.f32 %v6531, %v6542
    %v6555 = vmul.f32 %v6532, %v6536
    %v6556 = vmul.f32 %v6533, %v6541
    %v6557 = vmul.f32 %v6534, %v6542
    %6558 = vrot.lane.b32.xlu0 %v5728, 56
    %v6559 = vpop.permute.xlu0 %6558
    %6560 = vrot.lane.b32.xlu0 %v5732, 56
    %v6561 = vpop.permute.xlu0 %6560
    %6562 = vrot.lane.b32.xlu0 %v5736, 56
    %v6563 = vpop.permute.xlu0 %6562
    %v6564 = vsel %vm5592, %v6559, %v6561
    %v6565 = vsel %vm5592, %v6561, %v6563
    %v6569 = vadd.f32 %v6546, %v6559
    %v6570 = vadd.f32 %v6547, %v6564
    %v6571 = vadd.f32 %v6548, %v6565
    %v6572 = vadd.f32 %v6549, %v6559
    %v6573 = vadd.f32 %v6550, %v6564
    %v6574 = vadd.f32 %v6551, %v6565
    %v6575 = vadd.f32 %v6552, %v6559
    %v6576 = vadd.f32 %v6553, %v6564
    %v6577 = vadd.f32 %v6554, %v6565
    %v6578 = vadd.f32 %v6555, %v6559
    %v6579 = vadd.f32 %v6556, %v6564
    %v6580 = vadd.f32 %v6557, %v6565
    %6593 = vrot.lane.b32.xlu0 %v6569, 72
    %v6594 = vpop.permute.xlu0 %6593
    %6595 = vrot.lane.b32.xlu0 %v6570, 72
    %v6596 = vpop.permute.xlu0 %6595
    %6597 = vrot.lane.b32.xlu0 %v6571, 72
    %v6598 = vpop.permute.xlu0 %6597
    %6599 = vrot.lane.b32.xlu0 %v6572, 72
    %v6600 = vpop.permute.xlu0 %6599
    %6601 = vrot.lane.b32.xlu0 %v6573, 72
    %v6602 = vpop.permute.xlu0 %6601
    %6603 = vrot.lane.b32.xlu0 %v6574, 72
    %v6604 = vpop.permute.xlu0 %6603
    %6605 = vrot.lane.b32.xlu0 %v6575, 72
    %v6606 = vpop.permute.xlu0 %6605
    %6607 = vrot.lane.b32.xlu0 %v6576, 72
    %v6608 = vpop.permute.xlu0 %6607
    %6609 = vrot.lane.b32.xlu0 %v6577, 72
    %v6610 = vpop.permute.xlu0 %6609
    %6611 = vrot.lane.b32.xlu0 %v6578, 72
    %v6612 = vpop.permute.xlu0 %6611
    %6613 = vrot.lane.b32.xlu0 %v6579, 72
    %v6614 = vpop.permute.xlu0 %6613
    %6615 = vrot.lane.b32.xlu0 %v6580, 72
    %v6616 = vpop.permute.xlu0 %6615
    %v6617 = vsel %vm6354, %v6594, %v6596
    %v6618 = vsel %vm6354, %v6596, %v6598
    %v6619 = vsel %vm6354, %v6600, %v6602
    %v6620 = vsel %vm6354, %v6602, %v6604
    %v6621 = vsel %vm6354, %v6606, %v6608
    %v6622 = vsel %vm6354, %v6608, %v6610
    %v6623 = vsel %vm6354, %v6612, %v6614
    %v6624 = vsel %vm6354, %v6614, %v6616
    %6637 = vst [vmem:[#allocation9] sm:$0xff] %v6617
    %6638 = vst [vmem:[#allocation9 + $0x8] sm:$0xff] %v6618
    %6639 = vst.msk [vmem:[#allocation9 + $0x10] sm:$0xff] %vm5592, %v6598
    %6640 = vst [vmem:[#allocation9 + $0x18] sm:$0xff] %v6619
    %6641 = vst [vmem:[#allocation9 + $0x20] sm:$0xff] %v6620
    %6642 = vst.msk [vmem:[#allocation9 + $0x28] sm:$0xff] %vm5592, %v6604
    %6643 = vst [vmem:[#allocation9 + $0x30] sm:$0xff] %v6621
    %6644 = vst [vmem:[#allocation9 + $0x38] sm:$0xff] %v6622
    %6645 = vst.msk [vmem:[#allocation9 + $0x40] sm:$0xff] %vm5592, %v6610
    %6646 = vst [vmem:[#allocation9 + $0x48] sm:$0xff] %v6623
    %6647 = vst [vmem:[#allocation9 + $0x50] sm:$0xff] %v6624
    %6648 = vst.msk [vmem:[#allocation9 + $0x58] sm:$0xff] %vm5592, %v6616
    %v6649 = vld [vmem:[#allocation9] sm:$0xff]
    %v6650 = vld [vmem:[#allocation9 + $0x18] sm:$0xff]
    %v6651 = vld [vmem:[#allocation9 + $0x30] sm:$0xff]
    %v6652 = vld [vmem:[#allocation9 + $0x48] sm:$0xff]
    %6657 = vrot.lane.b32.xlu0 %v6649, 127
    %v6658 = vpop.permute.xlu0 %6657
    %6659 = vrot.lane.b32.xlu0 %v6650, 127
    %v6660 = vpop.permute.xlu0 %6659
    %6661 = vrot.lane.b32.xlu0 %v6651, 127
    %v6662 = vpop.permute.xlu0 %6661
    %6663 = vrot.lane.b32.xlu0 %v6652, 127
    %v6664 = vpop.permute.xlu0 %6663
    %v6669 = vmax.f32 %v6649, %v6658
    %v6670 = vmax.f32 %v6650, %v6660
    %v6671 = vmax.f32 %v6651, %v6662
    %v6672 = vmax.f32 %v6652, %v6664
    %v6673 = vld [vmem:[#allocation9 + $0x8] sm:$0xff]
    %v6674 = vld [vmem:[#allocation9 + $0x20] sm:$0xff]
    %v6675 = vld [vmem:[#allocation9 + $0x38] sm:$0xff]
    %v6676 = vld [vmem:[#allocation9 + $0x50] sm:$0xff]
    %6681 = vrot.lane.b32.xlu0 %v6673, 127
    %v6682 = vpop.permute.xlu0 %6681
    %6683 = vrot.lane.b32.xlu0 %v6674, 127
    %v6684 = vpop.permute.xlu0 %6683
    %6685 = vrot.lane.b32.xlu0 %v6675, 127
    %v6686 = vpop.permute.xlu0 %6685
    %6687 = vrot.lane.b32.xlu0 %v6676, 127
    %v6688 = vpop.permute.xlu0 %6687
    %v6689 = vsel %vm408, %v6658, %v6682
    %v6690 = vsel %vm408, %v6660, %v6684
    %v6691 = vsel %vm408, %v6662, %v6686
    %v6692 = vsel %vm408, %v6664, %v6688
    %v6701 = vmax.f32 %v6649, %v6689
    %v6702 = vmax.f32 %v6673, %v6682
    %v6703 = vmax.f32 %v6650, %v6690
    %v6704 = vmax.f32 %v6674, %v6684
    %v6705 = vmax.f32 %v6651, %v6691
    %v6706 = vmax.f32 %v6675, %v6686
    %v6707 = vmax.f32 %v6652, %v6692
    %v6708 = vmax.f32 %v6676, %v6688
    %6717 = vrot.lane.b32.xlu0 %v6701, 76
    %v6718 = vpop.permute.xlu0 %6717
    %6719 = vrot.lane.b32.xlu0 %v6702, 76
    %v6720 = vpop.permute.xlu0 %6719
    %6721 = vrot.lane.b32.xlu0 %v6703, 76
    %v6722 = vpop.permute.xlu0 %6721
    %6723 = vrot.lane.b32.xlu0 %v6704, 76
    %v6724 = vpop.permute.xlu0 %6723
    %6725 = vrot.lane.b32.xlu0 %v6705, 76
    %v6726 = vpop.permute.xlu0 %6725
    %6727 = vrot.lane.b32.xlu0 %v6706, 76
    %v6728 = vpop.permute.xlu0 %6727
    %6729 = vrot.lane.b32.xlu0 %v6707, 76
    %v6730 = vpop.permute.xlu0 %6729
    %6731 = vrot.lane.b32.xlu0 %v6708, 76
    %v6732 = vpop.permute.xlu0 %6731
    %v6733 = vsel %vm194, %v6718, %v6720
    %v6734 = vsel %vm194, %v6722, %v6724
    %v6735 = vsel %vm194, %v6726, %v6728
    %v6736 = vsel %vm194, %v6730, %v6732
    %v6741 = vmax.f32 %v6669, %v6733
    %v6742 = vmax.f32 %v6670, %v6734
    %v6743 = vmax.f32 %v6671, %v6735
    %v6744 = vmax.f32 %v6672, %v6736
    %v6745 = vpack.c.bf16 %v6742, %v6741
    %v6746 = vpack.c.bf16 %v6744, %v6743
    %v6747 = vld [vmem:[%s8] sm:$0xf]
    %v6748 = vld [vmem:[%s8 + $0x4] sm:$0xf]
    %v6749 = vld [vmem:[%s8 + $0x8] sm:$0xf]
    %v6750 = vld [vmem:[%s8 + $0xc] sm:$0xf]
    %v6751 = vld [vmem:[%s8 + $0x10] sm:$0xf]
    %v6752 = vld [vmem:[%s8 + $0x14] sm:$0xf]
    %v6753 = vld [vmem:[%s8 + $0x18] sm:$0x3]
    %6756 = vrot.lane.b32.xlu0 %v6745, 76
    %v6757 = vpop.permute.xlu0 %6756
    %6758 = vrot.lane.b32.xlu0 %v6746, 76
    %v6759 = vpop.permute.xlu0 %6758
    %v6767 = vunpack.c.l.b16 %v6747
    %v6768 = vunpack.c.l.b16 %v6748
    %v6769 = vunpack.c.l.b16 %v6749
    %v6770 = vunpack.c.l.b16 %v6750
    %v6771 = vunpack.c.l.b16 %v6751
    %v6772 = vunpack.c.l.b16 %v6752
    %v6773 = vunpack.c.l.b16 %v6753
    %v6774 = vpack.c.b16 %v6768, %v6767
    %v6775 = vpack.c.b16 %v6770, %v6769
    %v6776 = vpack.c.b16 %v6772, %v6771
    %v6777 = vpack.c.b16 %v6773, %v6773
    %v6782 = vsel %vm116, %v6757, 0
    %v6785 = vsel %vm116, %v6759, 0
    %v6788 = vsel %vm5902, %v6777, 0
    %6790 = vmatprep.subr.bf16.mxu0 0
    %6791 = vmatpush1.bf16.msra.mxu0 0
    %6792 = vmatprep.subr.bf16.mxu0 0
    %6793 = vmatpush1.bf16.msra.mxu0 0
    %6794 = vmatprep.subr.bf16.mxu0 0
    %6795 = vmatpush1.bf16.msra.mxu0 0
    %6796 = vmatprep.subr.bf16.mxu0 0
    %6797 = vmatpush1.bf16.msra.mxu0 0
    %6798 = vmatprep.subr.bf16.mxu0 0
    %6799 = vmatpush1.bf16.msra.mxu0 %v6788
    %6800 = vmatprep.subr.bf16.mxu0 0
    %6801 = vmatpush1.bf16.msra.mxu0 %v6776
    %6802 = vmatprep.subr.bf16.mxu0 0
    %6803 = vmatpush1.bf16.msra.mxu0 %v6775
    %6804 = vmatprep.subr.bf16.mxu0 0
    %6805 = vmatpush1.bf16.msra.mxu0 %v6774
    %6806 = vmatprep.subr.bf16.mxu0 0
    %6807 = vmatpush2.bf16.msra.mxu0 0
    %6808 = vmatprep.subr.bf16.mxu0 0
    %6809 = vmatpush2.bf16.msra.mxu0 0
    %6810 = vmatprep.subr.bf16.mxu0 0
    %6811 = vmatpush2.bf16.msra.mxu0 0
    %6812 = vmatprep.subr.bf16.mxu0 0
    %6813 = vmatpush2.bf16.msra.mxu0 0
    %6814 = vmatprep.subr.bf16.mxu0 0
    %6815 = vmatpush2.bf16.msra.mxu0 0
    %6816 = vmatprep.subr.bf16.mxu0 0
    %6817 = vmatpush2.bf16.msra.mxu0 0
    %6818 = vmatprep.subr.bf16.mxu0 0
    %6819 = vmatpush2.bf16.msra.mxu0 0
    %6820 = vmatprep.subr.bf16.mxu0 0
    %6821 = vmatpush2.bf16.msra.mxu0 0
    %6822 = vmatprep.mubr.bf16.mxu0 0
    %6823 = vmatmul.mubr.bf16.gmra.mxu0 %v6782
    %v6824 = vpop.f32.mrf.mxu0
    %v6825 = vadd.f32 0.0, %v6824
    %v6826 = vpop.f32.mrf.mxu0
    %v6827 = vpop.f32.mrf.mxu0
    %v6828 = vadd.f32 0.0, %v6827
    %v6829 = vpop.f32.mrf.mxu0
    %6830 = vmatprep.mubr.bf16.mxu0 0
    %6831 = vmatmul.mubr.bf16.gmra.mxu0 %v6785
    %v6832 = vpop.f32.mrf.mxu0
    %v6833 = vadd.f32 0.0, %v6832
    %v6834 = vpop.f32.mrf.mxu0
    %v6835 = vpop.f32.mrf.mxu0
    %v6836 = vadd.f32 0.0, %v6835
    %v6837 = vpop.f32.mrf.mxu0
    %6838 = vdwg.mxu0
    %6839 = vst.msk [vmem:[#allocation10] sm:$0xff] %vm832, %v6825
    %6840 = vst.msk [vmem:[#allocation10 + $0x8] sm:$0xff] %vm832, %v6828
    %6841 = vst.msk [vmem:[#allocation10 + $0x10] sm:$0xff] %vm832, %v6833
    %6842 = vst.msk [vmem:[#allocation10 + $0x18] sm:$0xff] %vm832, %v6836
    %v6843 = vld [vmem:[#allocation9 + $0x8] sm:$0xff]
    %v6844 = vld [vmem:[#allocation9 + $0x20] sm:$0xff]
    %v6845 = vld [vmem:[#allocation9 + $0x38] sm:$0xff]
    %v6846 = vld [vmem:[#allocation9 + $0x50] sm:$0xff]
    %6851 = vrot.lane.b32.xlu0 %v6843, 127
    %v6852 = vpop.permute.xlu0 %6851
    %6853 = vrot.lane.b32.xlu0 %v6844, 127
    %v6854 = vpop.permute.xlu0 %6853
    %6855 = vrot.lane.b32.xlu0 %v6845, 127
    %v6856 = vpop.permute.xlu0 %6855
    %6857 = vrot.lane.b32.xlu0 %v6846, 127
    %v6858 = vpop.permute.xlu0 %6857
    %v6863 = vmax.f32 %v6843, %v6852
    %v6864 = vmax.f32 %v6844, %v6854
    %v6865 = vmax.f32 %v6845, %v6856
    %v6866 = vmax.f32 %v6846, %v6858
    %v6867 = vld [vmem:[#allocation9 + $0x10] sm:$0xff]
    %v6868 = vld [vmem:[#allocation9 + $0x28] sm:$0xff]
    %v6869 = vld [vmem:[#allocation9 + $0x40] sm:$0xff]
    %v6870 = vld [vmem:[#allocation9 + $0x58] sm:$0xff]
    %6875 = vrot.lane.b32.xlu0 %v6867, 127
    %v6876 = vpop.permute.xlu0 %6875
    %6877 = vrot.lane.b32.xlu0 %v6868, 127
    %v6878 = vpop.permute.xlu0 %6877
    %6879 = vrot.lane.b32.xlu0 %v6869, 127
    %v6880 = vpop.permute.xlu0 %6879
    %6881 = vrot.lane.b32.xlu0 %v6870, 127
    %v6882 = vpop.permute.xlu0 %6881
    %v6883 = vsel %vm408, %v6852, %v6876
    %v6884 = vsel %vm408, %v6854, %v6878
    %v6885 = vsel %vm408, %v6856, %v6880
    %v6886 = vsel %vm408, %v6858, %v6882
    %v6895 = vmax.f32 %v6843, %v6883
    %v6896 = vmax.f32 %v6867, %v6876
    %v6897 = vmax.f32 %v6844, %v6884
    %v6898 = vmax.f32 %v6868, %v6878
    %v6899 = vmax.f32 %v6845, %v6885
    %v6900 = vmax.f32 %v6869, %v6880
    %v6901 = vmax.f32 %v6846, %v6886
    %v6902 = vmax.f32 %v6870, %v6882
    %6911 = vrot.lane.b32.xlu0 %v6895, 76
    %v6912 = vpop.permute.xlu0 %6911
    %6913 = vrot.lane.b32.xlu0 %v6896, 76
    %v6914 = vpop.permute.xlu0 %6913
    %6915 = vrot.lane.b32.xlu0 %v6897, 76
    %v6916 = vpop.permute.xlu0 %6915
    %6917 = vrot.lane.b32.xlu0 %v6898, 76
    %v6918 = vpop.permute.xlu0 %6917
    %6919 = vrot.lane.b32.xlu0 %v6899, 76
    %v6920 = vpop.permute.xlu0 %6919
    %6921 = vrot.lane.b32.xlu0 %v6900, 76
    %v6922 = vpop.permute.xlu0 %6921
    %6923 = vrot.lane.b32.xlu0 %v6901, 76
    %v6924 = vpop.permute.xlu0 %6923
    %6925 = vrot.lane.b32.xlu0 %v6902, 76
    %v6926 = vpop.permute.xlu0 %6925
    %v6927 = vsel %vm194, %v6912, %v6914
    %v6928 = vsel %vm194, %v6916, %v6918
    %v6929 = vsel %vm194, %v6920, %v6922
    %v6930 = vsel %vm194, %v6924, %v6926
    %v6935 = vmax.f32 %v6863, %v6927
    %v6936 = vmax.f32 %v6864, %v6928
    %v6937 = vmax.f32 %v6865, %v6929
    %v6938 = vmax.f32 %v6866, %v6930
    %v6939 = vpack.c.bf16 %v6936, %v6935
    %v6940 = vpack.c.bf16 %v6938, %v6937
    %v6941 = vld [vmem:[%s8] sm:$0xf]
    %v6942 = vld [vmem:[%s8 + $0x4] sm:$0xf]
    %v6943 = vld [vmem:[%s8 + $0x8] sm:$0xf]
    %v6944 = vld [vmem:[%s8 + $0xc] sm:$0xf]
    %v6945 = vld [vmem:[%s8 + $0x10] sm:$0xf]
    %v6946 = vld [vmem:[%s8 + $0x14] sm:$0xf]
    %v6947 = vld [vmem:[%s8 + $0x18] sm:$0x3]
    %6950 = vrot.lane.b32.xlu0 %v6939, 100
    %v6951 = vpop.permute.xlu0 %6950
    %6952 = vrot.lane.b32.xlu0 %v6940, 100
    %v6953 = vpop.permute.xlu0 %6952
    %v6961 = vunpack.c.l.b16 %v6941
    %v6962 = vunpack.c.l.b16 %v6942
    %v6963 = vunpack.c.l.b16 %v6943
    %v6964 = vunpack.c.l.b16 %v6944
    %v6965 = vunpack.c.l.b16 %v6945
    %v6966 = vunpack.c.l.b16 %v6946
    %v6967 = vunpack.c.l.b16 %v6947
    %v6968 = vpack.c.b16 %v6962, %v6961
    %v6969 = vpack.c.b16 %v6964, %v6963
    %v6970 = vpack.c.b16 %v6966, %v6965
    %v6971 = vpack.c.b16 %v6967, %v6967
    %v6976 = vsel %vm116, %v6951, 0
    %v6979 = vsel %vm116, %v6953, 0
    %v6982 = vsel %vm5902, %v6971, 0
    %6984 = vmatprep.subr.bf16.mxu0 0
    %6985 = vmatpush1.bf16.msra.mxu0 0
    %6986 = vmatprep.subr.bf16.mxu0 0
    %6987 = vmatpush1.bf16.msra.mxu0 0
    %6988 = vmatprep.subr.bf16.mxu0 0
    %6989 = vmatpush1.bf16.msra.mxu0 0
    %6990 = vmatprep.subr.bf16.mxu0 0
    %6991 = vmatpush1.bf16.msra.mxu0 0
    %6992 = vmatprep.subr.bf16.mxu0 0
    %6993 = vmatpush1.bf16.msra.mxu0 %v6982
    %6994 = vmatprep.subr.bf16.mxu0 0
    %6995 = vmatpush1.bf16.msra.mxu0 %v6970
    %6996 = vmatprep.subr.bf16.mxu0 0
    %6997 = vmatpush1.bf16.msra.mxu0 %v6969
    %6998 = vmatprep.subr.bf16.mxu0 0
    %6999 = vmatpush1.bf16.msra.mxu0 %v6968
    %7000 = vmatprep.subr.bf16.mxu0 0
    %7001 = vmatpush2.bf16.msra.mxu0 0
    %7002 = vmatprep.subr.bf16.mxu0 0
    %7003 = vmatpush2.bf16.msra.mxu0 0
    %7004 = vmatprep.subr.bf16.mxu0 0
    %7005 = vmatpush2.bf16.msra.mxu0 0
    %7006 = vmatprep.subr.bf16.mxu0 0
    %7007 = vmatpush2.bf16.msra.mxu0 0
    %7008 = vmatprep.subr.bf16.mxu0 0
    %7009 = vmatpush2.bf16.msra.mxu0 0
    %7010 = vmatprep.subr.bf16.mxu0 0
    %7011 = vmatpush2.bf16.msra.mxu0 0
    %7012 = vmatprep.subr.bf16.mxu0 0
    %7013 = vmatpush2.bf16.msra.mxu0 0
    %7014 = vmatprep.subr.bf16.mxu0 0
    %7015 = vmatpush2.bf16.msra.mxu0 0
    %7016 = vmatprep.mubr.bf16.mxu0 0
    %7017 = vmatmul.mubr.bf16.gmra.mxu0 %v6976
    %v7018 = vpop.f32.mrf.mxu0
    %v7019 = vadd.f32 0.0, %v7018
    %v7020 = vpop.f32.mrf.mxu0
    %v7021 = vpop.f32.mrf.mxu0
    %v7022 = vadd.f32 0.0, %v7021
    %v7023 = vpop.f32.mrf.mxu0
    %7024 = vmatprep.mubr.bf16.mxu0 0
    %7025 = vmatmul.mubr.bf16.gmra.mxu0 %v6979
    %v7026 = vpop.f32.mrf.mxu0
    %v7027 = vadd.f32 0.0, %v7026
    %v7028 = vpop.f32.mrf.mxu0
    %v7029 = vpop.f32.mrf.mxu0
    %v7030 = vadd.f32 0.0, %v7029
    %v7031 = vpop.f32.mrf.mxu0
    %7032 = vdwg.mxu0
    %7037 = vrot.lane.b32.xlu0 %v7019, 25
    %v7038 = vpop.permute.xlu0 %7037
    %7039 = vrot.lane.b32.xlu0 %v7022, 25
    %v7040 = vpop.permute.xlu0 %7039
    %7041 = vrot.lane.b32.xlu0 %v7027, 25
    %v7042 = vpop.permute.xlu0 %7041
    %7043 = vrot.lane.b32.xlu0 %v7030, 25
    %v7044 = vpop.permute.xlu0 %7043
    %7049 = vst.msk [vmem:[#allocation10] sm:$0xff] %vm6165, %v7038
    %7050 = vst.msk [vmem:[#allocation10 + $0x8] sm:$0xff] %vm6165, %v7040
    %7051 = vst.msk [vmem:[#allocation10 + $0x10] sm:$0xff] %vm6165, %v7042
    %7052 = vst.msk [vmem:[#allocation10 + $0x18] sm:$0xff] %vm6165, %v7044
    %v7053 = vld [vmem:[#allocation10] sm:$0x1]
    %7054 = vst.msk [vmem:[#allocation11 + $0x1] sm:$0x1] %vm6171, %v7053
    %v7055 = vld [vmem:[#allocation10 + $0x1] sm:$0x1]
    %7056 = vst.msk [vmem:[#allocation11 + $0x3] sm:$0x1] %vm6171, %v7055
    %v7057 = vld [vmem:[#allocation10 + $0x2] sm:$0x1]
    %7058 = vst.msk [vmem:[#allocation11 + $0x5] sm:$0x1] %vm6171, %v7057
    %v7059 = vld [vmem:[#allocation10 + $0x3] sm:$0x1]
    %7060 = vst.msk [vmem:[#allocation11 + $0x7] sm:$0x1] %vm6171, %v7059
    %v7061 = vld [vmem:[#allocation10 + $0x4] sm:$0x1]
    %7062 = vst.msk [vmem:[#allocation11 + $0x9] sm:$0x1] %vm6171, %v7061
    %v7063 = vld [vmem:[#allocation10 + $0x5] sm:$0x1]
    %7064 = vst.msk [vmem:[#allocation11 + $0xb] sm:$0x1] %vm6171, %v7063
    %v7065 = vld [vmem:[#allocation10 + $0x6] sm:$0x1]
    %7066 = vst.msk [vmem:[#allocation11 + $0xd] sm:$0x1] %vm6171, %v7065
    %v7067 = vld [vmem:[#allocation10 + $0x7] sm:$0x1]
    %7068 = vst.msk [vmem:[#allocation11 + $0xf] sm:$0x1] %vm6171, %v7067
    %v7069 = vld [vmem:[#allocation10 + $0x8] sm:$0x1]
    %7070 = vst.msk [vmem:[#allocation11 + $0x11] sm:$0x1] %vm6171, %v7069
    %v7071 = vld [vmem:[#allocation10 + $0x9] sm:$0x1]
    %7072 = vst.msk [vmem:[#allocation11 + $0x13] sm:$0x1] %vm6171, %v7071
    %v7073 = vld [vmem:[#allocation10 + $0xa] sm:$0x1]
    %7074 = vst.msk [vmem:[#allocation11 + $0x15] sm:$0x1] %vm6171, %v7073
    %v7075 = vld [vmem:[#allocation10 + $0xb] sm:$0x1]
    %7076 = vst.msk [vmem:[#allocation11 + $0x17] sm:$0x1] %vm6171, %v7075
    %v7077 = vld [vmem:[#allocation10 + $0xc] sm:$0x1]
    %7078 = vst.msk [vmem:[#allocation11 + $0x19] sm:$0x1] %vm6171, %v7077
    %v7079 = vld [vmem:[#allocation10 + $0xd] sm:$0x1]
    %7080 = vst.msk [vmem:[#allocation11 + $0x1b] sm:$0x1] %vm6171, %v7079
    %v7081 = vld [vmem:[#allocation10 + $0xe] sm:$0x1]
    %7082 = vst.msk [vmem:[#allocation11 + $0x1d] sm:$0x1] %vm6171, %v7081
    %v7083 = vld [vmem:[#allocation10 + $0xf] sm:$0x1]
    %7084 = vst.msk [vmem:[#allocation11 + $0x1f] sm:$0x1] %vm6171, %v7083
    %v7085 = vld [vmem:[#allocation10 + $0x10] sm:$0x1]
    %7086 = vst.msk [vmem:[#allocation11 + $0x21] sm:$0x1] %vm6171, %v7085
    %v7087 = vld [vmem:[#allocation10 + $0x11] sm:$0x1]
    %7088 = vst.msk [vmem:[#allocation11 + $0x23] sm:$0x1] %vm6171, %v7087
    %v7089 = vld [vmem:[#allocation10 + $0x12] sm:$0x1]
    %7090 = vst.msk [vmem:[#allocation11 + $0x25] sm:$0x1] %vm6171, %v7089
    %v7091 = vld [vmem:[#allocation10 + $0x13] sm:$0x1]
    %7092 = vst.msk [vmem:[#allocation11 + $0x27] sm:$0x1] %vm6171, %v7091
    %v7093 = vld [vmem:[#allocation10 + $0x14] sm:$0x1]
    %7094 = vst.msk [vmem:[#allocation11 + $0x29] sm:$0x1] %vm6171, %v7093
    %v7095 = vld [vmem:[#allocation10 + $0x15] sm:$0x1]
    %7096 = vst.msk [vmem:[#allocation11 + $0x2b] sm:$0x1] %vm6171, %v7095
    %v7097 = vld [vmem:[#allocation10 + $0x16] sm:$0x1]
    %7098 = vst.msk [vmem:[#allocation11 + $0x2d] sm:$0x1] %vm6171, %v7097
    %v7099 = vld [vmem:[#allocation10 + $0x17] sm:$0x1]
    %7100 = vst.msk [vmem:[#allocation11 + $0x2f] sm:$0x1] %vm6171, %v7099
    %v7101 = vld [vmem:[#allocation10 + $0x18] sm:$0x1]
    %7102 = vst.msk [vmem:[#allocation11 + $0x31] sm:$0x1] %vm6171, %v7101
    %v7103 = vld [vmem:[#allocation10 + $0x19] sm:$0x1]
    %7104 = vst.msk [vmem:[#allocation11 + $0x33] sm:$0x1] %vm6171, %v7103
    %v7105 = vld [vmem:[#allocation10 + $0x1a] sm:$0x1]
    %7106 = vst.msk [vmem:[#allocation11 + $0x35] sm:$0x1] %vm6171, %v7105
    %v7107 = vld [vmem:[#allocation10 + $0x1b] sm:$0x1]
    %7108 = vst.msk [vmem:[#allocation11 + $0x37] sm:$0x1] %vm6171, %v7107
    %v7109 = vld [vmem:[#allocation10 + $0x1c] sm:$0x1]
    %7110 = vst.msk [vmem:[#allocation11 + $0x39] sm:$0x1] %vm6171, %v7109
    %v7111 = vld [vmem:[#allocation10 + $0x1d] sm:$0x1]
    %7112 = vst.msk [vmem:[#allocation11 + $0x3b] sm:$0x1] %vm6171, %v7111
    %v7113 = vld [vmem:[#allocation10 + $0x1e] sm:$0x1]
    %7114 = vst.msk [vmem:[#allocation11 + $0x3d] sm:$0x1] %vm6171, %v7113
    %v7115 = vld [vmem:[#allocation10 + $0x1f] sm:$0x1]
    %7116 = vst.msk [vmem:[#allocation11 + $0x3f] sm:$0x1] %vm6171, %v7115
    %v7117 = vld [vmem:[#allocation11] sm:$0xff]
    %v7118 = vld [vmem:[#allocation11 + $0x8] sm:$0xff]
    %v7119 = vld [vmem:[#allocation11 + $0x10] sm:$0xff]
    %v7120 = vld [vmem:[#allocation11 + $0x18] sm:$0xff]
    %v7121 = vld [vmem:[#allocation11 + $0x20] sm:$0xff]
    %v7122 = vld [vmem:[#allocation11 + $0x28] sm:$0xff]
    %v7123 = vld [vmem:[#allocation11 + $0x30] sm:$0xff]
    %v7124 = vld [vmem:[#allocation11 + $0x38] sm:$0xff]
    %v7133 = vcombine.high %v7117, %v7117
    %v7135 = vunpack.c.l.s4 1983009808
    %v7136 = vunpack.c.0.s8 %v7135
    %v7137 = vlaneseq
    %v7138 = vshrl.u32 %v7137, 7
    %v7139 = vsub.s32 %v7136, %v7138
    %v7140 = vrot.slane %v7117, %v7139
    %v7142 = vunpack.c.l.s4 1983009808
    %v7143 = vunpack.c.0.s8 %v7142
    %v7144 = vlaneseq
    %v7145 = vshrl.u32 %v7144, 7
    %v7146 = vsub.s32 %v7143, %v7145
    %v7147 = vrot.slane %v7133, %v7146
    %v7148 = vcombine.high %v7140, %v7140
    %v7149 = vcombine.high %v7147, %v7147
    %v7150 = vcombine.high %v7118, %v7118
    %v7152 = vunpack.c.l.s4 1983009808
    %v7153 = vunpack.c.0.s8 %v7152
    %v7154 = vlaneseq
    %v7155 = vshrl.u32 %v7154, 7
    %v7156 = vsub.s32 %v7153, %v7155
    %v7157 = vrot.slane %v7118, %v7156
    %v7159 = vunpack.c.l.s4 1983009808
    %v7160 = vunpack.c.0.s8 %v7159
    %v7161 = vlaneseq
    %v7162 = vshrl.u32 %v7161, 7
    %v7163 = vsub.s32 %v7160, %v7162
    %v7164 = vrot.slane %v7150, %v7163
    %v7165 = vcombine.high %v7157, %v7157
    %v7166 = vcombine.high %v7164, %v7164
    %v7167 = vcombine.high %v7119, %v7119
    %v7169 = vunpack.c.l.s4 1983009808
    %v7170 = vunpack.c.0.s8 %v7169
    %v7171 = vlaneseq
    %v7172 = vshrl.u32 %v7171, 7
    %v7173 = vsub.s32 %v7170, %v7172
    %v7174 = vrot.slane %v7119, %v7173
    %v7176 = vunpack.c.l.s4 1983009808
    %v7177 = vunpack.c.0.s8 %v7176
    %v7178 = vlaneseq
    %v7179 = vshrl.u32 %v7178, 7
    %v7180 = vsub.s32 %v7177, %v7179
    %v7181 = vrot.slane %v7167, %v7180
    %v7182 = vcombine.high %v7174, %v7174
    %v7183 = vcombine.high %v7181, %v7181
    %v7184 = vcombine.high %v7120, %v7120
    %v7186 = vunpack.c.l.s4 1983009808
    %v7187 = vunpack.c.0.s8 %v7186
    %v7188 = vlaneseq
    %v7189 = vshrl.u32 %v7188, 7
    %v7190 = vsub.s32 %v7187, %v7189
    %v7191 = vrot.slane %v7120, %v7190
    %v7193 = vunpack.c.l.s4 1983009808
    %v7194 = vunpack.c.0.s8 %v7193
    %v7195 = vlaneseq
    %v7196 = vshrl.u32 %v7195, 7
    %v7197 = vsub.s32 %v7194, %v7196
    %v7198 = vrot.slane %v7184, %v7197
    %v7199 = vcombine.high %v7191, %v7191
    %v7200 = vcombine.high %v7198, %v7198
    %v7201 = vcombine.high %v7121, %v7121
    %v7203 = vunpack.c.l.s4 1983009808
    %v7204 = vunpack.c.0.s8 %v7203
    %v7205 = vlaneseq
    %v7206 = vshrl.u32 %v7205, 7
    %v7207 = vsub.s32 %v7204, %v7206
    %v7208 = vrot.slane %v7121, %v7207
    %v7210 = vunpack.c.l.s4 1983009808
    %v7211 = vunpack.c.0.s8 %v7210
    %v7212 = vlaneseq
    %v7213 = vshrl.u32 %v7212, 7
    %v7214 = vsub.s32 %v7211, %v7213
    %v7215 = vrot.slane %v7201, %v7214
    %v7216 = vcombine.high %v7208, %v7208
    %v7217 = vcombine.high %v7215, %v7215
    %v7218 = vcombine.high %v7122, %v7122
    %v7220 = vunpack.c.l.s4 1983009808
    %v7221 = vunpack.c.0.s8 %v7220
    %v7222 = vlaneseq
    %v7223 = vshrl.u32 %v7222, 7
    %v7224 = vsub.s32 %v7221, %v7223
    %v7225 = vrot.slane %v7122, %v7224
    %v7227 = vunpack.c.l.s4 1983009808
    %v7228 = vunpack.c.0.s8 %v7227
    %v7229 = vlaneseq
    %v7230 = vshrl.u32 %v7229, 7
    %v7231 = vsub.s32 %v7228, %v7230
    %v7232 = vrot.slane %v7218, %v7231
    %v7233 = vcombine.high %v7225, %v7225
    %v7234 = vcombine.high %v7232, %v7232
    %v7235 = vcombine.high %v7123, %v7123
    %v7237 = vunpack.c.l.s4 1983009808
    %v7238 = vunpack.c.0.s8 %v7237
    %v7239 = vlaneseq
    %v7240 = vshrl.u32 %v7239, 7
    %v7241 = vsub.s32 %v7238, %v7240
    %v7242 = vrot.slane %v7123, %v7241
    %v7244 = vunpack.c.l.s4 1983009808
    %v7245 = vunpack.c.0.s8 %v7244
    %v7246 = vlaneseq
    %v7247 = vshrl.u32 %v7246, 7
    %v7248 = vsub.s32 %v7245, %v7247
    %v7249 = vrot.slane %v7235, %v7248
    %v7250 = vcombine.high %v7242, %v7242
    %v7251 = vcombine.high %v7249, %v7249
    %v7252 = vcombine.high %v7124, %v7124
    %v7254 = vunpack.c.l.s4 1983009808
    %v7255 = vunpack.c.0.s8 %v7254
    %v7256 = vlaneseq
    %v7257 = vshrl.u32 %v7256, 7
    %v7258 = vsub.s32 %v7255, %v7257
    %v7259 = vrot.slane %v7124, %v7258
    %v7261 = vunpack.c.l.s4 1983009808
    %v7262 = vunpack.c.0.s8 %v7261
    %v7263 = vlaneseq
    %v7264 = vshrl.u32 %v7263, 7
    %v7265 = vsub.s32 %v7262, %v7264
    %v7266 = vrot.slane %v7252, %v7265
    %v7267 = vcombine.high %v7259, %v7259
    %v7268 = vcombine.high %v7266, %v7266
    %v7301 = vpack.c.bf16 %v7140, %v7140
    %v7302 = vpack.c.bf16 %v7148, %v7148
    %v7303 = vpack.c.bf16 %v7147, %v7147
    %v7304 = vpack.c.bf16 %v7149, %v7149
    %v7305 = vpack.c.bf16 %v7157, %v7157
    %v7306 = vpack.c.bf16 %v7165, %v7165
    %v7307 = vpack.c.bf16 %v7164, %v7164
    %v7308 = vpack.c.bf16 %v7166, %v7166
    %v7309 = vpack.c.bf16 %v7174, %v7174
    %v7310 = vpack.c.bf16 %v7182, %v7182
    %v7311 = vpack.c.bf16 %v7181, %v7181
    %v7312 = vpack.c.bf16 %v7183, %v7183
    %v7313 = vpack.c.bf16 %v7191, %v7191
    %v7314 = vpack.c.bf16 %v7199, %v7199
    %v7315 = vpack.c.bf16 %v7198, %v7198
    %v7316 = vpack.c.bf16 %v7200, %v7200
    %v7317 = vpack.c.bf16 %v7208, %v7208
    %v7318 = vpack.c.bf16 %v7216, %v7216
    %v7319 = vpack.c.bf16 %v7215, %v7215
    %v7320 = vpack.c.bf16 %v7217, %v7217
    %v7321 = vpack.c.bf16 %v7225, %v7225
    %v7322 = vpack.c.bf16 %v7233, %v7233
    %v7323 = vpack.c.bf16 %v7232, %v7232
    %v7324 = vpack.c.bf16 %v7234, %v7234
    %v7325 = vpack.c.bf16 %v7242, %v7242
    %v7326 = vpack.c.bf16 %v7250, %v7250
    %v7327 = vpack.c.bf16 %v7249, %v7249
    %v7328 = vpack.c.bf16 %v7251, %v7251
    %v7329 = vpack.c.bf16 %v7259, %v7259
    %v7330 = vpack.c.bf16 %v7267, %v7267
    %v7331 = vpack.c.bf16 %v7266, %v7266
    %v7332 = vpack.c.bf16 %v7268, %v7268
    %v7333 = vld [vmem:[%s9] sm:$0xf]
    %v7334 = vld [vmem:[%s9 + $0x4] sm:$0xf]
    %v7335 = vld [vmem:[%s9 + $0x8] sm:$0xf]
    %v7336 = vld [vmem:[%s9 + $0xc] sm:$0xf]
    %v7337 = vld [vmem:[%s9 + $0x10] sm:$0xf]
    %v7338 = vld [vmem:[%s9 + $0x14] sm:$0xf]
    %v7339 = vld [vmem:[%s9 + $0x18] sm:$0xf]
    %v7340 = vld [vmem:[%s9 + $0x1c] sm:$0xf]
    %v7341 = vld [vmem:[%s9 + $0x20] sm:$0xf]
    %v7342 = vld [vmem:[%s9 + $0x24] sm:$0xf]
    %v7343 = vld [vmem:[%s9 + $0x28] sm:$0xf]
    %v7344 = vld [vmem:[%s9 + $0x2c] sm:$0xf]
    %v7345 = vld [vmem:[%s9 + $0x30] sm:$0xf]
    %v7346 = vld [vmem:[%s9 + $0x34] sm:$0xf]
    %v7347 = vld [vmem:[%s9 + $0x38] sm:$0xf]
    %v7348 = vld [vmem:[%s9 + $0x3c] sm:$0xf]
    %v7349 = vld [vmem:[%s9 + $0x40] sm:$0xf]
    %v7350 = vld [vmem:[%s9 + $0x44] sm:$0xf]
    %v7351 = vld [vmem:[%s9 + $0x48] sm:$0xf]
    %v7352 = vld [vmem:[%s9 + $0x4c] sm:$0xf]
    %v7353 = vld [vmem:[%s9 + $0x50] sm:$0xf]
    %v7354 = vld [vmem:[%s9 + $0x54] sm:$0xf]
    %v7355 = vld [vmem:[%s9 + $0x58] sm:$0xf]
    %v7356 = vld [vmem:[%s9 + $0x5c] sm:$0xf]
    %v7357 = vld [vmem:[%s9 + $0x60] sm:$0xf]
    %v7358 = vld [vmem:[%s9 + $0x64] sm:$0xf]
    %v7359 = vld [vmem:[%s9 + $0x68] sm:$0xf]
    %v7360 = vld [vmem:[%s9 + $0x6c] sm:$0xf]
    %v7361 = vld [vmem:[%s9 + $0x70] sm:$0xf]
    %v7362 = vld [vmem:[%s9 + $0x74] sm:$0xf]
    %v7363 = vld [vmem:[%s9 + $0x78] sm:$0xf]
    %v7364 = vld [vmem:[%s9 + $0x7c] sm:$0xf]
    %v7365 = vld [vmem:[%s9 + $0x80] sm:$0xf]
    %v7366 = vld [vmem:[%s9 + $0x84] sm:$0xf]
    %v7367 = vld [vmem:[%s9 + $0x88] sm:$0xf]
    %v7368 = vld [vmem:[%s9 + $0x8c] sm:$0xf]
    %v7369 = vld [vmem:[%s9 + $0x90] sm:$0xf]
    %v7370 = vld [vmem:[%s9 + $0x94] sm:$0xf]
    %v7371 = vld [vmem:[%s9 + $0x98] sm:$0xf]
    %v7372 = vld [vmem:[%s9 + $0x9c] sm:$0xf]
    %v7373 = vld [vmem:[%s9 + $0xa0] sm:$0xf]
    %v7374 = vld [vmem:[%s9 + $0xa4] sm:$0xf]
    %v7375 = vld [vmem:[%s9 + $0xa8] sm:$0xf]
    %v7376 = vld [vmem:[%s9 + $0xac] sm:$0xf]
    %v7377 = vld [vmem:[%s9 + $0xb0] sm:$0xf]
    %v7378 = vld [vmem:[%s9 + $0xb4] sm:$0xf]
    %v7379 = vld [vmem:[%s9 + $0xb8] sm:$0xf]
    %v7380 = vld [vmem:[%s9 + $0xbc] sm:$0xf]
    %v7381 = vld [vmem:[%s9 + $0xc0] sm:$0xf]
    %v7382 = vld [vmem:[%s9 + $0xc4] sm:$0xf]
    %v7383 = vld [vmem:[%s9 + $0xc8] sm:$0xf]
    %v7384 = vld [vmem:[%s9 + $0xcc] sm:$0xf]
    %v7385 = vld [vmem:[%s9 + $0xd0] sm:$0xf]
    %v7386 = vld [vmem:[%s9 + $0xd4] sm:$0xf]
    %v7387 = vld [vmem:[%s9 + $0xd8] sm:$0xf]
    %v7388 = vld [vmem:[%s9 + $0xdc] sm:$0xf]
    %v7389 = vld [vmem:[%s9 + $0xe0] sm:$0xf]
    %v7390 = vld [vmem:[%s9 + $0xe4] sm:$0xf]
    %v7391 = vld [vmem:[%s9 + $0xe8] sm:$0xf]
    %v7392 = vld [vmem:[%s9 + $0xec] sm:$0xf]
    %v7393 = vld [vmem:[%s9 + $0xf0] sm:$0xf]
    %v7394 = vld [vmem:[%s9 + $0xf4] sm:$0xf]
    %v7395 = vld [vmem:[%s9 + $0xf8] sm:$0xf]
    %v7396 = vld [vmem:[%s9 + $0xfc] sm:$0xf]
    %v7397 = vld [vmem:[%s9 + $0x100] sm:$0xf]
    %v7398 = vld [vmem:[%s9 + $0x104] sm:$0xf]
    %v7399 = vld [vmem:[%s9 + $0x108] sm:$0xf]
    %v7400 = vld [vmem:[%s9 + $0x10c] sm:$0xf]
    %v7401 = vld [vmem:[%s9 + $0x110] sm:$0xf]
    %v7402 = vld [vmem:[%s9 + $0x114] sm:$0xf]
    %v7403 = vld [vmem:[%s9 + $0x118] sm:$0xf]
    %v7404 = vld [vmem:[%s9 + $0x11c] sm:$0xf]
    %v7405 = vld [vmem:[%s9 + $0x120] sm:$0xf]
    %v7406 = vld [vmem:[%s9 + $0x124] sm:$0xf]
    %v7407 = vld [vmem:[%s9 + $0x128] sm:$0xf]
    %v7408 = vld [vmem:[%s9 + $0x12c] sm:$0xf]
    %v7409 = vld [vmem:[%s9 + $0x130] sm:$0xf]
    %v7410 = vld [vmem:[%s9 + $0x134] sm:$0xf]
    %v7411 = vld [vmem:[%s9 + $0x138] sm:$0xf]
    %v7412 = vld [vmem:[%s9 + $0x13c] sm:$0xf]
    %v7413 = vld [vmem:[%s9 + $0x140] sm:$0xf]
    %v7414 = vld [vmem:[%s9 + $0x144] sm:$0xf]
    %v7415 = vld [vmem:[%s9 + $0x148] sm:$0xf]
    %v7416 = vld [vmem:[%s9 + $0x14c] sm:$0xf]
    %v7417 = vld [vmem:[%s9 + $0x150] sm:$0xf]
    %v7418 = vld [vmem:[%s9 + $0x154] sm:$0xf]
    %v7419 = vld [vmem:[%s9 + $0x158] sm:$0xf]
    %v7420 = vld [vmem:[%s9 + $0x15c] sm:$0xf]
    %v7421 = vld [vmem:[%s9 + $0x160] sm:$0xf]
    %v7422 = vld [vmem:[%s9 + $0x164] sm:$0xf]
    %v7423 = vld [vmem:[%s9 + $0x168] sm:$0xf]
    %v7424 = vld [vmem:[%s9 + $0x16c] sm:$0xf]
    %v7425 = vld [vmem:[%s9 + $0x170] sm:$0xf]
    %v7426 = vld [vmem:[%s9 + $0x174] sm:$0xf]
    %v7427 = vld [vmem:[%s9 + $0x178] sm:$0xf]
    %v7428 = vld [vmem:[%s9 + $0x17c] sm:$0xf]
    %v7429 = vld [vmem:[%s9 + $0x180] sm:$0xf]
    %v7430 = vld [vmem:[%s9 + $0x184] sm:$0xf]
    %v7431 = vld [vmem:[%s9 + $0x188] sm:$0xf]
    %v7432 = vld [vmem:[%s9 + $0x18c] sm:$0xf]
    %v7433 = vld [vmem:[%s9 + $0x190] sm:$0xf]
    %v7434 = vld [vmem:[%s9 + $0x194] sm:$0xf]
    %v7435 = vld [vmem:[%s9 + $0x198] sm:$0xf]
    %v7436 = vld [vmem:[%s9 + $0x19c] sm:$0xf]
    %v7437 = vld [vmem:[%s9 + $0x1a0] sm:$0xf]
    %v7438 = vld [vmem:[%s9 + $0x1a4] sm:$0xf]
    %v7439 = vld [vmem:[%s9 + $0x1a8] sm:$0xf]
    %v7440 = vld [vmem:[%s9 + $0x1ac] sm:$0xf]
    %v7441 = vld [vmem:[%s9 + $0x1b0] sm:$0xf]
    %v7442 = vld [vmem:[%s9 + $0x1b4] sm:$0xf]
    %v7443 = vld [vmem:[%s9 + $0x1b8] sm:$0xf]
    %v7444 = vld [vmem:[%s9 + $0x1bc] sm:$0xf]
    %v7445 = vld [vmem:[%s9 + $0x1c0] sm:$0xf]
    %v7446 = vld [vmem:[%s9 + $0x1c4] sm:$0xf]
    %v7447 = vld [vmem:[%s9 + $0x1c8] sm:$0xf]
    %v7448 = vld [vmem:[%s9 + $0x1cc] sm:$0xf]
    %v7449 = vld [vmem:[%s9 + $0x1d0] sm:$0xf]
    %v7450 = vld [vmem:[%s9 + $0x1d4] sm:$0xf]
    %v7451 = vld [vmem:[%s9 + $0x1d8] sm:$0xf]
    %v7452 = vld [vmem:[%s9 + $0x1dc] sm:$0xf]
    %v7453 = vld [vmem:[%s9 + $0x1e0] sm:$0xf]
    %v7454 = vld [vmem:[%s9 + $0x1e4] sm:$0xf]
    %v7455 = vld [vmem:[%s9 + $0x1e8] sm:$0xf]
    %v7456 = vld [vmem:[%s9 + $0x1ec] sm:$0xf]
    %v7457 = vld [vmem:[%s9 + $0x1f0] sm:$0xf]
    %v7458 = vld [vmem:[%s9 + $0x1f4] sm:$0xf]
    %v7459 = vld [vmem:[%s9 + $0x1f8] sm:$0xf]
    %v7460 = vld [vmem:[%s9 + $0x1fc] sm:$0xf]
    %v7461 = vld [vmem:[%s9 + $0x200] sm:$0xf]
    %v7462 = vld [vmem:[%s9 + $0x204] sm:$0xf]
    %v7463 = vld [vmem:[%s9 + $0x208] sm:$0xf]
    %v7464 = vld [vmem:[%s9 + $0x20c] sm:$0xf]
    %v7465 = vld [vmem:[%s9 + $0x210] sm:$0xf]
    %v7466 = vld [vmem:[%s9 + $0x214] sm:$0xf]
    %v7467 = vld [vmem:[%s9 + $0x218] sm:$0xf]
    %v7468 = vld [vmem:[%s9 + $0x21c] sm:$0xf]
    %v7469 = vld [vmem:[%s9 + $0x220] sm:$0xf]
    %v7470 = vld [vmem:[%s9 + $0x224] sm:$0xf]
    %v7471 = vld [vmem:[%s9 + $0x228] sm:$0xf]
    %v7472 = vld [vmem:[%s9 + $0x22c] sm:$0xf]
    %v7473 = vld [vmem:[%s9 + $0x230] sm:$0xf]
    %v7474 = vld [vmem:[%s9 + $0x234] sm:$0xf]
    %v7475 = vld [vmem:[%s9 + $0x238] sm:$0xf]
    %v7476 = vld [vmem:[%s9 + $0x23c] sm:$0xf]
    %v7477 = vld [vmem:[%s9 + $0x240] sm:$0xf]
    %v7478 = vld [vmem:[%s9 + $0x244] sm:$0xf]
    %v7479 = vld [vmem:[%s9 + $0x248] sm:$0xf]
    %v7480 = vld [vmem:[%s9 + $0x24c] sm:$0xf]
    %v7481 = vld [vmem:[%s9 + $0x250] sm:$0xf]
    %v7482 = vld [vmem:[%s9 + $0x254] sm:$0xf]
    %v7483 = vld [vmem:[%s9 + $0x258] sm:$0xf]
    %v7484 = vld [vmem:[%s9 + $0x25c] sm:$0xf]
    %v7485 = vld [vmem:[%s9 + $0x260] sm:$0xf]
    %v7486 = vld [vmem:[%s9 + $0x264] sm:$0xf]
    %v7487 = vld [vmem:[%s9 + $0x268] sm:$0xf]
    %v7488 = vld [vmem:[%s9 + $0x26c] sm:$0xf]
    %v7489 = vld [vmem:[%s9 + $0x270] sm:$0xf]
    %v7490 = vld [vmem:[%s9 + $0x274] sm:$0xf]
    %v7491 = vld [vmem:[%s9 + $0x278] sm:$0xf]
    %v7492 = vld [vmem:[%s9 + $0x27c] sm:$0xf]
    %v7493 = vld [vmem:[%s9 + $0x280] sm:$0xf]
    %v7494 = vld [vmem:[%s9 + $0x284] sm:$0xf]
    %v7495 = vld [vmem:[%s9 + $0x288] sm:$0xf]
    %v7496 = vld [vmem:[%s9 + $0x28c] sm:$0xf]
    %v7497 = vld [vmem:[%s9 + $0x290] sm:$0xf]
    %v7498 = vld [vmem:[%s9 + $0x294] sm:$0xf]
    %v7499 = vld [vmem:[%s9 + $0x298] sm:$0xf]
    %v7500 = vld [vmem:[%s9 + $0x29c] sm:$0xf]
    %v7501 = vld [vmem:[%s9 + $0x2a0] sm:$0xf]
    %v7502 = vld [vmem:[%s9 + $0x2a4] sm:$0xf]
    %v7503 = vld [vmem:[%s9 + $0x2a8] sm:$0xf]
    %v7504 = vld [vmem:[%s9 + $0x2ac] sm:$0xf]
    %v7505 = vld [vmem:[%s9 + $0x2b0] sm:$0xf]
    %v7506 = vld [vmem:[%s9 + $0x2b4] sm:$0xf]
    %v7507 = vld [vmem:[%s9 + $0x2b8] sm:$0xf]
    %v7508 = vld [vmem:[%s9 + $0x2bc] sm:$0xf]
    %v7509 = vld [vmem:[%s9 + $0x2c0] sm:$0xf]
    %v7510 = vld [vmem:[%s9 + $0x2c4] sm:$0xf]
    %v7511 = vld [vmem:[%s9 + $0x2c8] sm:$0xf]
    %v7512 = vld [vmem:[%s9 + $0x2cc] sm:$0xf]
    %v7513 = vld [vmem:[%s9 + $0x2d0] sm:$0xf]
    %v7514 = vld [vmem:[%s9 + $0x2d4] sm:$0xf]
    %v7515 = vld [vmem:[%s9 + $0x2d8] sm:$0xf]
    %v7516 = vld [vmem:[%s9 + $0x2dc] sm:$0xf]
    %v7517 = vld [vmem:[%s9 + $0x2e0] sm:$0xf]
    %v7518 = vld [vmem:[%s9 + $0x2e4] sm:$0xf]
    %v7519 = vld [vmem:[%s9 + $0x2e8] sm:$0xf]
    %v7520 = vld [vmem:[%s9 + $0x2ec] sm:$0xf]
    %v7521 = vld [vmem:[%s9 + $0x2f0] sm:$0xf]
    %v7522 = vld [vmem:[%s9 + $0x2f4] sm:$0xf]
    %v7523 = vld [vmem:[%s9 + $0x2f8] sm:$0xf]
    %v7524 = vld [vmem:[%s9 + $0x2fc] sm:$0xf]
    %v7525 = vld [vmem:[%s9 + $0x300] sm:$0xf]
    %v7526 = vld [vmem:[%s9 + $0x304] sm:$0xf]
    %v7527 = vld [vmem:[%s9 + $0x308] sm:$0xf]
    %v7528 = vld [vmem:[%s9 + $0x30c] sm:$0xf]
    %v7529 = vld [vmem:[%s9 + $0x310] sm:$0xf]
    %v7530 = vld [vmem:[%s9 + $0x314] sm:$0xf]
    %v7531 = vld [vmem:[%s9 + $0x318] sm:$0xf]
    %v7532 = vld [vmem:[%s9 + $0x31c] sm:$0xf]
    %v7533 = vld [vmem:[%s9 + $0x320] sm:$0xf]
    %v7534 = vld [vmem:[%s9 + $0x324] sm:$0xf]
    %v7535 = vld [vmem:[%s9 + $0x328] sm:$0xf]
    %v7536 = vld [vmem:[%s9 + $0x32c] sm:$0xf]
    %v7537 = vld [vmem:[%s9 + $0x330] sm:$0xf]
    %v7538 = vld [vmem:[%s9 + $0x334] sm:$0xf]
    %v7539 = vld [vmem:[%s9 + $0x338] sm:$0xf]
    %v7540 = vld [vmem:[%s9 + $0x33c] sm:$0xf]
    %v7541 = vld [vmem:[%s9 + $0x340] sm:$0xf]
    %v7542 = vld [vmem:[%s9 + $0x344] sm:$0xf]
    %v7543 = vld [vmem:[%s9 + $0x348] sm:$0xf]
    %v7544 = vld [vmem:[%s9 + $0x34c] sm:$0xf]
    %v7545 = vld [vmem:[%s9 + $0x350] sm:$0xf]
    %v7546 = vld [vmem:[%s9 + $0x354] sm:$0xf]
    %v7547 = vld [vmem:[%s9 + $0x358] sm:$0xf]
    %v7548 = vld [vmem:[%s9 + $0x35c] sm:$0xf]
    %v7549 = vld [vmem:[%s9 + $0x360] sm:$0xf]
    %v7550 = vld [vmem:[%s9 + $0x364] sm:$0xf]
    %v7551 = vld [vmem:[%s9 + $0x368] sm:$0xf]
    %v7552 = vld [vmem:[%s9 + $0x36c] sm:$0xf]
    %v7553 = vld [vmem:[%s9 + $0x370] sm:$0xf]
    %v7554 = vld [vmem:[%s9 + $0x374] sm:$0xf]
    %v7555 = vld [vmem:[%s9 + $0x378] sm:$0xf]
    %v7556 = vld [vmem:[%s9 + $0x37c] sm:$0xf]
    %v7557 = vld [vmem:[%s9 + $0x380] sm:$0xf]
    %v7558 = vld [vmem:[%s9 + $0x384] sm:$0xf]
    %v7559 = vld [vmem:[%s9 + $0x388] sm:$0xf]
    %v7560 = vld [vmem:[%s9 + $0x38c] sm:$0xf]
    %v7561 = vld [vmem:[%s9 + $0x390] sm:$0xf]
    %v7562 = vld [vmem:[%s9 + $0x394] sm:$0xf]
    %v7563 = vld [vmem:[%s9 + $0x398] sm:$0xf]
    %v7564 = vld [vmem:[%s9 + $0x39c] sm:$0xf]
    %v7565 = vld [vmem:[%s9 + $0x3a0] sm:$0xf]
    %v7566 = vld [vmem:[%s9 + $0x3a4] sm:$0xf]
    %v7567 = vld [vmem:[%s9 + $0x3a8] sm:$0xf]
    %v7568 = vld [vmem:[%s9 + $0x3ac] sm:$0xf]
    %v7569 = vld [vmem:[%s9 + $0x3b0] sm:$0xf]
    %v7570 = vld [vmem:[%s9 + $0x3b4] sm:$0xf]
    %v7571 = vld [vmem:[%s9 + $0x3b8] sm:$0xf]
    %v7572 = vld [vmem:[%s9 + $0x3bc] sm:$0xf]
    %v7573 = vld [vmem:[%s9 + $0x3c0] sm:$0xf]
    %v7574 = vld [vmem:[%s9 + $0x3c4] sm:$0xf]
    %v7575 = vld [vmem:[%s9 + $0x3c8] sm:$0xf]
    %v7576 = vld [vmem:[%s9 + $0x3cc] sm:$0xf]
    %v7577 = vld [vmem:[%s9 + $0x3d0] sm:$0xf]
    %v7578 = vld [vmem:[%s9 + $0x3d4] sm:$0xf]
    %v7579 = vld [vmem:[%s9 + $0x3d8] sm:$0xf]
    %v7580 = vld [vmem:[%s9 + $0x3dc] sm:$0xf]
    %v7581 = vld [vmem:[%s9 + $0x3e0] sm:$0xf]
    %v7582 = vld [vmem:[%s9 + $0x3e4] sm:$0xf]
    %v7583 = vld [vmem:[%s9 + $0x3e8] sm:$0xf]
    %v7584 = vld [vmem:[%s9 + $0x3ec] sm:$0xf]
    %v7585 = vld [vmem:[%s9 + $0x3f0] sm:$0xf]
    %v7586 = vld [vmem:[%s9 + $0x3f4] sm:$0xf]
    %v7587 = vld [vmem:[%s9 + $0x3f8] sm:$0xf]
    %v7588 = vld [vmem:[%s9 + $0x3fc] sm:$0xf]
    %v7589 = vld [vmem:[%s9 + $0x400] sm:$0xf]
    %v7590 = vld [vmem:[%s9 + $0x404] sm:$0xf]
    %v7591 = vld [vmem:[%s9 + $0x408] sm:$0xf]
    %v7592 = vld [vmem:[%s9 + $0x40c] sm:$0xf]
    %v7593 = vld [vmem:[%s9 + $0x410] sm:$0xf]
    %v7594 = vld [vmem:[%s9 + $0x414] sm:$0xf]
    %v7595 = vld [vmem:[%s9 + $0x418] sm:$0xf]
    %v7596 = vld [vmem:[%s9 + $0x41c] sm:$0xf]
    %v7597 = vld [vmem:[%s9 + $0x420] sm:$0xf]
    %v7598 = vld [vmem:[%s9 + $0x424] sm:$0xf]
    %v7599 = vld [vmem:[%s9 + $0x428] sm:$0xf]
    %v7600 = vld [vmem:[%s9 + $0x42c] sm:$0xf]
    %v7601 = vld [vmem:[%s9 + $0x430] sm:$0xf]
    %v7602 = vld [vmem:[%s9 + $0x434] sm:$0xf]
    %v7603 = vld [vmem:[%s9 + $0x438] sm:$0xf]
    %v7604 = vld [vmem:[%s9 + $0x43c] sm:$0xf]
    %v7605 = vld [vmem:[%s9 + $0x440] sm:$0xf]
    %v7606 = vld [vmem:[%s9 + $0x444] sm:$0xf]
    %v7607 = vld [vmem:[%s9 + $0x448] sm:$0xf]
    %v7608 = vld [vmem:[%s9 + $0x44c] sm:$0xf]
    %v7609 = vld [vmem:[%s9 + $0x450] sm:$0xf]
    %v7610 = vld [vmem:[%s9 + $0x454] sm:$0xf]
    %v7611 = vld [vmem:[%s9 + $0x458] sm:$0xf]
    %v7612 = vld [vmem:[%s9 + $0x45c] sm:$0xf]
    %v7613 = vld [vmem:[%s9 + $0x460] sm:$0xf]
    %v7614 = vld [vmem:[%s9 + $0x464] sm:$0xf]
    %v7615 = vld [vmem:[%s9 + $0x468] sm:$0xf]
    %v7616 = vld [vmem:[%s9 + $0x46c] sm:$0xf]
    %v7617 = vld [vmem:[%s9 + $0x470] sm:$0xf]
    %v7618 = vld [vmem:[%s9 + $0x474] sm:$0xf]
    %v7619 = vld [vmem:[%s9 + $0x478] sm:$0xf]
    %v7620 = vld [vmem:[%s9 + $0x47c] sm:$0xf]
    %v7621 = vld [vmem:[%s9 + $0x480] sm:$0xf]
    %v7622 = vld [vmem:[%s9 + $0x484] sm:$0xf]
    %v7623 = vld [vmem:[%s9 + $0x488] sm:$0xf]
    %v7624 = vld [vmem:[%s9 + $0x48c] sm:$0xf]
    %v7625 = vld [vmem:[%s9 + $0x490] sm:$0xf]
    %v7626 = vld [vmem:[%s9 + $0x494] sm:$0xf]
    %v7627 = vld [vmem:[%s9 + $0x498] sm:$0xf]
    %v7628 = vld [vmem:[%s9 + $0x49c] sm:$0xf]
    %v7629 = vld [vmem:[%s9 + $0x4a0] sm:$0xf]
    %v7630 = vld [vmem:[%s9 + $0x4a4] sm:$0xf]
    %v7631 = vld [vmem:[%s9 + $0x4a8] sm:$0xf]
    %v7632 = vld [vmem:[%s9 + $0x4ac] sm:$0xf]
    %v7633 = vld [vmem:[%s9 + $0x4b0] sm:$0xf]
    %v7634 = vld [vmem:[%s9 + $0x4b4] sm:$0xf]
    %v7635 = vld [vmem:[%s9 + $0x4b8] sm:$0xf]
    %v7636 = vld [vmem:[%s9 + $0x4bc] sm:$0xf]
    %v7637 = vld [vmem:[%s9 + $0x4c0] sm:$0xf]
    %v7638 = vld [vmem:[%s9 + $0x4c4] sm:$0xf]
    %v7639 = vld [vmem:[%s9 + $0x4c8] sm:$0xf]
    %v7640 = vld [vmem:[%s9 + $0x4cc] sm:$0xf]
    %v7641 = vld [vmem:[%s9 + $0x4d0] sm:$0xf]
    %v7642 = vld [vmem:[%s9 + $0x4d4] sm:$0xf]
    %v7643 = vld [vmem:[%s9 + $0x4d8] sm:$0xf]
    %v7644 = vld [vmem:[%s9 + $0x4dc] sm:$0xf]
    %v7645 = vld [vmem:[%s9 + $0x4e0] sm:$0xf]
    %v7646 = vld [vmem:[%s9 + $0x4e4] sm:$0xf]
    %v7647 = vld [vmem:[%s9 + $0x4e8] sm:$0xf]
    %v7648 = vld [vmem:[%s9 + $0x4ec] sm:$0xf]
    %v7649 = vld [vmem:[%s9 + $0x4f0] sm:$0xf]
    %v7650 = vld [vmem:[%s9 + $0x4f4] sm:$0xf]
    %v7651 = vld [vmem:[%s9 + $0x4f8] sm:$0xf]
    %v7652 = vld [vmem:[%s9 + $0x4fc] sm:$0xf]
    %v7653 = vld [vmem:[%s9 + $0x500] sm:$0xf]
    %v7654 = vld [vmem:[%s9 + $0x504] sm:$0xf]
    %v7655 = vld [vmem:[%s9 + $0x508] sm:$0xf]
    %v7656 = vld [vmem:[%s9 + $0x50c] sm:$0xf]
    %v7657 = vld [vmem:[%s9 + $0x510] sm:$0xf]
    %v7658 = vld [vmem:[%s9 + $0x514] sm:$0xf]
    %v7659 = vld [vmem:[%s9 + $0x518] sm:$0xf]
    %v7660 = vld [vmem:[%s9 + $0x51c] sm:$0xf]
    %v7661 = vld [vmem:[%s9 + $0x520] sm:$0xf]
    %v7662 = vld [vmem:[%s9 + $0x524] sm:$0xf]
    %v7663 = vld [vmem:[%s9 + $0x528] sm:$0xf]
    %v7664 = vld [vmem:[%s9 + $0x52c] sm:$0xf]
    %v7665 = vld [vmem:[%s9 + $0x530] sm:$0xf]
    %v7666 = vld [vmem:[%s9 + $0x534] sm:$0xf]
    %v7667 = vld [vmem:[%s9 + $0x538] sm:$0xf]
    %v7668 = vld [vmem:[%s9 + $0x53c] sm:$0xf]
    %v7669 = vld [vmem:[%s9 + $0x540] sm:$0xf]
    %v7670 = vld [vmem:[%s9 + $0x544] sm:$0xf]
    %v7671 = vld [vmem:[%s9 + $0x548] sm:$0xf]
    %v7672 = vld [vmem:[%s9 + $0x54c] sm:$0xf]
    %v7673 = vld [vmem:[%s9 + $0x550] sm:$0xf]
    %v7674 = vld [vmem:[%s9 + $0x554] sm:$0xf]
    %v7675 = vld [vmem:[%s9 + $0x558] sm:$0xf]
    %v7676 = vld [vmem:[%s9 + $0x55c] sm:$0xf]
    %v7677 = vld [vmem:[%s9 + $0x560] sm:$0xf]
    %v7678 = vld [vmem:[%s9 + $0x564] sm:$0xf]
    %v7679 = vld [vmem:[%s9 + $0x568] sm:$0xf]
    %v7680 = vld [vmem:[%s9 + $0x56c] sm:$0xf]
    %v7681 = vld [vmem:[%s9 + $0x570] sm:$0xf]
    %v7682 = vld [vmem:[%s9 + $0x574] sm:$0xf]
    %v7683 = vld [vmem:[%s9 + $0x578] sm:$0xf]
    %v7684 = vld [vmem:[%s9 + $0x57c] sm:$0xf]
    %v7685 = vld [vmem:[%s9 + $0x580] sm:$0xf]
    %v7686 = vld [vmem:[%s9 + $0x584] sm:$0xf]
    %v7687 = vld [vmem:[%s9 + $0x588] sm:$0xf]
    %v7688 = vld [vmem:[%s9 + $0x58c] sm:$0xf]
    %v7689 = vld [vmem:[%s9 + $0x590] sm:$0xf]
    %v7690 = vld [vmem:[%s9 + $0x594] sm:$0xf]
    %v7691 = vld [vmem:[%s9 + $0x598] sm:$0xf]
    %v7692 = vld [vmem:[%s9 + $0x59c] sm:$0xf]
    %v7693 = vld [vmem:[%s9 + $0x5a0] sm:$0xf]
    %v7694 = vld [vmem:[%s9 + $0x5a4] sm:$0xf]
    %v7695 = vld [vmem:[%s9 + $0x5a8] sm:$0xf]
    %v7696 = vld [vmem:[%s9 + $0x5ac] sm:$0xf]
    %v7697 = vld [vmem:[%s9 + $0x5b0] sm:$0xf]
    %v7698 = vld [vmem:[%s9 + $0x5b4] sm:$0xf]
    %v7699 = vld [vmem:[%s9 + $0x5b8] sm:$0xf]
    %v7700 = vld [vmem:[%s9 + $0x5bc] sm:$0xf]
    %v7701 = vld [vmem:[%s9 + $0x5c0] sm:$0xf]
    %v7702 = vld [vmem:[%s9 + $0x5c4] sm:$0xf]
    %v7703 = vld [vmem:[%s9 + $0x5c8] sm:$0xf]
    %v7704 = vld [vmem:[%s9 + $0x5cc] sm:$0xf]
    %v7705 = vld [vmem:[%s9 + $0x5d0] sm:$0xf]
    %v7706 = vld [vmem:[%s9 + $0x5d4] sm:$0xf]
    %v7707 = vld [vmem:[%s9 + $0x5d8] sm:$0xf]
    %v7708 = vld [vmem:[%s9 + $0x5dc] sm:$0xf]
    %v7709 = vld [vmem:[%s9 + $0x5e0] sm:$0xf]
    %v7710 = vld [vmem:[%s9 + $0x5e4] sm:$0xf]
    %v7711 = vld [vmem:[%s9 + $0x5e8] sm:$0xf]
    %v7712 = vld [vmem:[%s9 + $0x5ec] sm:$0xf]
    %v7713 = vld [vmem:[%s9 + $0x5f0] sm:$0xf]
    %v7714 = vld [vmem:[%s9 + $0x5f4] sm:$0xf]
    %v7715 = vld [vmem:[%s9 + $0x5f8] sm:$0xf]
    %v7716 = vld [vmem:[%s9 + $0x5fc] sm:$0xf]
    %v7717 = vld [vmem:[%s9 + $0x600] sm:$0xf]
    %v7718 = vld [vmem:[%s9 + $0x604] sm:$0xf]
    %v7719 = vld [vmem:[%s9 + $0x608] sm:$0xf]
    %v7720 = vld [vmem:[%s9 + $0x60c] sm:$0xf]
    %v7721 = vld [vmem:[%s9 + $0x610] sm:$0xf]
    %v7722 = vld [vmem:[%s9 + $0x614] sm:$0xf]
    %v7723 = vld [vmem:[%s9 + $0x618] sm:$0xf]
    %v7724 = vld [vmem:[%s9 + $0x61c] sm:$0xf]
    %v7725 = vld [vmem:[%s9 + $0x620] sm:$0xf]
    %v7726 = vld [vmem:[%s9 + $0x624] sm:$0xf]
    %v7727 = vld [vmem:[%s9 + $0x628] sm:$0xf]
    %v7728 = vld [vmem:[%s9 + $0x62c] sm:$0xf]
    %v7729 = vld [vmem:[%s9 + $0x630] sm:$0xf]
    %v7730 = vld [vmem:[%s9 + $0x634] sm:$0xf]
    %v7731 = vld [vmem:[%s9 + $0x638] sm:$0xf]
    %v7732 = vld [vmem:[%s9 + $0x63c] sm:$0xf]
    %v7733 = vld [vmem:[%s9 + $0x640] sm:$0xf]
    %v7734 = vld [vmem:[%s9 + $0x644] sm:$0xf]
    %v7735 = vld [vmem:[%s9 + $0x648] sm:$0xf]
    %v7736 = vld [vmem:[%s9 + $0x64c] sm:$0xf]
    %v7737 = vld [vmem:[%s9 + $0x650] sm:$0xf]
    %v7738 = vld [vmem:[%s9 + $0x654] sm:$0xf]
    %v7739 = vld [vmem:[%s9 + $0x658] sm:$0xf]
    %v7740 = vld [vmem:[%s9 + $0x65c] sm:$0xf]
    %v7741 = vld [vmem:[%s9 + $0x660] sm:$0xf]
    %v7742 = vld [vmem:[%s9 + $0x664] sm:$0xf]
    %v7743 = vld [vmem:[%s9 + $0x668] sm:$0xf]
    %v7744 = vld [vmem:[%s9 + $0x66c] sm:$0xf]
    %v7745 = vld [vmem:[%s9 + $0x670] sm:$0xf]
    %v7746 = vld [vmem:[%s9 + $0x674] sm:$0xf]
    %v7747 = vld [vmem:[%s9 + $0x678] sm:$0xf]
    %v7748 = vld [vmem:[%s9 + $0x67c] sm:$0xf]
    %v7749 = vld [vmem:[%s9 + $0x680] sm:$0xf]
    %v7750 = vld [vmem:[%s9 + $0x684] sm:$0xf]
    %v7751 = vld [vmem:[%s9 + $0x688] sm:$0xf]
    %v7752 = vld [vmem:[%s9 + $0x68c] sm:$0xf]
    %v7753 = vld [vmem:[%s9 + $0x690] sm:$0xf]
    %v7754 = vld [vmem:[%s9 + $0x694] sm:$0xf]
    %v7755 = vld [vmem:[%s9 + $0x698] sm:$0xf]
    %v7756 = vld [vmem:[%s9 + $0x69c] sm:$0xf]
    %v7757 = vld [vmem:[%s9 + $0x6a0] sm:$0xf]
    %v7758 = vld [vmem:[%s9 + $0x6a4] sm:$0xf]
    %v7759 = vld [vmem:[%s9 + $0x6a8] sm:$0xf]
    %v7760 = vld [vmem:[%s9 + $0x6ac] sm:$0xf]
    %v7761 = vld [vmem:[%s9 + $0x6b0] sm:$0xf]
    %v7762 = vld [vmem:[%s9 + $0x6b4] sm:$0xf]
    %v7763 = vld [vmem:[%s9 + $0x6b8] sm:$0xf]
    %v7764 = vld [vmem:[%s9 + $0x6bc] sm:$0xf]
    %v7765 = vld [vmem:[%s9 + $0x6c0] sm:$0xf]
    %v7766 = vld [vmem:[%s9 + $0x6c4] sm:$0xf]
    %v7767 = vld [vmem:[%s9 + $0x6c8] sm:$0xf]
    %v7768 = vld [vmem:[%s9 + $0x6cc] sm:$0xf]
    %v7769 = vld [vmem:[%s9 + $0x6d0] sm:$0xf]
    %v7770 = vld [vmem:[%s9 + $0x6d4] sm:$0xf]
    %v7771 = vld [vmem:[%s9 + $0x6d8] sm:$0xf]
    %v7772 = vld [vmem:[%s9 + $0x6dc] sm:$0xf]
    %v7773 = vld [vmem:[%s9 + $0x6e0] sm:$0xf]
    %v7774 = vld [vmem:[%s9 + $0x6e4] sm:$0xf]
    %v7775 = vld [vmem:[%s9 + $0x6e8] sm:$0xf]
    %v7776 = vld [vmem:[%s9 + $0x6ec] sm:$0xf]
    %v7777 = vld [vmem:[%s9 + $0x6f0] sm:$0xf]
    %v7778 = vld [vmem:[%s9 + $0x6f4] sm:$0xf]
    %v7779 = vld [vmem:[%s9 + $0x6f8] sm:$0xf]
    %v7780 = vld [vmem:[%s9 + $0x6fc] sm:$0xf]
    %v7781 = vld [vmem:[%s9 + $0x700] sm:$0xf]
    %v7782 = vld [vmem:[%s9 + $0x704] sm:$0xf]
    %v7783 = vld [vmem:[%s9 + $0x708] sm:$0xf]
    %v7784 = vld [vmem:[%s9 + $0x70c] sm:$0xf]
    %v7785 = vld [vmem:[%s9 + $0x710] sm:$0xf]
    %v7786 = vld [vmem:[%s9 + $0x714] sm:$0xf]
    %v7787 = vld [vmem:[%s9 + $0x718] sm:$0xf]
    %v7788 = vld [vmem:[%s9 + $0x71c] sm:$0xf]
    %v7789 = vld [vmem:[%s9 + $0x720] sm:$0xf]
    %v7790 = vld [vmem:[%s9 + $0x724] sm:$0xf]
    %v7791 = vld [vmem:[%s9 + $0x728] sm:$0xf]
    %v7792 = vld [vmem:[%s9 + $0x72c] sm:$0xf]
    %v7793 = vld [vmem:[%s9 + $0x730] sm:$0xf]
    %v7794 = vld [vmem:[%s9 + $0x734] sm:$0xf]
    %v7795 = vld [vmem:[%s9 + $0x738] sm:$0xf]
    %v7796 = vld [vmem:[%s9 + $0x73c] sm:$0xf]
    %v7797 = vld [vmem:[%s9 + $0x740] sm:$0xf]
    %v7798 = vld [vmem:[%s9 + $0x744] sm:$0xf]
    %v7799 = vld [vmem:[%s9 + $0x748] sm:$0xf]
    %v7800 = vld [vmem:[%s9 + $0x74c] sm:$0xf]
    %v7801 = vld [vmem:[%s9 + $0x750] sm:$0xf]
    %v7802 = vld [vmem:[%s9 + $0x754] sm:$0xf]
    %v7803 = vld [vmem:[%s9 + $0x758] sm:$0xf]
    %v7804 = vld [vmem:[%s9 + $0x75c] sm:$0xf]
    %v7805 = vld [vmem:[%s9 + $0x760] sm:$0xf]
    %v7806 = vld [vmem:[%s9 + $0x764] sm:$0xf]
    %v7807 = vld [vmem:[%s9 + $0x768] sm:$0xf]
    %v7808 = vld [vmem:[%s9 + $0x76c] sm:$0xf]
    %v7809 = vld [vmem:[%s9 + $0x770] sm:$0xf]
    %v7810 = vld [vmem:[%s9 + $0x774] sm:$0xf]
    %v7811 = vld [vmem:[%s9 + $0x778] sm:$0xf]
    %v7812 = vld [vmem:[%s9 + $0x77c] sm:$0xf]
    %v7813 = vld [vmem:[%s9 + $0x780] sm:$0xf]
    %v7814 = vld [vmem:[%s9 + $0x784] sm:$0xf]
    %v7815 = vld [vmem:[%s9 + $0x788] sm:$0xf]
    %v7816 = vld [vmem:[%s9 + $0x78c] sm:$0xf]
    %v7817 = vld [vmem:[%s9 + $0x790] sm:$0xf]
    %v7818 = vld [vmem:[%s9 + $0x794] sm:$0xf]
    %v7819 = vld [vmem:[%s9 + $0x798] sm:$0xf]
    %v7820 = vld [vmem:[%s9 + $0x79c] sm:$0xf]
    %v7821 = vld [vmem:[%s9 + $0x7a0] sm:$0xf]
    %v7822 = vld [vmem:[%s9 + $0x7a4] sm:$0xf]
    %v7823 = vld [vmem:[%s9 + $0x7a8] sm:$0xf]
    %v7824 = vld [vmem:[%s9 + $0x7ac] sm:$0xf]
    %v7825 = vld [vmem:[%s9 + $0x7b0] sm:$0xf]
    %v7826 = vld [vmem:[%s9 + $0x7b4] sm:$0xf]
    %v7827 = vld [vmem:[%s9 + $0x7b8] sm:$0xf]
    %v7828 = vld [vmem:[%s9 + $0x7bc] sm:$0xf]
    %v7829 = vld [vmem:[%s9 + $0x7c0] sm:$0xf]
    %v7830 = vld [vmem:[%s9 + $0x7c4] sm:$0xf]
    %v7831 = vld [vmem:[%s9 + $0x7c8] sm:$0xf]
    %v7832 = vld [vmem:[%s9 + $0x7cc] sm:$0xf]
    %v7833 = vld [vmem:[%s9 + $0x7d0] sm:$0xf]
    %v7834 = vld [vmem:[%s9 + $0x7d4] sm:$0xf]
    %v7835 = vld [vmem:[%s9 + $0x7d8] sm:$0xf]
    %v7836 = vld [vmem:[%s9 + $0x7dc] sm:$0xf]
    %v7837 = vld [vmem:[%s9 + $0x7e0] sm:$0xf]
    %v7838 = vld [vmem:[%s9 + $0x7e4] sm:$0xf]
    %v7839 = vld [vmem:[%s9 + $0x7e8] sm:$0xf]
    %v7840 = vld [vmem:[%s9 + $0x7ec] sm:$0xf]
    %v7841 = vld [vmem:[%s9 + $0x7f0] sm:$0xf]
    %v7842 = vld [vmem:[%s9 + $0x7f4] sm:$0xf]
    %v7843 = vld [vmem:[%s9 + $0x7f8] sm:$0xf]
    %v7844 = vld [vmem:[%s9 + $0x7fc] sm:$0xf]
    %v7845 = vld [vmem:[%s10] sm:$0x1]
    %v7847 = vlaneseq
    %v7848 = vshrl.u32 %v7847, 7
    %v7849 = vsub.s32 0, %v7848
    %v7850 = vrot.slane %v7845, %v7849
    %v8364 = vunpack.c.l.b16 %v7333
    %v8365 = vunpack.c.l.b16 %v7334
    %v8366 = vunpack.c.l.b16 %v7335
    %v8367 = vunpack.c.l.b16 %v7336
    %v8368 = vunpack.c.l.b16 %v7337
    %v8369 = vunpack.c.l.b16 %v7338
    %v8370 = vunpack.c.l.b16 %v7339
    %v8371 = vunpack.c.l.b16 %v7340
    %v8372 = vunpack.c.l.b16 %v7341
    %v8373 = vunpack.c.l.b16 %v7342
    %v8374 = vunpack.c.l.b16 %v7343
    %v8375 = vunpack.c.l.b16 %v7344
    %v8376 = vunpack.c.l.b16 %v7345
    %v8377 = vunpack.c.l.b16 %v7346
    %v8378 = vunpack.c.l.b16 %v7347
    %v8379 = vunpack.c.l.b16 %v7348
    %v8380 = vunpack.c.l.b16 %v7349
    %v8381 = vunpack.c.l.b16 %v7350
    %v8382 = vunpack.c.l.b16 %v7351
    %v8383 = vunpack.c.l.b16 %v7352
    %v8384 = vunpack.c.l.b16 %v7353
    %v8385 = vunpack.c.l.b16 %v7354
    %v8386 = vunpack.c.l.b16 %v7355
    %v8387 = vunpack.c.l.b16 %v7356
    %v8388 = vunpack.c.l.b16 %v7357
    %v8389 = vunpack.c.l.b16 %v7358
    %v8390 = vunpack.c.l.b16 %v7359
    %v8391 = vunpack.c.l.b16 %v7360
    %v8392 = vunpack.c.l.b16 %v7361
    %v8393 = vunpack.c.l.b16 %v7362
    %v8394 = vunpack.c.l.b16 %v7363
    %v8395 = vunpack.c.l.b16 %v7364
    %v8396 = vunpack.c.l.b16 %v7365
    %v8397 = vunpack.c.l.b16 %v7366
    %v8398 = vunpack.c.l.b16 %v7367
    %v8399 = vunpack.c.l.b16 %v7368
    %v8400 = vunpack.c.l.b16 %v7369
    %v8401 = vunpack.c.l.b16 %v7370
    %v8402 = vunpack.c.l.b16 %v7371
    %v8403 = vunpack.c.l.b16 %v7372
    %v8404 = vunpack.c.l.b16 %v7373
    %v8405 = vunpack.c.l.b16 %v7374
    %v8406 = vunpack.c.l.b16 %v7375
    %v8407 = vunpack.c.l.b16 %v7376
    %v8408 = vunpack.c.l.b16 %v7377
    %v8409 = vunpack.c.l.b16 %v7378
    %v8410 = vunpack.c.l.b16 %v7379
    %v8411 = vunpack.c.l.b16 %v7380
    %v8412 = vunpack.c.l.b16 %v7381
    %v8413 = vunpack.c.l.b16 %v7382
    %v8414 = vunpack.c.l.b16 %v7383
    %v8415 = vunpack.c.l.b16 %v7384
    %v8416 = vunpack.c.l.b16 %v7385
    %v8417 = vunpack.c.l.b16 %v7386
    %v8418 = vunpack.c.l.b16 %v7387
    %v8419 = vunpack.c.l.b16 %v7388
    %v8420 = vunpack.c.l.b16 %v7389
    %v8421 = vunpack.c.l.b16 %v7390
    %v8422 = vunpack.c.l.b16 %v7391
    %v8423 = vunpack.c.l.b16 %v7392
    %v8424 = vunpack.c.l.b16 %v7393
    %v8425 = vunpack.c.l.b16 %v7394
    %v8426 = vunpack.c.l.b16 %v7395
    %v8427 = vunpack.c.l.b16 %v7396
    %v8428 = vunpack.c.l.b16 %v7397
    %v8429 = vunpack.c.l.b16 %v7398
    %v8430 = vunpack.c.l.b16 %v7399
    %v8431 = vunpack.c.l.b16 %v7400
    %v8432 = vunpack.c.l.b16 %v7401
    %v8433 = vunpack.c.l.b16 %v7402
    %v8434 = vunpack.c.l.b16 %v7403
    %v8435 = vunpack.c.l.b16 %v7404
    %v8436 = vunpack.c.l.b16 %v7405
    %v8437 = vunpack.c.l.b16 %v7406
    %v8438 = vunpack.c.l.b16 %v7407
    %v8439 = vunpack.c.l.b16 %v7408
    %v8440 = vunpack.c.l.b16 %v7409
    %v8441 = vunpack.c.l.b16 %v7410
    %v8442 = vunpack.c.l.b16 %v7411
    %v8443 = vunpack.c.l.b16 %v7412
    %v8444 = vunpack.c.l.b16 %v7413
    %v8445 = vunpack.c.l.b16 %v7414
    %v8446 = vunpack.c.l.b16 %v7415
    %v8447 = vunpack.c.l.b16 %v7416
    %v8448 = vunpack.c.l.b16 %v7417
    %v8449 = vunpack.c.l.b16 %v7418
    %v8450 = vunpack.c.l.b16 %v7419
    %v8451 = vunpack.c.l.b16 %v7420
    %v8452 = vunpack.c.l.b16 %v7421
    %v8453 = vunpack.c.l.b16 %v7422
    %v8454 = vunpack.c.l.b16 %v7423
    %v8455 = vunpack.c.l.b16 %v7424
    %v8456 = vunpack.c.l.b16 %v7425
    %v8457 = vunpack.c.l.b16 %v7426
    %v8458 = vunpack.c.l.b16 %v7427
    %v8459 = vunpack.c.l.b16 %v7428
    %v8460 = vunpack.c.l.b16 %v7429
    %v8461 = vunpack.c.l.b16 %v7430
    %v8462 = vunpack.c.l.b16 %v7431
    %v8463 = vunpack.c.l.b16 %v7432
    %v8464 = vunpack.c.l.b16 %v7433
    %v8465 = vunpack.c.l.b16 %v7434
    %v8466 = vunpack.c.l.b16 %v7435
    %v8467 = vunpack.c.l.b16 %v7436
    %v8468 = vunpack.c.l.b16 %v7437
    %v8469 = vunpack.c.l.b16 %v7438
    %v8470 = vunpack.c.l.b16 %v7439
    %v8471 = vunpack.c.l.b16 %v7440
    %v8472 = vunpack.c.l.b16 %v7441
    %v8473 = vunpack.c.l.b16 %v7442
    %v8474 = vunpack.c.l.b16 %v7443
    %v8475 = vunpack.c.l.b16 %v7444
    %v8476 = vunpack.c.l.b16 %v7445
    %v8477 = vunpack.c.l.b16 %v7446
    %v8478 = vunpack.c.l.b16 %v7447
    %v8479 = vunpack.c.l.b16 %v7448
    %v8480 = vunpack.c.l.b16 %v7449
    %v8481 = vunpack.c.l.b16 %v7450
    %v8482 = vunpack.c.l.b16 %v7451
    %v8483 = vunpack.c.l.b16 %v7452
    %v8484 = vunpack.c.l.b16 %v7453
    %v8485 = vunpack.c.l.b16 %v7454
    %v8486 = vunpack.c.l.b16 %v7455
    %v8487 = vunpack.c.l.b16 %v7456
    %v8488 = vunpack.c.l.b16 %v7457
    %v8489 = vunpack.c.l.b16 %v7458
    %v8490 = vunpack.c.l.b16 %v7459
    %v8491 = vunpack.c.l.b16 %v7460
    %v8492 = vunpack.c.l.b16 %v7461
    %v8493 = vunpack.c.l.b16 %v7462
    %v8494 = vunpack.c.l.b16 %v7463
    %v8495 = vunpack.c.l.b16 %v7464
    %v8496 = vunpack.c.l.b16 %v7465
    %v8497 = vunpack.c.l.b16 %v7466
    %v8498 = vunpack.c.l.b16 %v7467
    %v8499 = vunpack.c.l.b16 %v7468
    %v8500 = vunpack.c.l.b16 %v7469
    %v8501 = vunpack.c.l.b16 %v7470
    %v8502 = vunpack.c.l.b16 %v7471
    %v8503 = vunpack.c.l.b16 %v7472
    %v8504 = vunpack.c.l.b16 %v7473
    %v8505 = vunpack.c.l.b16 %v7474
    %v8506 = vunpack.c.l.b16 %v7475
    %v8507 = vunpack.c.l.b16 %v7476
    %v8508 = vunpack.c.l.b16 %v7477
    %v8509 = vunpack.c.l.b16 %v7478
    %v8510 = vunpack.c.l.b16 %v7479
    %v8511 = vunpack.c.l.b16 %v7480
    %v8512 = vunpack.c.l.b16 %v7481
    %v8513 = vunpack.c.l.b16 %v7482
    %v8514 = vunpack.c.l.b16 %v7483
    %v8515 = vunpack.c.l.b16 %v7484
    %v8516 = vunpack.c.l.b16 %v7485
    %v8517 = vunpack.c.l.b16 %v7486
    %v8518 = vunpack.c.l.b16 %v7487
    %v8519 = vunpack.c.l.b16 %v7488
    %v8520 = vunpack.c.l.b16 %v7489
    %v8521 = vunpack.c.l.b16 %v7490
    %v8522 = vunpack.c.l.b16 %v7491
    %v8523 = vunpack.c.l.b16 %v7492
    %v8524 = vunpack.c.l.b16 %v7493
    %v8525 = vunpack.c.l.b16 %v7494
    %v8526 = vunpack.c.l.b16 %v7495
    %v8527 = vunpack.c.l.b16 %v7496
    %v8528 = vunpack.c.l.b16 %v7497
    %v8529 = vunpack.c.l.b16 %v7498
    %v8530 = vunpack.c.l.b16 %v7499
    %v8531 = vunpack.c.l.b16 %v7500
    %v8532 = vunpack.c.l.b16 %v7501
    %v8533 = vunpack.c.l.b16 %v7502
    %v8534 = vunpack.c.l.b16 %v7503
    %v8535 = vunpack.c.l.b16 %v7504
    %v8536 = vunpack.c.l.b16 %v7505
    %v8537 = vunpack.c.l.b16 %v7506
    %v8538 = vunpack.c.l.b16 %v7507
    %v8539 = vunpack.c.l.b16 %v7508
    %v8540 = vunpack.c.l.b16 %v7509
    %v8541 = vunpack.c.l.b16 %v7510
    %v8542 = vunpack.c.l.b16 %v7511
    %v8543 = vunpack.c.l.b16 %v7512
    %v8544 = vunpack.c.l.b16 %v7513
    %v8545 = vunpack.c.l.b16 %v7514
    %v8546 = vunpack.c.l.b16 %v7515
    %v8547 = vunpack.c.l.b16 %v7516
    %v8548 = vunpack.c.l.b16 %v7517
    %v8549 = vunpack.c.l.b16 %v7518
    %v8550 = vunpack.c.l.b16 %v7519
    %v8551 = vunpack.c.l.b16 %v7520
    %v8552 = vunpack.c.l.b16 %v7521
    %v8553 = vunpack.c.l.b16 %v7522
    %v8554 = vunpack.c.l.b16 %v7523
    %v8555 = vunpack.c.l.b16 %v7524
    %v8556 = vunpack.c.l.b16 %v7525
    %v8557 = vunpack.c.l.b16 %v7526
    %v8558 = vunpack.c.l.b16 %v7527
    %v8559 = vunpack.c.l.b16 %v7528
    %v8560 = vunpack.c.l.b16 %v7529
    %v8561 = vunpack.c.l.b16 %v7530
    %v8562 = vunpack.c.l.b16 %v7531
    %v8563 = vunpack.c.l.b16 %v7532
    %v8564 = vunpack.c.l.b16 %v7533
    %v8565 = vunpack.c.l.b16 %v7534
    %v8566 = vunpack.c.l.b16 %v7535
    %v8567 = vunpack.c.l.b16 %v7536
    %v8568 = vunpack.c.l.b16 %v7537
    %v8569 = vunpack.c.l.b16 %v7538
    %v8570 = vunpack.c.l.b16 %v7539
    %v8571 = vunpack.c.l.b16 %v7540
    %v8572 = vunpack.c.l.b16 %v7541
    %v8573 = vunpack.c.l.b16 %v7542
    %v8574 = vunpack.c.l.b16 %v7543
    %v8575 = vunpack.c.l.b16 %v7544
    %v8576 = vunpack.c.l.b16 %v7545
    %v8577 = vunpack.c.l.b16 %v7546
    %v8578 = vunpack.c.l.b16 %v7547
    %v8579 = vunpack.c.l.b16 %v7548
    %v8580 = vunpack.c.l.b16 %v7549
    %v8581 = vunpack.c.l.b16 %v7550
    %v8582 = vunpack.c.l.b16 %v7551
    %v8583 = vunpack.c.l.b16 %v7552
    %v8584 = vunpack.c.l.b16 %v7553
    %v8585 = vunpack.c.l.b16 %v7554
    %v8586 = vunpack.c.l.b16 %v7555
    %v8587 = vunpack.c.l.b16 %v7556
    %v8588 = vunpack.c.l.b16 %v7557
    %v8589 = vunpack.c.l.b16 %v7558
    %v8590 = vunpack.c.l.b16 %v7559
    %v8591 = vunpack.c.l.b16 %v7560
    %v8592 = vunpack.c.l.b16 %v7561
    %v8593 = vunpack.c.l.b16 %v7562
    %v8594 = vunpack.c.l.b16 %v7563
    %v8595 = vunpack.c.l.b16 %v7564
    %v8596 = vunpack.c.l.b16 %v7565
    %v8597 = vunpack.c.l.b16 %v7566
    %v8598 = vunpack.c.l.b16 %v7567
    %v8599 = vunpack.c.l.b16 %v7568
    %v8600 = vunpack.c.l.b16 %v7569
    %v8601 = vunpack.c.l.b16 %v7570
    %v8602 = vunpack.c.l.b16 %v7571
    %v8603 = vunpack.c.l.b16 %v7572
    %v8604 = vunpack.c.l.b16 %v7573
    %v8605 = vunpack.c.l.b16 %v7574
    %v8606 = vunpack.c.l.b16 %v7575
    %v8607 = vunpack.c.l.b16 %v7576
    %v8608 = vunpack.c.l.b16 %v7577
    %v8609 = vunpack.c.l.b16 %v7578
    %v8610 = vunpack.c.l.b16 %v7579
    %v8611 = vunpack.c.l.b16 %v7580
    %v8612 = vunpack.c.l.b16 %v7581
    %v8613 = vunpack.c.l.b16 %v7582
    %v8614 = vunpack.c.l.b16 %v7583
    %v8615 = vunpack.c.l.b16 %v7584
    %v8616 = vunpack.c.l.b16 %v7585
    %v8617 = vunpack.c.l.b16 %v7586
    %v8618 = vunpack.c.l.b16 %v7587
    %v8619 = vunpack.c.l.b16 %v7588
    %v8620 = vunpack.c.l.b16 %v7589
    %v8621 = vunpack.c.l.b16 %v7590
    %v8622 = vunpack.c.l.b16 %v7591
    %v8623 = vunpack.c.l.b16 %v7592
    %v8624 = vunpack.c.l.b16 %v7593
    %v8625 = vunpack.c.l.b16 %v7594
    %v8626 = vunpack.c.l.b16 %v7595
    %v8627 = vunpack.c.l.b16 %v7596
    %v8628 = vunpack.c.l.b16 %v7597
    %v8629 = vunpack.c.l.b16 %v7598
    %v8630 = vunpack.c.l.b16 %v7599
    %v8631 = vunpack.c.l.b16 %v7600
    %v8632 = vunpack.c.l.b16 %v7601
    %v8633 = vunpack.c.l.b16 %v7602
    %v8634 = vunpack.c.l.b16 %v7603
    %v8635 = vunpack.c.l.b16 %v7604
    %v8636 = vunpack.c.l.b16 %v7605
    %v8637 = vunpack.c.l.b16 %v7606
    %v8638 = vunpack.c.l.b16 %v7607
    %v8639 = vunpack.c.l.b16 %v7608
    %v8640 = vunpack.c.l.b16 %v7609
    %v8641 = vunpack.c.l.b16 %v7610
    %v8642 = vunpack.c.l.b16 %v7611
    %v8643 = vunpack.c.l.b16 %v7612
    %v8644 = vunpack.c.l.b16 %v7613
    %v8645 = vunpack.c.l.b16 %v7614
    %v8646 = vunpack.c.l.b16 %v7615
    %v8647 = vunpack.c.l.b16 %v7616
    %v8648 = vunpack.c.l.b16 %v7617
    %v8649 = vunpack.c.l.b16 %v7618
    %v8650 = vunpack.c.l.b16 %v7619
    %v8651 = vunpack.c.l.b16 %v7620
    %v8652 = vunpack.c.l.b16 %v7621
    %v8653 = vunpack.c.l.b16 %v7622
    %v8654 = vunpack.c.l.b16 %v7623
    %v8655 = vunpack.c.l.b16 %v7624
    %v8656 = vunpack.c.l.b16 %v7625
    %v8657 = vunpack.c.l.b16 %v7626
    %v8658 = vunpack.c.l.b16 %v7627
    %v8659 = vunpack.c.l.b16 %v7628
    %v8660 = vunpack.c.l.b16 %v7629
    %v8661 = vunpack.c.l.b16 %v7630
    %v8662 = vunpack.c.l.b16 %v7631
    %v8663 = vunpack.c.l.b16 %v7632
    %v8664 = vunpack.c.l.b16 %v7633
    %v8665 = vunpack.c.l.b16 %v7634
    %v8666 = vunpack.c.l.b16 %v7635
    %v8667 = vunpack.c.l.b16 %v7636
    %v8668 = vunpack.c.l.b16 %v7637
    %v8669 = vunpack.c.l.b16 %v7638
    %v8670 = vunpack.c.l.b16 %v7639
    %v8671 = vunpack.c.l.b16 %v7640
    %v8672 = vunpack.c.l.b16 %v7641
    %v8673 = vunpack.c.l.b16 %v7642
    %v8674 = vunpack.c.l.b16 %v7643
    %v8675 = vunpack.c.l.b16 %v7644
    %v8676 = vunpack.c.l.b16 %v7645
    %v8677 = vunpack.c.l.b16 %v7646
    %v8678 = vunpack.c.l.b16 %v7647
    %v8679 = vunpack.c.l.b16 %v7648
    %v8680 = vunpack.c.l.b16 %v7649
    %v8681 = vunpack.c.l.b16 %v7650
    %v8682 = vunpack.c.l.b16 %v7651
    %v8683 = vunpack.c.l.b16 %v7652
    %v8684 = vunpack.c.l.b16 %v7653
    %v8685 = vunpack.c.l.b16 %v7654
    %v8686 = vunpack.c.l.b16 %v7655
    %v8687 = vunpack.c.l.b16 %v7656
    %v8688 = vunpack.c.l.b16 %v7657
    %v8689 = vunpack.c.l.b16 %v7658
    %v8690 = vunpack.c.l.b16 %v7659
    %v8691 = vunpack.c.l.b16 %v7660
    %v8692 = vunpack.c.l.b16 %v7661
    %v8693 = vunpack.c.l.b16 %v7662
    %v8694 = vunpack.c.l.b16 %v7663
    %v8695 = vunpack.c.l.b16 %v7664
    %v8696 = vunpack.c.l.b16 %v7665
    %v8697 = vunpack.c.l.b16 %v7666
    %v8698 = vunpack.c.l.b16 %v7667
    %v8699 = vunpack.c.l.b16 %v7668
    %v8700 = vunpack.c.l.b16 %v7669
    %v8701 = vunpack.c.l.b16 %v7670
    %v8702 = vunpack.c.l.b16 %v7671
    %v8703 = vunpack.c.l.b16 %v7672
    %v8704 = vunpack.c.l.b16 %v7673
    %v8705 = vunpack.c.l.b16 %v7674
    %v8706 = vunpack.c.l.b16 %v7675
    %v8707 = vunpack.c.l.b16 %v7676
    %v8708 = vunpack.c.l.b16 %v7677
    %v8709 = vunpack.c.l.b16 %v7678
    %v8710 = vunpack.c.l.b16 %v7679
    %v8711 = vunpack.c.l.b16 %v7680
    %v8712 = vunpack.c.l.b16 %v7681
    %v8713 = vunpack.c.l.b16 %v7682
    %v8714 = vunpack.c.l.b16 %v7683
    %v8715 = vunpack.c.l.b16 %v7684
    %v8716 = vunpack.c.l.b16 %v7685
    %v8717 = vunpack.c.l.b16 %v7686
    %v8718 = vunpack.c.l.b16 %v7687
    %v8719 = vunpack.c.l.b16 %v7688
    %v8720 = vunpack.c.l.b16 %v7689
    %v8721 = vunpack.c.l.b16 %v7690
    %v8722 = vunpack.c.l.b16 %v7691
    %v8723 = vunpack.c.l.b16 %v7692
    %v8724 = vunpack.c.l.b16 %v7693
    %v8725 = vunpack.c.l.b16 %v7694
    %v8726 = vunpack.c.l.b16 %v7695
    %v8727 = vunpack.c.l.b16 %v7696
    %v8728 = vunpack.c.l.b16 %v7697
    %v8729 = vunpack.c.l.b16 %v7698
    %v8730 = vunpack.c.l.b16 %v7699
    %v8731 = vunpack.c.l.b16 %v7700
    %v8732 = vunpack.c.l.b16 %v7701
    %v8733 = vunpack.c.l.b16 %v7702
    %v8734 = vunpack.c.l.b16 %v7703
    %v8735 = vunpack.c.l.b16 %v7704
    %v8736 = vunpack.c.l.b16 %v7705
    %v8737 = vunpack.c.l.b16 %v7706
    %v8738 = vunpack.c.l.b16 %v7707
    %v8739 = vunpack.c.l.b16 %v7708
    %v8740 = vunpack.c.l.b16 %v7709
    %v8741 = vunpack.c.l.b16 %v7710
    %v8742 = vunpack.c.l.b16 %v7711
    %v8743 = vunpack.c.l.b16 %v7712
    %v8744 = vunpack.c.l.b16 %v7713
    %v8745 = vunpack.c.l.b16 %v7714
    %v8746 = vunpack.c.l.b16 %v7715
    %v8747 = vunpack.c.l.b16 %v7716
    %v8748 = vunpack.c.l.b16 %v7717
    %v8749 = vunpack.c.l.b16 %v7718
    %v8750 = vunpack.c.l.b16 %v7719
    %v8751 = vunpack.c.l.b16 %v7720
    %v8752 = vunpack.c.l.b16 %v7721
    %v8753 = vunpack.c.l.b16 %v7722
    %v8754 = vunpack.c.l.b16 %v7723
    %v8755 = vunpack.c.l.b16 %v7724
    %v8756 = vunpack.c.l.b16 %v7725
    %v8757 = vunpack.c.l.b16 %v7726
    %v8758 = vunpack.c.l.b16 %v7727
    %v8759 = vunpack.c.l.b16 %v7728
    %v8760 = vunpack.c.l.b16 %v7729
    %v8761 = vunpack.c.l.b16 %v7730
    %v8762 = vunpack.c.l.b16 %v7731
    %v8763 = vunpack.c.l.b16 %v7732
    %v8764 = vunpack.c.l.b16 %v7733
    %v8765 = vunpack.c.l.b16 %v7734
    %v8766 = vunpack.c.l.b16 %v7735
    %v8767 = vunpack.c.l.b16 %v7736
    %v8768 = vunpack.c.l.b16 %v7737
    %v8769 = vunpack.c.l.b16 %v7738
    %v8770 = vunpack.c.l.b16 %v7739
    %v8771 = vunpack.c.l.b16 %v7740
    %v8772 = vunpack.c.l.b16 %v7741
    %v8773 = vunpack.c.l.b16 %v7742
    %v8774 = vunpack.c.l.b16 %v7743
    %v8775 = vunpack.c.l.b16 %v7744
    %v8776 = vunpack.c.l.b16 %v7745
    %v8777 = vunpack.c.l.b16 %v7746
    %v8778 = vunpack.c.l.b16 %v7747
    %v8779 = vunpack.c.l.b16 %v7748
    %v8780 = vunpack.c.l.b16 %v7749
    %v8781 = vunpack.c.l.b16 %v7750
    %v8782 = vunpack.c.l.b16 %v7751
    %v8783 = vunpack.c.l.b16 %v7752
    %v8784 = vunpack.c.l.b16 %v7753
    %v8785 = vunpack.c.l.b16 %v7754
    %v8786 = vunpack.c.l.b16 %v7755
    %v8787 = vunpack.c.l.b16 %v7756
    %v8788 = vunpack.c.l.b16 %v7757
    %v8789 = vunpack.c.l.b16 %v7758
    %v8790 = vunpack.c.l.b16 %v7759
    %v8791 = vunpack.c.l.b16 %v7760
    %v8792 = vunpack.c.l.b16 %v7761
    %v8793 = vunpack.c.l.b16 %v7762
    %v8794 = vunpack.c.l.b16 %v7763
    %v8795 = vunpack.c.l.b16 %v7764
    %v8796 = vunpack.c.l.b16 %v7765
    %v8797 = vunpack.c.l.b16 %v7766
    %v8798 = vunpack.c.l.b16 %v7767
    %v8799 = vunpack.c.l.b16 %v7768
    %v8800 = vunpack.c.l.b16 %v7769
    %v8801 = vunpack.c.l.b16 %v7770
    %v8802 = vunpack.c.l.b16 %v7771
    %v8803 = vunpack.c.l.b16 %v7772
    %v8804 = vunpack.c.l.b16 %v7773
    %v8805 = vunpack.c.l.b16 %v7774
    %v8806 = vunpack.c.l.b16 %v7775
    %v8807 = vunpack.c.l.b16 %v7776
    %v8808 = vunpack.c.l.b16 %v7777
    %v8809 = vunpack.c.l.b16 %v7778
    %v8810 = vunpack.c.l.b16 %v7779
    %v8811 = vunpack.c.l.b16 %v7780
    %v8812 = vunpack.c.l.b16 %v7781
    %v8813 = vunpack.c.l.b16 %v7782
    %v8814 = vunpack.c.l.b16 %v7783
    %v8815 = vunpack.c.l.b16 %v7784
    %v8816 = vunpack.c.l.b16 %v7785
    %v8817 = vunpack.c.l.b16 %v7786
    %v8818 = vunpack.c.l.b16 %v7787
    %v8819 = vunpack.c.l.b16 %v7788
    %v8820 = vunpack.c.l.b16 %v7789
    %v8821 = vunpack.c.l.b16 %v7790
    %v8822 = vunpack.c.l.b16 %v7791
    %v8823 = vunpack.c.l.b16 %v7792
    %v8824 = vunpack.c.l.b16 %v7793
    %v8825 = vunpack.c.l.b16 %v7794
    %v8826 = vunpack.c.l.b16 %v7795
    %v8827 = vunpack.c.l.b16 %v7796
    %v8828 = vunpack.c.l.b16 %v7797
    %v8829 = vunpack.c.l.b16 %v7798
    %v8830 = vunpack.c.l.b16 %v7799
    %v8831 = vunpack.c.l.b16 %v7800
    %v8832 = vunpack.c.l.b16 %v7801
    %v8833 = vunpack.c.l.b16 %v7802
    %v8834 = vunpack.c.l.b16 %v7803
    %v8835 = vunpack.c.l.b16 %v7804
    %v8836 = vunpack.c.l.b16 %v7805
    %v8837 = vunpack.c.l.b16 %v7806
    %v8838 = vunpack.c.l.b16 %v7807
    %v8839 = vunpack.c.l.b16 %v7808
    %v8840 = vunpack.c.l.b16 %v7809
    %v8841 = vunpack.c.l.b16 %v7810
    %v8842 = vunpack.c.l.b16 %v7811
    %v8843 = vunpack.c.l.b16 %v7812
    %v8844 = vunpack.c.l.b16 %v7813
    %v8845 = vunpack.c.l.b16 %v7814
    %v8846 = vunpack.c.l.b16 %v7815
    %v8847 = vunpack.c.l.b16 %v7816
    %v8848 = vunpack.c.l.b16 %v7817
    %v8849 = vunpack.c.l.b16 %v7818
    %v8850 = vunpack.c.l.b16 %v7819
    %v8851 = vunpack.c.l.b16 %v7820
    %v8852 = vunpack.c.l.b16 %v7821
    %v8853 = vunpack.c.l.b16 %v7822
    %v8854 = vunpack.c.l.b16 %v7823
    %v8855 = vunpack.c.l.b16 %v7824
    %v8856 = vunpack.c.l.b16 %v7825
    %v8857 = vunpack.c.l.b16 %v7826
    %v8858 = vunpack.c.l.b16 %v7827
    %v8859 = vunpack.c.l.b16 %v7828
    %v8860 = vunpack.c.l.b16 %v7829
    %v8861 = vunpack.c.l.b16 %v7830
    %v8862 = vunpack.c.l.b16 %v7831
    %v8863 = vunpack.c.l.b16 %v7832
    %v8864 = vunpack.c.l.b16 %v7833
    %v8865 = vunpack.c.l.b16 %v7834
    %v8866 = vunpack.c.l.b16 %v7835
    %v8867 = vunpack.c.l.b16 %v7836
    %v8868 = vunpack.c.l.b16 %v7837
    %v8869 = vunpack.c.l.b16 %v7838
    %v8870 = vunpack.c.l.b16 %v7839
    %v8871 = vunpack.c.l.b16 %v7840
    %v8872 = vunpack.c.l.b16 %v7841
    %v8873 = vunpack.c.l.b16 %v7842
    %v8874 = vunpack.c.l.b16 %v7843
    %v8875 = vunpack.c.l.b16 %v7844
    %v8876 = vpack.c.b16 %v8365, %v8364
    %v8877 = vpack.c.b16 %v8367, %v8366
    %v8878 = vpack.c.b16 %v8369, %v8368
    %v8879 = vpack.c.b16 %v8371, %v8370
    %v8880 = vpack.c.b16 %v8373, %v8372
    %v8881 = vpack.c.b16 %v8375, %v8374
    %v8882 = vpack.c.b16 %v8377, %v8376
    %v8883 = vpack.c.b16 %v8379, %v8378
    %v8884 = vpack.c.b16 %v8381, %v8380
    %v8885 = vpack.c.b16 %v8383, %v8382
    %v8886 = vpack.c.b16 %v8385, %v8384
    %v8887 = vpack.c.b16 %v8387, %v8386
    %v8888 = vpack.c.b16 %v8389, %v8388
    %v8889 = vpack.c.b16 %v8391, %v8390
    %v8890 = vpack.c.b16 %v8393, %v8392
    %v8891 = vpack.c.b16 %v8395, %v8394
    %v8892 = vpack.c.b16 %v8397, %v8396
    %v8893 = vpack.c.b16 %v8399, %v8398
    %v8894 = vpack.c.b16 %v8401, %v8400
    %v8895 = vpack.c.b16 %v8403, %v8402
    %v8896 = vpack.c.b16 %v8405, %v8404
    %v8897 = vpack.c.b16 %v8407, %v8406
    %v8898 = vpack.c.b16 %v8409, %v8408
    %v8899 = vpack.c.b16 %v8411, %v8410
    %v8900 = vpack.c.b16 %v8413, %v8412
    %v8901 = vpack.c.b16 %v8415, %v8414
    %v8902 = vpack.c.b16 %v8417, %v8416
    %v8903 = vpack.c.b16 %v8419, %v8418
    %v8904 = vpack.c.b16 %v8421, %v8420
    %v8905 = vpack.c.b16 %v8423, %v8422
    %v8906 = vpack.c.b16 %v8425, %v8424
    %v8907 = vpack.c.b16 %v8427, %v8426
    %v8908 = vpack.c.b16 %v8429, %v8428
    %v8909 = vpack.c.b16 %v8431, %v8430
    %v8910 = vpack.c.b16 %v8433, %v8432
    %v8911 = vpack.c.b16 %v8435, %v8434
    %v8912 = vpack.c.b16 %v8437, %v8436
    %v8913 = vpack.c.b16 %v8439, %v8438
    %v8914 = vpack.c.b16 %v8441, %v8440
    %v8915 = vpack.c.b16 %v8443, %v8442
    %v8916 = vpack.c.b16 %v8445, %v8444
    %v8917 = vpack.c.b16 %v8447, %v8446
    %v8918 = vpack.c.b16 %v8449, %v8448
    %v8919 = vpack.c.b16 %v8451, %v8450
    %v8920 = vpack.c.b16 %v8453, %v8452
    %v8921 = vpack.c.b16 %v8455, %v8454
    %v8922 = vpack.c.b16 %v8457, %v8456
    %v8923 = vpack.c.b16 %v8459, %v8458
    %v8924 = vpack.c.b16 %v8461, %v8460
    %v8925 = vpack.c.b16 %v8463, %v8462
    %v8926 = vpack.c.b16 %v8465, %v8464
    %v8927 = vpack.c.b16 %v8467, %v8466
    %v8928 = vpack.c.b16 %v8469, %v8468
    %v8929 = vpack.c.b16 %v8471, %v8470
    %v8930 = vpack.c.b16 %v8473, %v8472
    %v8931 = vpack.c.b16 %v8475, %v8474
    %v8932 = vpack.c.b16 %v8477, %v8476
    %v8933 = vpack.c.b16 %v8479, %v8478
    %v8934 = vpack.c.b16 %v8481, %v8480
    %v8935 = vpack.c.b16 %v8483, %v8482
    %v8936 = vpack.c.b16 %v8485, %v8484
    %v8937 = vpack.c.b16 %v8487, %v8486
    %v8938 = vpack.c.b16 %v8489, %v8488
    %v8939 = vpack.c.b16 %v8491, %v8490
    %v8940 = vpack.c.b16 %v8493, %v8492
    %v8941 = vpack.c.b16 %v8495, %v8494
    %v8942 = vpack.c.b16 %v8497, %v8496
    %v8943 = vpack.c.b16 %v8499, %v8498
    %v8944 = vpack.c.b16 %v8501, %v8500
    %v8945 = vpack.c.b16 %v8503, %v8502
    %v8946 = vpack.c.b16 %v8505, %v8504
    %v8947 = vpack.c.b16 %v8507, %v8506
    %v8948 = vpack.c.b16 %v8509, %v8508
    %v8949 = vpack.c.b16 %v8511, %v8510
    %v8950 = vpack.c.b16 %v8513, %v8512
    %v8951 = vpack.c.b16 %v8515, %v8514
    %v8952 = vpack.c.b16 %v8517, %v8516
    %v8953 = vpack.c.b16 %v8519, %v8518
    %v8954 = vpack.c.b16 %v8521, %v8520
    %v8955 = vpack.c.b16 %v8523, %v8522
    %v8956 = vpack.c.b16 %v8525, %v8524
    %v8957 = vpack.c.b16 %v8527, %v8526
    %v8958 = vpack.c.b16 %v8529, %v8528
    %v8959 = vpack.c.b16 %v8531, %v8530
    %v8960 = vpack.c.b16 %v8533, %v8532
    %v8961 = vpack.c.b16 %v8535, %v8534
    %v8962 = vpack.c.b16 %v8537, %v8536
    %v8963 = vpack.c.b16 %v8539, %v8538
    %v8964 = vpack.c.b16 %v8541, %v8540
    %v8965 = vpack.c.b16 %v8543, %v8542
    %v8966 = vpack.c.b16 %v8545, %v8544
    %v8967 = vpack.c.b16 %v8547, %v8546
    %v8968 = vpack.c.b16 %v8549, %v8548
    %v8969 = vpack.c.b16 %v8551, %v8550
    %v8970 = vpack.c.b16 %v8553, %v8552
    %v8971 = vpack.c.b16 %v8555, %v8554
    %v8972 = vpack.c.b16 %v8557, %v8556
    %v8973 = vpack.c.b16 %v8559, %v8558
    %v8974 = vpack.c.b16 %v8561, %v8560
    %v8975 = vpack.c.b16 %v8563, %v8562
    %v8976 = vpack.c.b16 %v8565, %v8564
    %v8977 = vpack.c.b16 %v8567, %v8566
    %v8978 = vpack.c.b16 %v8569, %v8568
    %v8979 = vpack.c.b16 %v8571, %v8570
    %v8980 = vpack.c.b16 %v8573, %v8572
    %v8981 = vpack.c.b16 %v8575, %v8574
    %v8982 = vpack.c.b16 %v8577, %v8576
    %v8983 = vpack.c.b16 %v8579, %v8578
    %v8984 = vpack.c.b16 %v8581, %v8580
    %v8985 = vpack.c.b16 %v8583, %v8582
    %v8986 = vpack.c.b16 %v8585, %v8584
    %v8987 = vpack.c.b16 %v8587, %v8586
    %v8988 = vpack.c.b16 %v8589, %v8588
    %v8989 = vpack.c.b16 %v8591, %v8590
    %v8990 = vpack.c.b16 %v8593, %v8592
    %v8991 = vpack.c.b16 %v8595, %v8594
    %v8992 = vpack.c.b16 %v8597, %v8596
    %v8993 = vpack.c.b16 %v8599, %v8598
    %v8994 = vpack.c.b16 %v8601, %v8600
    %v8995 = vpack.c.b16 %v8603, %v8602
    %v8996 = vpack.c.b16 %v8605, %v8604
    %v8997 = vpack.c.b16 %v8607, %v8606
    %v8998 = vpack.c.b16 %v8609, %v8608
    %v8999 = vpack.c.b16 %v8611, %v8610
    %v9000 = vpack.c.b16 %v8613, %v8612
    %v9001 = vpack.c.b16 %v8615, %v8614
    %v9002 = vpack.c.b16 %v8617, %v8616
    %v9003 = vpack.c.b16 %v8619, %v8618
    %v9004 = vpack.c.b16 %v8621, %v8620
    %v9005 = vpack.c.b16 %v8623, %v8622
    %v9006 = vpack.c.b16 %v8625, %v8624
    %v9007 = vpack.c.b16 %v8627, %v8626
    %v9008 = vpack.c.b16 %v8629, %v8628
    %v9009 = vpack.c.b16 %v8631, %v8630
    %v9010 = vpack.c.b16 %v8633, %v8632
    %v9011 = vpack.c.b16 %v8635, %v8634
    %v9012 = vpack.c.b16 %v8637, %v8636
    %v9013 = vpack.c.b16 %v8639, %v8638
    %v9014 = vpack.c.b16 %v8641, %v8640
    %v9015 = vpack.c.b16 %v8643, %v8642
    %v9016 = vpack.c.b16 %v8645, %v8644
    %v9017 = vpack.c.b16 %v8647, %v8646
    %v9018 = vpack.c.b16 %v8649, %v8648
    %v9019 = vpack.c.b16 %v8651, %v8650
    %v9020 = vpack.c.b16 %v8653, %v8652
    %v9021 = vpack.c.b16 %v8655, %v8654
    %v9022 = vpack.c.b16 %v8657, %v8656
    %v9023 = vpack.c.b16 %v8659, %v8658
    %v9024 = vpack.c.b16 %v8661, %v8660
    %v9025 = vpack.c.b16 %v8663, %v8662
    %v9026 = vpack.c.b16 %v8665, %v8664
    %v9027 = vpack.c.b16 %v8667, %v8666
    %v9028 = vpack.c.b16 %v8669, %v8668
    %v9029 = vpack.c.b16 %v8671, %v8670
    %v9030 = vpack.c.b16 %v8673, %v8672
    %v9031 = vpack.c.b16 %v8675, %v8674
    %v9032 = vpack.c.b16 %v8677, %v8676
    %v9033 = vpack.c.b16 %v8679, %v8678
    %v9034 = vpack.c.b16 %v8681, %v8680
    %v9035 = vpack.c.b16 %v8683, %v8682
    %v9036 = vpack.c.b16 %v8685, %v8684
    %v9037 = vpack.c.b16 %v8687, %v8686
    %v9038 = vpack.c.b16 %v8689, %v8688
    %v9039 = vpack.c.b16 %v8691, %v8690
    %v9040 = vpack.c.b16 %v8693, %v8692
    %v9041 = vpack.c.b16 %v8695, %v8694
    %v9042 = vpack.c.b16 %v8697, %v8696
    %v9043 = vpack.c.b16 %v8699, %v8698
    %v9044 = vpack.c.b16 %v8701, %v8700
    %v9045 = vpack.c.b16 %v8703, %v8702
    %v9046 = vpack.c.b16 %v8705, %v8704
    %v9047 = vpack.c.b16 %v8707, %v8706
    %v9048 = vpack.c.b16 %v8709, %v8708
    %v9049 = vpack.c.b16 %v8711, %v8710
    %v9050 = vpack.c.b16 %v8713, %v8712
    %v9051 = vpack.c.b16 %v8715, %v8714
    %v9052 = vpack.c.b16 %v8717, %v8716
    %v9053 = vpack.c.b16 %v8719, %v8718
    %v9054 = vpack.c.b16 %v8721, %v8720
    %v9055 = vpack.c.b16 %v8723, %v8722
    %v9056 = vpack.c.b16 %v8725, %v8724
    %v9057 = vpack.c.b16 %v8727, %v8726
    %v9058 = vpack.c.b16 %v8729, %v8728
    %v9059 = vpack.c.b16 %v8731, %v8730
    %v9060 = vpack.c.b16 %v8733, %v8732
    %v9061 = vpack.c.b16 %v8735, %v8734
    %v9062 = vpack.c.b16 %v8737, %v8736
    %v9063 = vpack.c.b16 %v8739, %v8738
    %v9064 = vpack.c.b16 %v8741, %v8740
    %v9065 = vpack.c.b16 %v8743, %v8742
    %v9066 = vpack.c.b16 %v8745, %v8744
    %v9067 = vpack.c.b16 %v8747, %v8746
    %v9068 = vpack.c.b16 %v8749, %v8748
    %v9069 = vpack.c.b16 %v8751, %v8750
    %v9070 = vpack.c.b16 %v8753, %v8752
    %v9071 = vpack.c.b16 %v8755, %v8754
    %v9072 = vpack.c.b16 %v8757, %v8756
    %v9073 = vpack.c.b16 %v8759, %v8758
    %v9074 = vpack.c.b16 %v8761, %v8760
    %v9075 = vpack.c.b16 %v8763, %v8762
    %v9076 = vpack.c.b16 %v8765, %v8764
    %v9077 = vpack.c.b16 %v8767, %v8766
    %v9078 = vpack.c.b16 %v8769, %v8768
    %v9079 = vpack.c.b16 %v8771, %v8770
    %v9080 = vpack.c.b16 %v8773, %v8772
    %v9081 = vpack.c.b16 %v8775, %v8774
    %v9082 = vpack.c.b16 %v8777, %v8776
    %v9083 = vpack.c.b16 %v8779, %v8778
    %v9084 = vpack.c.b16 %v8781, %v8780
    %v9085 = vpack.c.b16 %v8783, %v8782
    %v9086 = vpack.c.b16 %v8785, %v8784
    %v9087 = vpack.c.b16 %v8787, %v8786
    %v9088 = vpack.c.b16 %v8789, %v8788
    %v9089 = vpack.c.b16 %v8791, %v8790
    %v9090 = vpack.c.b16 %v8793, %v8792
    %v9091 = vpack.c.b16 %v8795, %v8794
    %v9092 = vpack.c.b16 %v8797, %v8796
    %v9093 = vpack.c.b16 %v8799, %v8798
    %v9094 = vpack.c.b16 %v8801, %v8800
    %v9095 = vpack.c.b16 %v8803, %v8802
    %v9096 = vpack.c.b16 %v8805, %v8804
    %v9097 = vpack.c.b16 %v8807, %v8806
    %v9098 = vpack.c.b16 %v8809, %v8808
    %v9099 = vpack.c.b16 %v8811, %v8810
    %v9100 = vpack.c.b16 %v8813, %v8812
    %v9101 = vpack.c.b16 %v8815, %v8814
    %v9102 = vpack.c.b16 %v8817, %v8816
    %v9103 = vpack.c.b16 %v8819, %v8818
    %v9104 = vpack.c.b16 %v8821, %v8820
    %v9105 = vpack.c.b16 %v8823, %v8822
    %v9106 = vpack.c.b16 %v8825, %v8824
    %v9107 = vpack.c.b16 %v8827, %v8826
    %v9108 = vpack.c.b16 %v8829, %v8828
    %v9109 = vpack.c.b16 %v8831, %v8830
    %v9110 = vpack.c.b16 %v8833, %v8832
    %v9111 = vpack.c.b16 %v8835, %v8834
    %v9112 = vpack.c.b16 %v8837, %v8836
    %v9113 = vpack.c.b16 %v8839, %v8838
    %v9114 = vpack.c.b16 %v8841, %v8840
    %v9115 = vpack.c.b16 %v8843, %v8842
    %v9116 = vpack.c.b16 %v8845, %v8844
    %v9117 = vpack.c.b16 %v8847, %v8846
    %v9118 = vpack.c.b16 %v8849, %v8848
    %v9119 = vpack.c.b16 %v8851, %v8850
    %v9120 = vpack.c.b16 %v8853, %v8852
    %v9121 = vpack.c.b16 %v8855, %v8854
    %v9122 = vpack.c.b16 %v8857, %v8856
    %v9123 = vpack.c.b16 %v8859, %v8858
    %v9124 = vpack.c.b16 %v8861, %v8860
    %v9125 = vpack.c.b16 %v8863, %v8862
    %v9126 = vpack.c.b16 %v8865, %v8864
    %v9127 = vpack.c.b16 %v8867, %v8866
    %v9128 = vpack.c.b16 %v8869, %v8868
    %v9129 = vpack.c.b16 %v8871, %v8870
    %v9130 = vpack.c.b16 %v8873, %v8872
    %v9131 = vpack.c.b16 %v8875, %v8874
    %9388 = vmatprep.subr.bf16.mxu0 0
    %9389 = vmatpush1.bf16.msra.mxu0 %v8883
    %9390 = vmatprep.subr.bf16.mxu0 0
    %9391 = vmatpush1.bf16.msra.mxu0 %v8882
    %9392 = vmatprep.subr.bf16.mxu0 0
    %9393 = vmatpush1.bf16.msra.mxu0 %v8881
    %9394 = vmatprep.subr.bf16.mxu0 0
    %9395 = vmatpush1.bf16.msra.mxu0 %v8880
    %9396 = vmatprep.subr.bf16.mxu0 0
    %9397 = vmatpush1.bf16.msra.mxu0 %v8879
    %9398 = vmatprep.subr.bf16.mxu0 0
    %9399 = vmatpush1.bf16.msra.mxu0 %v8878
    %9400 = vmatprep.subr.bf16.mxu0 0
    %9401 = vmatpush1.bf16.msra.mxu0 %v8877
    %9402 = vmatprep.subr.bf16.mxu0 0
    %9403 = vmatpush1.bf16.msra.mxu0 %v8876
    %9404 = vmatprep.subr.bf16.mxu0 0
    %9405 = vmatpush2.bf16.msra.mxu0 %v8891
    %9406 = vmatprep.subr.bf16.mxu0 0
    %9407 = vmatpush2.bf16.msra.mxu0 %v8890
    %9408 = vmatprep.subr.bf16.mxu0 0
    %9409 = vmatpush2.bf16.msra.mxu0 %v8889
    %9410 = vmatprep.subr.bf16.mxu0 0
    %9411 = vmatpush2.bf16.msra.mxu0 %v8888
    %9412 = vmatprep.subr.bf16.mxu0 0
    %9413 = vmatpush2.bf16.msra.mxu0 %v8887
    %9414 = vmatprep.subr.bf16.mxu0 0
    %9415 = vmatpush2.bf16.msra.mxu0 %v8886
    %9416 = vmatprep.subr.bf16.mxu0 0
    %9417 = vmatpush2.bf16.msra.mxu0 %v8885
    %9418 = vmatprep.subr.bf16.mxu0 0
    %9419 = vmatpush2.bf16.msra.mxu0 %v8884
    %9420 = vmatprep.mubr.bf16.mxu0 %v7302
    %9421 = vmatmul.mubr.bf16.gmra.mxu0 %v7301
    %v9422 = vpop.f32.mrf.mxu0
    %v9423 = vadd.f32 %v7850, %v9422
    %v9424 = vpop.f32.mrf.mxu0
    %v9425 = vpop.f32.mrf.mxu0
    %v9426 = vpop.f32.mrf.mxu0
    %9427 = vdwg.mxu0
    %9428 = vmatprep.subr.bf16.mxu0 0
    %9429 = vmatpush1.bf16.msra.mxu0 %v8899
    %9430 = vmatprep.subr.bf16.mxu0 0
    %9431 = vmatpush1.bf16.msra.mxu0 %v8898
    %9432 = vmatprep.subr.bf16.mxu0 0
    %9433 = vmatpush1.bf16.msra.mxu0 %v8897
    %9434 = vmatprep.subr.bf16.mxu0 0
    %9435 = vmatpush1.bf16.msra.mxu0 %v8896
    %9436 = vmatprep.subr.bf16.mxu0 0
    %9437 = vmatpush1.bf16.msra.mxu0 %v8895
    %9438 = vmatprep.subr.bf16.mxu0 0
    %9439 = vmatpush1.bf16.msra.mxu0 %v8894
    %9440 = vmatprep.subr.bf16.mxu0 0
    %9441 = vmatpush1.bf16.msra.mxu0 %v8893
    %9442 = vmatprep.subr.bf16.mxu0 0
    %9443 = vmatpush1.bf16.msra.mxu0 %v8892
    %9444 = vmatprep.subr.bf16.mxu0 0
    %9445 = vmatpush2.bf16.msra.mxu0 %v8907
    %9446 = vmatprep.subr.bf16.mxu0 0
    %9447 = vmatpush2.bf16.msra.mxu0 %v8906
    %9448 = vmatprep.subr.bf16.mxu0 0
    %9449 = vmatpush2.bf16.msra.mxu0 %v8905
    %9450 = vmatprep.subr.bf16.mxu0 0
    %9451 = vmatpush2.bf16.msra.mxu0 %v8904
    %9452 = vmatprep.subr.bf16.mxu0 0
    %9453 = vmatpush2.bf16.msra.mxu0 %v8903
    %9454 = vmatprep.subr.bf16.mxu0 0
    %9455 = vmatpush2.bf16.msra.mxu0 %v8902
    %9456 = vmatprep.subr.bf16.mxu0 0
    %9457 = vmatpush2.bf16.msra.mxu0 %v8901
    %9458 = vmatprep.subr.bf16.mxu0 0
    %9459 = vmatpush2.bf16.msra.mxu0 %v8900
    %9460 = vmatprep.mubr.bf16.mxu0 %v7304
    %9461 = vmatmul.mubr.bf16.gmra.mxu0 %v7303
    %v9462 = vpop.f32.mrf.mxu0
    %v9463 = vadd.f32 %v9423, %v9462
    %v9464 = vpop.f32.mrf.mxu0
    %v9465 = vpop.f32.mrf.mxu0
    %v9466 = vpop.f32.mrf.mxu0
    %9467 = vdwg.mxu0
    %9468 = vmatprep.subr.bf16.mxu0 0
    %9469 = vmatpush1.bf16.msra.mxu0 %v8915
    %9470 = vmatprep.subr.bf16.mxu0 0
    %9471 = vmatpush1.bf16.msra.mxu0 %v8914
    %9472 = vmatprep.subr.bf16.mxu0 0
    %9473 = vmatpush1.bf16.msra.mxu0 %v8913
    %9474 = vmatprep.subr.bf16.mxu0 0
    %9475 = vmatpush1.bf16.msra.mxu0 %v8912
    %9476 = vmatprep.subr.bf16.mxu0 0
    %9477 = vmatpush1.bf16.msra.mxu0 %v8911
    %9478 = vmatprep.subr.bf16.mxu0 0
    %9479 = vmatpush1.bf16.msra.mxu0 %v8910
    %9480 = vmatprep.subr.bf16.mxu0 0
    %9481 = vmatpush1.bf16.msra.mxu0 %v8909
    %9482 = vmatprep.subr.bf16.mxu0 0
    %9483 = vmatpush1.bf16.msra.mxu0 %v8908
    %9484 = vmatprep.subr.bf16.mxu0 0
    %9485 = vmatpush2.bf16.msra.mxu0 %v8923
    %9486 = vmatprep.subr.bf16.mxu0 0
    %9487 = vmatpush2.bf16.msra.mxu0 %v8922
    %9488 = vmatprep.subr.bf16.mxu0 0
    %9489 = vmatpush2.bf16.msra.mxu0 %v8921
    %9490 = vmatprep.subr.bf16.mxu0 0
    %9491 = vmatpush2.bf16.msra.mxu0 %v8920
    %9492 = vmatprep.subr.bf16.mxu0 0
    %9493 = vmatpush2.bf16.msra.mxu0 %v8919
    %9494 = vmatprep.subr.bf16.mxu0 0
    %9495 = vmatpush2.bf16.msra.mxu0 %v8918
    %9496 = vmatprep.subr.bf16.mxu0 0
    %9497 = vmatpush2.bf16.msra.mxu0 %v8917
    %9498 = vmatprep.subr.bf16.mxu0 0
    %9499 = vmatpush2.bf16.msra.mxu0 %v8916
    %9500 = vmatprep.mubr.bf16.mxu0 %v7306
    %9501 = vmatmul.mubr.bf16.gmra.mxu0 %v7305
    %v9502 = vpop.f32.mrf.mxu0
    %v9503 = vadd.f32 %v9463, %v9502
    %v9504 = vpop.f32.mrf.mxu0
    %v9505 = vpop.f32.mrf.mxu0
    %v9506 = vpop.f32.mrf.mxu0
    %9507 = vdwg.mxu0
    %9508 = vmatprep.subr.bf16.mxu0 0
    %9509 = vmatpush1.bf16.msra.mxu0 %v8931
    %9510 = vmatprep.subr.bf16.mxu0 0
    %9511 = vmatpush1.bf16.msra.mxu0 %v8930
    %9512 = vmatprep.subr.bf16.mxu0 0
    %9513 = vmatpush1.bf16.msra.mxu0 %v8929
    %9514 = vmatprep.subr.bf16.mxu0 0
    %9515 = vmatpush1.bf16.msra.mxu0 %v8928
    %9516 = vmatprep.subr.bf16.mxu0 0
    %9517 = vmatpush1.bf16.msra.mxu0 %v8927
    %9518 = vmatprep.subr.bf16.mxu0 0
    %9519 = vmatpush1.bf16.msra.mxu0 %v8926
    %9520 = vmatprep.subr.bf16.mxu0 0
    %9521 = vmatpush1.bf16.msra.mxu0 %v8925
    %9522 = vmatprep.subr.bf16.mxu0 0
    %9523 = vmatpush1.bf16.msra.mxu0 %v8924
    %9524 = vmatprep.subr.bf16.mxu0 0
    %9525 = vmatpush2.bf16.msra.mxu0 %v8939
    %9526 = vmatprep.subr.bf16.mxu0 0
    %9527 = vmatpush2.bf16.msra.mxu0 %v8938
    %9528 = vmatprep.subr.bf16.mxu0 0
    %9529 = vmatpush2.bf16.msra.mxu0 %v8937
    %9530 = vmatprep.subr.bf16.mxu0 0
    %9531 = vmatpush2.bf16.msra.mxu0 %v8936
    %9532 = vmatprep.subr.bf16.mxu0 0
    %9533 = vmatpush2.bf16.msra.mxu0 %v8935
    %9534 = vmatprep.subr.bf16.mxu0 0
    %9535 = vmatpush2.bf16.msra.mxu0 %v8934
    %9536 = vmatprep.subr.bf16.mxu0 0
    %9537 = vmatpush2.bf16.msra.mxu0 %v8933
    %9538 = vmatprep.subr.bf16.mxu0 0
    %9539 = vmatpush2.bf16.msra.mxu0 %v8932
    %9540 = vmatprep.mubr.bf16.mxu0 %v7308
    %9541 = vmatmul.mubr.bf16.gmra.mxu0 %v7307
    %v9542 = vpop.f32.mrf.mxu0
    %v9543 = vadd.f32 %v9503, %v9542
    %v9544 = vpop.f32.mrf.mxu0
    %v9545 = vpop.f32.mrf.mxu0
    %v9546 = vpop.f32.mrf.mxu0
    %9547 = vdwg.mxu0
    %9548 = vmatprep.subr.bf16.mxu0 0
    %9549 = vmatpush1.bf16.msra.mxu0 %v8947
    %9550 = vmatprep.subr.bf16.mxu0 0
    %9551 = vmatpush1.bf16.msra.mxu0 %v8946
    %9552 = vmatprep.subr.bf16.mxu0 0
    %9553 = vmatpush1.bf16.msra.mxu0 %v8945
    %9554 = vmatprep.subr.bf16.mxu0 0
    %9555 = vmatpush1.bf16.msra.mxu0 %v8944
    %9556 = vmatprep.subr.bf16.mxu0 0
    %9557 = vmatpush1.bf16.msra.mxu0 %v8943
    %9558 = vmatprep.subr.bf16.mxu0 0
    %9559 = vmatpush1.bf16.msra.mxu0 %v8942
    %9560 = vmatprep.subr.bf16.mxu0 0
    %9561 = vmatpush1.bf16.msra.mxu0 %v8941
    %9562 = vmatprep.subr.bf16.mxu0 0
    %9563 = vmatpush1.bf16.msra.mxu0 %v8940
    %9564 = vmatprep.subr.bf16.mxu0 0
    %9565 = vmatpush2.bf16.msra.mxu0 %v8955
    %9566 = vmatprep.subr.bf16.mxu0 0
    %9567 = vmatpush2.bf16.msra.mxu0 %v8954
    %9568 = vmatprep.subr.bf16.mxu0 0
    %9569 = vmatpush2.bf16.msra.mxu0 %v8953
    %9570 = vmatprep.subr.bf16.mxu0 0
    %9571 = vmatpush2.bf16.msra.mxu0 %v8952
    %9572 = vmatprep.subr.bf16.mxu0 0
    %9573 = vmatpush2.bf16.msra.mxu0 %v8951
    %9574 = vmatprep.subr.bf16.mxu0 0
    %9575 = vmatpush2.bf16.msra.mxu0 %v8950
    %9576 = vmatprep.subr.bf16.mxu0 0
    %9577 = vmatpush2.bf16.msra.mxu0 %v8949
    %9578 = vmatprep.subr.bf16.mxu0 0
    %9579 = vmatpush2.bf16.msra.mxu0 %v8948
    %9580 = vmatprep.mubr.bf16.mxu0 %v7310
    %9581 = vmatmul.mubr.bf16.gmra.mxu0 %v7309
    %v9582 = vpop.f32.mrf.mxu0
    %v9583 = vadd.f32 %v9543, %v9582
    %v9584 = vpop.f32.mrf.mxu0
    %v9585 = vpop.f32.mrf.mxu0
    %v9586 = vpop.f32.mrf.mxu0
    %9587 = vdwg.mxu0
    %9588 = vmatprep.subr.bf16.mxu0 0
    %9589 = vmatpush1.bf16.msra.mxu0 %v8963
    %9590 = vmatprep.subr.bf16.mxu0 0
    %9591 = vmatpush1.bf16.msra.mxu0 %v8962
    %9592 = vmatprep.subr.bf16.mxu0 0
    %9593 = vmatpush1.bf16.msra.mxu0 %v8961
    %9594 = vmatprep.subr.bf16.mxu0 0
    %9595 = vmatpush1.bf16.msra.mxu0 %v8960
    %9596 = vmatprep.subr.bf16.mxu0 0
    %9597 = vmatpush1.bf16.msra.mxu0 %v8959
    %9598 = vmatprep.subr.bf16.mxu0 0
    %9599 = vmatpush1.bf16.msra.mxu0 %v8958
    %9600 = vmatprep.subr.bf16.mxu0 0
    %9601 = vmatpush1.bf16.msra.mxu0 %v8957
    %9602 = vmatprep.subr.bf16.mxu0 0
    %9603 = vmatpush1.bf16.msra.mxu0 %v8956
    %9604 = vmatprep.subr.bf16.mxu0 0
    %9605 = vmatpush2.bf16.msra.mxu0 %v8971
    %9606 = vmatprep.subr.bf16.mxu0 0
    %9607 = vmatpush2.bf16.msra.mxu0 %v8970
    %9608 = vmatprep.subr.bf16.mxu0 0
    %9609 = vmatpush2.bf16.msra.mxu0 %v8969
    %9610 = vmatprep.subr.bf16.mxu0 0
    %9611 = vmatpush2.bf16.msra.mxu0 %v8968
    %9612 = vmatprep.subr.bf16.mxu0 0
    %9613 = vmatpush2.bf16.msra.mxu0 %v8967
    %9614 = vmatprep.subr.bf16.mxu0 0
    %9615 = vmatpush2.bf16.msra.mxu0 %v8966
    %9616 = vmatprep.subr.bf16.mxu0 0
    %9617 = vmatpush2.bf16.msra.mxu0 %v8965
    %9618 = vmatprep.subr.bf16.mxu0 0
    %9619 = vmatpush2.bf16.msra.mxu0 %v8964
    %9620 = vmatprep.mubr.bf16.mxu0 %v7312
    %9621 = vmatmul.mubr.bf16.gmra.mxu0 %v7311
    %v9622 = vpop.f32.mrf.mxu0
    %v9623 = vadd.f32 %v9583, %v9622
    %v9624 = vpop.f32.mrf.mxu0
    %v9625 = vpop.f32.mrf.mxu0
    %v9626 = vpop.f32.mrf.mxu0
    %9627 = vdwg.mxu0
    %9628 = vmatprep.subr.bf16.mxu0 0
    %9629 = vmatpush1.bf16.msra.mxu0 %v8979
    %9630 = vmatprep.subr.bf16.mxu0 0
    %9631 = vmatpush1.bf16.msra.mxu0 %v8978
    %9632 = vmatprep.subr.bf16.mxu0 0
    %9633 = vmatpush1.bf16.msra.mxu0 %v8977
    %9634 = vmatprep.subr.bf16.mxu0 0
    %9635 = vmatpush1.bf16.msra.mxu0 %v8976
    %9636 = vmatprep.subr.bf16.mxu0 0
    %9637 = vmatpush1.bf16.msra.mxu0 %v8975
    %9638 = vmatprep.subr.bf16.mxu0 0
    %9639 = vmatpush1.bf16.msra.mxu0 %v8974
    %9640 = vmatprep.subr.bf16.mxu0 0
    %9641 = vmatpush1.bf16.msra.mxu0 %v8973
    %9642 = vmatprep.subr.bf16.mxu0 0
    %9643 = vmatpush1.bf16.msra.mxu0 %v8972
    %9644 = vmatprep.subr.bf16.mxu0 0
    %9645 = vmatpush2.bf16.msra.mxu0 %v8987
    %9646 = vmatprep.subr.bf16.mxu0 0
    %9647 = vmatpush2.bf16.msra.mxu0 %v8986
    %9648 = vmatprep.subr.bf16.mxu0 0
    %9649 = vmatpush2.bf16.msra.mxu0 %v8985
    %9650 = vmatprep.subr.bf16.mxu0 0
    %9651 = vmatpush2.bf16.msra.mxu0 %v8984
    %9652 = vmatprep.subr.bf16.mxu0 0
    %9653 = vmatpush2.bf16.msra.mxu0 %v8983
    %9654 = vmatprep.subr.bf16.mxu0 0
    %9655 = vmatpush2.bf16.msra.mxu0 %v8982
    %9656 = vmatprep.subr.bf16.mxu0 0
    %9657 = vmatpush2.bf16.msra.mxu0 %v8981
    %9658 = vmatprep.subr.bf16.mxu0 0
    %9659 = vmatpush2.bf16.msra.mxu0 %v8980
    %9660 = vmatprep.mubr.bf16.mxu0 %v7314
    %9661 = vmatmul.mubr.bf16.gmra.mxu0 %v7313
    %v9662 = vpop.f32.mrf.mxu0
    %v9663 = vadd.f32 %v9623, %v9662
    %v9664 = vpop.f32.mrf.mxu0
    %v9665 = vpop.f32.mrf.mxu0
    %v9666 = vpop.f32.mrf.mxu0
    %9667 = vdwg.mxu0
    %9668 = vmatprep.subr.bf16.mxu0 0
    %9669 = vmatpush1.bf16.msra.mxu0 %v8995
    %9670 = vmatprep.subr.bf16.mxu0 0
    %9671 = vmatpush1.bf16.msra.mxu0 %v8994
    %9672 = vmatprep.subr.bf16.mxu0 0
    %9673 = vmatpush1.bf16.msra.mxu0 %v8993
    %9674 = vmatprep.subr.bf16.mxu0 0
    %9675 = vmatpush1.bf16.msra.mxu0 %v8992
    %9676 = vmatprep.subr.bf16.mxu0 0
    %9677 = vmatpush1.bf16.msra.mxu0 %v8991
    %9678 = vmatprep.subr.bf16.mxu0 0
    %9679 = vmatpush1.bf16.msra.mxu0 %v8990
    %9680 = vmatprep.subr.bf16.mxu0 0
    %9681 = vmatpush1.bf16.msra.mxu0 %v8989
    %9682 = vmatprep.subr.bf16.mxu0 0
    %9683 = vmatpush1.bf16.msra.mxu0 %v8988
    %9684 = vmatprep.subr.bf16.mxu0 0
    %9685 = vmatpush2.bf16.msra.mxu0 %v9003
    %9686 = vmatprep.subr.bf16.mxu0 0
    %9687 = vmatpush2.bf16.msra.mxu0 %v9002
    %9688 = vmatprep.subr.bf16.mxu0 0
    %9689 = vmatpush2.bf16.msra.mxu0 %v9001
    %9690 = vmatprep.subr.bf16.mxu0 0
    %9691 = vmatpush2.bf16.msra.mxu0 %v9000
    %9692 = vmatprep.subr.bf16.mxu0 0
    %9693 = vmatpush2.bf16.msra.mxu0 %v8999
    %9694 = vmatprep.subr.bf16.mxu0 0
    %9695 = vmatpush2.bf16.msra.mxu0 %v8998
    %9696 = vmatprep.subr.bf16.mxu0 0
    %9697 = vmatpush2.bf16.msra.mxu0 %v8997
    %9698 = vmatprep.subr.bf16.mxu0 0
    %9699 = vmatpush2.bf16.msra.mxu0 %v8996
    %9700 = vmatprep.mubr.bf16.mxu0 %v7316
    %9701 = vmatmul.mubr.bf16.gmra.mxu0 %v7315
    %v9702 = vpop.f32.mrf.mxu0
    %v9703 = vadd.f32 %v9663, %v9702
    %v9704 = vpop.f32.mrf.mxu0
    %v9705 = vpop.f32.mrf.mxu0
    %v9706 = vpop.f32.mrf.mxu0
    %9707 = vdwg.mxu0
    %9708 = vmatprep.subr.bf16.mxu0 0
    %9709 = vmatpush1.bf16.msra.mxu0 %v9011
    %9710 = vmatprep.subr.bf16.mxu0 0
    %9711 = vmatpush1.bf16.msra.mxu0 %v9010
    %9712 = vmatprep.subr.bf16.mxu0 0
    %9713 = vmatpush1.bf16.msra.mxu0 %v9009
    %9714 = vmatprep.subr.bf16.mxu0 0
    %9715 = vmatpush1.bf16.msra.mxu0 %v9008
    %9716 = vmatprep.subr.bf16.mxu0 0
    %9717 = vmatpush1.bf16.msra.mxu0 %v9007
    %9718 = vmatprep.subr.bf16.mxu0 0
    %9719 = vmatpush1.bf16.msra.mxu0 %v9006
    %9720 = vmatprep.subr.bf16.mxu0 0
    %9721 = vmatpush1.bf16.msra.mxu0 %v9005
    %9722 = vmatprep.subr.bf16.mxu0 0
    %9723 = vmatpush1.bf16.msra.mxu0 %v9004
    %9724 = vmatprep.subr.bf16.mxu0 0
    %9725 = vmatpush2.bf16.msra.mxu0 %v9019
    %9726 = vmatprep.subr.bf16.mxu0 0
    %9727 = vmatpush2.bf16.msra.mxu0 %v9018
    %9728 = vmatprep.subr.bf16.mxu0 0
    %9729 = vmatpush2.bf16.msra.mxu0 %v9017
    %9730 = vmatprep.subr.bf16.mxu0 0
    %9731 = vmatpush2.bf16.msra.mxu0 %v9016
    %9732 = vmatprep.subr.bf16.mxu0 0
    %9733 = vmatpush2.bf16.msra.mxu0 %v9015
    %9734 = vmatprep.subr.bf16.mxu0 0
    %9735 = vmatpush2.bf16.msra.mxu0 %v9014
    %9736 = vmatprep.subr.bf16.mxu0 0
    %9737 = vmatpush2.bf16.msra.mxu0 %v9013
    %9738 = vmatprep.subr.bf16.mxu0 0
    %9739 = vmatpush2.bf16.msra.mxu0 %v9012
    %9740 = vmatprep.mubr.bf16.mxu0 %v7318
    %9741 = vmatmul.mubr.bf16.gmra.mxu0 %v7317
    %v9742 = vpop.f32.mrf.mxu0
    %v9743 = vadd.f32 %v9703, %v9742
    %v9744 = vpop.f32.mrf.mxu0
    %v9745 = vpop.f32.mrf.mxu0
    %v9746 = vpop.f32.mrf.mxu0
    %9747 = vdwg.mxu0
    %9748 = vmatprep.subr.bf16.mxu0 0
    %9749 = vmatpush1.bf16.msra.mxu0 %v9027
    %9750 = vmatprep.subr.bf16.mxu0 0
    %9751 = vmatpush1.bf16.msra.mxu0 %v9026
    %9752 = vmatprep.subr.bf16.mxu0 0
    %9753 = vmatpush1.bf16.msra.mxu0 %v9025
    %9754 = vmatprep.subr.bf16.mxu0 0
    %9755 = vmatpush1.bf16.msra.mxu0 %v9024
    %9756 = vmatprep.subr.bf16.mxu0 0
    %9757 = vmatpush1.bf16.msra.mxu0 %v9023
    %9758 = vmatprep.subr.bf16.mxu0 0
    %9759 = vmatpush1.bf16.msra.mxu0 %v9022
    %9760 = vmatprep.subr.bf16.mxu0 0
    %9761 = vmatpush1.bf16.msra.mxu0 %v9021
    %9762 = vmatprep.subr.bf16.mxu0 0
    %9763 = vmatpush1.bf16.msra.mxu0 %v9020
    %9764 = vmatprep.subr.bf16.mxu0 0
    %9765 = vmatpush2.bf16.msra.mxu0 %v9035
    %9766 = vmatprep.subr.bf16.mxu0 0
    %9767 = vmatpush2.bf16.msra.mxu0 %v9034
    %9768 = vmatprep.subr.bf16.mxu0 0
    %9769 = vmatpush2.bf16.msra.mxu0 %v9033
    %9770 = vmatprep.subr.bf16.mxu0 0
    %9771 = vmatpush2.bf16.msra.mxu0 %v9032
    %9772 = vmatprep.subr.bf16.mxu0 0
    %9773 = vmatpush2.bf16.msra.mxu0 %v9031
    %9774 = vmatprep.subr.bf16.mxu0 0
    %9775 = vmatpush2.bf16.msra.mxu0 %v9030
    %9776 = vmatprep.subr.bf16.mxu0 0
    %9777 = vmatpush2.bf16.msra.mxu0 %v9029
    %9778 = vmatprep.subr.bf16.mxu0 0
    %9779 = vmatpush2.bf16.msra.mxu0 %v9028
    %9780 = vmatprep.mubr.bf16.mxu0 %v7320
    %9781 = vmatmul.mubr.bf16.gmra.mxu0 %v7319
    %v9782 = vpop.f32.mrf.mxu0
    %v9783 = vadd.f32 %v9743, %v9782
    %v9784 = vpop.f32.mrf.mxu0
    %v9785 = vpop.f32.mrf.mxu0
    %v9786 = vpop.f32.mrf.mxu0
    %9787 = vdwg.mxu0
    %9788 = vmatprep.subr.bf16.mxu0 0
    %9789 = vmatpush1.bf16.msra.mxu0 %v9043
    %9790 = vmatprep.subr.bf16.mxu0 0
    %9791 = vmatpush1.bf16.msra.mxu0 %v9042
    %9792 = vmatprep.subr.bf16.mxu0 0
    %9793 = vmatpush1.bf16.msra.mxu0 %v9041
    %9794 = vmatprep.subr.bf16.mxu0 0
    %9795 = vmatpush1.bf16.msra.mxu0 %v9040
    %9796 = vmatprep.subr.bf16.mxu0 0
    %9797 = vmatpush1.bf16.msra.mxu0 %v9039
    %9798 = vmatprep.subr.bf16.mxu0 0
    %9799 = vmatpush1.bf16.msra.mxu0 %v9038
    %9800 = vmatprep.subr.bf16.mxu0 0
    %9801 = vmatpush1.bf16.msra.mxu0 %v9037
    %9802 = vmatprep.subr.bf16.mxu0 0
    %9803 = vmatpush1.bf16.msra.mxu0 %v9036
    %9804 = vmatprep.subr.bf16.mxu0 0
    %9805 = vmatpush2.bf16.msra.mxu0 %v9051
    %9806 = vmatprep.subr.bf16.mxu0 0
    %9807 = vmatpush2.bf16.msra.mxu0 %v9050
    %9808 = vmatprep.subr.bf16.mxu0 0
    %9809 = vmatpush2.bf16.msra.mxu0 %v9049
    %9810 = vmatprep.subr.bf16.mxu0 0
    %9811 = vmatpush2.bf16.msra.mxu0 %v9048
    %9812 = vmatprep.subr.bf16.mxu0 0
    %9813 = vmatpush2.bf16.msra.mxu0 %v9047
    %9814 = vmatprep.subr.bf16.mxu0 0
    %9815 = vmatpush2.bf16.msra.mxu0 %v9046
    %9816 = vmatprep.subr.bf16.mxu0 0
    %9817 = vmatpush2.bf16.msra.mxu0 %v9045
    %9818 = vmatprep.subr.bf16.mxu0 0
    %9819 = vmatpush2.bf16.msra.mxu0 %v9044
    %9820 = vmatprep.mubr.bf16.mxu0 %v7322
    %9821 = vmatmul.mubr.bf16.gmra.mxu0 %v7321
    %v9822 = vpop.f32.mrf.mxu0
    %v9823 = vadd.f32 %v9783, %v9822
    %v9824 = vpop.f32.mrf.mxu0
    %v9825 = vpop.f32.mrf.mxu0
    %v9826 = vpop.f32.mrf.mxu0
    %9827 = vdwg.mxu0
    %9828 = vmatprep.subr.bf16.mxu0 0
    %9829 = vmatpush1.bf16.msra.mxu0 %v9059
    %9830 = vmatprep.subr.bf16.mxu0 0
    %9831 = vmatpush1.bf16.msra.mxu0 %v9058
    %9832 = vmatprep.subr.bf16.mxu0 0
    %9833 = vmatpush1.bf16.msra.mxu0 %v9057
    %9834 = vmatprep.subr.bf16.mxu0 0
    %9835 = vmatpush1.bf16.msra.mxu0 %v9056
    %9836 = vmatprep.subr.bf16.mxu0 0
    %9837 = vmatpush1.bf16.msra.mxu0 %v9055
    %9838 = vmatprep.subr.bf16.mxu0 0
    %9839 = vmatpush1.bf16.msra.mxu0 %v9054
    %9840 = vmatprep.subr.bf16.mxu0 0
    %9841 = vmatpush1.bf16.msra.mxu0 %v9053
    %9842 = vmatprep.subr.bf16.mxu0 0
    %9843 = vmatpush1.bf16.msra.mxu0 %v9052
    %9844 = vmatprep.subr.bf16.mxu0 0
    %9845 = vmatpush2.bf16.msra.mxu0 %v9067
    %9846 = vmatprep.subr.bf16.mxu0 0
    %9847 = vmatpush2.bf16.msra.mxu0 %v9066
    %9848 = vmatprep.subr.bf16.mxu0 0
    %9849 = vmatpush2.bf16.msra.mxu0 %v9065
    %9850 = vmatprep.subr.bf16.mxu0 0
    %9851 = vmatpush2.bf16.msra.mxu0 %v9064
    %9852 = vmatprep.subr.bf16.mxu0 0
    %9853 = vmatpush2.bf16.msra.mxu0 %v9063
    %9854 = vmatprep.subr.bf16.mxu0 0
    %9855 = vmatpush2.bf16.msra.mxu0 %v9062
    %9856 = vmatprep.subr.bf16.mxu0 0
    %9857 = vmatpush2.bf16.msra.mxu0 %v9061
    %9858 = vmatprep.subr.bf16.mxu0 0
    %9859 = vmatpush2.bf16.msra.mxu0 %v9060
    %9860 = vmatprep.mubr.bf16.mxu0 %v7324
    %9861 = vmatmul.mubr.bf16.gmra.mxu0 %v7323
    %v9862 = vpop.f32.mrf.mxu0
    %v9863 = vadd.f32 %v9823, %v9862
    %v9864 = vpop.f32.mrf.mxu0
    %v9865 = vpop.f32.mrf.mxu0
    %v9866 = vpop.f32.mrf.mxu0
    %9867 = vdwg.mxu0
    %9868 = vmatprep.subr.bf16.mxu0 0
    %9869 = vmatpush1.bf16.msra.mxu0 %v9075
    %9870 = vmatprep.subr.bf16.mxu0 0
    %9871 = vmatpush1.bf16.msra.mxu0 %v9074
    %9872 = vmatprep.subr.bf16.mxu0 0
    %9873 = vmatpush1.bf16.msra.mxu0 %v9073
    %9874 = vmatprep.subr.bf16.mxu0 0
    %9875 = vmatpush1.bf16.msra.mxu0 %v9072
    %9876 = vmatprep.subr.bf16.mxu0 0
    %9877 = vmatpush1.bf16.msra.mxu0 %v9071
    %9878 = vmatprep.subr.bf16.mxu0 0
    %9879 = vmatpush1.bf16.msra.mxu0 %v9070
    %9880 = vmatprep.subr.bf16.mxu0 0
    %9881 = vmatpush1.bf16.msra.mxu0 %v9069
    %9882 = vmatprep.subr.bf16.mxu0 0
    %9883 = vmatpush1.bf16.msra.mxu0 %v9068
    %9884 = vmatprep.subr.bf16.mxu0 0
    %9885 = vmatpush2.bf16.msra.mxu0 %v9083
    %9886 = vmatprep.subr.bf16.mxu0 0
    %9887 = vmatpush2.bf16.msra.mxu0 %v9082
    %9888 = vmatprep.subr.bf16.mxu0 0
    %9889 = vmatpush2.bf16.msra.mxu0 %v9081
    %9890 = vmatprep.subr.bf16.mxu0 0
    %9891 = vmatpush2.bf16.msra.mxu0 %v9080
    %9892 = vmatprep.subr.bf16.mxu0 0
    %9893 = vmatpush2.bf16.msra.mxu0 %v9079
    %9894 = vmatprep.subr.bf16.mxu0 0
    %9895 = vmatpush2.bf16.msra.mxu0 %v9078
    %9896 = vmatprep.subr.bf16.mxu0 0
    %9897 = vmatpush2.bf16.msra.mxu0 %v9077
    %9898 = vmatprep.subr.bf16.mxu0 0
    %9899 = vmatpush2.bf16.msra.mxu0 %v9076
    %9900 = vmatprep.mubr.bf16.mxu0 %v7326
    %9901 = vmatmul.mubr.bf16.gmra.mxu0 %v7325
    %v9902 = vpop.f32.mrf.mxu0
    %v9903 = vadd.f32 %v9863, %v9902
    %v9904 = vpop.f32.mrf.mxu0
    %v9905 = vpop.f32.mrf.mxu0
    %v9906 = vpop.f32.mrf.mxu0
    %9907 = vdwg.mxu0
    %9908 = vmatprep.subr.bf16.mxu0 0
    %9909 = vmatpush1.bf16.msra.mxu0 %v9091
    %9910 = vmatprep.subr.bf16.mxu0 0
    %9911 = vmatpush1.bf16.msra.mxu0 %v9090
    %9912 = vmatprep.subr.bf16.mxu0 0
    %9913 = vmatpush1.bf16.msra.mxu0 %v9089
    %9914 = vmatprep.subr.bf16.mxu0 0
    %9915 = vmatpush1.bf16.msra.mxu0 %v9088
    %9916 = vmatprep.subr.bf16.mxu0 0
    %9917 = vmatpush1.bf16.msra.mxu0 %v9087
    %9918 = vmatprep.subr.bf16.mxu0 0
    %9919 = vmatpush1.bf16.msra.mxu0 %v9086
    %9920 = vmatprep.subr.bf16.mxu0 0
    %9921 = vmatpush1.bf16.msra.mxu0 %v9085
    %9922 = vmatprep.subr.bf16.mxu0 0
    %9923 = vmatpush1.bf16.msra.mxu0 %v9084
    %9924 = vmatprep.subr.bf16.mxu0 0
    %9925 = vmatpush2.bf16.msra.mxu0 %v9099
    %9926 = vmatprep.subr.bf16.mxu0 0
    %9927 = vmatpush2.bf16.msra.mxu0 %v9098
    %9928 = vmatprep.subr.bf16.mxu0 0
    %9929 = vmatpush2.bf16.msra.mxu0 %v9097
    %9930 = vmatprep.subr.bf16.mxu0 0
    %9931 = vmatpush2.bf16.msra.mxu0 %v9096
    %9932 = vmatprep.subr.bf16.mxu0 0
    %9933 = vmatpush2.bf16.msra.mxu0 %v9095
    %9934 = vmatprep.subr.bf16.mxu0 0
    %9935 = vmatpush2.bf16.msra.mxu0 %v9094
    %9936 = vmatprep.subr.bf16.mxu0 0
    %9937 = vmatpush2.bf16.msra.mxu0 %v9093
    %9938 = vmatprep.subr.bf16.mxu0 0
    %9939 = vmatpush2.bf16.msra.mxu0 %v9092
    %9940 = vmatprep.mubr.bf16.mxu0 %v7328
    %9941 = vmatmul.mubr.bf16.gmra.mxu0 %v7327
    %v9942 = vpop.f32.mrf.mxu0
    %v9943 = vadd.f32 %v9903, %v9942
    %v9944 = vpop.f32.mrf.mxu0
    %v9945 = vpop.f32.mrf.mxu0
    %v9946 = vpop.f32.mrf.mxu0
    %9947 = vdwg.mxu0
    %9948 = vmatprep.subr.bf16.mxu0 0
    %9949 = vmatpush1.bf16.msra.mxu0 %v9107
    %9950 = vmatprep.subr.bf16.mxu0 0
    %9951 = vmatpush1.bf16.msra.mxu0 %v9106
    %9952 = vmatprep.subr.bf16.mxu0 0
    %9953 = vmatpush1.bf16.msra.mxu0 %v9105
    %9954 = vmatprep.subr.bf16.mxu0 0
    %9955 = vmatpush1.bf16.msra.mxu0 %v9104
    %9956 = vmatprep.subr.bf16.mxu0 0
    %9957 = vmatpush1.bf16.msra.mxu0 %v9103
    %9958 = vmatprep.subr.bf16.mxu0 0
    %9959 = vmatpush1.bf16.msra.mxu0 %v9102
    %9960 = vmatprep.subr.bf16.mxu0 0
    %9961 = vmatpush1.bf16.msra.mxu0 %v9101
    %9962 = vmatprep.subr.bf16.mxu0 0
    %9963 = vmatpush1.bf16.msra.mxu0 %v9100
    %9964 = vmatprep.subr.bf16.mxu0 0
    %9965 = vmatpush2.bf16.msra.mxu0 %v9115
    %9966 = vmatprep.subr.bf16.mxu0 0
    %9967 = vmatpush2.bf16.msra.mxu0 %v9114
    %9968 = vmatprep.subr.bf16.mxu0 0
    %9969 = vmatpush2.bf16.msra.mxu0 %v9113
    %9970 = vmatprep.subr.bf16.mxu0 0
    %9971 = vmatpush2.bf16.msra.mxu0 %v9112
    %9972 = vmatprep.subr.bf16.mxu0 0
    %9973 = vmatpush2.bf16.msra.mxu0 %v9111
    %9974 = vmatprep.subr.bf16.mxu0 0
    %9975 = vmatpush2.bf16.msra.mxu0 %v9110
    %9976 = vmatprep.subr.bf16.mxu0 0
    %9977 = vmatpush2.bf16.msra.mxu0 %v9109
    %9978 = vmatprep.subr.bf16.mxu0 0
    %9979 = vmatpush2.bf16.msra.mxu0 %v9108
    %9980 = vmatprep.mubr.bf16.mxu0 %v7330
    %9981 = vmatmul.mubr.bf16.gmra.mxu0 %v7329
    %v9982 = vpop.f32.mrf.mxu0
    %v9983 = vadd.f32 %v9943, %v9982
    %v9984 = vpop.f32.mrf.mxu0
    %v9985 = vpop.f32.mrf.mxu0
    %v9986 = vpop.f32.mrf.mxu0
    %9987 = vdwg.mxu0
    %9988 = vmatprep.subr.bf16.mxu0 0
    %9989 = vmatpush1.bf16.msra.mxu0 %v9123
    %9990 = vmatprep.subr.bf16.mxu0 0
    %9991 = vmatpush1.bf16.msra.mxu0 %v9122
    %9992 = vmatprep.subr.bf16.mxu0 0
    %9993 = vmatpush1.bf16.msra.mxu0 %v9121
    %9994 = vmatprep.subr.bf16.mxu0 0
    %9995 = vmatpush1.bf16.msra.mxu0 %v9120
    %9996 = vmatprep.subr.bf16.mxu0 0
    %9997 = vmatpush1.bf16.msra.mxu0 %v9119
    %9998 = vmatprep.subr.bf16.mxu0 0
    %9999 = vmatpush1.bf16.msra.mxu0 %v9118
    %10000 = vmatprep.subr.bf16.mxu0 0
    %10001 = vmatpush1.bf16.msra.mxu0 %v9117
    %10002 = vmatprep.subr.bf16.mxu0 0
    %10003 = vmatpush1.bf16.msra.mxu0 %v9116
    %10004 = vmatprep.subr.bf16.mxu0 0
    %10005 = vmatpush2.bf16.msra.mxu0 %v9131
    %10006 = vmatprep.subr.bf16.mxu0 0
    %10007 = vmatpush2.bf16.msra.mxu0 %v9130
    %10008 = vmatprep.subr.bf16.mxu0 0
    %10009 = vmatpush2.bf16.msra.mxu0 %v9129
    %10010 = vmatprep.subr.bf16.mxu0 0
    %10011 = vmatpush2.bf16.msra.mxu0 %v9128
    %10012 = vmatprep.subr.bf16.mxu0 0
    %10013 = vmatpush2.bf16.msra.mxu0 %v9127
    %10014 = vmatprep.subr.bf16.mxu0 0
    %10015 = vmatpush2.bf16.msra.mxu0 %v9126
    %10016 = vmatprep.subr.bf16.mxu0 0
    %10017 = vmatpush2.bf16.msra.mxu0 %v9125
    %10018 = vmatprep.subr.bf16.mxu0 0
    %10019 = vmatpush2.bf16.msra.mxu0 %v9124
    %10020 = vmatprep.mubr.bf16.mxu0 %v7332
    %10021 = vmatmul.mubr.bf16.gmra.mxu0 %v7331
    %v10022 = vpop.f32.mrf.mxu0
    %v10023 = vadd.f32 %v9983, %v10022
    %v10024 = vpop.f32.mrf.mxu0
    %v10025 = vpop.f32.mrf.mxu0
    %v10026 = vpop.f32.mrf.mxu0
    %10027 = vdwg.mxu0
    %vm10028 = vcmask 312320
    %10029 = vst.msk [vmem:[#allocation12] sm:$0x3] %vm10028, %v10023
    // Predicated region
    $region46: #{simple_cnn4_forward.1} parent=1 // pred_check
      _
    $region47: #{simple_cnn4_forward.1} parent=1 // pred_check_branch
      %10031 = sbr.rel (0) target = $region49
    $region48: #{simple_cnn4_forward.1} parent=1 // pred_region
      %s10033 = ssub.s32 32, 32
      %10034 = vsyncadd [#allocation13], %s10033
      %s10036 = sshll.u32 [#allocation12], 4
      %s10037 = int_to_ptr.vmem [resolvable:$true] %s10036
      %10039 = dma.vmem_to_hbm [thread:$0]  %s10037, 32, %s11, [#allocation13]
    $region49: #{simple_cnn4_forward.1} parent=1 // pred_fallthru
      _
    // Predicated region
    $region50: #{simple_cnn4_forward.1} parent=1 // pred_check
      _
    $region51: #{simple_cnn4_forward.1} parent=1 // pred_check_branch
      %10041 = sbr.rel (0) target = $region53
    $region52: #{simple_cnn4_forward.1} parent=1 // pred_region
      %10042 = dma.done [#allocation13], 32
    $region53: #{simple_cnn4_forward.1} parent=1 // pred_fallthru
      _
    %10043 = vsyncpa [#allocation13], 1

</llo_original>
